<compile_context>
chip_gen: v7x
topology: tpu7x:2x2x1
jax: 0.10.0
libtpu: 0.0.40
codegen_flags: <defaults>
</compile_context>

<pallas_src>
import math
import numpy as np
import jax
import jax.numpy as jnp
from jax import lax
from jax.experimental import pallas as pl
from jax.experimental.pallas import tpu as pltpu

# ---------------- problem sizes (small, consistent with the module) ----------
B, T, S = 2, 8, 8      # batch, target len, source len
D = 32                 # model_dim == AdapterConfig.hidden_size
H = 4                  # attention heads
DH = D // H            # dim per head
FF = 64                # d_ff of the position-wise feed forward
A = 16                 # AdapterConfig.adapter_size
EPS = 1e-6             # PreSumm LayerNorm eps
NEG = -1e18            # masked_fill value used by onmt MultiHeadedAttention


# ---------------- in-kernel math helpers (traced inside the Pallas body) -----
def _linear(x, w, b):
    # F.linear: x @ w.T + b   (w: [out, in], b: [1, out])
    y = lax.dot_general(x, w, (((1,), (1,)), ((), ())),
                        preferred_element_type=jnp.float32)
    return y + b


def _layer_norm(x, g, b):
    mean = jnp.mean(x, axis=-1, keepdims=True)
    var = jnp.mean((x - mean) ** 2, axis=-1, keepdims=True)
    return (x - mean) * lax.rsqrt(var + EPS) * g + b


def _softmax(x):
    m = jnp.max(x, axis=-1, keepdims=True)
    e = jnp.exp(x - m)
    # reciprocal on the EUP slot instead of a VPU divide
    return e * pl.reciprocal(jnp.sum(e, axis=-1, keepdims=True), approx=True)


def _adapter(x, wd, bd, wu, bu):
    # Adapter_func.forward: x + up(relu(down(x)))
    down = jnp.maximum(_linear(x, wd, bd), 0.0)
    return x + _linear(down, wu, bu)


def _head_masks():
    # (1, D) float masks selecting the lane range of each head; built from a
    # 2-D iota so they lower cleanly and are hoisted once per kernel body.
    lane = lax.broadcasted_iota(jnp.int32, (1, D), 1)
    return [((lane >= h * DH) & (lane < (h + 1) * DH)).astype(jnp.float32)
            for h in range(H)]


def _attend(q, k, v, wo, bo, bias, head_masks):
    """Multi-head attention core.

    q: (Tq, D) already projected AND pre-scaled by 1/sqrt(DH)
    k, v: (Tk, D) already projected
    bias: (Tq, Tk) additive mask (0 or NEG), hoisted out of the head loop
    Output projection is a single (Tq, D) @ (D, D) matmul: per-head contexts
    are written into disjoint lane ranges via head_masks (exact, +0.0 fill).
    """
    ctx = None
    for h in range(H):
        sl = slice(h * DH, (h + 1) * DH)
        s = lax.dot_general(q[:, sl], k[:, sl], (((1,), (1,)), ((), ())),
                            preferred_element_type=jnp.float32)   # (Tq, Tk)
        a = _softmax(s + bias)                                     # dropout=id
        part = jnp.dot(a, v * head_masks[h],
                       preferred_element_type=jnp.float32)         # (Tq, D)
        ctx = part if ctx is None else ctx + part
    return _linear(ctx, wo, bo)


# ---------------- the Pallas kernel ------------------------------------------
def _make_kernel(nb):
    scale = 1.0 / math.sqrt(DH)

    def kernel(inputs_ref, mem_ref, dec_mask_ref, src_mask_ref,
               qkv_w_ref, qkv_b_ref, o_w_ref, o_b_ref,
               ln_g_ref, ln_b_ref,
               ff_w1_ref, ff_b1_ref, ff_w2_ref, ff_b2_ref,
               ad_wd_ref, ad_bd_ref, ad_wu_ref, ad_bu_ref,
               out_ref, all_input_ref):
        head_masks = _head_masks()              # hoisted, reused by both MHAs

        for b in range(nb):                     # static unroll over the block
            x = inputs_ref[b]                   # (T, D)
            mem = mem_ref[b]                    # (S, D)
            # additive attention biases, hoisted out of the head loops
            dec_bias = dec_mask_ref[b] * NEG                          # (T, T)
            src_bias = jnp.broadcast_to(src_mask_ref[b] * NEG, (T, S))

            # ----- self-attention block -----
            input_norm = _layer_norm(x, ln_g_ref[0], ln_b_ref[0])
            all_input_ref[b] = input_norm       # all_input (previous_input=None)
            qkv = _linear(input_norm, qkv_w_ref[0], qkv_b_ref[0])     # (T, 3D)
            query = _attend(qkv[:, :D] * scale, qkv[:, D:2 * D], qkv[:, 2 * D:],
                            o_w_ref[0], o_b_ref[0], dec_bias, head_masks)
            query = _adapter(query, ad_wd_ref[0], ad_bd_ref[0],
                             ad_wu_ref[0], ad_bu_ref[0]) + x

            # ----- context (encoder-decoder) attention block -----
            query_norm = _layer_norm(query, ln_g_ref[1], ln_b_ref[1])
            b_ctx = qkv_b_ref[1]                                      # (1, 3D)
            q_ctx = _linear(query_norm, qkv_w_ref[1, :D, :],
                            b_ctx[:, :D]) * scale                     # (T, D)
            kv = _linear(mem, qkv_w_ref[1, D:, :], b_ctx[:, D:])      # (S, 2D)
            mid = _attend(q_ctx, kv[:, :D], kv[:, D:],
                          o_w_ref[1], o_b_ref[1], src_bias, head_masks)
            output = _adapter(mid, ad_wd_ref[1], ad_bd_ref[1],
                              ad_wu_ref[1], ad_bu_ref[1]) + query

            # ----- PositionwiseAdaptedFeedForward -----
            ffn_in = _layer_norm(output, ln_g_ref[2], ln_b_ref[2])
            inter = jax.nn.gelu(_linear(ffn_in, ff_w1_ref[...], ff_b1_ref[...]),
                                approximate=True)   # PreSumm gelu (tanh approx)
            ff_out = _linear(inter, ff_w2_ref[...], ff_b2_ref[...])
            ff_out = _adapter(ff_out, ad_wd_ref[2], ad_bd_ref[2],
                              ad_wu_ref[2], ad_bu_ref[2]) + output

            out_ref[b] = ff_out

    return kernel


# ---------------- wrapper ----------------------------------------------------
def _full_spec(shape):
    nd = len(shape)
    return pl.BlockSpec(shape, lambda b, _nd=nd: (0,) * _nd)


def _tensorcores_per_device():
    """2 for dual-TensorCore devices (v7x / megacore), else 1."""
    try:
        kind = jax.devices()[0].device_kind.lower()
    except Exception:
        return 1
    for tag in ("v7", "v4", "v5p"):
        if tag in kind:
            return 2
    return 1


def transformer_adapted_decoder_layer(inputs, memory_bank, dec_mask, src_mask,
                                      params):
    (attn_w, attn_b, ln_g, ln_b, ff_w1, ff_b1, ff_w2, ff_b2,
     ad_wd, ad_bd, ad_wu, ad_bu) = params

    # Wrapper-side repack: fuse Q/K/V projection weights & biases.
    qkv_w = attn_w[:, :3].reshape(2, 3 * D, D)                        # (2,3D,D)
    qkv_b = jnp.swapaxes(attn_b[:, :3], 1, 2).reshape(2, 1, 3 * D)    # (2,1,3D)
    o_w = attn_w[:, 3]                                                # (2, D,D)
    o_b = attn_b[:, 3]                                                # (2, 1,D)
    kparams = (qkv_w, qkv_b, o_w, o_b, ln_g, ln_b,
               ff_w1, ff_b1, ff_w2, ff_b2, ad_wd, ad_bd, ad_wu, ad_bu)

    # Batch grid: one step per batch element only if >1 TC can run them in
    # parallel; otherwise collapse the batch into a single grid step.
    nb = 1 if (_tensorcores_per_device() >= 2 and B > 1) else B
    grid = (B // nb,)

    act_specs = [
        pl.BlockSpec((nb, T, D), lambda b: (b, 0, 0)),   # inputs
        pl.BlockSpec((nb, S, D), lambda b: (b, 0, 0)),   # memory_bank
        pl.BlockSpec((nb, T, T), lambda b: (b, 0, 0)),   # dec_mask
        pl.BlockSpec((nb, 1, S), lambda b: (b, 0, 0)),   # src_pad_mask
    ]
    w_specs = [_full_spec(p.shape) for p in kparams]
    out_specs = (pl.BlockSpec((nb, T, D), lambda b: (b, 0, 0)),
                 pl.BlockSpec((nb, T, D), lambda b: (b, 0, 0)))

    return pl.pallas_call(
        _make_kernel(nb),
        out_shape=(jax.ShapeDtypeStruct((B, T, D), jnp.float32),
                   jax.ShapeDtypeStruct((B, T, D), jnp.float32)),
        grid_spec=pltpu.PrefetchScalarGridSpec(
            num_scalar_prefetch=0,
            grid=grid,
            in_specs=act_specs + w_specs,
            out_specs=out_specs),
        compiler_params=pltpu.CompilerParams(
            dimension_semantics=("parallel",)),
    )(inputs, memory_bank, dec_mask, src_mask, *kparams)


# ---------------- pure-JAX reference (same math, vectorized) -----------------
def reference(inputs, memory, dec_mask, src_mask, params):
    (attn_w, attn_b, ln_g, ln_b, ff_w1, ff_b1, ff_w2, ff_b2,
     ad_wd, ad_bd, ad_wu, ad_bu) = params

    def ln(x, g, b):
        m = x.mean(-1, keepdims=True)
        v = ((x - m) ** 2).mean(-1, keepdims=True)
        return (x - m) / jnp.sqrt(v + EPS) * g + b

    def lin(x, w, b):
        return x @ w.T + b

    def adapter(x, i):
        d = jnp.maximum(lin(x, ad_wd[i], ad_bd[i]), 0.0)
        return x + lin(d, ad_wu[i], ad_bu[i])

    def mha(q, k, v, i, mask):
        Bq, Tq, _ = q.shape
        Tk = k.shape[1]
        qp = lin(q, attn_w[i, 0], attn_b[i, 0]).reshape(Bq, Tq, H, DH).transpose(0, 2, 1, 3)
        kp = lin(k, attn_w[i, 1], attn_b[i, 1]).reshape(Bq, Tk, H, DH).transpose(0, 2, 1, 3)
        vp = lin(v, attn_w[i, 2], attn_b[i, 2]).reshape(Bq, Tk, H, DH).transpose(0, 2, 1, 3)
        sc = jnp.einsum('bhqd,bhkd->bhqk', qp / math.sqrt(DH), kp)
        sc = jnp.where(mask[:, None] > 0.0, NEG, sc)
        m = sc.max(-1, keepdims=True)
        e = jnp.exp(sc - m)
        at = e / e.sum(-1, keepdims=True)
        ctx = jnp.einsum('bhqk,bhkd->bhqd', at, vp).transpose(0, 2, 1, 3).reshape(Bq, Tq, D)
        return lin(ctx, attn_w[i, 3], attn_b[i, 3])

    x = inputs
    input_norm = ln(x, ln_g[0], ln_b[0])
    all_input = input_norm
    query = mha(input_norm, all_input, all_input, 0, dec_mask)
    query = adapter(query, 0) + x
    query_norm = ln(query, ln_g[1], ln_b[1])
    mid = mha(query_norm, memory, memory, 1, src_mask)
    output = adapter(mid, 1) + query
    ffn_in = ln(output, ln_g[2], ln_b[2])
    inter = jax.nn.gelu(lin(ffn_in, ff_w1, ff_b1), approximate=True)
    ff_out = lin(inter, ff_w2, ff_b2)
    output = adapter(ff_out, 2) + output
    return output, all_input


# ---------------- driver ------------------------------------------------------
if __name__ == "__main__":
    key = jax.random.PRNGKey(0)
    ks = jax.random.split(key, 10)
    std = 0.02  # AdapterConfig.adapter_initializer_range

    attn_w = jax.random.normal(ks[0], (2, 4, D, D), jnp.float32) * std
    attn_b = jax.random.normal(ks[1], (2, 4, 1, D), jnp.float32) * std
    ln_g = jnp.ones((3, 1, D), jnp.float32)     # LayerNorm default init
    ln_b = jnp.zeros((3, 1, D), jnp.float32)
    ff_w1 = jax.random.normal(ks[2], (FF, D), jnp.float32) * std
    ff_b1 = jax.random.normal(ks[3], (1, FF), jnp.float32) * std
    ff_w2 = jax.random.normal(ks[4], (D, FF), jnp.float32) * std
    ff_b2 = jax.random.normal(ks[5], (1, D), jnp.float32) * std
    # Adapter_func.__init__: weights ~ N(0, initializer_range), biases = 0
    ad_wd = jax.random.normal(ks[6], (3, A, D), jnp.float32) * std
    ad_bd = jnp.zeros((3, 1, A), jnp.float32)
    ad_wu = jax.random.normal(ks[7], (3, D, A), jnp.float32) * std
    ad_bu = jnp.zeros((3, 1, D), jnp.float32)

    params = (attn_w, attn_b, ln_g, ln_b, ff_w1, ff_b1, ff_w2, ff_b2,
              ad_wd, ad_bd, ad_wu, ad_bu)

    inputs = jax.random.normal(ks[8], (B, T, D), jnp.float32)
    memory = jax.random.normal(ks[9], (B, S, D), jnp.float32)

    # dec_mask = (tgt_pad_mask + causal subsequent mask) > 0   (glue, outside kernel)
    causal = jnp.triu(jnp.ones((T, T), jnp.float32), k=1)
    tgt_pad_mask = jnp.zeros((B, T, T), jnp.float32)
    dec_mask = ((tgt_pad_mask + causal[None]) > 0).astype(jnp.float32)
    # src_pad_mask: [B, 1, S]; pad the last two source positions of batch 1
    src_mask = jnp.zeros((B, 1, S), jnp.float32).at[1, 0, S - 2:].set(1.0)

    out, all_input = transformer_adapted_decoder_layer(
        inputs, memory, dec_mask, src_mask, params)
    jax.block_until_ready((out, all_input))

    ref_out, ref_all = reference(inputs, memory, dec_mask, src_mask, params)
    # tolerance has headroom for the EUP approx-reciprocal in the softmax
    np.testing.assert_allclose(np.asarray(all_input), np.asarray(ref_all),
                               rtol=2e-4, atol=2e-4)
    np.testing.assert_allclose(np.asarray(out), np.asarray(ref_out),
                               rtol=2e-4, atol=2e-4)
    print("KERNEL_OK")
</pallas_src>

<mosaic_0001>
module attributes {stable_mosaic.version = 11 : i64} {
  func.func @kernel(%arg0: i32, %arg1: memref<2x8x32xf32, #tpu.memory_space<vmem>>, %arg2: memref<2x8x32xf32, #tpu.memory_space<vmem>>, %arg3: memref<2x8x8xf32, #tpu.memory_space<vmem>>, %arg4: memref<2x1x8xf32, #tpu.memory_space<vmem>>, %arg5: memref<2x96x32xf32, #tpu.memory_space<vmem>>, %arg6: memref<2x1x96xf32, #tpu.memory_space<vmem>>, %arg7: memref<2x32x32xf32, #tpu.memory_space<vmem>>, %arg8: memref<2x1x32xf32, #tpu.memory_space<vmem>>, %arg9: memref<3x1x32xf32, #tpu.memory_space<vmem>>, %arg10: memref<3x1x32xf32, #tpu.memory_space<vmem>>, %arg11: memref<64x32xf32, #tpu.memory_space<vmem>>, %arg12: memref<1x64xf32, #tpu.memory_space<vmem>>, %arg13: memref<32x64xf32, #tpu.memory_space<vmem>>, %arg14: memref<1x32xf32, #tpu.memory_space<vmem>>, %arg15: memref<3x16x32xf32, #tpu.memory_space<vmem>>, %arg16: memref<3x1x16xf32, #tpu.memory_space<vmem>>, %arg17: memref<3x32x16xf32, #tpu.memory_space<vmem>>, %arg18: memref<3x1x32xf32, #tpu.memory_space<vmem>>, %arg19: memref<2x8x32xf32, #tpu.memory_space<vmem>>, %arg20: memref<2x8x32xf32, #tpu.memory_space<vmem>>) attributes {dimension_semantics = [#tpu.dimension_semantics<parallel>], iteration_bounds = array<i64: 1>, scalar_prefetch = 0 : i64, scratch_operands = 0 : i64, tpu.core_type = #tpu.core_type<tc>, window_params = [{transform_indices = @transform_0, window_bounds = array<i64: 2, 8, 32>}, {transform_indices = @transform_1, window_bounds = array<i64: 2, 8, 32>}, {transform_indices = @transform_2, window_bounds = array<i64: 2, 8, 8>}, {transform_indices = @transform_3, window_bounds = array<i64: 2, 1, 8>}, {pipeline_mode = #tpu.pipeline_mode<synchronous>, transform_indices = @transform_4, window_bounds = array<i64: 2, 96, 32>}, {pipeline_mode = #tpu.pipeline_mode<synchronous>, transform_indices = @transform_5, window_bounds = array<i64: 2, 1, 96>}, {pipeline_mode = #tpu.pipeline_mode<synchronous>, transform_indices = @transform_6, window_bounds = array<i64: 2, 32, 32>}, {pipeline_mode = #tpu.pipeline_mode<synchronous>, transform_indices = @transform_7, window_bounds = array<i64: 2, 1, 32>}, {pipeline_mode = #tpu.pipeline_mode<synchronous>, transform_indices = @transform_8, window_bounds = array<i64: 3, 1, 32>}, {pipeline_mode = #tpu.pipeline_mode<synchronous>, transform_indices = @transform_9, window_bounds = array<i64: 3, 1, 32>}, {pipeline_mode = #tpu.pipeline_mode<synchronous>, transform_indices = @transform_10, window_bounds = array<i64: 64, 32>}, {pipeline_mode = #tpu.pipeline_mode<synchronous>, transform_indices = @transform_11, window_bounds = array<i64: 1, 64>}, {pipeline_mode = #tpu.pipeline_mode<synchronous>, transform_indices = @transform_12, window_bounds = array<i64: 32, 64>}, {pipeline_mode = #tpu.pipeline_mode<synchronous>, transform_indices = @transform_13, window_bounds = array<i64: 1, 32>}, {pipeline_mode = #tpu.pipeline_mode<synchronous>, transform_indices = @transform_14, window_bounds = array<i64: 3, 16, 32>}, {pipeline_mode = #tpu.pipeline_mode<synchronous>, transform_indices = @transform_15, window_bounds = array<i64: 3, 1, 16>}, {pipeline_mode = #tpu.pipeline_mode<synchronous>, transform_indices = @transform_16, window_bounds = array<i64: 3, 32, 16>}, {pipeline_mode = #tpu.pipeline_mode<synchronous>, transform_indices = @transform_17, window_bounds = array<i64: 3, 1, 32>}, {transform_indices = @transform_18, window_bounds = array<i64: 2, 8, 32>}, {transform_indices = @transform_19, window_bounds = array<i64: 2, 8, 32>}]} {
    %0 = tpu.iota {dimensions = array<i32: 1>} : vector<1x32xi32>
    %c0_i32 = arith.constant 0 : i32
    %1 = vector.broadcast %c0_i32 : i32 to vector<1x32xi32>
    %2 = arith.cmpi sge, %0, %1 : vector<1x32xi32>
    %c8_i32 = arith.constant 8 : i32
    %3 = vector.broadcast %c8_i32 : i32 to vector<1x32xi32>
    %4 = arith.cmpi slt, %0, %3 : vector<1x32xi32>
    %5 = arith.andi %2, %4 : vector<1x32xi1>
    %6 = arith.extui %5 : vector<1x32xi1> to vector<1x32xi32>
    %7 = arith.sitofp %6 : vector<1x32xi32> to vector<1x32xf32>
    %c8_i32_0 = arith.constant 8 : i32
    %8 = vector.broadcast %c8_i32_0 : i32 to vector<1x32xi32>
    %9 = arith.cmpi sge, %0, %8 : vector<1x32xi32>
    %c16_i32 = arith.constant 16 : i32
    %10 = vector.broadcast %c16_i32 : i32 to vector<1x32xi32>
    %11 = arith.cmpi slt, %0, %10 : vector<1x32xi32>
    %12 = arith.andi %9, %11 : vector<1x32xi1>
    %13 = arith.extui %12 : vector<1x32xi1> to vector<1x32xi32>
    %14 = arith.sitofp %13 : vector<1x32xi32> to vector<1x32xf32>
    %c16_i32_1 = arith.constant 16 : i32
    %15 = vector.broadcast %c16_i32_1 : i32 to vector<1x32xi32>
    %16 = arith.cmpi sge, %0, %15 : vector<1x32xi32>
    %c24_i32 = arith.constant 24 : i32
    %17 = vector.broadcast %c24_i32 : i32 to vector<1x32xi32>
    %18 = arith.cmpi slt, %0, %17 : vector<1x32xi32>
    %19 = arith.andi %16, %18 : vector<1x32xi1>
    %20 = arith.extui %19 : vector<1x32xi1> to vector<1x32xi32>
    %21 = arith.sitofp %20 : vector<1x32xi32> to vector<1x32xf32>
    %c24_i32_2 = arith.constant 24 : i32
    %22 = vector.broadcast %c24_i32_2 : i32 to vector<1x32xi32>
    %23 = arith.cmpi sge, %0, %22 : vector<1x32xi32>
    %c32_i32 = arith.constant 32 : i32
    %24 = vector.broadcast %c32_i32 : i32 to vector<1x32xi32>
    %25 = arith.cmpi slt, %0, %24 : vector<1x32xi32>
    %26 = arith.andi %23, %25 : vector<1x32xi1>
    %27 = arith.extui %26 : vector<1x32xi1> to vector<1x32xi32>
    %28 = arith.sitofp %27 : vector<1x32xi32> to vector<1x32xf32>
    %c0 = arith.constant 0 : index
    %c0_3 = arith.constant 0 : index
    %c0_4 = arith.constant 0 : index
    %29 = vector.load %arg1[%c0, %c0_3, %c0_4] : memref<2x8x32xf32, #tpu.memory_space<vmem>>, vector<1x8x32xf32>
    %30 = vector.shape_cast %29 : vector<1x8x32xf32> to vector<8x32xf32>
    %c0_5 = arith.constant 0 : index
    %c0_6 = arith.constant 0 : index
    %c0_7 = arith.constant 0 : index
    %31 = vector.load %arg2[%c0_5, %c0_6, %c0_7] : memref<2x8x32xf32, #tpu.memory_space<vmem>>, vector<1x8x32xf32>
    %32 = vector.shape_cast %31 : vector<1x8x32xf32> to vector<8x32xf32>
    %c0_8 = arith.constant 0 : index
    %c0_9 = arith.constant 0 : index
    %c0_10 = arith.constant 0 : index
    %33 = vector.load %arg3[%c0_8, %c0_9, %c0_10] : memref<2x8x8xf32, #tpu.memory_space<vmem>>, vector<1x8x8xf32>
    %34 = vector.shape_cast %33 : vector<1x8x8xf32> to vector<8x8xf32>
    %cst = arith.constant -9.99999984E+17 : f32
    %35 = vector.broadcast %cst : f32 to vector<8x8xf32>
    %36 = arith.mulf %34, %35 : vector<8x8xf32>
    %c0_11 = arith.constant 0 : index
    %c0_12 = arith.constant 0 : index
    %c0_13 = arith.constant 0 : index
    %37 = vector.load %arg4[%c0_11, %c0_12, %c0_13] : memref<2x1x8xf32, #tpu.memory_space<vmem>>, vector<1x1x8xf32>
    %38 = vector.shape_cast %37 : vector<1x1x8xf32> to vector<1x8xf32>
    %cst_14 = arith.constant -9.99999984E+17 : f32
    %39 = vector.broadcast %cst_14 : f32 to vector<1x8xf32>
    %40 = arith.mulf %38, %39 : vector<1x8xf32>
    %41 = vector.shape_cast %40 : vector<1x8xf32> to vector<1x8xf32>
    %42 = vector.broadcast %41 : vector<1x8xf32> to vector<8x8xf32>
    %c0_15 = arith.constant 0 : index
    %c0_16 = arith.constant 0 : index
    %c0_17 = arith.constant 0 : index
    %43 = vector.load %arg9[%c0_15, %c0_16, %c0_17] : memref<3x1x32xf32, #tpu.memory_space<vmem>>, vector<1x1x32xf32>
    %44 = vector.shape_cast %43 : vector<1x1x32xf32> to vector<1x32xf32>
    %c0_18 = arith.constant 0 : index
    %c0_19 = arith.constant 0 : index
    %c0_20 = arith.constant 0 : index
    %45 = vector.load %arg10[%c0_18, %c0_19, %c0_20] : memref<3x1x32xf32, #tpu.memory_space<vmem>>, vector<1x1x32xf32>
    %46 = vector.shape_cast %45 : vector<1x1x32xf32> to vector<1x32xf32>
    %cst_21 = arith.constant dense<0.000000e+00> : vector<8xf32>
    %47 = vector.multi_reduction <add>, %30, %cst_21 [1] : vector<8x32xf32> to vector<8xf32>
    %48 = vector.shape_cast %47 : vector<8xf32> to vector<8x1xf32>
    %cst_22 = arith.constant 3.200000e+01 : f32
    %49 = vector.broadcast %cst_22 : f32 to vector<8x1xf32>
    %50 = arith.divf %48, %49 : vector<8x1xf32>
    %51 = vector.broadcast %50 : vector<8x1xf32> to vector<8x32xf32>
    %52 = arith.subf %30, %51 : vector<8x32xf32>
    %53 = arith.mulf %52, %52 : vector<8x32xf32>
    %cst_23 = arith.constant dense<0.000000e+00> : vector<8xf32>
    %54 = vector.multi_reduction <add>, %53, %cst_23 [1] : vector<8x32xf32> to vector<8xf32>
    %55 = vector.shape_cast %54 : vector<8xf32> to vector<8x1xf32>
    %cst_24 = arith.constant 3.200000e+01 : f32
    %56 = vector.broadcast %cst_24 : f32 to vector<8x1xf32>
    %57 = arith.divf %55, %56 : vector<8x1xf32>
    %58 = vector.broadcast %50 : vector<8x1xf32> to vector<8x32xf32>
    %59 = arith.subf %30, %58 : vector<8x32xf32>
    %cst_25 = arith.constant 9.99999997E-7 : f32
    %60 = vector.broadcast %cst_25 : f32 to vector<8x1xf32>
    %61 = arith.addf %57, %60 : vector<8x1xf32>
    %62 = math.rsqrt %61 : vector<8x1xf32>
    %63 = vector.broadcast %62 : vector<8x1xf32> to vector<8x32xf32>
    %64 = arith.mulf %59, %63 : vector<8x32xf32>
    %65 = vector.broadcast %44 : vector<1x32xf32> to vector<8x32xf32>
    %66 = arith.mulf %64, %65 : vector<8x32xf32>
    %67 = vector.broadcast %46 : vector<1x32xf32> to vector<8x32xf32>
    %68 = arith.addf %66, %67 : vector<8x32xf32>
    %c0_26 = arith.constant 0 : index
    %c0_27 = arith.constant 0 : index
    %c0_28 = arith.constant 0 : index
    %69 = vector.load %arg20[%c0_26, %c0_27, %c0_28] : memref<2x8x32xf32, #tpu.memory_space<vmem>>, vector<1x8x32xf32>
    %70 = vector.shape_cast %69 : vector<1x8x32xf32> to vector<8x32xf32>
    %71 = vector.shape_cast %68 : vector<8x32xf32> to vector<1x8x32xf32>
    tpu.vector_store %arg20[%c0_26, %c0_27, %c0_28], %71 {strides = array<i32>} : memref<2x8x32xf32, #tpu.memory_space<vmem>>, vector<1x8x32xf32>,
    %c0_29 = arith.constant 0 : index
    %c0_30 = arith.constant 0 : index
    %c0_31 = arith.constant 0 : index
    %72 = vector.load %arg5[%c0_29, %c0_30, %c0_31] : memref<2x96x32xf32, #tpu.memory_space<vmem>>, vector<1x96x32xf32>
    %73 = vector.shape_cast %72 : vector<1x96x32xf32> to vector<96x32xf32>
    %c0_32 = arith.constant 0 : index
    %c0_33 = arith.constant 0 : index
    %c0_34 = arith.constant 0 : index
    %74 = vector.load %arg6[%c0_32, %c0_33, %c0_34] : memref<2x1x96xf32, #tpu.memory_space<vmem>>, vector<1x1x96xf32>
    %75 = vector.shape_cast %74 : vector<1x1x96xf32> to vector<1x96xf32>
    %cst_35 = arith.constant dense<0.000000e+00> : vector<8x96xf32>
    %76 = tpu.matmul %68, %73, %cst_35 {dimension_numbers = #tpu.dot_dimension_numbers<[1], [1], [0], [0], [0, 0, 1, 0], [], []>} : vector<8x32xf32>, vector<96x32xf32>, vector<8x96xf32> -> vector<8x96xf32>
    %77 = vector.broadcast %75 : vector<1x96xf32> to vector<8x96xf32>
    %78 = arith.addf %76, %77 : vector<8x96xf32>
    %79 = vector.extract_strided_slice %78 {offsets = [0, 0], sizes = [8, 32], strides = [1, 1]} : vector<8x96xf32> to vector<8x32xf32>
    %cst_36 = arith.constant 0.353553385 : f32
    %80 = vector.broadcast %cst_36 : f32 to vector<8x32xf32>
    %81 = arith.mulf %79, %80 : vector<8x32xf32>
    %82 = vector.extract_strided_slice %78 {offsets = [0, 32], sizes = [8, 32], strides = [1, 1]} : vector<8x96xf32> to vector<8x32xf32>
    %83 = vector.extract_strided_slice %78 {offsets = [0, 64], sizes = [8, 32], strides = [1, 1]} : vector<8x96xf32> to vector<8x32xf32>
    %c0_37 = arith.constant 0 : index
    %c0_38 = arith.constant 0 : index
    %c0_39 = arith.constant 0 : index
    %84 = vector.load %arg7[%c0_37, %c0_38, %c0_39] : memref<2x32x32xf32, #tpu.memory_space<vmem>>, vector<1x32x32xf32>
    %85 = vector.shape_cast %84 : vector<1x32x32xf32> to vector<32x32xf32>
    %c0_40 = arith.constant 0 : index
    %c0_41 = arith.constant 0 : index
    %c0_42 = arith.constant 0 : index
    %86 = vector.load %arg8[%c0_40, %c0_41, %c0_42] : memref<2x1x32xf32, #tpu.memory_space<vmem>>, vector<1x1x32xf32>
    %87 = vector.shape_cast %86 : vector<1x1x32xf32> to vector<1x32xf32>
    %88 = vector.extract_strided_slice %81 {offsets = [0, 0], sizes = [8, 8], strides = [1, 1]} : vector<8x32xf32> to vector<8x8xf32>
    %89 = vector.extract_strided_slice %82 {offsets = [0, 0], sizes = [8, 8], strides = [1, 1]} : vector<8x32xf32> to vector<8x8xf32>
    %cst_43 = arith.constant dense<0.000000e+00> : vector<8x8xf32>
    %90 = tpu.matmul %88, %89, %cst_43 {dimension_numbers = #tpu.dot_dimension_numbers<[1], [1], [0], [0], [0, 0, 1, 0], [], []>} : vector<8x8xf32>, vector<8x8xf32>, vector<8x8xf32> -> vector<8x8xf32>
    %91 = arith.addf %90, %36 : vector<8x8xf32>
    %cst_44 = arith.constant dense<0xFF800000> : vector<8xf32>
    %92 = vector.multi_reduction <maximumf>, %91, %cst_44 [1] : vector<8x8xf32> to vector<8xf32>
    %93 = vector.shape_cast %92 : vector<8xf32> to vector<8x1xf32>
    %94 = vector.broadcast %93 : vector<8x1xf32> to vector<8x8xf32>
    %95 = arith.subf %91, %94 : vector<8x8xf32>
    %96 = math.exp %95 : vector<8x8xf32>
    %cst_45 = arith.constant dense<0.000000e+00> : vector<8xf32>
    %97 = vector.multi_reduction <add>, %96, %cst_45 [1] : vector<8x8xf32> to vector<8xf32>
    %98 = vector.shape_cast %97 : vector<8xf32> to vector<8x1xf32>
    %99 = tpu.reciprocal %98 {approx = true} : vector<8x1xf32> -> vector<8x1xf32>
    %100 = vector.broadcast %99 : vector<8x1xf32> to vector<8x8xf32>
    %101 = arith.mulf %96, %100 : vector<8x8xf32>
    %102 = vector.broadcast %7 : vector<1x32xf32> to vector<8x32xf32>
    %103 = arith.mulf %83, %102 : vector<8x32xf32>
    %cst_46 = arith.constant dense<0.000000e+00> : vector<8x32xf32>
    %104 = tpu.matmul %101, %103, %cst_46 {dimension_numbers = #tpu.dot_dimension_numbers<[1], [0], [0], [1], [0, 0, 1, 1], [], []>} : vector<8x8xf32>, vector<8x32xf32>, vector<8x32xf32> -> vector<8x32xf32>
    %105 = vector.extract_strided_slice %81 {offsets = [0, 8], sizes = [8, 8], strides = [1, 1]} : vector<8x32xf32> to vector<8x8xf32>
    %106 = vector.extract_strided_slice %82 {offsets = [0, 8], sizes = [8, 8], strides = [1, 1]} : vector<8x32xf32> to vector<8x8xf32>
    %cst_47 = arith.constant dense<0.000000e+00> : vector<8x8xf32>
    %107 = tpu.matmul %105, %106, %cst_47 {dimension_numbers = #tpu.dot_dimension_numbers<[1], [1], [0], [0], [0, 0, 1, 0], [], []>} : vector<8x8xf32>, vector<8x8xf32>, vector<8x8xf32> -> vector<8x8xf32>
    %108 = arith.addf %107, %36 : vector<8x8xf32>
    %cst_48 = arith.constant dense<0xFF800000> : vector<8xf32>
    %109 = vector.multi_reduction <maximumf>, %108, %cst_48 [1] : vector<8x8xf32> to vector<8xf32>
    %110 = vector.shape_cast %109 : vector<8xf32> to vector<8x1xf32>
    %111 = vector.broadcast %110 : vector<8x1xf32> to vector<8x8xf32>
    %112 = arith.subf %108, %111 : vector<8x8xf32>
    %113 = math.exp %112 : vector<8x8xf32>
    %cst_49 = arith.constant dense<0.000000e+00> : vector<8xf32>
    %114 = vector.multi_reduction <add>, %113, %cst_49 [1] : vector<8x8xf32> to vector<8xf32>
    %115 = vector.shape_cast %114 : vector<8xf32> to vector<8x1xf32>
    %116 = tpu.reciprocal %115 {approx = true} : vector<8x1xf32> -> vector<8x1xf32>
    %117 = vector.broadcast %116 : vector<8x1xf32> to vector<8x8xf32>
    %118 = arith.mulf %113, %117 : vector<8x8xf32>
    %119 = vector.broadcast %14 : vector<1x32xf32> to vector<8x32xf32>
    %120 = arith.mulf %83, %119 : vector<8x32xf32>
    %cst_50 = arith.constant dense<0.000000e+00> : vector<8x32xf32>
    %121 = tpu.matmul %118, %120, %cst_50 {dimension_numbers = #tpu.dot_dimension_numbers<[1], [0], [0], [1], [0, 0, 1, 1], [], []>} : vector<8x8xf32>, vector<8x32xf32>, vector<8x32xf32> -> vector<8x32xf32>
    %122 = arith.addf %104, %121 : vector<8x32xf32>
    %123 = vector.extract_strided_slice %81 {offsets = [0, 16], sizes = [8, 8], strides = [1, 1]} : vector<8x32xf32> to vector<8x8xf32>
    %124 = vector.extract_strided_slice %82 {offsets = [0, 16], sizes = [8, 8], strides = [1, 1]} : vector<8x32xf32> to vector<8x8xf32>
    %cst_51 = arith.constant dense<0.000000e+00> : vector<8x8xf32>
    %125 = tpu.matmul %123, %124, %cst_51 {dimension_numbers = #tpu.dot_dimension_numbers<[1], [1], [0], [0], [0, 0, 1, 0], [], []>} : vector<8x8xf32>, vector<8x8xf32>, vector<8x8xf32> -> vector<8x8xf32>
    %126 = arith.addf %125, %36 : vector<8x8xf32>
    %cst_52 = arith.constant dense<0xFF800000> : vector<8xf32>
    %127 = vector.multi_reduction <maximumf>, %126, %cst_52 [1] : vector<8x8xf32> to vector<8xf32>
    %128 = vector.shape_cast %127 : vector<8xf32> to vector<8x1xf32>
    %129 = vector.broadcast %128 : vector<8x1xf32> to vector<8x8xf32>
    %130 = arith.subf %126, %129 : vector<8x8xf32>
    %131 = math.exp %130 : vector<8x8xf32>
    %cst_53 = arith.constant dense<0.000000e+00> : vector<8xf32>
    %132 = vector.multi_reduction <add>, %131, %cst_53 [1] : vector<8x8xf32> to vector<8xf32>
    %133 = vector.shape_cast %132 : vector<8xf32> to vector<8x1xf32>
    %134 = tpu.reciprocal %133 {approx = true} : vector<8x1xf32> -> vector<8x1xf32>
    %135 = vector.broadcast %134 : vector<8x1xf32> to vector<8x8xf32>
    %136 = arith.mulf %131, %135 : vector<8x8xf32>
    %137 = vector.broadcast %21 : vector<1x32xf32> to vector<8x32xf32>
    %138 = arith.mulf %83, %137 : vector<8x32xf32>
    %cst_54 = arith.constant dense<0.000000e+00> : vector<8x32xf32>
    %139 = tpu.matmul %136, %138, %cst_54 {dimension_numbers = #tpu.dot_dimension_numbers<[1], [0], [0], [1], [0, 0, 1, 1], [], []>} : vector<8x8xf32>, vector<8x32xf32>, vector<8x32xf32> -> vector<8x32xf32>
    %140 = arith.addf %122, %139 : vector<8x32xf32>
    %141 = vector.extract_strided_slice %81 {offsets = [0, 24], sizes = [8, 8], strides = [1, 1]} : vector<8x32xf32> to vector<8x8xf32>
    %142 = vector.extract_strided_slice %82 {offsets = [0, 24], sizes = [8, 8], strides = [1, 1]} : vector<8x32xf32> to vector<8x8xf32>
    %cst_55 = arith.constant dense<0.000000e+00> : vector<8x8xf32>
    %143 = tpu.matmul %141, %142, %cst_55 {dimension_numbers = #tpu.dot_dimension_numbers<[1], [1], [0], [0], [0, 0, 1, 0], [], []>} : vector<8x8xf32>, vector<8x8xf32>, vector<8x8xf32> -> vector<8x8xf32>
    %144 = arith.addf %143, %36 : vector<8x8xf32>
    %cst_56 = arith.constant dense<0xFF800000> : vector<8xf32>
    %145 = vector.multi_reduction <maximumf>, %144, %cst_56 [1] : vector<8x8xf32> to vector<8xf32>
    %146 = vector.shape_cast %145 : vector<8xf32> to vector<8x1xf32>
    %147 = vector.broadcast %146 : vector<8x1xf32> to vector<8x8xf32>
    %148 = arith.subf %144, %147 : vector<8x8xf32>
    %149 = math.exp %148 : vector<8x8xf32>
    %cst_57 = arith.constant dense<0.000000e+00> : vector<8xf32>
    %150 = vector.multi_reduction <add>, %149, %cst_57 [1] : vector<8x8xf32> to vector<8xf32>
    %151 = vector.shape_cast %150 : vector<8xf32> to vector<8x1xf32>
    %152 = tpu.reciprocal %151 {approx = true} : vector<8x1xf32> -> vector<8x1xf32>
    %153 = vector.broadcast %152 : vector<8x1xf32> to vector<8x8xf32>
    %154 = arith.mulf %149, %153 : vector<8x8xf32>
    %155 = vector.broadcast %28 : vector<1x32xf32> to vector<8x32xf32>
    %156 = arith.mulf %83, %155 : vector<8x32xf32>
    %cst_58 = arith.constant dense<0.000000e+00> : vector<8x32xf32>
    %157 = tpu.matmul %154, %156, %cst_58 {dimension_numbers = #tpu.dot_dimension_numbers<[1], [0], [0], [1], [0, 0, 1, 1], [], []>} : vector<8x8xf32>, vector<8x32xf32>, vector<8x32xf32> -> vector<8x32xf32>
    %158 = arith.addf %140, %157 : vector<8x32xf32>
    %cst_59 = arith.constant dense<0.000000e+00> : vector<8x32xf32>
    %159 = tpu.matmul %158, %85, %cst_59 {dimension_numbers = #tpu.dot_dimension_numbers<[1], [1], [0], [0], [0, 0, 1, 0], [], []>} : vector<8x32xf32>, vector<32x32xf32>, vector<8x32xf32> -> vector<8x32xf32>
    %160 = vector.broadcast %87 : vector<1x32xf32> to vector<8x32xf32>
    %161 = arith.addf %159, %160 : vector<8x32xf32>
    %c0_60 = arith.constant 0 : index
    %c0_61 = arith.constant 0 : index
    %c0_62 = arith.constant 0 : index
    %162 = vector.load %arg15[%c0_60, %c0_61, %c0_62] : memref<3x16x32xf32, #tpu.memory_space<vmem>>, vector<1x16x32xf32>
    %163 = vector.shape_cast %162 : vector<1x16x32xf32> to vector<16x32xf32>
    %c0_63 = arith.constant 0 : index
    %c0_64 = arith.constant 0 : index
    %c0_65 = arith.constant 0 : index
    %164 = vector.load %arg16[%c0_63, %c0_64, %c0_65] : memref<3x1x16xf32, #tpu.memory_space<vmem>>, vector<1x1x16xf32>
    %165 = vector.shape_cast %164 : vector<1x1x16xf32> to vector<1x16xf32>
    %c0_66 = arith.constant 0 : index
    %c0_67 = arith.constant 0 : index
    %c0_68 = arith.constant 0 : index
    %166 = vector.load %arg17[%c0_66, %c0_67, %c0_68] : memref<3x32x16xf32, #tpu.memory_space<vmem>>, vector<1x32x16xf32>
    %167 = vector.shape_cast %166 : vector<1x32x16xf32> to vector<32x16xf32>
    %c0_69 = arith.constant 0 : index
    %c0_70 = arith.constant 0 : index
    %c0_71 = arith.constant 0 : index
    %168 = vector.load %arg18[%c0_69, %c0_70, %c0_71] : memref<3x1x32xf32, #tpu.memory_space<vmem>>, vector<1x1x32xf32>
    %169 = vector.shape_cast %168 : vector<1x1x32xf32> to vector<1x32xf32>
    %cst_72 = arith.constant dense<0.000000e+00> : vector<8x16xf32>
    %170 = tpu.matmul %161, %163, %cst_72 {dimension_numbers = #tpu.dot_dimension_numbers<[1], [1], [0], [0], [0, 0, 1, 0], [], []>} : vector<8x32xf32>, vector<16x32xf32>, vector<8x16xf32> -> vector<8x16xf32>
    %171 = vector.broadcast %165 : vector<1x16xf32> to vector<8x16xf32>
    %172 = arith.addf %170, %171 : vector<8x16xf32>
    %cst_73 = arith.constant 0.000000e+00 : f32
    %173 = vector.broadcast %cst_73 : f32 to vector<8x16xf32>
    %174 = arith.maximumf %172, %173 : vector<8x16xf32>
    %cst_74 = arith.constant dense<0.000000e+00> : vector<8x32xf32>
    %175 = tpu.matmul %174, %167, %cst_74 {dimension_numbers = #tpu.dot_dimension_numbers<[1], [1], [0], [0], [0, 0, 1, 0], [], []>} : vector<8x16xf32>, vector<32x16xf32>, vector<8x32xf32> -> vector<8x32xf32>
    %176 = vector.broadcast %169 : vector<1x32xf32> to vector<8x32xf32>
    %177 = arith.addf %175, %176 : vector<8x32xf32>
    %178 = arith.addf %161, %177 : vector<8x32xf32>
    %179 = arith.addf %178, %30 : vector<8x32xf32>
    %c1 = arith.constant 1 : index
    %c0_75 = arith.constant 0 : index
    %c0_76 = arith.constant 0 : index
    %180 = vector.load %arg9[%c1, %c0_75, %c0_76] : memref<3x1x32xf32, #tpu.memory_space<vmem>>, vector<1x1x32xf32>
    %181 = vector.shape_cast %180 : vector<1x1x32xf32> to vector<1x32xf32>
    %c1_77 = arith.constant 1 : index
    %c0_78 = arith.constant 0 : index
    %c0_79 = arith.constant 0 : index
    %182 = vector.load %arg10[%c1_77, %c0_78, %c0_79] : memref<3x1x32xf32, #tpu.memory_space<vmem>>, vector<1x1x32xf32>
    %183 = vector.shape_cast %182 : vector<1x1x32xf32> to vector<1x32xf32>
    %cst_80 = arith.constant dense<0.000000e+00> : vector<8xf32>
    %184 = vector.multi_reduction <add>, %179, %cst_80 [1] : vector<8x32xf32> to vector<8xf32>
    %185 = vector.shape_cast %184 : vector<8xf32> to vector<8x1xf32>
    %cst_81 = arith.constant 3.200000e+01 : f32
    %186 = vector.broadcast %cst_81 : f32 to vector<8x1xf32>
    %187 = arith.divf %185, %186 : vector<8x1xf32>
    %188 = vector.broadcast %187 : vector<8x1xf32> to vector<8x32xf32>
    %189 = arith.subf %179, %188 : vector<8x32xf32>
    %190 = arith.mulf %189, %189 : vector<8x32xf32>
    %cst_82 = arith.constant dense<0.000000e+00> : vector<8xf32>
    %191 = vector.multi_reduction <add>, %190, %cst_82 [1] : vector<8x32xf32> to vector<8xf32>
    %192 = vector.shape_cast %191 : vector<8xf32> to vector<8x1xf32>
    %cst_83 = arith.constant 3.200000e+01 : f32
    %193 = vector.broadcast %cst_83 : f32 to vector<8x1xf32>
    %194 = arith.divf %192, %193 : vector<8x1xf32>
    %195 = vector.broadcast %187 : vector<8x1xf32> to vector<8x32xf32>
    %196 = arith.subf %179, %195 : vector<8x32xf32>
    %cst_84 = arith.constant 9.99999997E-7 : f32
    %197 = vector.broadcast %cst_84 : f32 to vector<8x1xf32>
    %198 = arith.addf %194, %197 : vector<8x1xf32>
    %199 = math.rsqrt %198 : vector<8x1xf32>
    %200 = vector.broadcast %199 : vector<8x1xf32> to vector<8x32xf32>
    %201 = arith.mulf %196, %200 : vector<8x32xf32>
    %202 = vector.broadcast %181 : vector<1x32xf32> to vector<8x32xf32>
    %203 = arith.mulf %201, %202 : vector<8x32xf32>
    %204 = vector.broadcast %183 : vector<1x32xf32> to vector<8x32xf32>
    %205 = arith.addf %203, %204 : vector<8x32xf32>
    %c1_85 = arith.constant 1 : index
    %c0_86 = arith.constant 0 : index
    %c0_87 = arith.constant 0 : index
    %206 = vector.load %arg6[%c1_85, %c0_86, %c0_87] : memref<2x1x96xf32, #tpu.memory_space<vmem>>, vector<1x1x96xf32>
    %207 = vector.shape_cast %206 : vector<1x1x96xf32> to vector<1x96xf32>
    %c1_88 = arith.constant 1 : index
    %c0_89 = arith.constant 0 : index
    %c0_90 = arith.constant 0 : index
    %208 = vector.load %arg5[%c1_88, %c0_89, %c0_90] : memref<2x96x32xf32, #tpu.memory_space<vmem>>, vector<1x32x32xf32>
    %209 = vector.shape_cast %208 : vector<1x32x32xf32> to vector<32x32xf32>
    %210 = vector.extract_strided_slice %207 {offsets = [0, 0], sizes = [1, 32], strides = [1, 1]} : vector<1x96xf32> to vector<1x32xf32>
    %cst_91 = arith.constant dense<0.000000e+00> : vector<8x32xf32>
    %211 = tpu.matmul %205, %209, %cst_91 {dimension_numbers = #tpu.dot_dimension_numbers<[1], [1], [0], [0], [0, 0, 1, 0], [], []>} : vector<8x32xf32>, vector<32x32xf32>, vector<8x32xf32> -> vector<8x32xf32>
    %212 = vector.broadcast %210 : vector<1x32xf32> to vector<8x32xf32>
    %213 = arith.addf %211, %212 : vector<8x32xf32>
    %cst_92 = arith.constant 0.353553385 : f32
    %214 = vector.broadcast %cst_92 : f32 to vector<8x32xf32>
    %215 = arith.mulf %213, %214 : vector<8x32xf32>
    %c1_93 = arith.constant 1 : index
    %c32 = arith.constant 32 : index
    %c0_94 = arith.constant 0 : index
    %216 = vector.load %arg5[%c1_93, %c32, %c0_94] : memref<2x96x32xf32, #tpu.memory_space<vmem>>, vector<1x64x32xf32>
    %217 = vector.shape_cast %216 : vector<1x64x32xf32> to vector<64x32xf32>
    %218 = vector.extract_strided_slice %207 {offsets = [0, 32], sizes = [1, 64], strides = [1, 1]} : vector<1x96xf32> to vector<1x64xf32>
    %cst_95 = arith.constant dense<0.000000e+00> : vector<8x64xf32>
    %219 = tpu.matmul %32, %217, %cst_95 {dimension_numbers = #tpu.dot_dimension_numbers<[1], [1], [0], [0], [0, 0, 1, 0], [], []>} : vector<8x32xf32>, vector<64x32xf32>, vector<8x64xf32> -> vector<8x64xf32>
    %220 = vector.broadcast %218 : vector<1x64xf32> to vector<8x64xf32>
    %221 = arith.addf %219, %220 : vector<8x64xf32>
    %222 = vector.extract_strided_slice %221 {offsets = [0, 0], sizes = [8, 32], strides = [1, 1]} : vector<8x64xf32> to vector<8x32xf32>
    %223 = vector.extract_strided_slice %221 {offsets = [0, 32], sizes = [8, 32], strides = [1, 1]} : vector<8x64xf32> to vector<8x32xf32>
    %c1_96 = arith.constant 1 : index
    %c0_97 = arith.constant 0 : index
    %c0_98 = arith.constant 0 : index
    %224 = vector.load %arg7[%c1_96, %c0_97, %c0_98] : memref<2x32x32xf32, #tpu.memory_space<vmem>>, vector<1x32x32xf32>
    %225 = vector.shape_cast %224 : vector<1x32x32xf32> to vector<32x32xf32>
    %c1_99 = arith.constant 1 : index
    %c0_100 = arith.constant 0 : index
    %c0_101 = arith.constant 0 : index
    %226 = vector.load %arg8[%c1_99, %c0_100, %c0_101] : memref<2x1x32xf32, #tpu.memory_space<vmem>>, vector<1x1x32xf32>
    %227 = vector.shape_cast %226 : vector<1x1x32xf32> to vector<1x32xf32>
    %228 = vector.extract_strided_slice %215 {offsets = [0, 0], sizes = [8, 8], strides = [1, 1]} : vector<8x32xf32> to vector<8x8xf32>
    %229 = vector.extract_strided_slice %222 {offsets = [0, 0], sizes = [8, 8], strides = [1, 1]} : vector<8x32xf32> to vector<8x8xf32>
    %cst_102 = arith.constant dense<0.000000e+00> : vector<8x8xf32>
    %230 = tpu.matmul %228, %229, %cst_102 {dimension_numbers = #tpu.dot_dimension_numbers<[1], [1], [0], [0], [0, 0, 1, 0], [], []>} : vector<8x8xf32>, vector<8x8xf32>, vector<8x8xf32> -> vector<8x8xf32>
    %231 = arith.addf %230, %42 : vector<8x8xf32>
    %cst_103 = arith.constant dense<0xFF800000> : vector<8xf32>
    %232 = vector.multi_reduction <maximumf>, %231, %cst_103 [1] : vector<8x8xf32> to vector<8xf32>
    %233 = vector.shape_cast %232 : vector<8xf32> to vector<8x1xf32>
    %234 = vector.broadcast %233 : vector<8x1xf32> to vector<8x8xf32>
    %235 = arith.subf %231, %234 : vector<8x8xf32>
    %236 = math.exp %235 : vector<8x8xf32>
    %cst_104 = arith.constant dense<0.000000e+00> : vector<8xf32>
    %237 = vector.multi_reduction <add>, %236, %cst_104 [1] : vector<8x8xf32> to vector<8xf32>
    %238 = vector.shape_cast %237 : vector<8xf32> to vector<8x1xf32>
    %239 = tpu.reciprocal %238 {approx = true} : vector<8x1xf32> -> vector<8x1xf32>
    %240 = vector.broadcast %239 : vector<8x1xf32> to vector<8x8xf32>
    %241 = arith.mulf %236, %240 : vector<8x8xf32>
    %242 = vector.broadcast %7 : vector<1x32xf32> to vector<8x32xf32>
    %243 = arith.mulf %223, %242 : vector<8x32xf32>
    %cst_105 = arith.constant dense<0.000000e+00> : vector<8x32xf32>
    %244 = tpu.matmul %241, %243, %cst_105 {dimension_numbers = #tpu.dot_dimension_numbers<[1], [0], [0], [1], [0, 0, 1, 1], [], []>} : vector<8x8xf32>, vector<8x32xf32>, vector<8x32xf32> -> vector<8x32xf32>
    %245 = vector.extract_strided_slice %215 {offsets = [0, 8], sizes = [8, 8], strides = [1, 1]} : vector<8x32xf32> to vector<8x8xf32>
    %246 = vector.extract_strided_slice %222 {offsets = [0, 8], sizes = [8, 8], strides = [1, 1]} : vector<8x32xf32> to vector<8x8xf32>
    %cst_106 = arith.constant dense<0.000000e+00> : vector<8x8xf32>
    %247 = tpu.matmul %245, %246, %cst_106 {dimension_numbers = #tpu.dot_dimension_numbers<[1], [1], [0], [0], [0, 0, 1, 0], [], []>} : vector<8x8xf32>, vector<8x8xf32>, vector<8x8xf32> -> vector<8x8xf32>
    %248 = arith.addf %247, %42 : vector<8x8xf32>
    %cst_107 = arith.constant dense<0xFF800000> : vector<8xf32>
    %249 = vector.multi_reduction <maximumf>, %248, %cst_107 [1] : vector<8x8xf32> to vector<8xf32>
    %250 = vector.shape_cast %249 : vector<8xf32> to vector<8x1xf32>
    %251 = vector.broadcast %250 : vector<8x1xf32> to vector<8x8xf32>
    %252 = arith.subf %248, %251 : vector<8x8xf32>
    %253 = math.exp %252 : vector<8x8xf32>
    %cst_108 = arith.constant dense<0.000000e+00> : vector<8xf32>
    %254 = vector.multi_reduction <add>, %253, %cst_108 [1] : vector<8x8xf32> to vector<8xf32>
    %255 = vector.shape_cast %254 : vector<8xf32> to vector<8x1xf32>
    %256 = tpu.reciprocal %255 {approx = true} : vector<8x1xf32> -> vector<8x1xf32>
    %257 = vector.broadcast %256 : vector<8x1xf32> to vector<8x8xf32>
    %258 = arith.mulf %253, %257 : vector<8x8xf32>
    %259 = vector.broadcast %14 : vector<1x32xf32> to vector<8x32xf32>
    %260 = arith.mulf %223, %259 : vector<8x32xf32>
    %cst_109 = arith.constant dense<0.000000e+00> : vector<8x32xf32>
    %261 = tpu.matmul %258, %260, %cst_109 {dimension_numbers = #tpu.dot_dimension_numbers<[1], [0], [0], [1], [0, 0, 1, 1], [], []>} : vector<8x8xf32>, vector<8x32xf32>, vector<8x32xf32> -> vector<8x32xf32>
    %262 = arith.addf %244, %261 : vector<8x32xf32>
    %263 = vector.extract_strided_slice %215 {offsets = [0, 16], sizes = [8, 8], strides = [1, 1]} : vector<8x32xf32> to vector<8x8xf32>
    %264 = vector.extract_strided_slice %222 {offsets = [0, 16], sizes = [8, 8], strides = [1, 1]} : vector<8x32xf32> to vector<8x8xf32>
    %cst_110 = arith.constant dense<0.000000e+00> : vector<8x8xf32>
    %265 = tpu.matmul %263, %264, %cst_110 {dimension_numbers = #tpu.dot_dimension_numbers<[1], [1], [0], [0], [0, 0, 1, 0], [], []>} : vector<8x8xf32>, vector<8x8xf32>, vector<8x8xf32> -> vector<8x8xf32>
    %266 = arith.addf %265, %42 : vector<8x8xf32>
    %cst_111 = arith.constant dense<0xFF800000> : vector<8xf32>
    %267 = vector.multi_reduction <maximumf>, %266, %cst_111 [1] : vector<8x8xf32> to vector<8xf32>
    %268 = vector.shape_cast %267 : vector<8xf32> to vector<8x1xf32>
    %269 = vector.broadcast %268 : vector<8x1xf32> to vector<8x8xf32>
    %270 = arith.subf %266, %269 : vector<8x8xf32>
    %271 = math.exp %270 : vector<8x8xf32>
    %cst_112 = arith.constant dense<0.000000e+00> : vector<8xf32>
    %272 = vector.multi_reduction <add>, %271, %cst_112 [1] : vector<8x8xf32> to vector<8xf32>
    %273 = vector.shape_cast %272 : vector<8xf32> to vector<8x1xf32>
    %274 = tpu.reciprocal %273 {approx = true} : vector<8x1xf32> -> vector<8x1xf32>
    %275 = vector.broadcast %274 : vector<8x1xf32> to vector<8x8xf32>
    %276 = arith.mulf %271, %275 : vector<8x8xf32>
    %277 = vector.broadcast %21 : vector<1x32xf32> to vector<8x32xf32>
    %278 = arith.mulf %223, %277 : vector<8x32xf32>
    %cst_113 = arith.constant dense<0.000000e+00> : vector<8x32xf32>
    %279 = tpu.matmul %276, %278, %cst_113 {dimension_numbers = #tpu.dot_dimension_numbers<[1], [0], [0], [1], [0, 0, 1, 1], [], []>} : vector<8x8xf32>, vector<8x32xf32>, vector<8x32xf32> -> vector<8x32xf32>
    %280 = arith.addf %262, %279 : vector<8x32xf32>
    %281 = vector.extract_strided_slice %215 {offsets = [0, 24], sizes = [8, 8], strides = [1, 1]} : vector<8x32xf32> to vector<8x8xf32>
    %282 = vector.extract_strided_slice %222 {offsets = [0, 24], sizes = [8, 8], strides = [1, 1]} : vector<8x32xf32> to vector<8x8xf32>
    %cst_114 = arith.constant dense<0.000000e+00> : vector<8x8xf32>
    %283 = tpu.matmul %281, %282, %cst_114 {dimension_numbers = #tpu.dot_dimension_numbers<[1], [1], [0], [0], [0, 0, 1, 0], [], []>} : vector<8x8xf32>, vector<8x8xf32>, vector<8x8xf32> -> vector<8x8xf32>
    %284 = arith.addf %283, %42 : vector<8x8xf32>
    %cst_115 = arith.constant dense<0xFF800000> : vector<8xf32>
    %285 = vector.multi_reduction <maximumf>, %284, %cst_115 [1] : vector<8x8xf32> to vector<8xf32>
    %286 = vector.shape_cast %285 : vector<8xf32> to vector<8x1xf32>
    %287 = vector.broadcast %286 : vector<8x1xf32> to vector<8x8xf32>
    %288 = arith.subf %284, %287 : vector<8x8xf32>
    %289 = math.exp %288 : vector<8x8xf32>
    %cst_116 = arith.constant dense<0.000000e+00> : vector<8xf32>
    %290 = vector.multi_reduction <add>, %289, %cst_116 [1] : vector<8x8xf32> to vector<8xf32>
    %291 = vector.shape_cast %290 : vector<8xf32> to vector<8x1xf32>
    %292 = tpu.reciprocal %291 {approx = true} : vector<8x1xf32> -> vector<8x1xf32>
    %293 = vector.broadcast %292 : vector<8x1xf32> to vector<8x8xf32>
    %294 = arith.mulf %289, %293 : vector<8x8xf32>
    %295 = vector.broadcast %28 : vector<1x32xf32> to vector<8x32xf32>
    %296 = arith.mulf %223, %295 : vector<8x32xf32>
    %cst_117 = arith.constant dense<0.000000e+00> : vector<8x32xf32>
    %297 = tpu.matmul %294, %296, %cst_117 {dimension_numbers = #tpu.dot_dimension_numbers<[1], [0], [0], [1], [0, 0, 1, 1], [], []>} : vector<8x8xf32>, vector<8x32xf32>, vector<8x32xf32> -> vector<8x32xf32>
    %298 = arith.addf %280, %297 : vector<8x32xf32>
    %cst_118 = arith.constant dense<0.000000e+00> : vector<8x32xf32>
    %299 = tpu.matmul %298, %225, %cst_118 {dimension_numbers = #tpu.dot_dimension_numbers<[1], [1], [0], [0], [0, 0, 1, 0], [], []>} : vector<8x32xf32>, vector<32x32xf32>, vector<8x32xf32> -> vector<8x32xf32>
    %300 = vector.broadcast %227 : vector<1x32xf32> to vector<8x32xf32>
    %301 = arith.addf %299, %300 : vector<8x32xf32>
    %c1_119 = arith.constant 1 : index
    %c0_120 = arith.constant 0 : index
    %c0_121 = arith.constant 0 : index
    %302 = vector.load %arg15[%c1_119, %c0_120, %c0_121] : memref<3x16x32xf32, #tpu.memory_space<vmem>>, vector<1x16x32xf32>
    %303 = vector.shape_cast %302 : vector<1x16x32xf32> to vector<16x32xf32>
    %c1_122 = arith.constant 1 : index
    %c0_123 = arith.constant 0 : index
    %c0_124 = arith.constant 0 : index
    %304 = vector.load %arg16[%c1_122, %c0_123, %c0_124] : memref<3x1x16xf32, #tpu.memory_space<vmem>>, vector<1x1x16xf32>
    %305 = vector.shape_cast %304 : vector<1x1x16xf32> to vector<1x16xf32>
    %c1_125 = arith.constant 1 : index
    %c0_126 = arith.constant 0 : index
    %c0_127 = arith.constant 0 : index
    %306 = vector.load %arg17[%c1_125, %c0_126, %c0_127] : memref<3x32x16xf32, #tpu.memory_space<vmem>>, vector<1x32x16xf32>
    %307 = vector.shape_cast %306 : vector<1x32x16xf32> to vector<32x16xf32>
    %c1_128 = arith.constant 1 : index
    %c0_129 = arith.constant 0 : index
    %c0_130 = arith.constant 0 : index
    %308 = vector.load %arg18[%c1_128, %c0_129, %c0_130] : memref<3x1x32xf32, #tpu.memory_space<vmem>>, vector<1x1x32xf32>
    %309 = vector.shape_cast %308 : vector<1x1x32xf32> to vector<1x32xf32>
    %cst_131 = arith.constant dense<0.000000e+00> : vector<8x16xf32>
    %310 = tpu.matmul %301, %303, %cst_131 {dimension_numbers = #tpu.dot_dimension_numbers<[1], [1], [0], [0], [0, 0, 1, 0], [], []>} : vector<8x32xf32>, vector<16x32xf32>, vector<8x16xf32> -> vector<8x16xf32>
    %311 = vector.broadcast %305 : vector<1x16xf32> to vector<8x16xf32>
    %312 = arith.addf %310, %311 : vector<8x16xf32>
    %cst_132 = arith.constant 0.000000e+00 : f32
    %313 = vector.broadcast %cst_132 : f32 to vector<8x16xf32>
    %314 = arith.maximumf %312, %313 : vector<8x16xf32>
    %cst_133 = arith.constant dense<0.000000e+00> : vector<8x32xf32>
    %315 = tpu.matmul %314, %307, %cst_133 {dimension_numbers = #tpu.dot_dimension_numbers<[1], [1], [0], [0], [0, 0, 1, 0], [], []>} : vector<8x16xf32>, vector<32x16xf32>, vector<8x32xf32> -> vector<8x32xf32>
    %316 = vector.broadcast %309 : vector<1x32xf32> to vector<8x32xf32>
    %317 = arith.addf %315, %316 : vector<8x32xf32>
    %318 = arith.addf %301, %317 : vector<8x32xf32>
    %319 = arith.addf %318, %179 : vector<8x32xf32>
    %c2 = arith.constant 2 : index
    %c0_134 = arith.constant 0 : index
    %c0_135 = arith.constant 0 : index
    %320 = vector.load %arg9[%c2, %c0_134, %c0_135] : memref<3x1x32xf32, #tpu.memory_space<vmem>>, vector<1x1x32xf32>
    %321 = vector.shape_cast %320 : vector<1x1x32xf32> to vector<1x32xf32>
    %c2_136 = arith.constant 2 : index
    %c0_137 = arith.constant 0 : index
    %c0_138 = arith.constant 0 : index
    %322 = vector.load %arg10[%c2_136, %c0_137, %c0_138] : memref<3x1x32xf32, #tpu.memory_space<vmem>>, vector<1x1x32xf32>
    %323 = vector.shape_cast %322 : vector<1x1x32xf32> to vector<1x32xf32>
    %cst_139 = arith.constant dense<0.000000e+00> : vector<8xf32>
    %324 = vector.multi_reduction <add>, %319, %cst_139 [1] : vector<8x32xf32> to vector<8xf32>
    %325 = vector.shape_cast %324 : vector<8xf32> to vector<8x1xf32>
    %cst_140 = arith.constant 3.200000e+01 : f32
    %326 = vector.broadcast %cst_140 : f32 to vector<8x1xf32>
    %327 = arith.divf %325, %326 : vector<8x1xf32>
    %328 = vector.broadcast %327 : vector<8x1xf32> to vector<8x32xf32>
    %329 = arith.subf %319, %328 : vector<8x32xf32>
    %330 = arith.mulf %329, %329 : vector<8x32xf32>
    %cst_141 = arith.constant dense<0.000000e+00> : vector<8xf32>
    %331 = vector.multi_reduction <add>, %330, %cst_141 [1] : vector<8x32xf32> to vector<8xf32>
    %332 = vector.shape_cast %331 : vector<8xf32> to vector<8x1xf32>
    %cst_142 = arith.constant 3.200000e+01 : f32
    %333 = vector.broadcast %cst_142 : f32 to vector<8x1xf32>
    %334 = arith.divf %332, %333 : vector<8x1xf32>
    %335 = vector.broadcast %327 : vector<8x1xf32> to vector<8x32xf32>
    %336 = arith.subf %319, %335 : vector<8x32xf32>
    %cst_143 = arith.constant 9.99999997E-7 : f32
    %337 = vector.broadcast %cst_143 : f32 to vector<8x1xf32>
    %338 = arith.addf %334, %337 : vector<8x1xf32>
    %339 = math.rsqrt %338 : vector<8x1xf32>
    %340 = vector.broadcast %339 : vector<8x1xf32> to vector<8x32xf32>
    %341 = arith.mulf %336, %340 : vector<8x32xf32>
    %342 = vector.broadcast %321 : vector<1x32xf32> to vector<8x32xf32>
    %343 = arith.mulf %341, %342 : vector<8x32xf32>
    %344 = vector.broadcast %323 : vector<1x32xf32> to vector<8x32xf32>
    %345 = arith.addf %343, %344 : vector<8x32xf32>
    %c0_144 = arith.constant 0 : index
    %c0_145 = arith.constant 0 : index
    %346 = vector.load %arg11[%c0_144, %c0_145] : memref<64x32xf32, #tpu.memory_space<vmem>>, vector<64x32xf32>
    %c0_146 = arith.constant 0 : index
    %c0_147 = arith.constant 0 : index
    %347 = vector.load %arg12[%c0_146, %c0_147] : memref<1x64xf32, #tpu.memory_space<vmem>>, vector<1x64xf32>
    %cst_148 = arith.constant dense<0.000000e+00> : vector<8x64xf32>
    %348 = tpu.matmul %345, %346, %cst_148 {dimension_numbers = #tpu.dot_dimension_numbers<[1], [1], [0], [0], [0, 0, 1, 0], [], []>} : vector<8x32xf32>, vector<64x32xf32>, vector<8x64xf32> -> vector<8x64xf32>
    %349 = vector.broadcast %347 : vector<1x64xf32> to vector<8x64xf32>
    %350 = arith.addf %348, %349 : vector<8x64xf32>
    %351 = arith.mulf %350, %350 : vector<8x64xf32>
    %352 = arith.mulf %350, %351 : vector<8x64xf32>
    %cst_149 = arith.constant 4.471500e-02 : f32
    %353 = vector.broadcast %cst_149 : f32 to vector<8x64xf32>
    %354 = arith.mulf %353, %352 : vector<8x64xf32>
    %355 = arith.addf %350, %354 : vector<8x64xf32>
    %cst_150 = arith.constant 0.797884583 : f32
    %356 = vector.broadcast %cst_150 : f32 to vector<8x64xf32>
    %357 = arith.mulf %356, %355 : vector<8x64xf32>
    %358 = math.tanh %357 : vector<8x64xf32>
    %cst_151 = arith.constant 1.000000e+00 : f32
    %359 = vector.broadcast %cst_151 : f32 to vector<8x64xf32>
    %360 = arith.addf %359, %358 : vector<8x64xf32>
    %cst_152 = arith.constant 5.000000e-01 : f32
    %361 = vector.broadcast %cst_152 : f32 to vector<8x64xf32>
    %362 = arith.mulf %361, %360 : vector<8x64xf32>
    %363 = arith.mulf %350, %362 : vector<8x64xf32>
    %c0_153 = arith.constant 0 : index
    %c0_154 = arith.constant 0 : index
    %364 = vector.load %arg13[%c0_153, %c0_154] : memref<32x64xf32, #tpu.memory_space<vmem>>, vector<32x64xf32>
    %c0_155 = arith.constant 0 : index
    %c0_156 = arith.constant 0 : index
    %365 = vector.load %arg14[%c0_155, %c0_156] : memref<1x32xf32, #tpu.memory_space<vmem>>, vector<1x32xf32>
    %cst_157 = arith.constant dense<0.000000e+00> : vector<8x32xf32>
    %366 = tpu.matmul %363, %364, %cst_157 {dimension_numbers = #tpu.dot_dimension_numbers<[1], [1], [0], [0], [0, 0, 1, 0], [], []>} : vector<8x64xf32>, vector<32x64xf32>, vector<8x32xf32> -> vector<8x32xf32>
    %367 = vector.broadcast %365 : vector<1x32xf32> to vector<8x32xf32>
    %368 = arith.addf %366, %367 : vector<8x32xf32>
    %c2_158 = arith.constant 2 : index
    %c0_159 = arith.constant 0 : index
    %c0_160 = arith.constant 0 : index
    %369 = vector.load %arg15[%c2_158, %c0_159, %c0_160] : memref<3x16x32xf32, #tpu.memory_space<vmem>>, vector<1x16x32xf32>
    %370 = vector.shape_cast %369 : vector<1x16x32xf32> to vector<16x32xf32>
    %c2_161 = arith.constant 2 : index
    %c0_162 = arith.constant 0 : index
    %c0_163 = arith.constant 0 : index
    %371 = vector.load %arg16[%c2_161, %c0_162, %c0_163] : memref<3x1x16xf32, #tpu.memory_space<vmem>>, vector<1x1x16xf32>
    %372 = vector.shape_cast %371 : vector<1x1x16xf32> to vector<1x16xf32>
    %c2_164 = arith.constant 2 : index
    %c0_165 = arith.constant 0 : index
    %c0_166 = arith.constant 0 : index
    %373 = vector.load %arg17[%c2_164, %c0_165, %c0_166] : memref<3x32x16xf32, #tpu.memory_space<vmem>>, vector<1x32x16xf32>
    %374 = vector.shape_cast %373 : vector<1x32x16xf32> to vector<32x16xf32>
    %c2_167 = arith.constant 2 : index
    %c0_168 = arith.constant 0 : index
    %c0_169 = arith.constant 0 : index
    %375 = vector.load %arg18[%c2_167, %c0_168, %c0_169] : memref<3x1x32xf32, #tpu.memory_space<vmem>>, vector<1x1x32xf32>
    %376 = vector.shape_cast %375 : vector<1x1x32xf32> to vector<1x32xf32>
    %cst_170 = arith.constant dense<0.000000e+00> : vector<8x16xf32>
    %377 = tpu.matmul %368, %370, %cst_170 {dimension_numbers = #tpu.dot_dimension_numbers<[1], [1], [0], [0], [0, 0, 1, 0], [], []>} : vector<8x32xf32>, vector<16x32xf32>, vector<8x16xf32> -> vector<8x16xf32>
    %378 = vector.broadcast %372 : vector<1x16xf32> to vector<8x16xf32>
    %379 = arith.addf %377, %378 : vector<8x16xf32>
    %cst_171 = arith.constant 0.000000e+00 : f32
    %380 = vector.broadcast %cst_171 : f32 to vector<8x16xf32>
    %381 = arith.maximumf %379, %380 : vector<8x16xf32>
    %cst_172 = arith.constant dense<0.000000e+00> : vector<8x32xf32>
    %382 = tpu.matmul %381, %374, %cst_172 {dimension_numbers = #tpu.dot_dimension_numbers<[1], [1], [0], [0], [0, 0, 1, 0], [], []>} : vector<8x16xf32>, vector<32x16xf32>, vector<8x32xf32> -> vector<8x32xf32>
    %383 = vector.broadcast %376 : vector<1x32xf32> to vector<8x32xf32>
    %384 = arith.addf %382, %383 : vector<8x32xf32>
    %385 = arith.addf %368, %384 : vector<8x32xf32>
    %386 = arith.addf %385, %319 : vector<8x32xf32>
    %c0_173 = arith.constant 0 : index
    %c0_174 = arith.constant 0 : index
    %c0_175 = arith.constant 0 : index
    %387 = vector.load %arg19[%c0_173, %c0_174, %c0_175] : memref<2x8x32xf32, #tpu.memory_space<vmem>>, vector<1x8x32xf32>
    %388 = vector.shape_cast %387 : vector<1x8x32xf32> to vector<8x32xf32>
    %389 = vector.shape_cast %386 : vector<8x32xf32> to vector<1x8x32xf32>
    tpu.vector_store %arg19[%c0_173, %c0_174, %c0_175], %389 {strides = array<i32>} : memref<2x8x32xf32, #tpu.memory_space<vmem>>, vector<1x8x32xf32>,
    %c1_176 = arith.constant 1 : index
    %c0_177 = arith.constant 0 : index
    %c0_178 = arith.constant 0 : index
    %390 = vector.load %arg1[%c1_176, %c0_177, %c0_178] : memref<2x8x32xf32, #tpu.memory_space<vmem>>, vector<1x8x32xf32>
    %391 = vector.shape_cast %390 : vector<1x8x32xf32> to vector<8x32xf32>
    %c1_179 = arith.constant 1 : index
    %c0_180 = arith.constant 0 : index
    %c0_181 = arith.constant 0 : index
    %392 = vector.load %arg2[%c1_179, %c0_180, %c0_181] : memref<2x8x32xf32, #tpu.memory_space<vmem>>, vector<1x8x32xf32>
    %393 = vector.shape_cast %392 : vector<1x8x32xf32> to vector<8x32xf32>
    %c1_182 = arith.constant 1 : index
    %c0_183 = arith.constant 0 : index
    %c0_184 = arith.constant 0 : index
    %394 = vector.load %arg3[%c1_182, %c0_183, %c0_184] : memref<2x8x8xf32, #tpu.memory_space<vmem>>, vector<1x8x8xf32>
    %395 = vector.shape_cast %394 : vector<1x8x8xf32> to vector<8x8xf32>
    %cst_185 = arith.constant -9.99999984E+17 : f32
    %396 = vector.broadcast %cst_185 : f32 to vector<8x8xf32>
    %397 = arith.mulf %395, %396 : vector<8x8xf32>
    %c1_186 = arith.constant 1 : index
    %c0_187 = arith.constant 0 : index
    %c0_188 = arith.constant 0 : index
    %398 = vector.load %arg4[%c1_186, %c0_187, %c0_188] : memref<2x1x8xf32, #tpu.memory_space<vmem>>, vector<1x1x8xf32>
    %399 = vector.shape_cast %398 : vector<1x1x8xf32> to vector<1x8xf32>
    %cst_189 = arith.constant -9.99999984E+17 : f32
    %400 = vector.broadcast %cst_189 : f32 to vector<1x8xf32>
    %401 = arith.mulf %399, %400 : vector<1x8xf32>
    %402 = vector.shape_cast %401 : vector<1x8xf32> to vector<1x8xf32>
    %403 = vector.broadcast %402 : vector<1x8xf32> to vector<8x8xf32>
    %c0_190 = arith.constant 0 : index
    %c0_191 = arith.constant 0 : index
    %c0_192 = arith.constant 0 : index
    %404 = vector.load %arg9[%c0_190, %c0_191, %c0_192] : memref<3x1x32xf32, #tpu.memory_space<vmem>>, vector<1x1x32xf32>
    %405 = vector.shape_cast %404 : vector<1x1x32xf32> to vector<1x32xf32>
    %c0_193 = arith.constant 0 : index
    %c0_194 = arith.constant 0 : index
    %c0_195 = arith.constant 0 : index
    %406 = vector.load %arg10[%c0_193, %c0_194, %c0_195] : memref<3x1x32xf32, #tpu.memory_space<vmem>>, vector<1x1x32xf32>
    %407 = vector.shape_cast %406 : vector<1x1x32xf32> to vector<1x32xf32>
    %cst_196 = arith.constant dense<0.000000e+00> : vector<8xf32>
    %408 = vector.multi_reduction <add>, %391, %cst_196 [1] : vector<8x32xf32> to vector<8xf32>
    %409 = vector.shape_cast %408 : vector<8xf32> to vector<8x1xf32>
    %cst_197 = arith.constant 3.200000e+01 : f32
    %410 = vector.broadcast %cst_197 : f32 to vector<8x1xf32>
    %411 = arith.divf %409, %410 : vector<8x1xf32>
    %412 = vector.broadcast %411 : vector<8x1xf32> to vector<8x32xf32>
    %413 = arith.subf %391, %412 : vector<8x32xf32>
    %414 = arith.mulf %413, %413 : vector<8x32xf32>
    %cst_198 = arith.constant dense<0.000000e+00> : vector<8xf32>
    %415 = vector.multi_reduction <add>, %414, %cst_198 [1] : vector<8x32xf32> to vector<8xf32>
    %416 = vector.shape_cast %415 : vector<8xf32> to vector<8x1xf32>
    %cst_199 = arith.constant 3.200000e+01 : f32
    %417 = vector.broadcast %cst_199 : f32 to vector<8x1xf32>
    %418 = arith.divf %416, %417 : vector<8x1xf32>
    %419 = vector.broadcast %411 : vector<8x1xf32> to vector<8x32xf32>
    %420 = arith.subf %391, %419 : vector<8x32xf32>
    %cst_200 = arith.constant 9.99999997E-7 : f32
    %421 = vector.broadcast %cst_200 : f32 to vector<8x1xf32>
    %422 = arith.addf %418, %421 : vector<8x1xf32>
    %423 = math.rsqrt %422 : vector<8x1xf32>
    %424 = vector.broadcast %423 : vector<8x1xf32> to vector<8x32xf32>
    %425 = arith.mulf %420, %424 : vector<8x32xf32>
    %426 = vector.broadcast %405 : vector<1x32xf32> to vector<8x32xf32>
    %427 = arith.mulf %425, %426 : vector<8x32xf32>
    %428 = vector.broadcast %407 : vector<1x32xf32> to vector<8x32xf32>
    %429 = arith.addf %427, %428 : vector<8x32xf32>
    %c1_201 = arith.constant 1 : index
    %c0_202 = arith.constant 0 : index
    %c0_203 = arith.constant 0 : index
    %430 = vector.load %arg20[%c1_201, %c0_202, %c0_203] : memref<2x8x32xf32, #tpu.memory_space<vmem>>, vector<1x8x32xf32>
    %431 = vector.shape_cast %430 : vector<1x8x32xf32> to vector<8x32xf32>
    %432 = vector.shape_cast %429 : vector<8x32xf32> to vector<1x8x32xf32>
    tpu.vector_store %arg20[%c1_201, %c0_202, %c0_203], %432 {strides = array<i32>} : memref<2x8x32xf32, #tpu.memory_space<vmem>>, vector<1x8x32xf32>,
    %c0_204 = arith.constant 0 : index
    %c0_205 = arith.constant 0 : index
    %c0_206 = arith.constant 0 : index
    %433 = vector.load %arg5[%c0_204, %c0_205, %c0_206] : memref<2x96x32xf32, #tpu.memory_space<vmem>>, vector<1x96x32xf32>
    %434 = vector.shape_cast %433 : vector<1x96x32xf32> to vector<96x32xf32>
    %c0_207 = arith.constant 0 : index
    %c0_208 = arith.constant 0 : index
    %c0_209 = arith.constant 0 : index
    %435 = vector.load %arg6[%c0_207, %c0_208, %c0_209] : memref<2x1x96xf32, #tpu.memory_space<vmem>>, vector<1x1x96xf32>
    %436 = vector.shape_cast %435 : vector<1x1x96xf32> to vector<1x96xf32>
    %cst_210 = arith.constant dense<0.000000e+00> : vector<8x96xf32>
    %437 = tpu.matmul %429, %434, %cst_210 {dimension_numbers = #tpu.dot_dimension_numbers<[1], [1], [0], [0], [0, 0, 1, 0], [], []>} : vector<8x32xf32>, vector<96x32xf32>, vector<8x96xf32> -> vector<8x96xf32>
    %438 = vector.broadcast %436 : vector<1x96xf32> to vector<8x96xf32>
    %439 = arith.addf %437, %438 : vector<8x96xf32>
    %440 = vector.extract_strided_slice %439 {offsets = [0, 0], sizes = [8, 32], strides = [1, 1]} : vector<8x96xf32> to vector<8x32xf32>
    %cst_211 = arith.constant 0.353553385 : f32
    %441 = vector.broadcast %cst_211 : f32 to vector<8x32xf32>
    %442 = arith.mulf %440, %441 : vector<8x32xf32>
    %443 = vector.extract_strided_slice %439 {offsets = [0, 32], sizes = [8, 32], strides = [1, 1]} : vector<8x96xf32> to vector<8x32xf32>
    %444 = vector.extract_strided_slice %439 {offsets = [0, 64], sizes = [8, 32], strides = [1, 1]} : vector<8x96xf32> to vector<8x32xf32>
    %c0_212 = arith.constant 0 : index
    %c0_213 = arith.constant 0 : index
    %c0_214 = arith.constant 0 : index
    %445 = vector.load %arg7[%c0_212, %c0_213, %c0_214] : memref<2x32x32xf32, #tpu.memory_space<vmem>>, vector<1x32x32xf32>
    %446 = vector.shape_cast %445 : vector<1x32x32xf32> to vector<32x32xf32>
    %c0_215 = arith.constant 0 : index
    %c0_216 = arith.constant 0 : index
    %c0_217 = arith.constant 0 : index
    %447 = vector.load %arg8[%c0_215, %c0_216, %c0_217] : memref<2x1x32xf32, #tpu.memory_space<vmem>>, vector<1x1x32xf32>
    %448 = vector.shape_cast %447 : vector<1x1x32xf32> to vector<1x32xf32>
    %449 = vector.extract_strided_slice %442 {offsets = [0, 0], sizes = [8, 8], strides = [1, 1]} : vector<8x32xf32> to vector<8x8xf32>
    %450 = vector.extract_strided_slice %443 {offsets = [0, 0], sizes = [8, 8], strides = [1, 1]} : vector<8x32xf32> to vector<8x8xf32>
    %cst_218 = arith.constant dense<0.000000e+00> : vector<8x8xf32>
    %451 = tpu.matmul %449, %450, %cst_218 {dimension_numbers = #tpu.dot_dimension_numbers<[1], [1], [0], [0], [0, 0, 1, 0], [], []>} : vector<8x8xf32>, vector<8x8xf32>, vector<8x8xf32> -> vector<8x8xf32>
    %452 = arith.addf %451, %397 : vector<8x8xf32>
    %cst_219 = arith.constant dense<0xFF800000> : vector<8xf32>
    %453 = vector.multi_reduction <maximumf>, %452, %cst_219 [1] : vector<8x8xf32> to vector<8xf32>
    %454 = vector.shape_cast %453 : vector<8xf32> to vector<8x1xf32>
    %455 = vector.broadcast %454 : vector<8x1xf32> to vector<8x8xf32>
    %456 = arith.subf %452, %455 : vector<8x8xf32>
    %457 = math.exp %456 : vector<8x8xf32>
    %cst_220 = arith.constant dense<0.000000e+00> : vector<8xf32>
    %458 = vector.multi_reduction <add>, %457, %cst_220 [1] : vector<8x8xf32> to vector<8xf32>
    %459 = vector.shape_cast %458 : vector<8xf32> to vector<8x1xf32>
    %460 = tpu.reciprocal %459 {approx = true} : vector<8x1xf32> -> vector<8x1xf32>
    %461 = vector.broadcast %460 : vector<8x1xf32> to vector<8x8xf32>
    %462 = arith.mulf %457, %461 : vector<8x8xf32>
    %463 = vector.broadcast %7 : vector<1x32xf32> to vector<8x32xf32>
    %464 = arith.mulf %444, %463 : vector<8x32xf32>
    %cst_221 = arith.constant dense<0.000000e+00> : vector<8x32xf32>
    %465 = tpu.matmul %462, %464, %cst_221 {dimension_numbers = #tpu.dot_dimension_numbers<[1], [0], [0], [1], [0, 0, 1, 1], [], []>} : vector<8x8xf32>, vector<8x32xf32>, vector<8x32xf32> -> vector<8x32xf32>
    %466 = vector.extract_strided_slice %442 {offsets = [0, 8], sizes = [8, 8], strides = [1, 1]} : vector<8x32xf32> to vector<8x8xf32>
    %467 = vector.extract_strided_slice %443 {offsets = [0, 8], sizes = [8, 8], strides = [1, 1]} : vector<8x32xf32> to vector<8x8xf32>
    %cst_222 = arith.constant dense<0.000000e+00> : vector<8x8xf32>
    %468 = tpu.matmul %466, %467, %cst_222 {dimension_numbers = #tpu.dot_dimension_numbers<[1], [1], [0], [0], [0, 0, 1, 0], [], []>} : vector<8x8xf32>, vector<8x8xf32>, vector<8x8xf32> -> vector<8x8xf32>
    %469 = arith.addf %468, %397 : vector<8x8xf32>
    %cst_223 = arith.constant dense<0xFF800000> : vector<8xf32>
    %470 = vector.multi_reduction <maximumf>, %469, %cst_223 [1] : vector<8x8xf32> to vector<8xf32>
    %471 = vector.shape_cast %470 : vector<8xf32> to vector<8x1xf32>
    %472 = vector.broadcast %471 : vector<8x1xf32> to vector<8x8xf32>
    %473 = arith.subf %469, %472 : vector<8x8xf32>
    %474 = math.exp %473 : vector<8x8xf32>
    %cst_224 = arith.constant dense<0.000000e+00> : vector<8xf32>
    %475 = vector.multi_reduction <add>, %474, %cst_224 [1] : vector<8x8xf32> to vector<8xf32>
    %476 = vector.shape_cast %475 : vector<8xf32> to vector<8x1xf32>
    %477 = tpu.reciprocal %476 {approx = true} : vector<8x1xf32> -> vector<8x1xf32>
    %478 = vector.broadcast %477 : vector<8x1xf32> to vector<8x8xf32>
    %479 = arith.mulf %474, %478 : vector<8x8xf32>
    %480 = vector.broadcast %14 : vector<1x32xf32> to vector<8x32xf32>
    %481 = arith.mulf %444, %480 : vector<8x32xf32>
    %cst_225 = arith.constant dense<0.000000e+00> : vector<8x32xf32>
    %482 = tpu.matmul %479, %481, %cst_225 {dimension_numbers = #tpu.dot_dimension_numbers<[1], [0], [0], [1], [0, 0, 1, 1], [], []>} : vector<8x8xf32>, vector<8x32xf32>, vector<8x32xf32> -> vector<8x32xf32>
    %483 = arith.addf %465, %482 : vector<8x32xf32>
    %484 = vector.extract_strided_slice %442 {offsets = [0, 16], sizes = [8, 8], strides = [1, 1]} : vector<8x32xf32> to vector<8x8xf32>
    %485 = vector.extract_strided_slice %443 {offsets = [0, 16], sizes = [8, 8], strides = [1, 1]} : vector<8x32xf32> to vector<8x8xf32>
    %cst_226 = arith.constant dense<0.000000e+00> : vector<8x8xf32>
    %486 = tpu.matmul %484, %485, %cst_226 {dimension_numbers = #tpu.dot_dimension_numbers<[1], [1], [0], [0], [0, 0, 1, 0], [], []>} : vector<8x8xf32>, vector<8x8xf32>, vector<8x8xf32> -> vector<8x8xf32>
    %487 = arith.addf %486, %397 : vector<8x8xf32>
    %cst_227 = arith.constant dense<0xFF800000> : vector<8xf32>
    %488 = vector.multi_reduction <maximumf>, %487, %cst_227 [1] : vector<8x8xf32> to vector<8xf32>
    %489 = vector.shape_cast %488 : vector<8xf32> to vector<8x1xf32>
    %490 = vector.broadcast %489 : vector<8x1xf32> to vector<8x8xf32>
    %491 = arith.subf %487, %490 : vector<8x8xf32>
    %492 = math.exp %491 : vector<8x8xf32>
    %cst_228 = arith.constant dense<0.000000e+00> : vector<8xf32>
    %493 = vector.multi_reduction <add>, %492, %cst_228 [1] : vector<8x8xf32> to vector<8xf32>
    %494 = vector.shape_cast %493 : vector<8xf32> to vector<8x1xf32>
    %495 = tpu.reciprocal %494 {approx = true} : vector<8x1xf32> -> vector<8x1xf32>
    %496 = vector.broadcast %495 : vector<8x1xf32> to vector<8x8xf32>
    %497 = arith.mulf %492, %496 : vector<8x8xf32>
    %498 = vector.broadcast %21 : vector<1x32xf32> to vector<8x32xf32>
    %499 = arith.mulf %444, %498 : vector<8x32xf32>
    %cst_229 = arith.constant dense<0.000000e+00> : vector<8x32xf32>
    %500 = tpu.matmul %497, %499, %cst_229 {dimension_numbers = #tpu.dot_dimension_numbers<[1], [0], [0], [1], [0, 0, 1, 1], [], []>} : vector<8x8xf32>, vector<8x32xf32>, vector<8x32xf32> -> vector<8x32xf32>
    %501 = arith.addf %483, %500 : vector<8x32xf32>
    %502 = vector.extract_strided_slice %442 {offsets = [0, 24], sizes = [8, 8], strides = [1, 1]} : vector<8x32xf32> to vector<8x8xf32>
    %503 = vector.extract_strided_slice %443 {offsets = [0, 24], sizes = [8, 8], strides = [1, 1]} : vector<8x32xf32> to vector<8x8xf32>
    %cst_230 = arith.constant dense<0.000000e+00> : vector<8x8xf32>
    %504 = tpu.matmul %502, %503, %cst_230 {dimension_numbers = #tpu.dot_dimension_numbers<[1], [1], [0], [0], [0, 0, 1, 0], [], []>} : vector<8x8xf32>, vector<8x8xf32>, vector<8x8xf32> -> vector<8x8xf32>
    %505 = arith.addf %504, %397 : vector<8x8xf32>
    %cst_231 = arith.constant dense<0xFF800000> : vector<8xf32>
    %506 = vector.multi_reduction <maximumf>, %505, %cst_231 [1] : vector<8x8xf32> to vector<8xf32>
    %507 = vector.shape_cast %506 : vector<8xf32> to vector<8x1xf32>
    %508 = vector.broadcast %507 : vector<8x1xf32> to vector<8x8xf32>
    %509 = arith.subf %505, %508 : vector<8x8xf32>
    %510 = math.exp %509 : vector<8x8xf32>
    %cst_232 = arith.constant dense<0.000000e+00> : vector<8xf32>
    %511 = vector.multi_reduction <add>, %510, %cst_232 [1] : vector<8x8xf32> to vector<8xf32>
    %512 = vector.shape_cast %511 : vector<8xf32> to vector<8x1xf32>
    %513 = tpu.reciprocal %512 {approx = true} : vector<8x1xf32> -> vector<8x1xf32>
    %514 = vector.broadcast %513 : vector<8x1xf32> to vector<8x8xf32>
    %515 = arith.mulf %510, %514 : vector<8x8xf32>
    %516 = vector.broadcast %28 : vector<1x32xf32> to vector<8x32xf32>
    %517 = arith.mulf %444, %516 : vector<8x32xf32>
    %cst_233 = arith.constant dense<0.000000e+00> : vector<8x32xf32>
    %518 = tpu.matmul %515, %517, %cst_233 {dimension_numbers = #tpu.dot_dimension_numbers<[1], [0], [0], [1], [0, 0, 1, 1], [], []>} : vector<8x8xf32>, vector<8x32xf32>, vector<8x32xf32> -> vector<8x32xf32>
    %519 = arith.addf %501, %518 : vector<8x32xf32>
    %cst_234 = arith.constant dense<0.000000e+00> : vector<8x32xf32>
    %520 = tpu.matmul %519, %446, %cst_234 {dimension_numbers = #tpu.dot_dimension_numbers<[1], [1], [0], [0], [0, 0, 1, 0], [], []>} : vector<8x32xf32>, vector<32x32xf32>, vector<8x32xf32> -> vector<8x32xf32>
    %521 = vector.broadcast %448 : vector<1x32xf32> to vector<8x32xf32>
    %522 = arith.addf %520, %521 : vector<8x32xf32>
    %c0_235 = arith.constant 0 : index
    %c0_236 = arith.constant 0 : index
    %c0_237 = arith.constant 0 : index
    %523 = vector.load %arg15[%c0_235, %c0_236, %c0_237] : memref<3x16x32xf32, #tpu.memory_space<vmem>>, vector<1x16x32xf32>
    %524 = vector.shape_cast %523 : vector<1x16x32xf32> to vector<16x32xf32>
    %c0_238 = arith.constant 0 : index
    %c0_239 = arith.constant 0 : index
    %c0_240 = arith.constant 0 : index
    %525 = vector.load %arg16[%c0_238, %c0_239, %c0_240] : memref<3x1x16xf32, #tpu.memory_space<vmem>>, vector<1x1x16xf32>
    %526 = vector.shape_cast %525 : vector<1x1x16xf32> to vector<1x16xf32>
    %c0_241 = arith.constant 0 : index
    %c0_242 = arith.constant 0 : index
    %c0_243 = arith.constant 0 : index
    %527 = vector.load %arg17[%c0_241, %c0_242, %c0_243] : memref<3x32x16xf32, #tpu.memory_space<vmem>>, vector<1x32x16xf32>
    %528 = vector.shape_cast %527 : vector<1x32x16xf32> to vector<32x16xf32>
    %c0_244 = arith.constant 0 : index
    %c0_245 = arith.constant 0 : index
    %c0_246 = arith.constant 0 : index
    %529 = vector.load %arg18[%c0_244, %c0_245, %c0_246] : memref<3x1x32xf32, #tpu.memory_space<vmem>>, vector<1x1x32xf32>
    %530 = vector.shape_cast %529 : vector<1x1x32xf32> to vector<1x32xf32>
    %cst_247 = arith.constant dense<0.000000e+00> : vector<8x16xf32>
    %531 = tpu.matmul %522, %524, %cst_247 {dimension_numbers = #tpu.dot_dimension_numbers<[1], [1], [0], [0], [0, 0, 1, 0], [], []>} : vector<8x32xf32>, vector<16x32xf32>, vector<8x16xf32> -> vector<8x16xf32>
    %532 = vector.broadcast %526 : vector<1x16xf32> to vector<8x16xf32>
    %533 = arith.addf %531, %532 : vector<8x16xf32>
    %cst_248 = arith.constant 0.000000e+00 : f32
    %534 = vector.broadcast %cst_248 : f32 to vector<8x16xf32>
    %535 = arith.maximumf %533, %534 : vector<8x16xf32>
    %cst_249 = arith.constant dense<0.000000e+00> : vector<8x32xf32>
    %536 = tpu.matmul %535, %528, %cst_249 {dimension_numbers = #tpu.dot_dimension_numbers<[1], [1], [0], [0], [0, 0, 1, 0], [], []>} : vector<8x16xf32>, vector<32x16xf32>, vector<8x32xf32> -> vector<8x32xf32>
    %537 = vector.broadcast %530 : vector<1x32xf32> to vector<8x32xf32>
    %538 = arith.addf %536, %537 : vector<8x32xf32>
    %539 = arith.addf %522, %538 : vector<8x32xf32>
    %540 = arith.addf %539, %391 : vector<8x32xf32>
    %c1_250 = arith.constant 1 : index
    %c0_251 = arith.constant 0 : index
    %c0_252 = arith.constant 0 : index
    %541 = vector.load %arg9[%c1_250, %c0_251, %c0_252] : memref<3x1x32xf32, #tpu.memory_space<vmem>>, vector<1x1x32xf32>
    %542 = vector.shape_cast %541 : vector<1x1x32xf32> to vector<1x32xf32>
    %c1_253 = arith.constant 1 : index
    %c0_254 = arith.constant 0 : index
    %c0_255 = arith.constant 0 : index
    %543 = vector.load %arg10[%c1_253, %c0_254, %c0_255] : memref<3x1x32xf32, #tpu.memory_space<vmem>>, vector<1x1x32xf32>
    %544 = vector.shape_cast %543 : vector<1x1x32xf32> to vector<1x32xf32>
    %cst_256 = arith.constant dense<0.000000e+00> : vector<8xf32>
    %545 = vector.multi_reduction <add>, %540, %cst_256 [1] : vector<8x32xf32> to vector<8xf32>
    %546 = vector.shape_cast %545 : vector<8xf32> to vector<8x1xf32>
    %cst_257 = arith.constant 3.200000e+01 : f32
    %547 = vector.broadcast %cst_257 : f32 to vector<8x1xf32>
    %548 = arith.divf %546, %547 : vector<8x1xf32>
    %549 = vector.broadcast %548 : vector<8x1xf32> to vector<8x32xf32>
    %550 = arith.subf %540, %549 : vector<8x32xf32>
    %551 = arith.mulf %550, %550 : vector<8x32xf32>
    %cst_258 = arith.constant dense<0.000000e+00> : vector<8xf32>
    %552 = vector.multi_reduction <add>, %551, %cst_258 [1] : vector<8x32xf32> to vector<8xf32>
    %553 = vector.shape_cast %552 : vector<8xf32> to vector<8x1xf32>
    %cst_259 = arith.constant 3.200000e+01 : f32
    %554 = vector.broadcast %cst_259 : f32 to vector<8x1xf32>
    %555 = arith.divf %553, %554 : vector<8x1xf32>
    %556 = vector.broadcast %548 : vector<8x1xf32> to vector<8x32xf32>
    %557 = arith.subf %540, %556 : vector<8x32xf32>
    %cst_260 = arith.constant 9.99999997E-7 : f32
    %558 = vector.broadcast %cst_260 : f32 to vector<8x1xf32>
    %559 = arith.addf %555, %558 : vector<8x1xf32>
    %560 = math.rsqrt %559 : vector<8x1xf32>
    %561 = vector.broadcast %560 : vector<8x1xf32> to vector<8x32xf32>
    %562 = arith.mulf %557, %561 : vector<8x32xf32>
    %563 = vector.broadcast %542 : vector<1x32xf32> to vector<8x32xf32>
    %564 = arith.mulf %562, %563 : vector<8x32xf32>
    %565 = vector.broadcast %544 : vector<1x32xf32> to vector<8x32xf32>
    %566 = arith.addf %564, %565 : vector<8x32xf32>
    %c1_261 = arith.constant 1 : index
    %c0_262 = arith.constant 0 : index
    %c0_263 = arith.constant 0 : index
    %567 = vector.load %arg6[%c1_261, %c0_262, %c0_263] : memref<2x1x96xf32, #tpu.memory_space<vmem>>, vector<1x1x96xf32>
    %568 = vector.shape_cast %567 : vector<1x1x96xf32> to vector<1x96xf32>
    %c1_264 = arith.constant 1 : index
    %c0_265 = arith.constant 0 : index
    %c0_266 = arith.constant 0 : index
    %569 = vector.load %arg5[%c1_264, %c0_265, %c0_266] : memref<2x96x32xf32, #tpu.memory_space<vmem>>, vector<1x32x32xf32>
    %570 = vector.shape_cast %569 : vector<1x32x32xf32> to vector<32x32xf32>
    %571 = vector.extract_strided_slice %568 {offsets = [0, 0], sizes = [1, 32], strides = [1, 1]} : vector<1x96xf32> to vector<1x32xf32>
    %cst_267 = arith.constant dense<0.000000e+00> : vector<8x32xf32>
    %572 = tpu.matmul %566, %570, %cst_267 {dimension_numbers = #tpu.dot_dimension_numbers<[1], [1], [0], [0], [0, 0, 1, 0], [], []>} : vector<8x32xf32>, vector<32x32xf32>, vector<8x32xf32> -> vector<8x32xf32>
    %573 = vector.broadcast %571 : vector<1x32xf32> to vector<8x32xf32>
    %574 = arith.addf %572, %573 : vector<8x32xf32>
    %cst_268 = arith.constant 0.353553385 : f32
    %575 = vector.broadcast %cst_268 : f32 to vector<8x32xf32>
    %576 = arith.mulf %574, %575 : vector<8x32xf32>
    %c1_269 = arith.constant 1 : index
    %c32_270 = arith.constant 32 : index
    %c0_271 = arith.constant 0 : index
    %577 = vector.load %arg5[%c1_269, %c32_270, %c0_271] : memref<2x96x32xf32, #tpu.memory_space<vmem>>, vector<1x64x32xf32>
    %578 = vector.shape_cast %577 : vector<1x64x32xf32> to vector<64x32xf32>
    %579 = vector.extract_strided_slice %568 {offsets = [0, 32], sizes = [1, 64], strides = [1, 1]} : vector<1x96xf32> to vector<1x64xf32>
    %cst_272 = arith.constant dense<0.000000e+00> : vector<8x64xf32>
    %580 = tpu.matmul %393, %578, %cst_272 {dimension_numbers = #tpu.dot_dimension_numbers<[1], [1], [0], [0], [0, 0, 1, 0], [], []>} : vector<8x32xf32>, vector<64x32xf32>, vector<8x64xf32> -> vector<8x64xf32>
    %581 = vector.broadcast %579 : vector<1x64xf32> to vector<8x64xf32>
    %582 = arith.addf %580, %581 : vector<8x64xf32>
    %583 = vector.extract_strided_slice %582 {offsets = [0, 0], sizes = [8, 32], strides = [1, 1]} : vector<8x64xf32> to vector<8x32xf32>
    %584 = vector.extract_strided_slice %582 {offsets = [0, 32], sizes = [8, 32], strides = [1, 1]} : vector<8x64xf32> to vector<8x32xf32>
    %c1_273 = arith.constant 1 : index
    %c0_274 = arith.constant 0 : index
    %c0_275 = arith.constant 0 : index
    %585 = vector.load %arg7[%c1_273, %c0_274, %c0_275] : memref<2x32x32xf32, #tpu.memory_space<vmem>>, vector<1x32x32xf32>
    %586 = vector.shape_cast %585 : vector<1x32x32xf32> to vector<32x32xf32>
    %c1_276 = arith.constant 1 : index
    %c0_277 = arith.constant 0 : index
    %c0_278 = arith.constant 0 : index
    %587 = vector.load %arg8[%c1_276, %c0_277, %c0_278] : memref<2x1x32xf32, #tpu.memory_space<vmem>>, vector<1x1x32xf32>
    %588 = vector.shape_cast %587 : vector<1x1x32xf32> to vector<1x32xf32>
    %589 = vector.extract_strided_slice %576 {offsets = [0, 0], sizes = [8, 8], strides = [1, 1]} : vector<8x32xf32> to vector<8x8xf32>
    %590 = vector.extract_strided_slice %583 {offsets = [0, 0], sizes = [8, 8], strides = [1, 1]} : vector<8x32xf32> to vector<8x8xf32>
    %cst_279 = arith.constant dense<0.000000e+00> : vector<8x8xf32>
    %591 = tpu.matmul %589, %590, %cst_279 {dimension_numbers = #tpu.dot_dimension_numbers<[1], [1], [0], [0], [0, 0, 1, 0], [], []>} : vector<8x8xf32>, vector<8x8xf32>, vector<8x8xf32> -> vector<8x8xf32>
    %592 = arith.addf %591, %403 : vector<8x8xf32>
    %cst_280 = arith.constant dense<0xFF800000> : vector<8xf32>
    %593 = vector.multi_reduction <maximumf>, %592, %cst_280 [1] : vector<8x8xf32> to vector<8xf32>
    %594 = vector.shape_cast %593 : vector<8xf32> to vector<8x1xf32>
    %595 = vector.broadcast %594 : vector<8x1xf32> to vector<8x8xf32>
    %596 = arith.subf %592, %595 : vector<8x8xf32>
    %597 = math.exp %596 : vector<8x8xf32>
    %cst_281 = arith.constant dense<0.000000e+00> : vector<8xf32>
    %598 = vector.multi_reduction <add>, %597, %cst_281 [1] : vector<8x8xf32> to vector<8xf32>
    %599 = vector.shape_cast %598 : vector<8xf32> to vector<8x1xf32>
    %600 = tpu.reciprocal %599 {approx = true} : vector<8x1xf32> -> vector<8x1xf32>
    %601 = vector.broadcast %600 : vector<8x1xf32> to vector<8x8xf32>
    %602 = arith.mulf %597, %601 : vector<8x8xf32>
    %603 = vector.broadcast %7 : vector<1x32xf32> to vector<8x32xf32>
    %604 = arith.mulf %584, %603 : vector<8x32xf32>
    %cst_282 = arith.constant dense<0.000000e+00> : vector<8x32xf32>
    %605 = tpu.matmul %602, %604, %cst_282 {dimension_numbers = #tpu.dot_dimension_numbers<[1], [0], [0], [1], [0, 0, 1, 1], [], []>} : vector<8x8xf32>, vector<8x32xf32>, vector<8x32xf32> -> vector<8x32xf32>
    %606 = vector.extract_strided_slice %576 {offsets = [0, 8], sizes = [8, 8], strides = [1, 1]} : vector<8x32xf32> to vector<8x8xf32>
    %607 = vector.extract_strided_slice %583 {offsets = [0, 8], sizes = [8, 8], strides = [1, 1]} : vector<8x32xf32> to vector<8x8xf32>
    %cst_283 = arith.constant dense<0.000000e+00> : vector<8x8xf32>
    %608 = tpu.matmul %606, %607, %cst_283 {dimension_numbers = #tpu.dot_dimension_numbers<[1], [1], [0], [0], [0, 0, 1, 0], [], []>} : vector<8x8xf32>, vector<8x8xf32>, vector<8x8xf32> -> vector<8x8xf32>
    %609 = arith.addf %608, %403 : vector<8x8xf32>
    %cst_284 = arith.constant dense<0xFF800000> : vector<8xf32>
    %610 = vector.multi_reduction <maximumf>, %609, %cst_284 [1] : vector<8x8xf32> to vector<8xf32>
    %611 = vector.shape_cast %610 : vector<8xf32> to vector<8x1xf32>
    %612 = vector.broadcast %611 : vector<8x1xf32> to vector<8x8xf32>
    %613 = arith.subf %609, %612 : vector<8x8xf32>
    %614 = math.exp %613 : vector<8x8xf32>
    %cst_285 = arith.constant dense<0.000000e+00> : vector<8xf32>
    %615 = vector.multi_reduction <add>, %614, %cst_285 [1] : vector<8x8xf32> to vector<8xf32>
    %616 = vector.shape_cast %615 : vector<8xf32> to vector<8x1xf32>
    %617 = tpu.reciprocal %616 {approx = true} : vector<8x1xf32> -> vector<8x1xf32>
    %618 = vector.broadcast %617 : vector<8x1xf32> to vector<8x8xf32>
    %619 = arith.mulf %614, %618 : vector<8x8xf32>
    %620 = vector.broadcast %14 : vector<1x32xf32> to vector<8x32xf32>
    %621 = arith.mulf %584, %620 : vector<8x32xf32>
    %cst_286 = arith.constant dense<0.000000e+00> : vector<8x32xf32>
    %622 = tpu.matmul %619, %621, %cst_286 {dimension_numbers = #tpu.dot_dimension_numbers<[1], [0], [0], [1], [0, 0, 1, 1], [], []>} : vector<8x8xf32>, vector<8x32xf32>, vector<8x32xf32> -> vector<8x32xf32>
    %623 = arith.addf %605, %622 : vector<8x32xf32>
    %624 = vector.extract_strided_slice %576 {offsets = [0, 16], sizes = [8, 8], strides = [1, 1]} : vector<8x32xf32> to vector<8x8xf32>
    %625 = vector.extract_strided_slice %583 {offsets = [0, 16], sizes = [8, 8], strides = [1, 1]} : vector<8x32xf32> to vector<8x8xf32>
    %cst_287 = arith.constant dense<0.000000e+00> : vector<8x8xf32>
    %626 = tpu.matmul %624, %625, %cst_287 {dimension_numbers = #tpu.dot_dimension_numbers<[1], [1], [0], [0], [0, 0, 1, 0], [], []>} : vector<8x8xf32>, vector<8x8xf32>, vector<8x8xf32> -> vector<8x8xf32>
    %627 = arith.addf %626, %403 : vector<8x8xf32>
    %cst_288 = arith.constant dense<0xFF800000> : vector<8xf32>
    %628 = vector.multi_reduction <maximumf>, %627, %cst_288 [1] : vector<8x8xf32> to vector<8xf32>
    %629 = vector.shape_cast %628 : vector<8xf32> to vector<8x1xf32>
    %630 = vector.broadcast %629 : vector<8x1xf32> to vector<8x8xf32>
    %631 = arith.subf %627, %630 : vector<8x8xf32>
    %632 = math.exp %631 : vector<8x8xf32>
    %cst_289 = arith.constant dense<0.000000e+00> : vector<8xf32>
    %633 = vector.multi_reduction <add>, %632, %cst_289 [1] : vector<8x8xf32> to vector<8xf32>
    %634 = vector.shape_cast %633 : vector<8xf32> to vector<8x1xf32>
    %635 = tpu.reciprocal %634 {approx = true} : vector<8x1xf32> -> vector<8x1xf32>
    %636 = vector.broadcast %635 : vector<8x1xf32> to vector<8x8xf32>
    %637 = arith.mulf %632, %636 : vector<8x8xf32>
    %638 = vector.broadcast %21 : vector<1x32xf32> to vector<8x32xf32>
    %639 = arith.mulf %584, %638 : vector<8x32xf32>
    %cst_290 = arith.constant dense<0.000000e+00> : vector<8x32xf32>
    %640 = tpu.matmul %637, %639, %cst_290 {dimension_numbers = #tpu.dot_dimension_numbers<[1], [0], [0], [1], [0, 0, 1, 1], [], []>} : vector<8x8xf32>, vector<8x32xf32>, vector<8x32xf32> -> vector<8x32xf32>
    %641 = arith.addf %623, %640 : vector<8x32xf32>
    %642 = vector.extract_strided_slice %576 {offsets = [0, 24], sizes = [8, 8], strides = [1, 1]} : vector<8x32xf32> to vector<8x8xf32>
    %643 = vector.extract_strided_slice %583 {offsets = [0, 24], sizes = [8, 8], strides = [1, 1]} : vector<8x32xf32> to vector<8x8xf32>
    %cst_291 = arith.constant dense<0.000000e+00> : vector<8x8xf32>
    %644 = tpu.matmul %642, %643, %cst_291 {dimension_numbers = #tpu.dot_dimension_numbers<[1], [1], [0], [0], [0, 0, 1, 0], [], []>} : vector<8x8xf32>, vector<8x8xf32>, vector<8x8xf32> -> vector<8x8xf32>
    %645 = arith.addf %644, %403 : vector<8x8xf32>
    %cst_292 = arith.constant dense<0xFF800000> : vector<8xf32>
    %646 = vector.multi_reduction <maximumf>, %645, %cst_292 [1] : vector<8x8xf32> to vector<8xf32>
    %647 = vector.shape_cast %646 : vector<8xf32> to vector<8x1xf32>
    %648 = vector.broadcast %647 : vector<8x1xf32> to vector<8x8xf32>
    %649 = arith.subf %645, %648 : vector<8x8xf32>
    %650 = math.exp %649 : vector<8x8xf32>
    %cst_293 = arith.constant dense<0.000000e+00> : vector<8xf32>
    %651 = vector.multi_reduction <add>, %650, %cst_293 [1] : vector<8x8xf32> to vector<8xf32>
    %652 = vector.shape_cast %651 : vector<8xf32> to vector<8x1xf32>
    %653 = tpu.reciprocal %652 {approx = true} : vector<8x1xf32> -> vector<8x1xf32>
    %654 = vector.broadcast %653 : vector<8x1xf32> to vector<8x8xf32>
    %655 = arith.mulf %650, %654 : vector<8x8xf32>
    %656 = vector.broadcast %28 : vector<1x32xf32> to vector<8x32xf32>
    %657 = arith.mulf %584, %656 : vector<8x32xf32>
    %cst_294 = arith.constant dense<0.000000e+00> : vector<8x32xf32>
    %658 = tpu.matmul %655, %657, %cst_294 {dimension_numbers = #tpu.dot_dimension_numbers<[1], [0], [0], [1], [0, 0, 1, 1], [], []>} : vector<8x8xf32>, vector<8x32xf32>, vector<8x32xf32> -> vector<8x32xf32>
    %659 = arith.addf %641, %658 : vector<8x32xf32>
    %cst_295 = arith.constant dense<0.000000e+00> : vector<8x32xf32>
    %660 = tpu.matmul %659, %586, %cst_295 {dimension_numbers = #tpu.dot_dimension_numbers<[1], [1], [0], [0], [0, 0, 1, 0], [], []>} : vector<8x32xf32>, vector<32x32xf32>, vector<8x32xf32> -> vector<8x32xf32>
    %661 = vector.broadcast %588 : vector<1x32xf32> to vector<8x32xf32>
    %662 = arith.addf %660, %661 : vector<8x32xf32>
    %c1_296 = arith.constant 1 : index
    %c0_297 = arith.constant 0 : index
    %c0_298 = arith.constant 0 : index
    %663 = vector.load %arg15[%c1_296, %c0_297, %c0_298] : memref<3x16x32xf32, #tpu.memory_space<vmem>>, vector<1x16x32xf32>
    %664 = vector.shape_cast %663 : vector<1x16x32xf32> to vector<16x32xf32>
    %c1_299 = arith.constant 1 : index
    %c0_300 = arith.constant 0 : index
    %c0_301 = arith.constant 0 : index
    %665 = vector.load %arg16[%c1_299, %c0_300, %c0_301] : memref<3x1x16xf32, #tpu.memory_space<vmem>>, vector<1x1x16xf32>
    %666 = vector.shape_cast %665 : vector<1x1x16xf32> to vector<1x16xf32>
    %c1_302 = arith.constant 1 : index
    %c0_303 = arith.constant 0 : index
    %c0_304 = arith.constant 0 : index
    %667 = vector.load %arg17[%c1_302, %c0_303, %c0_304] : memref<3x32x16xf32, #tpu.memory_space<vmem>>, vector<1x32x16xf32>
    %668 = vector.shape_cast %667 : vector<1x32x16xf32> to vector<32x16xf32>
    %c1_305 = arith.constant 1 : index
    %c0_306 = arith.constant 0 : index
    %c0_307 = arith.constant 0 : index
    %669 = vector.load %arg18[%c1_305, %c0_306, %c0_307] : memref<3x1x32xf32, #tpu.memory_space<vmem>>, vector<1x1x32xf32>
    %670 = vector.shape_cast %669 : vector<1x1x32xf32> to vector<1x32xf32>
    %cst_308 = arith.constant dense<0.000000e+00> : vector<8x16xf32>
    %671 = tpu.matmul %662, %664, %cst_308 {dimension_numbers = #tpu.dot_dimension_numbers<[1], [1], [0], [0], [0, 0, 1, 0], [], []>} : vector<8x32xf32>, vector<16x32xf32>, vector<8x16xf32> -> vector<8x16xf32>
    %672 = vector.broadcast %666 : vector<1x16xf32> to vector<8x16xf32>
    %673 = arith.addf %671, %672 : vector<8x16xf32>
    %cst_309 = arith.constant 0.000000e+00 : f32
    %674 = vector.broadcast %cst_309 : f32 to vector<8x16xf32>
    %675 = arith.maximumf %673, %674 : vector<8x16xf32>
    %cst_310 = arith.constant dense<0.000000e+00> : vector<8x32xf32>
    %676 = tpu.matmul %675, %668, %cst_310 {dimension_numbers = #tpu.dot_dimension_numbers<[1], [1], [0], [0], [0, 0, 1, 0], [], []>} : vector<8x16xf32>, vector<32x16xf32>, vector<8x32xf32> -> vector<8x32xf32>
    %677 = vector.broadcast %670 : vector<1x32xf32> to vector<8x32xf32>
    %678 = arith.addf %676, %677 : vector<8x32xf32>
    %679 = arith.addf %662, %678 : vector<8x32xf32>
    %680 = arith.addf %679, %540 : vector<8x32xf32>
    %c2_311 = arith.constant 2 : index
    %c0_312 = arith.constant 0 : index
    %c0_313 = arith.constant 0 : index
    %681 = vector.load %arg9[%c2_311, %c0_312, %c0_313] : memref<3x1x32xf32, #tpu.memory_space<vmem>>, vector<1x1x32xf32>
    %682 = vector.shape_cast %681 : vector<1x1x32xf32> to vector<1x32xf32>
    %c2_314 = arith.constant 2 : index
    %c0_315 = arith.constant 0 : index
    %c0_316 = arith.constant 0 : index
    %683 = vector.load %arg10[%c2_314, %c0_315, %c0_316] : memref<3x1x32xf32, #tpu.memory_space<vmem>>, vector<1x1x32xf32>
    %684 = vector.shape_cast %683 : vector<1x1x32xf32> to vector<1x32xf32>
    %cst_317 = arith.constant dense<0.000000e+00> : vector<8xf32>
    %685 = vector.multi_reduction <add>, %680, %cst_317 [1] : vector<8x32xf32> to vector<8xf32>
    %686 = vector.shape_cast %685 : vector<8xf32> to vector<8x1xf32>
    %cst_318 = arith.constant 3.200000e+01 : f32
    %687 = vector.broadcast %cst_318 : f32 to vector<8x1xf32>
    %688 = arith.divf %686, %687 : vector<8x1xf32>
    %689 = vector.broadcast %688 : vector<8x1xf32> to vector<8x32xf32>
    %690 = arith.subf %680, %689 : vector<8x32xf32>
    %691 = arith.mulf %690, %690 : vector<8x32xf32>
    %cst_319 = arith.constant dense<0.000000e+00> : vector<8xf32>
    %692 = vector.multi_reduction <add>, %691, %cst_319 [1] : vector<8x32xf32> to vector<8xf32>
    %693 = vector.shape_cast %692 : vector<8xf32> to vector<8x1xf32>
    %cst_320 = arith.constant 3.200000e+01 : f32
    %694 = vector.broadcast %cst_320 : f32 to vector<8x1xf32>
    %695 = arith.divf %693, %694 : vector<8x1xf32>
    %696 = vector.broadcast %688 : vector<8x1xf32> to vector<8x32xf32>
    %697 = arith.subf %680, %696 : vector<8x32xf32>
    %cst_321 = arith.constant 9.99999997E-7 : f32
    %698 = vector.broadcast %cst_321 : f32 to vector<8x1xf32>
    %699 = arith.addf %695, %698 : vector<8x1xf32>
    %700 = math.rsqrt %699 : vector<8x1xf32>
    %701 = vector.broadcast %700 : vector<8x1xf32> to vector<8x32xf32>
    %702 = arith.mulf %697, %701 : vector<8x32xf32>
    %703 = vector.broadcast %682 : vector<1x32xf32> to vector<8x32xf32>
    %704 = arith.mulf %702, %703 : vector<8x32xf32>
    %705 = vector.broadcast %684 : vector<1x32xf32> to vector<8x32xf32>
    %706 = arith.addf %704, %705 : vector<8x32xf32>
    %c0_322 = arith.constant 0 : index
    %c0_323 = arith.constant 0 : index
    %707 = vector.load %arg11[%c0_322, %c0_323] : memref<64x32xf32, #tpu.memory_space<vmem>>, vector<64x32xf32>
    %c0_324 = arith.constant 0 : index
    %c0_325 = arith.constant 0 : index
    %708 = vector.load %arg12[%c0_324, %c0_325] : memref<1x64xf32, #tpu.memory_space<vmem>>, vector<1x64xf32>
    %cst_326 = arith.constant dense<0.000000e+00> : vector<8x64xf32>
    %709 = tpu.matmul %706, %707, %cst_326 {dimension_numbers = #tpu.dot_dimension_numbers<[1], [1], [0], [0], [0, 0, 1, 0], [], []>} : vector<8x32xf32>, vector<64x32xf32>, vector<8x64xf32> -> vector<8x64xf32>
    %710 = vector.broadcast %708 : vector<1x64xf32> to vector<8x64xf32>
    %711 = arith.addf %709, %710 : vector<8x64xf32>
    %712 = arith.mulf %711, %711 : vector<8x64xf32>
    %713 = arith.mulf %711, %712 : vector<8x64xf32>
    %cst_327 = arith.constant 4.471500e-02 : f32
    %714 = vector.broadcast %cst_327 : f32 to vector<8x64xf32>
    %715 = arith.mulf %714, %713 : vector<8x64xf32>
    %716 = arith.addf %711, %715 : vector<8x64xf32>
    %cst_328 = arith.constant 0.797884583 : f32
    %717 = vector.broadcast %cst_328 : f32 to vector<8x64xf32>
    %718 = arith.mulf %717, %716 : vector<8x64xf32>
    %719 = math.tanh %718 : vector<8x64xf32>
    %cst_329 = arith.constant 1.000000e+00 : f32
    %720 = vector.broadcast %cst_329 : f32 to vector<8x64xf32>
    %721 = arith.addf %720, %719 : vector<8x64xf32>
    %cst_330 = arith.constant 5.000000e-01 : f32
    %722 = vector.broadcast %cst_330 : f32 to vector<8x64xf32>
    %723 = arith.mulf %722, %721 : vector<8x64xf32>
    %724 = arith.mulf %711, %723 : vector<8x64xf32>
    %c0_331 = arith.constant 0 : index
    %c0_332 = arith.constant 0 : index
    %725 = vector.load %arg13[%c0_331, %c0_332] : memref<32x64xf32, #tpu.memory_space<vmem>>, vector<32x64xf32>
    %c0_333 = arith.constant 0 : index
    %c0_334 = arith.constant 0 : index
    %726 = vector.load %arg14[%c0_333, %c0_334] : memref<1x32xf32, #tpu.memory_space<vmem>>, vector<1x32xf32>
    %cst_335 = arith.constant dense<0.000000e+00> : vector<8x32xf32>
    %727 = tpu.matmul %724, %725, %cst_335 {dimension_numbers = #tpu.dot_dimension_numbers<[1], [1], [0], [0], [0, 0, 1, 0], [], []>} : vector<8x64xf32>, vector<32x64xf32>, vector<8x32xf32> -> vector<8x32xf32>
    %728 = vector.broadcast %726 : vector<1x32xf32> to vector<8x32xf32>
    %729 = arith.addf %727, %728 : vector<8x32xf32>
    %c2_336 = arith.constant 2 : index
    %c0_337 = arith.constant 0 : index
    %c0_338 = arith.constant 0 : index
    %730 = vector.load %arg15[%c2_336, %c0_337, %c0_338] : memref<3x16x32xf32, #tpu.memory_space<vmem>>, vector<1x16x32xf32>
    %731 = vector.shape_cast %730 : vector<1x16x32xf32> to vector<16x32xf32>
    %c2_339 = arith.constant 2 : index
    %c0_340 = arith.constant 0 : index
    %c0_341 = arith.constant 0 : index
    %732 = vector.load %arg16[%c2_339, %c0_340, %c0_341] : memref<3x1x16xf32, #tpu.memory_space<vmem>>, vector<1x1x16xf32>
    %733 = vector.shape_cast %732 : vector<1x1x16xf32> to vector<1x16xf32>
    %c2_342 = arith.constant 2 : index
    %c0_343 = arith.constant 0 : index
    %c0_344 = arith.constant 0 : index
    %734 = vector.load %arg17[%c2_342, %c0_343, %c0_344] : memref<3x32x16xf32, #tpu.memory_space<vmem>>, vector<1x32x16xf32>
    %735 = vector.shape_cast %734 : vector<1x32x16xf32> to vector<32x16xf32>
    %c2_345 = arith.constant 2 : index
    %c0_346 = arith.constant 0 : index
    %c0_347 = arith.constant 0 : index
    %736 = vector.load %arg18[%c2_345, %c0_346, %c0_347] : memref<3x1x32xf32, #tpu.memory_space<vmem>>, vector<1x1x32xf32>
    %737 = vector.shape_cast %736 : vector<1x1x32xf32> to vector<1x32xf32>
    %cst_348 = arith.constant dense<0.000000e+00> : vector<8x16xf32>
    %738 = tpu.matmul %729, %731, %cst_348 {dimension_numbers = #tpu.dot_dimension_numbers<[1], [1], [0], [0], [0, 0, 1, 0], [], []>} : vector<8x32xf32>, vector<16x32xf32>, vector<8x16xf32> -> vector<8x16xf32>
    %739 = vector.broadcast %733 : vector<1x16xf32> to vector<8x16xf32>
    %740 = arith.addf %738, %739 : vector<8x16xf32>
    %cst_349 = arith.constant 0.000000e+00 : f32
    %741 = vector.broadcast %cst_349 : f32 to vector<8x16xf32>
    %742 = arith.maximumf %740, %741 : vector<8x16xf32>
    %cst_350 = arith.constant dense<0.000000e+00> : vector<8x32xf32>
    %743 = tpu.matmul %742, %735, %cst_350 {dimension_numbers = #tpu.dot_dimension_numbers<[1], [1], [0], [0], [0, 0, 1, 0], [], []>} : vector<8x16xf32>, vector<32x16xf32>, vector<8x32xf32> -> vector<8x32xf32>
    %744 = vector.broadcast %737 : vector<1x32xf32> to vector<8x32xf32>
    %745 = arith.addf %743, %744 : vector<8x32xf32>
    %746 = arith.addf %729, %745 : vector<8x32xf32>
    %747 = arith.addf %746, %680 : vector<8x32xf32>
    %c1_351 = arith.constant 1 : index
    %c0_352 = arith.constant 0 : index
    %c0_353 = arith.constant 0 : index
    %748 = vector.load %arg19[%c1_351, %c0_352, %c0_353] : memref<2x8x32xf32, #tpu.memory_space<vmem>>, vector<1x8x32xf32>
    %749 = vector.shape_cast %748 : vector<1x8x32xf32> to vector<8x32xf32>
    %750 = vector.shape_cast %747 : vector<8x32xf32> to vector<1x8x32xf32>
    tpu.vector_store %arg19[%c1_351, %c0_352, %c0_353], %750 {strides = array<i32>} : memref<2x8x32xf32, #tpu.memory_space<vmem>>, vector<1x8x32xf32>,
    return
  }
  func.func @transform_0(%arg0: i32) -> (i32, i32, i32) {
    %c0_i32 = arith.constant 0 : i32
    %c0_i32_0 = arith.constant 0 : i32
    %c0_i32_1 = arith.constant 0 : i32
    return %arg0, %c0_i32, %c0_i32_0 : i32, i32, i32
  }
  func.func @transform_1(%arg0: i32) -> (i32, i32, i32) {
    %c0_i32 = arith.constant 0 : i32
    %c0_i32_0 = arith.constant 0 : i32
    %c0_i32_1 = arith.constant 0 : i32
    return %arg0, %c0_i32, %c0_i32_0 : i32, i32, i32
  }
  func.func @transform_2(%arg0: i32) -> (i32, i32, i32) {
    %c0_i32 = arith.constant 0 : i32
    %c0_i32_0 = arith.constant 0 : i32
    %c0_i32_1 = arith.constant 0 : i32
    return %arg0, %c0_i32, %c0_i32_0 : i32, i32, i32
  }
  func.func @transform_3(%arg0: i32) -> (i32, i32, i32) {
    %c0_i32 = arith.constant 0 : i32
    %c0_i32_0 = arith.constant 0 : i32
    %c0_i32_1 = arith.constant 0 : i32
    return %arg0, %c0_i32, %c0_i32_0 : i32, i32, i32
  }
  func.func @transform_4(%arg0: i32) -> (i32, i32, i32) {
    %c0_i32 = arith.constant 0 : i32
    %c0_i32_0 = arith.constant 0 : i32
    %c0_i32_1 = arith.constant 0 : i32
    %c0_i32_2 = arith.constant 0 : i32
    return %c0_i32, %c0_i32_0, %c0_i32_1 : i32, i32, i32
  }
  func.func @transform_5(%arg0: i32) -> (i32, i32, i32) {
    %c0_i32 = arith.constant 0 : i32
    %c0_i32_0 = arith.constant 0 : i32
    %c0_i32_1 = arith.constant 0 : i32
    %c0_i32_2 = arith.constant 0 : i32
    return %c0_i32, %c0_i32_0, %c0_i32_1 : i32, i32, i32
  }
  func.func @transform_6(%arg0: i32) -> (i32, i32, i32) {
    %c0_i32 = arith.constant 0 : i32
    %c0_i32_0 = arith.constant 0 : i32
    %c0_i32_1 = arith.constant 0 : i32
    %c0_i32_2 = arith.constant 0 : i32
    return %c0_i32, %c0_i32_0, %c0_i32_1 : i32, i32, i32
  }
  func.func @transform_7(%arg0: i32) -> (i32, i32, i32) {
    %c0_i32 = arith.constant 0 : i32
    %c0_i32_0 = arith.constant 0 : i32
    %c0_i32_1 = arith.constant 0 : i32
    %c0_i32_2 = arith.constant 0 : i32
    return %c0_i32, %c0_i32_0, %c0_i32_1 : i32, i32, i32
  }
  func.func @transform_8(%arg0: i32) -> (i32, i32, i32) {
    %c0_i32 = arith.constant 0 : i32
    %c0_i32_0 = arith.constant 0 : i32
    %c0_i32_1 = arith.constant 0 : i32
    %c0_i32_2 = arith.constant 0 : i32
    return %c0_i32, %c0_i32_0, %c0_i32_1 : i32, i32, i32
  }
  func.func @transform_9(%arg0: i32) -> (i32, i32, i32) {
    %c0_i32 = arith.constant 0 : i32
    %c0_i32_0 = arith.constant 0 : i32
    %c0_i32_1 = arith.constant 0 : i32
    %c0_i32_2 = arith.constant 0 : i32
    return %c0_i32, %c0_i32_0, %c0_i32_1 : i32, i32, i32
  }
  func.func @transform_10(%arg0: i32) -> (i32, i32) {
    %c0_i32 = arith.constant 0 : i32
    %c0_i32_0 = arith.constant 0 : i32
    %c0_i32_1 = arith.constant 0 : i32
    return %c0_i32, %c0_i32_0 : i32, i32
  }
  func.func @transform_11(%arg0: i32) -> (i32, i32) {
    %c0_i32 = arith.constant 0 : i32
    %c0_i32_0 = arith.constant 0 : i32
    %c0_i32_1 = arith.constant 0 : i32
    return %c0_i32, %c0_i32_0 : i32, i32
  }
  func.func @transform_12(%arg0: i32) -> (i32, i32) {
    %c0_i32 = arith.constant 0 : i32
    %c0_i32_0 = arith.constant 0 : i32
    %c0_i32_1 = arith.constant 0 : i32
    return %c0_i32, %c0_i32_0 : i32, i32
  }
  func.func @transform_13(%arg0: i32) -> (i32, i32) {
    %c0_i32 = arith.constant 0 : i32
    %c0_i32_0 = arith.constant 0 : i32
    %c0_i32_1 = arith.constant 0 : i32
    return %c0_i32, %c0_i32_0 : i32, i32
  }
  func.func @transform_14(%arg0: i32) -> (i32, i32, i32) {
    %c0_i32 = arith.constant 0 : i32
    %c0_i32_0 = arith.constant 0 : i32
    %c0_i32_1 = arith.constant 0 : i32
    %c0_i32_2 = arith.constant 0 : i32
    return %c0_i32, %c0_i32_0, %c0_i32_1 : i32, i32, i32
  }
  func.func @transform_15(%arg0: i32) -> (i32, i32, i32) {
    %c0_i32 = arith.constant 0 : i32
    %c0_i32_0 = arith.constant 0 : i32
    %c0_i32_1 = arith.constant 0 : i32
    %c0_i32_2 = arith.constant 0 : i32
    return %c0_i32, %c0_i32_0, %c0_i32_1 : i32, i32, i32
  }
  func.func @transform_16(%arg0: i32) -> (i32, i32, i32) {
    %c0_i32 = arith.constant 0 : i32
    %c0_i32_0 = arith.constant 0 : i32
    %c0_i32_1 = arith.constant 0 : i32
    %c0_i32_2 = arith.constant 0 : i32
    return %c0_i32, %c0_i32_0, %c0_i32_1 : i32, i32, i32
  }
  func.func @transform_17(%arg0: i32) -> (i32, i32, i32) {
    %c0_i32 = arith.constant 0 : i32
    %c0_i32_0 = arith.constant 0 : i32
    %c0_i32_1 = arith.constant 0 : i32
    %c0_i32_2 = arith.constant 0 : i32
    return %c0_i32, %c0_i32_0, %c0_i32_1 : i32, i32, i32
  }
  func.func @transform_18(%arg0: i32) -> (i32, i32, i32) {
    %c0_i32 = arith.constant 0 : i32
    %c0_i32_0 = arith.constant 0 : i32
    %c0_i32_1 = arith.constant 0 : i32
    return %arg0, %c0_i32, %c0_i32_0 : i32, i32, i32
  }
  func.func @transform_19(%arg0: i32) -> (i32, i32, i32) {
    %c0_i32 = arith.constant 0 : i32
    %c0_i32_0 = arith.constant 0 : i32
    %c0_i32_1 = arith.constant 0 : i32
    return %arg0, %c0_i32, %c0_i32_0 : i32, i32, i32
  }
}

</mosaic_0001>

<llo_original>
// kernel: tpu_custom_call.1
$region0: #{tpu_custom_call.1}
  #allocation0 [shape = 'u32[]', space=smem, size = 0x4, offset = 0x4, fixed_abs, tag = 'smem constant byte address 0x4 - core index']
  #allocation1 [shape = 'u32[144,128]{1,0:T(1,128)}', space=vmem, size = 0x12000, scoped, tag = 'internal scratch']
  %s0 = inlined_call_operand.vmem [shape: f32[2,8,32], index: 0, kind: input, shape index: {}]
  %s1 = inlined_call_operand.vmem [shape: f32[2,8,32], index: 1, kind: input, shape index: {}]
  %s2 = inlined_call_operand.vmem [shape: f32[2,8,8], index: 2, kind: input, shape index: {}]
  %s3 = inlined_call_operand.vmem [shape: f32[2,1,8], index: 3, kind: input, shape index: {}]
  %s4 = inlined_call_operand.vmem [shape: f32[2,96,32], index: 4, kind: input, shape index: {}]
  %s5 = inlined_call_operand.vmem [shape: f32[2,1,96], index: 5, kind: input, shape index: {}]
  %s6 = inlined_call_operand.vmem [shape: f32[2,32,32], index: 6, kind: input, shape index: {}]
  %s7 = inlined_call_operand.vmem [shape: f32[2,1,32], index: 7, kind: input, shape index: {}]
  %s8 = inlined_call_operand.vmem [shape: f32[3,1,32], index: 8, kind: input, shape index: {}]
  %s9 = inlined_call_operand.vmem [shape: f32[3,1,32], index: 9, kind: input, shape index: {}]
  %s10 = inlined_call_operand.vmem [shape: f32[64,32], index: 10, kind: input, shape index: {}]
  %s11 = inlined_call_operand.vmem [shape: f32[1,64], index: 11, kind: input, shape index: {}]
  %s12 = inlined_call_operand.vmem [shape: f32[32,64], index: 12, kind: input, shape index: {}]
  %s13 = inlined_call_operand.vmem [shape: f32[1,32], index: 13, kind: input, shape index: {}]
  %s14 = inlined_call_operand.vmem [shape: f32[3,16,32], index: 14, kind: input, shape index: {}]
  %s15 = inlined_call_operand.vmem [shape: f32[3,1,16], index: 15, kind: input, shape index: {}]
  %s16 = inlined_call_operand.vmem [shape: f32[3,32,16], index: 16, kind: input, shape index: {}]
  %s17 = inlined_call_operand.vmem [shape: f32[3,1,32], index: 17, kind: input, shape index: {}]
  %s18 = inlined_call_operand.hbm [shape: f32[2,8,32], index: 18, kind: output, shape index: {0}]
  %s19 = inlined_call_operand.hbm [shape: f32[2,8,32], index: 19, kind: output, shape index: {1}]
  %20 = xla_tuple %s18, %s19
  %s21 = sld [smem:[#allocation0]]
  $region90: #{tpu_custom_call.1} parent=0
    _
  %s23 = ssub.s32 1, %s21
  %s24 = scalar_select 0, %s23, %s21
  $region1: #{tpu_custom_call.1} parent=0
    #allocation2 [shape = 'u8[8192]{0}', space=vmem, size = 0x2000, scoped, tag = 'output window, operand 0, single buffered']
    #allocation3 [shape = 's32[1]{0}', space=sflag, size = 0x4, scoped, tag = 'scoped memory for tpu_custom_call.1']
    #allocation4 [shape = 'u8[8192]{0}', space=vmem, size = 0x2000, scoped, tag = 'output window, operand 1, single buffered']
    #allocation5 [shape = 's32[1]{0}', space=sflag, size = 0x4, scoped, tag = 'scoped memory for tpu_custom_call.1']
    %25 = vsyncpa [#allocation3], 0
    %26 = vsyncpa [#allocation5], 0
    // Predicated region
    $region2: #{tpu_custom_call.1} parent=1 // pred_check
      _
    $region3: #{tpu_custom_call.1} parent=1 // pred_check_branch
      %28 = sbr.rel (0) target = $region5
    $region4: #{tpu_custom_call.1} parent=1 // pred_region
      _
    $region5: #{tpu_custom_call.1} parent=1 // pred_fallthru
      _
    // Predicated region
    $region6: #{tpu_custom_call.1} parent=1 // pred_check
      _
    $region7: #{tpu_custom_call.1} parent=1 // pred_check_branch
      %30 = sbr.rel (0) target = $region9
    $region8: #{tpu_custom_call.1} parent=1 // pred_region
      _
    $region9: #{tpu_custom_call.1} parent=1 // pred_fallthru
      _
    // Predicated region
    $region10: #{tpu_custom_call.1} parent=1 // pred_check
      _
    $region11: #{tpu_custom_call.1} parent=1 // pred_check_branch
      %32 = sbr.rel (0) target = $region13
    $region12: #{tpu_custom_call.1} parent=1 // pred_region
      _
    $region13: #{tpu_custom_call.1} parent=1 // pred_fallthru
      _
    // Predicated region
    $region14: #{tpu_custom_call.1} parent=1 // pred_check
      _
    $region15: #{tpu_custom_call.1} parent=1 // pred_check_branch
      %34 = sbr.rel (0) target = $region17
    $region16: #{tpu_custom_call.1} parent=1 // pred_region
      _
    $region17: #{tpu_custom_call.1} parent=1 // pred_fallthru
      _
    // Predicated region
    $region18: #{tpu_custom_call.1} parent=1 // pred_check
      _
    $region19: #{tpu_custom_call.1} parent=1 // pred_check_branch
      %36 = sbr.rel (0) target = $region21
    $region20: #{tpu_custom_call.1} parent=1 // pred_region
      _
    $region21: #{tpu_custom_call.1} parent=1 // pred_fallthru
      _
    // Predicated region
    $region22: #{tpu_custom_call.1} parent=1 // pred_check
      _
    $region23: #{tpu_custom_call.1} parent=1 // pred_check_branch
      %38 = sbr.rel (0) target = $region25
    $region24: #{tpu_custom_call.1} parent=1 // pred_region
      _
    $region25: #{tpu_custom_call.1} parent=1 // pred_fallthru
      _
    // Predicated region
    $region26: #{tpu_custom_call.1} parent=1 // pred_check
      _
    $region27: #{tpu_custom_call.1} parent=1 // pred_check_branch
      %40 = sbr.rel (0) target = $region29
    $region28: #{tpu_custom_call.1} parent=1 // pred_region
      _
    $region29: #{tpu_custom_call.1} parent=1 // pred_fallthru
      _
    // Predicated region
    $region30: #{tpu_custom_call.1} parent=1 // pred_check
      _
    $region31: #{tpu_custom_call.1} parent=1 // pred_check_branch
      %42 = sbr.rel (0) target = $region33
    $region32: #{tpu_custom_call.1} parent=1 // pred_region
      _
    $region33: #{tpu_custom_call.1} parent=1 // pred_fallthru
      _
    // Predicated region
    $region34: #{tpu_custom_call.1} parent=1 // pred_check
      _
    $region35: #{tpu_custom_call.1} parent=1 // pred_check_branch
      %44 = sbr.rel (0) target = $region37
    $region36: #{tpu_custom_call.1} parent=1 // pred_region
      _
    $region37: #{tpu_custom_call.1} parent=1 // pred_fallthru
      _
    // Predicated region
    $region38: #{tpu_custom_call.1} parent=1 // pred_check
      _
    $region39: #{tpu_custom_call.1} parent=1 // pred_check_branch
      %46 = sbr.rel (0) target = $region41
    $region40: #{tpu_custom_call.1} parent=1 // pred_region
      _
    $region41: #{tpu_custom_call.1} parent=1 // pred_fallthru
      _
    // Predicated region
    $region42: #{tpu_custom_call.1} parent=1 // pred_check
      _
    $region43: #{tpu_custom_call.1} parent=1 // pred_check_branch
      %48 = sbr.rel (0) target = $region45
    $region44: #{tpu_custom_call.1} parent=1 // pred_region
      _
    $region45: #{tpu_custom_call.1} parent=1 // pred_fallthru
      _
    // Predicated region
    $region46: #{tpu_custom_call.1} parent=1 // pred_check
      _
    $region47: #{tpu_custom_call.1} parent=1 // pred_check_branch
      %50 = sbr.rel (0) target = $region49
    $region48: #{tpu_custom_call.1} parent=1 // pred_region
      _
    $region49: #{tpu_custom_call.1} parent=1 // pred_fallthru
      _
    // Predicated region
    $region50: #{tpu_custom_call.1} parent=1 // pred_check
      _
    $region51: #{tpu_custom_call.1} parent=1 // pred_check_branch
      %52 = sbr.rel (0) target = $region53
    $region52: #{tpu_custom_call.1} parent=1 // pred_region
      _
    $region53: #{tpu_custom_call.1} parent=1 // pred_fallthru
      _
    // Predicated region
    $region54: #{tpu_custom_call.1} parent=1 // pred_check
      _
    $region55: #{tpu_custom_call.1} parent=1 // pred_check_branch
      %54 = sbr.rel (0) target = $region57
    $region56: #{tpu_custom_call.1} parent=1 // pred_region
      _
    $region57: #{tpu_custom_call.1} parent=1 // pred_fallthru
      _
    // Predicated region
    $region58: #{tpu_custom_call.1} parent=1 // pred_check
      _
    $region59: #{tpu_custom_call.1} parent=1 // pred_check_branch
      %56 = sbr.rel (0) target = $region61
    $region60: #{tpu_custom_call.1} parent=1 // pred_region
      _
    $region61: #{tpu_custom_call.1} parent=1 // pred_fallthru
      _
    // Predicated region
    $region62: #{tpu_custom_call.1} parent=1 // pred_check
      _
    $region63: #{tpu_custom_call.1} parent=1 // pred_check_branch
      %58 = sbr.rel (0) target = $region65
    $region64: #{tpu_custom_call.1} parent=1 // pred_region
      _
    $region65: #{tpu_custom_call.1} parent=1 // pred_fallthru
      _
    // Predicated region
    $region66: #{tpu_custom_call.1} parent=1 // pred_check
      _
    $region67: #{tpu_custom_call.1} parent=1 // pred_check_branch
      %60 = sbr.rel (0) target = $region69
    $region68: #{tpu_custom_call.1} parent=1 // pred_region
      _
    $region69: #{tpu_custom_call.1} parent=1 // pred_fallthru
      _
    // Predicated region
    $region70: #{tpu_custom_call.1} parent=1 // pred_check
      _
    $region71: #{tpu_custom_call.1} parent=1 // pred_check_branch
      %62 = sbr.rel (0) target = $region73
    $region72: #{tpu_custom_call.1} parent=1 // pred_region
      _
    $region73: #{tpu_custom_call.1} parent=1 // pred_fallthru
      _
    %v63 = vlaneseq
    %v64 = vand.u32 %v63, 127
    %vm65 = vcmp.ge.s32.totalorder %v64, 0
    %vm66 = vcmp.lt.s32.totalorder %v64, 8
    %vm67 = vmand %vm65, %vm66
    %v68 = vsel %vm67, 1, 0
    %v69 = vcvt.s32.f32 %v68
    %vm70 = vcmp.ge.s32.totalorder %v64, 8
    %vm71 = vcmp.lt.s32.totalorder %v64, 16
    %vm72 = vmand %vm70, %vm71
    %v73 = vsel %vm72, 1, 0
    %v74 = vcvt.s32.f32 %v73
    %vm75 = vcmp.ge.s32.totalorder %v64, 16
    %vm76 = vcmp.lt.s32.totalorder %v64, 24
    %vm77 = vmand %vm75, %vm76
    %v78 = vsel %vm77, 1, 0
    %v79 = vcvt.s32.f32 %v78
    %vm80 = vcmp.ge.s32.totalorder %v64, 24
    %vm81 = vcmp.lt.s32.totalorder %v64, 32
    %vm82 = vmand %vm80, %vm81
    %v83 = vsel %vm82, 1, 0
    %v84 = vcvt.s32.f32 %v83
    %v85 = vld [vmem:[%s0] sm:$0xff]
    %v86 = vld [vmem:[%s1] sm:$0xff]
    %v87 = vld [vmem:[%s2] sm:$0xff]
    %v88 = vmul.f32 %v87, -1e+18
    %v89 = vld [vmem:[%s3] sm:$0x1]
    %v90 = vmul.f32 %v89, -1e+18
    %v92 = vlaneseq
    %v93 = vshrl.u32 %v92, 7
    %v94 = vsub.s32 0, %v93
    %v95 = vrot.slane %v90, %v94
    %v97 = vld [vmem:[%s8] sm:$0x1]
    %v98 = vld [vmem:[%s9] sm:$0x1]
    %vm99 = vcmask 261120
    %v100 = vsel %vm99, %v85, 0.0
    %101 = vadd.xlane.f32.xlu0 %v100
    %v102 = vpop.xlane.xlu0 %101
    %v103 = vrcp.pop 32.0
    %v104 = vmul.f32 %v102, %v103
    %v105 = vsub.f32 %v85, %v104
    %v106 = vmul.f32 %v105, %v105
    %v107 = vsel %vm99, %v106, 0.0
    %108 = vadd.xlane.f32.xlu0 %v107
    %v109 = vpop.xlane.xlu0 %108
    %v110 = vmul.f32 %v109, %v103
    %v111 = vadd.f32 %v110, 1e-06
    %v112 = vrsqrt.pop %v111
    %v113 = vmul.f32 %v105, %v112
    %v115 = vlaneseq
    %v116 = vshrl.u32 %v115, 7
    %v117 = vsub.s32 0, %v116
    %v118 = vrot.slane %v97, %v117
    %v120 = vmul.f32 %v113, %v118
    %v122 = vlaneseq
    %v123 = vshrl.u32 %v122, 7
    %v124 = vsub.s32 0, %v123
    %v125 = vrot.slane %v98, %v124
    %v127 = vadd.f32 %v120, %v125
    %128 = vst.msk [vmem:[#allocation4] sm:$0xff] %vm99, %v127
    %v129 = vld [vmem:[%s4] sm:$0xff]
    %v130 = vld [vmem:[%s4 + $0x8] sm:$0xff]
    %v131 = vld [vmem:[%s4 + $0x10] sm:$0xff]
    %v132 = vld [vmem:[%s4 + $0x18] sm:$0xff]
    %v133 = vld [vmem:[%s4 + $0x20] sm:$0xff]
    %v134 = vld [vmem:[%s4 + $0x28] sm:$0xff]
    %v135 = vld [vmem:[%s4 + $0x30] sm:$0xff]
    %v136 = vld [vmem:[%s4 + $0x38] sm:$0xff]
    %v137 = vld [vmem:[%s4 + $0x40] sm:$0xff]
    %v138 = vld [vmem:[%s4 + $0x48] sm:$0xff]
    %v139 = vld [vmem:[%s4 + $0x50] sm:$0xff]
    %v140 = vld [vmem:[%s4 + $0x58] sm:$0xff]
    %v141 = vld [vmem:[%s5] sm:$0x1]
    %v143 = vlaneseq
    %v144 = vshrl.u32 %v143, 7
    %v145 = vsub.s32 0, %v144
    %v146 = vrot.slane %v141, %v145
    %v149 = vsel %vm99, %v127, 0
    %v152 = vsel %vm99, %v129, 0
    %v155 = vsel %vm99, %v130, 0
    %v158 = vsel %vm99, %v131, 0
    %v161 = vsel %vm99, %v132, 0
    %v164 = vsel %vm99, %v133, 0
    %v167 = vsel %vm99, %v134, 0
    %v170 = vsel %vm99, %v135, 0
    %v173 = vsel %vm99, %v136, 0
    %v176 = vsel %vm99, %v137, 0
    %v179 = vsel %vm99, %v138, 0
    %v182 = vsel %vm99, %v139, 0
    %v185 = vsel %vm99, %v140, 0
    %187 = vmatprep.subr.mxu0 0.0
    %188 = vmatpush1.xpose.msra.mxu0 %v152
    %189 = vmatprep.subr.mxu0 0.0
    %190 = vmatpush1.xpose.msra.mxu0 %v155
    %191 = vmatprep.subr.mxu0 0.0
    %192 = vmatpush1.xpose.msra.mxu0 %v158
    %193 = vmatprep.subr.mxu0 0.0
    %194 = vmatpush1.xpose.msra.mxu0 %v161
    %195 = vmatprep.subr.mxu0 0.0
    %196 = vmatpush1.xpose.msra.mxu0 %v164
    %197 = vmatprep.subr.mxu0 0.0
    %198 = vmatpush1.xpose.msra.mxu0 %v167
    %199 = vmatprep.subr.mxu0 0.0
    %200 = vmatpush1.xpose.msra.mxu0 %v170
    %201 = vmatprep.subr.mxu0 0.0
    %202 = vmatpush1.xpose.msra.mxu0 %v173
    %203 = vmatprep.subr.mxu0 0.0
    %204 = vmatpush1.xpose.msra.mxu0 %v176
    %205 = vmatprep.subr.mxu0 0.0
    %206 = vmatpush1.xpose.msra.mxu0 %v179
    %207 = vmatprep.subr.mxu0 0.0
    %208 = vmatpush1.xpose.msra.mxu0 %v182
    %209 = vmatprep.subr.mxu0 0.0
    %210 = vmatpush1.xpose.msra.mxu0 %v185
    %211 = vmatprep.subr.mxu0 0.0
    %212 = vmatpush1.xpose.msra.mxu0 0.0
    %213 = vmatprep.subr.mxu0 0.0
    %214 = vmatpush1.xpose.msra.mxu0 0.0
    %215 = vmatprep.subr.mxu0 0.0
    %216 = vmatpush1.xpose.msra.mxu0 0.0
    %217 = vmatprep.subr.mxu0 0.0
    %218 = vmatpush1.xpose.msra.mxu0 0.0
    %219 = vmatprep.subr.mxu0 0.0
    %220 = vmatpush1.xpose.msra.mxu0 0.0
    %221 = vmatprep.subr.mxu0 0.0
    %222 = vmatpush1.xpose.msra.mxu0 0.0
    %223 = vmatprep.subr.mxu0 0.0
    %224 = vmatpush1.xpose.msra.mxu0 0.0
    %225 = vmatprep.subr.mxu0 0.0
    %226 = vmatpush1.xpose.msra.mxu0 0.0
    %227 = vmatprep.subr.mxu0 0.0
    %228 = vmatpush1.xpose.msra.mxu0 0.0
    %229 = vmatprep.subr.mxu0 0.0
    %230 = vmatpush1.xpose.msra.mxu0 0.0
    %231 = vmatprep.subr.mxu0 0.0
    %232 = vmatpush1.xpose.msra.mxu0 0.0
    %233 = vmatprep.subr.mxu0 0.0
    %234 = vmatpush1.xpose.msra.mxu0 0.0
    %235 = vmatprep.subr.mxu0 0.0
    %236 = vmatpush1.xpose.msra.mxu0 0.0
    %237 = vmatprep.subr.mxu0 0.0
    %238 = vmatpush1.xpose.msra.mxu0 0.0
    %239 = vmatprep.subr.mxu0 0.0
    %240 = vmatpush1.xpose.msra.mxu0 0.0
    %241 = vmatprep.subr.mxu0 0.0
    %242 = vmatpush1.xpose.msra.mxu0 0.0
    %243 = vmatprep.subr.mxu0 0.0
    %244 = vmatpush1.xpose.msra.mxu0 0.0
    %245 = vmatprep.subr.mxu0 0.0
    %246 = vmatpush1.xpose.msra.mxu0 0.0
    %247 = vmatprep.subr.mxu0 0.0
    %248 = vmatpush1.xpose.msra.mxu0 0.0
    %249 = vmatprep.subr.mxu0 0.0
    %250 = vmatpush1.xpose.msra.mxu0 0.0
    %251 = vmatprep.mubr.f32.mxu0 0.0
    %252 = vmatmul.mubr.f32.gmra.mrb[0].mxu0 %v149
    %v253 = vpop.f32.mrb[0].mxu0
    %v254 = vadd.f32 %v146, %v253
    %v255 = vpop.f32.mrb[0].mxu0
    %256 = vdwg.mxu0
    %v257 = vmul.f32 %v254, 0.35355338
    %v258 = vld [vmem:[%s6] sm:$0xff]
    %v259 = vld [vmem:[%s6 + $0x8] sm:$0xff]
    %v260 = vld [vmem:[%s6 + $0x10] sm:$0xff]
    %v261 = vld [vmem:[%s6 + $0x18] sm:$0xff]
    %v262 = vld [vmem:[%s7] sm:$0x1]
    %264 = vrot.lane.b32.xlu0 %v254, 96
    %v265 = vpop.permute.xlu0 %264
    %vm266 = vcmask 64512
    %v268 = vsel %vm266, %v257, 0
    %v270 = vsel %vm266, %v265, 0
    %272 = vmatprep.subr.mxu0 0.0
    %273 = vmatpush1.xpose.msra.mxu0 %v270
    %274 = vmatprep.subr.mxu0 0.0
    %275 = vmatpush1.xpose.msra.mxu0 0.0
    %276 = vmatprep.subr.mxu0 0.0
    %277 = vmatpush1.xpose.msra.mxu0 0.0
    %278 = vmatprep.subr.mxu0 0.0
    %279 = vmatpush1.xpose.msra.mxu0 0.0
    %280 = vmatprep.subr.mxu0 0.0
    %281 = vmatpush1.xpose.msra.mxu0 0.0
    %282 = vmatprep.subr.mxu0 0.0
    %283 = vmatpush1.xpose.msra.mxu0 0.0
    %284 = vmatprep.subr.mxu0 0.0
    %285 = vmatpush1.xpose.msra.mxu0 0.0
    %286 = vmatprep.subr.mxu0 0.0
    %287 = vmatpush1.xpose.msra.mxu0 0.0
    %288 = vmatprep.subr.mxu0 0.0
    %289 = vmatpush1.xpose.msra.mxu0 0.0
    %290 = vmatprep.subr.mxu0 0.0
    %291 = vmatpush1.xpose.msra.mxu0 0.0
    %292 = vmatprep.subr.mxu0 0.0
    %293 = vmatpush1.xpose.msra.mxu0 0.0
    %294 = vmatprep.subr.mxu0 0.0
    %295 = vmatpush1.xpose.msra.mxu0 0.0
    %296 = vmatprep.subr.mxu0 0.0
    %297 = vmatpush1.xpose.msra.mxu0 0.0
    %298 = vmatprep.subr.mxu0 0.0
    %299 = vmatpush1.xpose.msra.mxu0 0.0
    %300 = vmatprep.subr.mxu0 0.0
    %301 = vmatpush1.xpose.msra.mxu0 0.0
    %302 = vmatprep.subr.mxu0 0.0
    %303 = vmatpush1.xpose.msra.mxu0 0.0
    %304 = vmatprep.subr.mxu0 0.0
    %305 = vmatpush1.xpose.msra.mxu0 0.0
    %306 = vmatprep.subr.mxu0 0.0
    %307 = vmatpush1.xpose.msra.mxu0 0.0
    %308 = vmatprep.subr.mxu0 0.0
    %309 = vmatpush1.xpose.msra.mxu0 0.0
    %310 = vmatprep.subr.mxu0 0.0
    %311 = vmatpush1.xpose.msra.mxu0 0.0
    %312 = vmatprep.subr.mxu0 0.0
    %313 = vmatpush1.xpose.msra.mxu0 0.0
    %314 = vmatprep.subr.mxu0 0.0
    %315 = vmatpush1.xpose.msra.mxu0 0.0
    %316 = vmatprep.subr.mxu0 0.0
    %317 = vmatpush1.xpose.msra.mxu0 0.0
    %318 = vmatprep.subr.mxu0 0.0
    %319 = vmatpush1.xpose.msra.mxu0 0.0
    %320 = vmatprep.subr.mxu0 0.0
    %321 = vmatpush1.xpose.msra.mxu0 0.0
    %322 = vmatprep.subr.mxu0 0.0
    %323 = vmatpush1.xpose.msra.mxu0 0.0
    %324 = vmatprep.subr.mxu0 0.0
    %325 = vmatpush1.xpose.msra.mxu0 0.0
    %326 = vmatprep.subr.mxu0 0.0
    %327 = vmatpush1.xpose.msra.mxu0 0.0
    %328 = vmatprep.subr.mxu0 0.0
    %329 = vmatpush1.xpose.msra.mxu0 0.0
    %330 = vmatprep.subr.mxu0 0.0
    %331 = vmatpush1.xpose.msra.mxu0 0.0
    %332 = vmatprep.subr.mxu0 0.0
    %333 = vmatpush1.xpose.msra.mxu0 0.0
    %334 = vmatprep.subr.mxu0 0.0
    %335 = vmatpush1.xpose.msra.mxu0 0.0
    %336 = vmatprep.mubr.f32.mxu0 0.0
    %337 = vmatmul.mubr.f32.gmra.mrb[0].mxu0 %v268
    %v338 = vpop.f32.mrb[0].mxu0
    %v339 = vadd.f32 %v88, %v338
    %v340 = vpop.f32.mrb[0].mxu0
    %341 = vdwg.mxu0
    %v342 = vsel %vm266, %v339, -inf
    %343 = vmax.xlane.f32.xlu0 %v342
    %v344 = vpop.xlane.xlu0 %343
    %v345 = vsub.f32 %v339, %v344
    %v346 = vmul.f32 %v345, 1.442695
    %v347 = vpow.pop %v346
    %v348 = vsel %vm266, %v347, 0.0
    %349 = vadd.xlane.f32.xlu0 %v348
    %v350 = vpop.xlane.xlu0 %349
    %v351 = vrcp.pop %v350
    %v352 = vmul.f32 %v347, %v351
    %354 = vrot.lane.b32.xlu0 %v69, 64
    %v355 = vpop.permute.xlu0 %354
    %v357 = vmul.f32 %v254, %v355
    %358 = vrot.lane.b32.xlu0 %v257, 120
    %v359 = vpop.permute.xlu0 %358
    %360 = vrot.lane.b32.xlu0 %v254, 88
    %v361 = vpop.permute.xlu0 %360
    %v362 = vsel %vm266, %v359, 0
    %v364 = vsel %vm266, %v361, 0
    %366 = vmatprep.subr.mxu0 0.0
    %367 = vmatpush1.xpose.msra.mxu0 %v364
    %368 = vmatprep.subr.mxu0 0.0
    %369 = vmatpush1.xpose.msra.mxu0 0.0
    %370 = vmatprep.subr.mxu0 0.0
    %371 = vmatpush1.xpose.msra.mxu0 0.0
    %372 = vmatprep.subr.mxu0 0.0
    %373 = vmatpush1.xpose.msra.mxu0 0.0
    %374 = vmatprep.subr.mxu0 0.0
    %375 = vmatpush1.xpose.msra.mxu0 0.0
    %376 = vmatprep.subr.mxu0 0.0
    %377 = vmatpush1.xpose.msra.mxu0 0.0
    %378 = vmatprep.subr.mxu0 0.0
    %379 = vmatpush1.xpose.msra.mxu0 0.0
    %380 = vmatprep.subr.mxu0 0.0
    %381 = vmatpush1.xpose.msra.mxu0 0.0
    %382 = vmatprep.subr.mxu0 0.0
    %383 = vmatpush1.xpose.msra.mxu0 0.0
    %384 = vmatprep.subr.mxu0 0.0
    %385 = vmatpush1.xpose.msra.mxu0 0.0
    %386 = vmatprep.subr.mxu0 0.0
    %387 = vmatpush1.xpose.msra.mxu0 0.0
    %388 = vmatprep.subr.mxu0 0.0
    %389 = vmatpush1.xpose.msra.mxu0 0.0
    %390 = vmatprep.subr.mxu0 0.0
    %391 = vmatpush1.xpose.msra.mxu0 0.0
    %392 = vmatprep.subr.mxu0 0.0
    %393 = vmatpush1.xpose.msra.mxu0 0.0
    %394 = vmatprep.subr.mxu0 0.0
    %395 = vmatpush1.xpose.msra.mxu0 0.0
    %396 = vmatprep.subr.mxu0 0.0
    %397 = vmatpush1.xpose.msra.mxu0 0.0
    %398 = vmatprep.subr.mxu0 0.0
    %399 = vmatpush1.xpose.msra.mxu0 0.0
    %400 = vmatprep.subr.mxu0 0.0
    %401 = vmatpush1.xpose.msra.mxu0 0.0
    %402 = vmatprep.subr.mxu0 0.0
    %403 = vmatpush1.xpose.msra.mxu0 0.0
    %404 = vmatprep.subr.mxu0 0.0
    %405 = vmatpush1.xpose.msra.mxu0 0.0
    %406 = vmatprep.subr.mxu0 0.0
    %407 = vmatpush1.xpose.msra.mxu0 0.0
    %408 = vmatprep.subr.mxu0 0.0
    %409 = vmatpush1.xpose.msra.mxu0 0.0
    %410 = vmatprep.subr.mxu0 0.0
    %411 = vmatpush1.xpose.msra.mxu0 0.0
    %412 = vmatprep.subr.mxu0 0.0
    %413 = vmatpush1.xpose.msra.mxu0 0.0
    %414 = vmatprep.subr.mxu0 0.0
    %415 = vmatpush1.xpose.msra.mxu0 0.0
    %416 = vmatprep.subr.mxu0 0.0
    %417 = vmatpush1.xpose.msra.mxu0 0.0
    %418 = vmatprep.subr.mxu0 0.0
    %419 = vmatpush1.xpose.msra.mxu0 0.0
    %420 = vmatprep.subr.mxu0 0.0
    %421 = vmatpush1.xpose.msra.mxu0 0.0
    %422 = vmatprep.subr.mxu0 0.0
    %423 = vmatpush1.xpose.msra.mxu0 0.0
    %424 = vmatprep.subr.mxu0 0.0
    %425 = vmatpush1.xpose.msra.mxu0 0.0
    %426 = vmatprep.subr.mxu0 0.0
    %427 = vmatpush1.xpose.msra.mxu0 0.0
    %428 = vmatprep.subr.mxu0 0.0
    %429 = vmatpush1.xpose.msra.mxu0 0.0
    %430 = vmatprep.mubr.f32.mxu0 0.0
    %431 = vmatmul.mubr.f32.gmra.mrb[0].mxu0 %v362
    %v432 = vpop.f32.mrb[0].mxu0
    %v433 = vadd.f32 %v88, %v432
    %v434 = vpop.f32.mrb[0].mxu0
    %435 = vdwg.mxu0
    %v436 = vsel %vm266, %v433, -inf
    %437 = vmax.xlane.f32.xlu0 %v436
    %v438 = vpop.xlane.xlu0 %437
    %v439 = vsub.f32 %v433, %v438
    %v440 = vmul.f32 %v439, 1.442695
    %v441 = vpow.pop %v440
    %v442 = vsel %vm266, %v441, 0.0
    %443 = vadd.xlane.f32.xlu0 %v442
    %v444 = vpop.xlane.xlu0 %443
    %v445 = vrcp.pop %v444
    %v446 = vmul.f32 %v441, %v445
    %448 = vrot.lane.b32.xlu0 %v74, 64
    %v449 = vpop.permute.xlu0 %448
    %v451 = vmul.f32 %v254, %v449
    %453 = vrot.lane.b32.xlu0 %v451, 64
    %v454 = vpop.permute.xlu0 %453
    %v457 = vsel %vm266, %v446, 0
    %459 = vmatprep.subr.mxu0 0.0
    %460 = vmatpush1.msra.mxu0 %v454
    %461 = vmatprep.subr.mxu0 0.0
    %462 = vmatpush1.msra.mxu0 0.0
    %463 = vmatprep.subr.mxu0 0.0
    %464 = vmatpush1.msra.mxu0 0.0
    %465 = vmatprep.subr.mxu0 0.0
    %466 = vmatpush1.msra.mxu0 0.0
    %467 = vmatprep.subr.mxu0 0.0
    %468 = vmatpush1.msra.mxu0 0.0
    %469 = vmatprep.subr.mxu0 0.0
    %470 = vmatpush1.msra.mxu0 0.0
    %471 = vmatprep.subr.mxu0 0.0
    %472 = vmatpush1.msra.mxu0 0.0
    %473 = vmatprep.subr.mxu0 0.0
    %474 = vmatpush1.msra.mxu0 0.0
    %475 = vmatprep.subr.mxu0 0.0
    %476 = vmatpush1.msra.mxu0 0.0
    %477 = vmatprep.subr.mxu0 0.0
    %478 = vmatpush1.msra.mxu0 0.0
    %479 = vmatprep.subr.mxu0 0.0
    %480 = vmatpush1.msra.mxu0 0.0
    %481 = vmatprep.subr.mxu0 0.0
    %482 = vmatpush1.msra.mxu0 0.0
    %483 = vmatprep.subr.mxu0 0.0
    %484 = vmatpush1.msra.mxu0 0.0
    %485 = vmatprep.subr.mxu0 0.0
    %486 = vmatpush1.msra.mxu0 0.0
    %487 = vmatprep.subr.mxu0 0.0
    %488 = vmatpush1.msra.mxu0 0.0
    %489 = vmatprep.subr.mxu0 0.0
    %490 = vmatpush1.msra.mxu0 0.0
    %491 = vmatprep.subr.mxu0 0.0
    %492 = vmatpush1.msra.mxu0 0.0
    %493 = vmatprep.subr.mxu0 0.0
    %494 = vmatpush1.msra.mxu0 0.0
    %495 = vmatprep.subr.mxu0 0.0
    %496 = vmatpush1.msra.mxu0 0.0
    %497 = vmatprep.subr.mxu0 0.0
    %498 = vmatpush1.msra.mxu0 0.0
    %499 = vmatprep.subr.mxu0 0.0
    %500 = vmatpush1.msra.mxu0 0.0
    %501 = vmatprep.subr.mxu0 0.0
    %502 = vmatpush1.msra.mxu0 0.0
    %503 = vmatprep.subr.mxu0 0.0
    %504 = vmatpush1.msra.mxu0 0.0
    %505 = vmatprep.subr.mxu0 0.0
    %506 = vmatpush1.msra.mxu0 0.0
    %507 = vmatprep.subr.mxu0 0.0
    %508 = vmatpush1.msra.mxu0 0.0
    %509 = vmatprep.subr.mxu0 0.0
    %510 = vmatpush1.msra.mxu0 0.0
    %511 = vmatprep.subr.mxu0 0.0
    %512 = vmatpush1.msra.mxu0 0.0
    %513 = vmatprep.subr.mxu0 0.0
    %514 = vmatpush1.msra.mxu0 0.0
    %515 = vmatprep.subr.mxu0 0.0
    %516 = vmatpush1.msra.mxu0 0.0
    %517 = vmatprep.subr.mxu0 0.0
    %518 = vmatpush1.msra.mxu0 0.0
    %519 = vmatprep.subr.mxu0 0.0
    %520 = vmatpush1.msra.mxu0 0.0
    %521 = vmatprep.subr.mxu0 0.0
    %522 = vmatpush1.msra.mxu0 0.0
    %523 = vmatprep.mubr.f32.mxu0 0.0
    %524 = vmatmul.mubr.f32.gmra.mrb[0].mxu0 %v457
    %v525 = vpop.f32.mrb[0].mxu0
    %v526 = vadd.f32 0.0, %v525
    %v527 = vpop.f32.mrb[0].mxu0
    %528 = vdwg.mxu0
    %530 = vrot.lane.b32.xlu0 %v357, 64
    %v531 = vpop.permute.xlu0 %530
    %v534 = vsel %vm266, %v352, 0
    %536 = vmatprep.subr.mxu0 0.0
    %537 = vmatpush1.msra.mxu0 %v531
    %538 = vmatprep.subr.mxu0 0.0
    %539 = vmatpush1.msra.mxu0 0.0
    %540 = vmatprep.subr.mxu0 0.0
    %541 = vmatpush1.msra.mxu0 0.0
    %542 = vmatprep.subr.mxu0 0.0
    %543 = vmatpush1.msra.mxu0 0.0
    %544 = vmatprep.subr.mxu0 0.0
    %545 = vmatpush1.msra.mxu0 0.0
    %546 = vmatprep.subr.mxu0 0.0
    %547 = vmatpush1.msra.mxu0 0.0
    %548 = vmatprep.subr.mxu0 0.0
    %549 = vmatpush1.msra.mxu0 0.0
    %550 = vmatprep.subr.mxu0 0.0
    %551 = vmatpush1.msra.mxu0 0.0
    %552 = vmatprep.subr.mxu0 0.0
    %553 = vmatpush1.msra.mxu0 0.0
    %554 = vmatprep.subr.mxu0 0.0
    %555 = vmatpush1.msra.mxu0 0.0
    %556 = vmatprep.subr.mxu0 0.0
    %557 = vmatpush1.msra.mxu0 0.0
    %558 = vmatprep.subr.mxu0 0.0
    %559 = vmatpush1.msra.mxu0 0.0
    %560 = vmatprep.subr.mxu0 0.0
    %561 = vmatpush1.msra.mxu0 0.0
    %562 = vmatprep.subr.mxu0 0.0
    %563 = vmatpush1.msra.mxu0 0.0
    %564 = vmatprep.subr.mxu0 0.0
    %565 = vmatpush1.msra.mxu0 0.0
    %566 = vmatprep.subr.mxu0 0.0
    %567 = vmatpush1.msra.mxu0 0.0
    %568 = vmatprep.subr.mxu0 0.0
    %569 = vmatpush1.msra.mxu0 0.0
    %570 = vmatprep.subr.mxu0 0.0
    %571 = vmatpush1.msra.mxu0 0.0
    %572 = vmatprep.subr.mxu0 0.0
    %573 = vmatpush1.msra.mxu0 0.0
    %574 = vmatprep.subr.mxu0 0.0
    %575 = vmatpush1.msra.mxu0 0.0
    %576 = vmatprep.subr.mxu0 0.0
    %577 = vmatpush1.msra.mxu0 0.0
    %578 = vmatprep.subr.mxu0 0.0
    %579 = vmatpush1.msra.mxu0 0.0
    %580 = vmatprep.subr.mxu0 0.0
    %581 = vmatpush1.msra.mxu0 0.0
    %582 = vmatprep.subr.mxu0 0.0
    %583 = vmatpush1.msra.mxu0 0.0
    %584 = vmatprep.subr.mxu0 0.0
    %585 = vmatpush1.msra.mxu0 0.0
    %586 = vmatprep.subr.mxu0 0.0
    %587 = vmatpush1.msra.mxu0 0.0
    %588 = vmatprep.subr.mxu0 0.0
    %589 = vmatpush1.msra.mxu0 0.0
    %590 = vmatprep.subr.mxu0 0.0
    %591 = vmatpush1.msra.mxu0 0.0
    %592 = vmatprep.subr.mxu0 0.0
    %593 = vmatpush1.msra.mxu0 0.0
    %594 = vmatprep.subr.mxu0 0.0
    %595 = vmatpush1.msra.mxu0 0.0
    %596 = vmatprep.subr.mxu0 0.0
    %597 = vmatpush1.msra.mxu0 0.0
    %598 = vmatprep.subr.mxu0 0.0
    %599 = vmatpush1.msra.mxu0 0.0
    %600 = vmatprep.mubr.f32.mxu0 0.0
    %601 = vmatmul.mubr.f32.gmra.mrb[0].mxu0 %v534
    %v602 = vpop.f32.mrb[0].mxu0
    %v603 = vadd.f32 %v526, %v602
    %v604 = vpop.f32.mrb[0].mxu0
    %605 = vdwg.mxu0
    %606 = vrot.lane.b32.xlu0 %v257, 112
    %v607 = vpop.permute.xlu0 %606
    %608 = vrot.lane.b32.xlu0 %v254, 80
    %v609 = vpop.permute.xlu0 %608
    %v610 = vsel %vm266, %v607, 0
    %v612 = vsel %vm266, %v609, 0
    %614 = vmatprep.subr.mxu0 0.0
    %615 = vmatpush1.xpose.msra.mxu0 %v612
    %616 = vmatprep.subr.mxu0 0.0
    %617 = vmatpush1.xpose.msra.mxu0 0.0
    %618 = vmatprep.subr.mxu0 0.0
    %619 = vmatpush1.xpose.msra.mxu0 0.0
    %620 = vmatprep.subr.mxu0 0.0
    %621 = vmatpush1.xpose.msra.mxu0 0.0
    %622 = vmatprep.subr.mxu0 0.0
    %623 = vmatpush1.xpose.msra.mxu0 0.0
    %624 = vmatprep.subr.mxu0 0.0
    %625 = vmatpush1.xpose.msra.mxu0 0.0
    %626 = vmatprep.subr.mxu0 0.0
    %627 = vmatpush1.xpose.msra.mxu0 0.0
    %628 = vmatprep.subr.mxu0 0.0
    %629 = vmatpush1.xpose.msra.mxu0 0.0
    %630 = vmatprep.subr.mxu0 0.0
    %631 = vmatpush1.xpose.msra.mxu0 0.0
    %632 = vmatprep.subr.mxu0 0.0
    %633 = vmatpush1.xpose.msra.mxu0 0.0
    %634 = vmatprep.subr.mxu0 0.0
    %635 = vmatpush1.xpose.msra.mxu0 0.0
    %636 = vmatprep.subr.mxu0 0.0
    %637 = vmatpush1.xpose.msra.mxu0 0.0
    %638 = vmatprep.subr.mxu0 0.0
    %639 = vmatpush1.xpose.msra.mxu0 0.0
    %640 = vmatprep.subr.mxu0 0.0
    %641 = vmatpush1.xpose.msra.mxu0 0.0
    %642 = vmatprep.subr.mxu0 0.0
    %643 = vmatpush1.xpose.msra.mxu0 0.0
    %644 = vmatprep.subr.mxu0 0.0
    %645 = vmatpush1.xpose.msra.mxu0 0.0
    %646 = vmatprep.subr.mxu0 0.0
    %647 = vmatpush1.xpose.msra.mxu0 0.0
    %648 = vmatprep.subr.mxu0 0.0
    %649 = vmatpush1.xpose.msra.mxu0 0.0
    %650 = vmatprep.subr.mxu0 0.0
    %651 = vmatpush1.xpose.msra.mxu0 0.0
    %652 = vmatprep.subr.mxu0 0.0
    %653 = vmatpush1.xpose.msra.mxu0 0.0
    %654 = vmatprep.subr.mxu0 0.0
    %655 = vmatpush1.xpose.msra.mxu0 0.0
    %656 = vmatprep.subr.mxu0 0.0
    %657 = vmatpush1.xpose.msra.mxu0 0.0
    %658 = vmatprep.subr.mxu0 0.0
    %659 = vmatpush1.xpose.msra.mxu0 0.0
    %660 = vmatprep.subr.mxu0 0.0
    %661 = vmatpush1.xpose.msra.mxu0 0.0
    %662 = vmatprep.subr.mxu0 0.0
    %663 = vmatpush1.xpose.msra.mxu0 0.0
    %664 = vmatprep.subr.mxu0 0.0
    %665 = vmatpush1.xpose.msra.mxu0 0.0
    %666 = vmatprep.subr.mxu0 0.0
    %667 = vmatpush1.xpose.msra.mxu0 0.0
    %668 = vmatprep.subr.mxu0 0.0
    %669 = vmatpush1.xpose.msra.mxu0 0.0
    %670 = vmatprep.subr.mxu0 0.0
    %671 = vmatpush1.xpose.msra.mxu0 0.0
    %672 = vmatprep.subr.mxu0 0.0
    %673 = vmatpush1.xpose.msra.mxu0 0.0
    %674 = vmatprep.subr.mxu0 0.0
    %675 = vmatpush1.xpose.msra.mxu0 0.0
    %676 = vmatprep.subr.mxu0 0.0
    %677 = vmatpush1.xpose.msra.mxu0 0.0
    %678 = vmatprep.mubr.f32.mxu0 0.0
    %679 = vmatmul.mubr.f32.gmra.mrb[0].mxu0 %v610
    %v680 = vpop.f32.mrb[0].mxu0
    %v681 = vadd.f32 %v88, %v680
    %v682 = vpop.f32.mrb[0].mxu0
    %683 = vdwg.mxu0
    %v684 = vsel %vm266, %v681, -inf
    %685 = vmax.xlane.f32.xlu0 %v684
    %v686 = vpop.xlane.xlu0 %685
    %v687 = vsub.f32 %v681, %v686
    %v688 = vmul.f32 %v687, 1.442695
    %v689 = vpow.pop %v688
    %v690 = vsel %vm266, %v689, 0.0
    %691 = vadd.xlane.f32.xlu0 %v690
    %v692 = vpop.xlane.xlu0 %691
    %v693 = vrcp.pop %v692
    %v694 = vmul.f32 %v689, %v693
    %696 = vrot.lane.b32.xlu0 %v79, 64
    %v697 = vpop.permute.xlu0 %696
    %v699 = vmul.f32 %v254, %v697
    %701 = vrot.lane.b32.xlu0 %v699, 64
    %v702 = vpop.permute.xlu0 %701
    %v705 = vsel %vm266, %v694, 0
    %707 = vmatprep.subr.mxu0 0.0
    %708 = vmatpush1.msra.mxu0 %v702
    %709 = vmatprep.subr.mxu0 0.0
    %710 = vmatpush1.msra.mxu0 0.0
    %711 = vmatprep.subr.mxu0 0.0
    %712 = vmatpush1.msra.mxu0 0.0
    %713 = vmatprep.subr.mxu0 0.0
    %714 = vmatpush1.msra.mxu0 0.0
    %715 = vmatprep.subr.mxu0 0.0
    %716 = vmatpush1.msra.mxu0 0.0
    %717 = vmatprep.subr.mxu0 0.0
    %718 = vmatpush1.msra.mxu0 0.0
    %719 = vmatprep.subr.mxu0 0.0
    %720 = vmatpush1.msra.mxu0 0.0
    %721 = vmatprep.subr.mxu0 0.0
    %722 = vmatpush1.msra.mxu0 0.0
    %723 = vmatprep.subr.mxu0 0.0
    %724 = vmatpush1.msra.mxu0 0.0
    %725 = vmatprep.subr.mxu0 0.0
    %726 = vmatpush1.msra.mxu0 0.0
    %727 = vmatprep.subr.mxu0 0.0
    %728 = vmatpush1.msra.mxu0 0.0
    %729 = vmatprep.subr.mxu0 0.0
    %730 = vmatpush1.msra.mxu0 0.0
    %731 = vmatprep.subr.mxu0 0.0
    %732 = vmatpush1.msra.mxu0 0.0
    %733 = vmatprep.subr.mxu0 0.0
    %734 = vmatpush1.msra.mxu0 0.0
    %735 = vmatprep.subr.mxu0 0.0
    %736 = vmatpush1.msra.mxu0 0.0
    %737 = vmatprep.subr.mxu0 0.0
    %738 = vmatpush1.msra.mxu0 0.0
    %739 = vmatprep.subr.mxu0 0.0
    %740 = vmatpush1.msra.mxu0 0.0
    %741 = vmatprep.subr.mxu0 0.0
    %742 = vmatpush1.msra.mxu0 0.0
    %743 = vmatprep.subr.mxu0 0.0
    %744 = vmatpush1.msra.mxu0 0.0
    %745 = vmatprep.subr.mxu0 0.0
    %746 = vmatpush1.msra.mxu0 0.0
    %747 = vmatprep.subr.mxu0 0.0
    %748 = vmatpush1.msra.mxu0 0.0
    %749 = vmatprep.subr.mxu0 0.0
    %750 = vmatpush1.msra.mxu0 0.0
    %751 = vmatprep.subr.mxu0 0.0
    %752 = vmatpush1.msra.mxu0 0.0
    %753 = vmatprep.subr.mxu0 0.0
    %754 = vmatpush1.msra.mxu0 0.0
    %755 = vmatprep.subr.mxu0 0.0
    %756 = vmatpush1.msra.mxu0 0.0
    %757 = vmatprep.subr.mxu0 0.0
    %758 = vmatpush1.msra.mxu0 0.0
    %759 = vmatprep.subr.mxu0 0.0
    %760 = vmatpush1.msra.mxu0 0.0
    %761 = vmatprep.subr.mxu0 0.0
    %762 = vmatpush1.msra.mxu0 0.0
    %763 = vmatprep.subr.mxu0 0.0
    %764 = vmatpush1.msra.mxu0 0.0
    %765 = vmatprep.subr.mxu0 0.0
    %766 = vmatpush1.msra.mxu0 0.0
    %767 = vmatprep.subr.mxu0 0.0
    %768 = vmatpush1.msra.mxu0 0.0
    %769 = vmatprep.subr.mxu0 0.0
    %770 = vmatpush1.msra.mxu0 0.0
    %771 = vmatprep.mubr.f32.mxu0 0.0
    %772 = vmatmul.mubr.f32.gmra.mrb[0].mxu0 %v705
    %v773 = vpop.f32.mrb[0].mxu0
    %v774 = vadd.f32 0.0, %v773
    %v775 = vpop.f32.mrb[0].mxu0
    %776 = vdwg.mxu0
    %v777 = vadd.f32 %v603, %v774
    %778 = vrot.lane.b32.xlu0 %v257, 104
    %v779 = vpop.permute.xlu0 %778
    %780 = vrot.lane.b32.xlu0 %v254, 72
    %v781 = vpop.permute.xlu0 %780
    %v782 = vsel %vm266, %v779, 0
    %v784 = vsel %vm266, %v781, 0
    %786 = vmatprep.subr.mxu0 0.0
    %787 = vmatpush1.xpose.msra.mxu0 %v784
    %788 = vmatprep.subr.mxu0 0.0
    %789 = vmatpush1.xpose.msra.mxu0 0.0
    %790 = vmatprep.subr.mxu0 0.0
    %791 = vmatpush1.xpose.msra.mxu0 0.0
    %792 = vmatprep.subr.mxu0 0.0
    %793 = vmatpush1.xpose.msra.mxu0 0.0
    %794 = vmatprep.subr.mxu0 0.0
    %795 = vmatpush1.xpose.msra.mxu0 0.0
    %796 = vmatprep.subr.mxu0 0.0
    %797 = vmatpush1.xpose.msra.mxu0 0.0
    %798 = vmatprep.subr.mxu0 0.0
    %799 = vmatpush1.xpose.msra.mxu0 0.0
    %800 = vmatprep.subr.mxu0 0.0
    %801 = vmatpush1.xpose.msra.mxu0 0.0
    %802 = vmatprep.subr.mxu0 0.0
    %803 = vmatpush1.xpose.msra.mxu0 0.0
    %804 = vmatprep.subr.mxu0 0.0
    %805 = vmatpush1.xpose.msra.mxu0 0.0
    %806 = vmatprep.subr.mxu0 0.0
    %807 = vmatpush1.xpose.msra.mxu0 0.0
    %808 = vmatprep.subr.mxu0 0.0
    %809 = vmatpush1.xpose.msra.mxu0 0.0
    %810 = vmatprep.subr.mxu0 0.0
    %811 = vmatpush1.xpose.msra.mxu0 0.0
    %812 = vmatprep.subr.mxu0 0.0
    %813 = vmatpush1.xpose.msra.mxu0 0.0
    %814 = vmatprep.subr.mxu0 0.0
    %815 = vmatpush1.xpose.msra.mxu0 0.0
    %816 = vmatprep.subr.mxu0 0.0
    %817 = vmatpush1.xpose.msra.mxu0 0.0
    %818 = vmatprep.subr.mxu0 0.0
    %819 = vmatpush1.xpose.msra.mxu0 0.0
    %820 = vmatprep.subr.mxu0 0.0
    %821 = vmatpush1.xpose.msra.mxu0 0.0
    %822 = vmatprep.subr.mxu0 0.0
    %823 = vmatpush1.xpose.msra.mxu0 0.0
    %824 = vmatprep.subr.mxu0 0.0
    %825 = vmatpush1.xpose.msra.mxu0 0.0
    %826 = vmatprep.subr.mxu0 0.0
    %827 = vmatpush1.xpose.msra.mxu0 0.0
    %828 = vmatprep.subr.mxu0 0.0
    %829 = vmatpush1.xpose.msra.mxu0 0.0
    %830 = vmatprep.subr.mxu0 0.0
    %831 = vmatpush1.xpose.msra.mxu0 0.0
    %832 = vmatprep.subr.mxu0 0.0
    %833 = vmatpush1.xpose.msra.mxu0 0.0
    %834 = vmatprep.subr.mxu0 0.0
    %835 = vmatpush1.xpose.msra.mxu0 0.0
    %836 = vmatprep.subr.mxu0 0.0
    %837 = vmatpush1.xpose.msra.mxu0 0.0
    %838 = vmatprep.subr.mxu0 0.0
    %839 = vmatpush1.xpose.msra.mxu0 0.0
    %840 = vmatprep.subr.mxu0 0.0
    %841 = vmatpush1.xpose.msra.mxu0 0.0
    %842 = vmatprep.subr.mxu0 0.0
    %843 = vmatpush1.xpose.msra.mxu0 0.0
    %844 = vmatprep.subr.mxu0 0.0
    %845 = vmatpush1.xpose.msra.mxu0 0.0
    %846 = vmatprep.subr.mxu0 0.0
    %847 = vmatpush1.xpose.msra.mxu0 0.0
    %848 = vmatprep.subr.mxu0 0.0
    %849 = vmatpush1.xpose.msra.mxu0 0.0
    %850 = vmatprep.mubr.f32.mxu0 0.0
    %851 = vmatmul.mubr.f32.gmra.mrb[0].mxu0 %v782
    %v852 = vpop.f32.mrb[0].mxu0
    %v853 = vadd.f32 %v88, %v852
    %v854 = vpop.f32.mrb[0].mxu0
    %855 = vdwg.mxu0
    %v856 = vsel %vm266, %v853, -inf
    %857 = vmax.xlane.f32.xlu0 %v856
    %v858 = vpop.xlane.xlu0 %857
    %v859 = vsub.f32 %v853, %v858
    %v860 = vmul.f32 %v859, 1.442695
    %v861 = vpow.pop %v860
    %v862 = vsel %vm266, %v861, 0.0
    %863 = vadd.xlane.f32.xlu0 %v862
    %v864 = vpop.xlane.xlu0 %863
    %v865 = vrcp.pop %v864
    %v866 = vmul.f32 %v861, %v865
    %868 = vrot.lane.b32.xlu0 %v84, 64
    %v869 = vpop.permute.xlu0 %868
    %v871 = vmul.f32 %v254, %v869
    %873 = vrot.lane.b32.xlu0 %v871, 64
    %v874 = vpop.permute.xlu0 %873
    %v877 = vsel %vm266, %v866, 0
    %879 = vmatprep.subr.mxu0 0.0
    %880 = vmatpush1.msra.mxu0 %v874
    %881 = vmatprep.subr.mxu0 0.0
    %882 = vmatpush1.msra.mxu0 0.0
    %883 = vmatprep.subr.mxu0 0.0
    %884 = vmatpush1.msra.mxu0 0.0
    %885 = vmatprep.subr.mxu0 0.0
    %886 = vmatpush1.msra.mxu0 0.0
    %887 = vmatprep.subr.mxu0 0.0
    %888 = vmatpush1.msra.mxu0 0.0
    %889 = vmatprep.subr.mxu0 0.0
    %890 = vmatpush1.msra.mxu0 0.0
    %891 = vmatprep.subr.mxu0 0.0
    %892 = vmatpush1.msra.mxu0 0.0
    %893 = vmatprep.subr.mxu0 0.0
    %894 = vmatpush1.msra.mxu0 0.0
    %895 = vmatprep.subr.mxu0 0.0
    %896 = vmatpush1.msra.mxu0 0.0
    %897 = vmatprep.subr.mxu0 0.0
    %898 = vmatpush1.msra.mxu0 0.0
    %899 = vmatprep.subr.mxu0 0.0
    %900 = vmatpush1.msra.mxu0 0.0
    %901 = vmatprep.subr.mxu0 0.0
    %902 = vmatpush1.msra.mxu0 0.0
    %903 = vmatprep.subr.mxu0 0.0
    %904 = vmatpush1.msra.mxu0 0.0
    %905 = vmatprep.subr.mxu0 0.0
    %906 = vmatpush1.msra.mxu0 0.0
    %907 = vmatprep.subr.mxu0 0.0
    %908 = vmatpush1.msra.mxu0 0.0
    %909 = vmatprep.subr.mxu0 0.0
    %910 = vmatpush1.msra.mxu0 0.0
    %911 = vmatprep.subr.mxu0 0.0
    %912 = vmatpush1.msra.mxu0 0.0
    %913 = vmatprep.subr.mxu0 0.0
    %914 = vmatpush1.msra.mxu0 0.0
    %915 = vmatprep.subr.mxu0 0.0
    %916 = vmatpush1.msra.mxu0 0.0
    %917 = vmatprep.subr.mxu0 0.0
    %918 = vmatpush1.msra.mxu0 0.0
    %919 = vmatprep.subr.mxu0 0.0
    %920 = vmatpush1.msra.mxu0 0.0
    %921 = vmatprep.subr.mxu0 0.0
    %922 = vmatpush1.msra.mxu0 0.0
    %923 = vmatprep.subr.mxu0 0.0
    %924 = vmatpush1.msra.mxu0 0.0
    %925 = vmatprep.subr.mxu0 0.0
    %926 = vmatpush1.msra.mxu0 0.0
    %927 = vmatprep.subr.mxu0 0.0
    %928 = vmatpush1.msra.mxu0 0.0
    %929 = vmatprep.subr.mxu0 0.0
    %930 = vmatpush1.msra.mxu0 0.0
    %931 = vmatprep.subr.mxu0 0.0
    %932 = vmatpush1.msra.mxu0 0.0
    %933 = vmatprep.subr.mxu0 0.0
    %934 = vmatpush1.msra.mxu0 0.0
    %935 = vmatprep.subr.mxu0 0.0
    %936 = vmatpush1.msra.mxu0 0.0
    %937 = vmatprep.subr.mxu0 0.0
    %938 = vmatpush1.msra.mxu0 0.0
    %939 = vmatprep.subr.mxu0 0.0
    %940 = vmatpush1.msra.mxu0 0.0
    %941 = vmatprep.subr.mxu0 0.0
    %942 = vmatpush1.msra.mxu0 0.0
    %943 = vmatprep.mubr.f32.mxu0 0.0
    %944 = vmatmul.mubr.f32.gmra.mrb[0].mxu0 %v877
    %v945 = vpop.f32.mrb[0].mxu0
    %v946 = vadd.f32 0.0, %v945
    %v947 = vpop.f32.mrb[0].mxu0
    %948 = vdwg.mxu0
    %v949 = vadd.f32 %v777, %v946
    %v951 = vlaneseq
    %v952 = vshrl.u32 %v951, 7
    %v953 = vsub.s32 0, %v952
    %v954 = vrot.slane %v262, %v953
    %v957 = vsel %vm99, %v949, 0
    %v960 = vsel %vm99, %v258, 0
    %v963 = vsel %vm99, %v259, 0
    %v966 = vsel %vm99, %v260, 0
    %v969 = vsel %vm99, %v261, 0
    %971 = vmatprep.subr.mxu0 0.0
    %972 = vmatpush1.xpose.msra.mxu0 %v960
    %973 = vmatprep.subr.mxu0 0.0
    %974 = vmatpush1.xpose.msra.mxu0 %v963
    %975 = vmatprep.subr.mxu0 0.0
    %976 = vmatpush1.xpose.msra.mxu0 %v966
    %977 = vmatprep.subr.mxu0 0.0
    %978 = vmatpush1.xpose.msra.mxu0 %v969
    %979 = vmatprep.subr.mxu0 0.0
    %980 = vmatpush1.xpose.msra.mxu0 0.0
    %981 = vmatprep.subr.mxu0 0.0
    %982 = vmatpush1.xpose.msra.mxu0 0.0
    %983 = vmatprep.subr.mxu0 0.0
    %984 = vmatpush1.xpose.msra.mxu0 0.0
    %985 = vmatprep.subr.mxu0 0.0
    %986 = vmatpush1.xpose.msra.mxu0 0.0
    %987 = vmatprep.subr.mxu0 0.0
    %988 = vmatpush1.xpose.msra.mxu0 0.0
    %989 = vmatprep.subr.mxu0 0.0
    %990 = vmatpush1.xpose.msra.mxu0 0.0
    %991 = vmatprep.subr.mxu0 0.0
    %992 = vmatpush1.xpose.msra.mxu0 0.0
    %993 = vmatprep.subr.mxu0 0.0
    %994 = vmatpush1.xpose.msra.mxu0 0.0
    %995 = vmatprep.subr.mxu0 0.0
    %996 = vmatpush1.xpose.msra.mxu0 0.0
    %997 = vmatprep.subr.mxu0 0.0
    %998 = vmatpush1.xpose.msra.mxu0 0.0
    %999 = vmatprep.subr.mxu0 0.0
    %1000 = vmatpush1.xpose.msra.mxu0 0.0
    %1001 = vmatprep.subr.mxu0 0.0
    %1002 = vmatpush1.xpose.msra.mxu0 0.0
    %1003 = vmatprep.subr.mxu0 0.0
    %1004 = vmatpush1.xpose.msra.mxu0 0.0
    %1005 = vmatprep.subr.mxu0 0.0
    %1006 = vmatpush1.xpose.msra.mxu0 0.0
    %1007 = vmatprep.subr.mxu0 0.0
    %1008 = vmatpush1.xpose.msra.mxu0 0.0
    %1009 = vmatprep.subr.mxu0 0.0
    %1010 = vmatpush1.xpose.msra.mxu0 0.0
    %1011 = vmatprep.subr.mxu0 0.0
    %1012 = vmatpush1.xpose.msra.mxu0 0.0
    %1013 = vmatprep.subr.mxu0 0.0
    %1014 = vmatpush1.xpose.msra.mxu0 0.0
    %1015 = vmatprep.subr.mxu0 0.0
    %1016 = vmatpush1.xpose.msra.mxu0 0.0
    %1017 = vmatprep.subr.mxu0 0.0
    %1018 = vmatpush1.xpose.msra.mxu0 0.0
    %1019 = vmatprep.subr.mxu0 0.0
    %1020 = vmatpush1.xpose.msra.mxu0 0.0
    %1021 = vmatprep.subr.mxu0 0.0
    %1022 = vmatpush1.xpose.msra.mxu0 0.0
    %1023 = vmatprep.subr.mxu0 0.0
    %1024 = vmatpush1.xpose.msra.mxu0 0.0
    %1025 = vmatprep.subr.mxu0 0.0
    %1026 = vmatpush1.xpose.msra.mxu0 0.0
    %1027 = vmatprep.subr.mxu0 0.0
    %1028 = vmatpush1.xpose.msra.mxu0 0.0
    %1029 = vmatprep.subr.mxu0 0.0
    %1030 = vmatpush1.xpose.msra.mxu0 0.0
    %1031 = vmatprep.subr.mxu0 0.0
    %1032 = vmatpush1.xpose.msra.mxu0 0.0
    %1033 = vmatprep.subr.mxu0 0.0
    %1034 = vmatpush1.xpose.msra.mxu0 0.0
    %1035 = vmatprep.mubr.f32.mxu0 0.0
    %1036 = vmatmul.mubr.f32.gmra.mrb[0].mxu0 %v957
    %v1037 = vpop.f32.mrb[0].mxu0
    %v1038 = vadd.f32 %v954, %v1037
    %v1039 = vpop.f32.mrb[0].mxu0
    %1040 = vdwg.mxu0
    %v1041 = vld [vmem:[%s14] sm:$0xff]
    %v1042 = vld [vmem:[%s14 + $0x8] sm:$0xff]
    %v1043 = vld [vmem:[%s15] sm:$0x1]
    %v1044 = vld [vmem:[%s16] sm:$0xff]
    %v1045 = vld [vmem:[%s16 + $0x8] sm:$0xff]
    %v1046 = vld [vmem:[%s16 + $0x10] sm:$0xff]
    %v1047 = vld [vmem:[%s16 + $0x18] sm:$0xff]
    %v1048 = vld [vmem:[%s17] sm:$0x1]
    %v1050 = vlaneseq
    %v1051 = vshrl.u32 %v1050, 7
    %v1052 = vsub.s32 0, %v1051
    %v1053 = vrot.slane %v1043, %v1052
    %v1056 = vsel %vm99, %v1038, 0
    %v1059 = vsel %vm99, %v1041, 0
    %v1062 = vsel %vm99, %v1042, 0
    %1064 = vmatprep.subr.mxu0 0.0
    %1065 = vmatpush1.xpose.msra.mxu0 %v1059
    %1066 = vmatprep.subr.mxu0 0.0
    %1067 = vmatpush1.xpose.msra.mxu0 %v1062
    %1068 = vmatprep.subr.mxu0 0.0
    %1069 = vmatpush1.xpose.msra.mxu0 0.0
    %1070 = vmatprep.subr.mxu0 0.0
    %1071 = vmatpush1.xpose.msra.mxu0 0.0
    %1072 = vmatprep.subr.mxu0 0.0
    %1073 = vmatpush1.xpose.msra.mxu0 0.0
    %1074 = vmatprep.subr.mxu0 0.0
    %1075 = vmatpush1.xpose.msra.mxu0 0.0
    %1076 = vmatprep.subr.mxu0 0.0
    %1077 = vmatpush1.xpose.msra.mxu0 0.0
    %1078 = vmatprep.subr.mxu0 0.0
    %1079 = vmatpush1.xpose.msra.mxu0 0.0
    %1080 = vmatprep.subr.mxu0 0.0
    %1081 = vmatpush1.xpose.msra.mxu0 0.0
    %1082 = vmatprep.subr.mxu0 0.0
    %1083 = vmatpush1.xpose.msra.mxu0 0.0
    %1084 = vmatprep.subr.mxu0 0.0
    %1085 = vmatpush1.xpose.msra.mxu0 0.0
    %1086 = vmatprep.subr.mxu0 0.0
    %1087 = vmatpush1.xpose.msra.mxu0 0.0
    %1088 = vmatprep.subr.mxu0 0.0
    %1089 = vmatpush1.xpose.msra.mxu0 0.0
    %1090 = vmatprep.subr.mxu0 0.0
    %1091 = vmatpush1.xpose.msra.mxu0 0.0
    %1092 = vmatprep.subr.mxu0 0.0
    %1093 = vmatpush1.xpose.msra.mxu0 0.0
    %1094 = vmatprep.subr.mxu0 0.0
    %1095 = vmatpush1.xpose.msra.mxu0 0.0
    %1096 = vmatprep.subr.mxu0 0.0
    %1097 = vmatpush1.xpose.msra.mxu0 0.0
    %1098 = vmatprep.subr.mxu0 0.0
    %1099 = vmatpush1.xpose.msra.mxu0 0.0
    %1100 = vmatprep.subr.mxu0 0.0
    %1101 = vmatpush1.xpose.msra.mxu0 0.0
    %1102 = vmatprep.subr.mxu0 0.0
    %1103 = vmatpush1.xpose.msra.mxu0 0.0
    %1104 = vmatprep.subr.mxu0 0.0
    %1105 = vmatpush1.xpose.msra.mxu0 0.0
    %1106 = vmatprep.subr.mxu0 0.0
    %1107 = vmatpush1.xpose.msra.mxu0 0.0
    %1108 = vmatprep.subr.mxu0 0.0
    %1109 = vmatpush1.xpose.msra.mxu0 0.0
    %1110 = vmatprep.subr.mxu0 0.0
    %1111 = vmatpush1.xpose.msra.mxu0 0.0
    %1112 = vmatprep.subr.mxu0 0.0
    %1113 = vmatpush1.xpose.msra.mxu0 0.0
    %1114 = vmatprep.subr.mxu0 0.0
    %1115 = vmatpush1.xpose.msra.mxu0 0.0
    %1116 = vmatprep.subr.mxu0 0.0
    %1117 = vmatpush1.xpose.msra.mxu0 0.0
    %1118 = vmatprep.subr.mxu0 0.0
    %1119 = vmatpush1.xpose.msra.mxu0 0.0
    %1120 = vmatprep.subr.mxu0 0.0
    %1121 = vmatpush1.xpose.msra.mxu0 0.0
    %1122 = vmatprep.subr.mxu0 0.0
    %1123 = vmatpush1.xpose.msra.mxu0 0.0
    %1124 = vmatprep.subr.mxu0 0.0
    %1125 = vmatpush1.xpose.msra.mxu0 0.0
    %1126 = vmatprep.subr.mxu0 0.0
    %1127 = vmatpush1.xpose.msra.mxu0 0.0
    %1128 = vmatprep.mubr.f32.mxu0 0.0
    %1129 = vmatmul.mubr.f32.gmra.mrb[0].mxu0 %v1056
    %v1130 = vpop.f32.mrb[0].mxu0
    %v1131 = vadd.f32 %v1053, %v1130
    %v1132 = vpop.f32.mrb[0].mxu0
    %1133 = vdwg.mxu0
    %v1134 = vmax.f32 %v1131, 0.0
    %v1136 = vlaneseq
    %v1137 = vshrl.u32 %v1136, 7
    %v1138 = vsub.s32 0, %v1137
    %v1139 = vrot.slane %v1048, %v1138
    %vm1141 = vcmask 130048
    %v1143 = vsel %vm1141, %v1134, 0
    %v1146 = vsel %vm1141, %v1044, 0
    %v1149 = vsel %vm1141, %v1045, 0
    %v1152 = vsel %vm1141, %v1046, 0
    %v1155 = vsel %vm1141, %v1047, 0
    %1157 = vmatprep.subr.mxu0 0.0
    %1158 = vmatpush1.xpose.msra.mxu0 %v1146
    %1159 = vmatprep.subr.mxu0 0.0
    %1160 = vmatpush1.xpose.msra.mxu0 %v1149
    %1161 = vmatprep.subr.mxu0 0.0
    %1162 = vmatpush1.xpose.msra.mxu0 %v1152
    %1163 = vmatprep.subr.mxu0 0.0
    %1164 = vmatpush1.xpose.msra.mxu0 %v1155
    %1165 = vmatprep.subr.mxu0 0.0
    %1166 = vmatpush1.xpose.msra.mxu0 0.0
    %1167 = vmatprep.subr.mxu0 0.0
    %1168 = vmatpush1.xpose.msra.mxu0 0.0
    %1169 = vmatprep.subr.mxu0 0.0
    %1170 = vmatpush1.xpose.msra.mxu0 0.0
    %1171 = vmatprep.subr.mxu0 0.0
    %1172 = vmatpush1.xpose.msra.mxu0 0.0
    %1173 = vmatprep.subr.mxu0 0.0
    %1174 = vmatpush1.xpose.msra.mxu0 0.0
    %1175 = vmatprep.subr.mxu0 0.0
    %1176 = vmatpush1.xpose.msra.mxu0 0.0
    %1177 = vmatprep.subr.mxu0 0.0
    %1178 = vmatpush1.xpose.msra.mxu0 0.0
    %1179 = vmatprep.subr.mxu0 0.0
    %1180 = vmatpush1.xpose.msra.mxu0 0.0
    %1181 = vmatprep.subr.mxu0 0.0
    %1182 = vmatpush1.xpose.msra.mxu0 0.0
    %1183 = vmatprep.subr.mxu0 0.0
    %1184 = vmatpush1.xpose.msra.mxu0 0.0
    %1185 = vmatprep.subr.mxu0 0.0
    %1186 = vmatpush1.xpose.msra.mxu0 0.0
    %1187 = vmatprep.subr.mxu0 0.0
    %1188 = vmatpush1.xpose.msra.mxu0 0.0
    %1189 = vmatprep.subr.mxu0 0.0
    %1190 = vmatpush1.xpose.msra.mxu0 0.0
    %1191 = vmatprep.subr.mxu0 0.0
    %1192 = vmatpush1.xpose.msra.mxu0 0.0
    %1193 = vmatprep.subr.mxu0 0.0
    %1194 = vmatpush1.xpose.msra.mxu0 0.0
    %1195 = vmatprep.subr.mxu0 0.0
    %1196 = vmatpush1.xpose.msra.mxu0 0.0
    %1197 = vmatprep.subr.mxu0 0.0
    %1198 = vmatpush1.xpose.msra.mxu0 0.0
    %1199 = vmatprep.subr.mxu0 0.0
    %1200 = vmatpush1.xpose.msra.mxu0 0.0
    %1201 = vmatprep.subr.mxu0 0.0
    %1202 = vmatpush1.xpose.msra.mxu0 0.0
    %1203 = vmatprep.subr.mxu0 0.0
    %1204 = vmatpush1.xpose.msra.mxu0 0.0
    %1205 = vmatprep.subr.mxu0 0.0
    %1206 = vmatpush1.xpose.msra.mxu0 0.0
    %1207 = vmatprep.subr.mxu0 0.0
    %1208 = vmatpush1.xpose.msra.mxu0 0.0
    %1209 = vmatprep.subr.mxu0 0.0
    %1210 = vmatpush1.xpose.msra.mxu0 0.0
    %1211 = vmatprep.subr.mxu0 0.0
    %1212 = vmatpush1.xpose.msra.mxu0 0.0
    %1213 = vmatprep.subr.mxu0 0.0
    %1214 = vmatpush1.xpose.msra.mxu0 0.0
    %1215 = vmatprep.subr.mxu0 0.0
    %1216 = vmatpush1.xpose.msra.mxu0 0.0
    %1217 = vmatprep.subr.mxu0 0.0
    %1218 = vmatpush1.xpose.msra.mxu0 0.0
    %1219 = vmatprep.subr.mxu0 0.0
    %1220 = vmatpush1.xpose.msra.mxu0 0.0
    %1221 = vmatprep.mubr.f32.mxu0 0.0
    %1222 = vmatmul.mubr.f32.gmra.mrb[0].mxu0 %v1143
    %v1223 = vpop.f32.mrb[0].mxu0
    %v1224 = vadd.f32 %v1139, %v1223
    %v1225 = vpop.f32.mrb[0].mxu0
    %1226 = vdwg.mxu0
    %v1227 = vadd.f32 %v1038, %v1224
    %v1228 = vadd.f32 %v1227, %v85
    %s1229 = scalar_lea.vmem %s8, 1
    %v1230 = vld [vmem:[%s1229] sm:$0x1]
    %s1231 = scalar_lea.vmem %s9, 1
    %v1232 = vld [vmem:[%s1231] sm:$0x1]
    %v1233 = vsel %vm99, %v1228, 0.0
    %1234 = vadd.xlane.f32.xlu0 %v1233
    %v1235 = vpop.xlane.xlu0 %1234
    %v1236 = vmul.f32 %v1235, %v103
    %v1237 = vsub.f32 %v1228, %v1236
    %v1238 = vmul.f32 %v1237, %v1237
    %v1239 = vsel %vm99, %v1238, 0.0
    %1240 = vadd.xlane.f32.xlu0 %v1239
    %v1241 = vpop.xlane.xlu0 %1240
    %v1242 = vmul.f32 %v1241, %v103
    %v1243 = vadd.f32 %v1242, 1e-06
    %v1244 = vrsqrt.pop %v1243
    %v1245 = vmul.f32 %v1237, %v1244
    %v1247 = vlaneseq
    %v1248 = vshrl.u32 %v1247, 7
    %v1249 = vsub.s32 0, %v1248
    %v1250 = vrot.slane %v1230, %v1249
    %v1252 = vmul.f32 %v1245, %v1250
    %v1254 = vlaneseq
    %v1255 = vshrl.u32 %v1254, 7
    %v1256 = vsub.s32 0, %v1255
    %v1257 = vrot.slane %v1232, %v1256
    %v1259 = vadd.f32 %v1252, %v1257
    %s1260 = scalar_lea.vmem %s5, 1
    %v1261 = vld [vmem:[%s1260] sm:$0x1]
    %s1262 = scalar_lea.vmem %s4, 96
    %v1263 = vld [vmem:[%s1262] sm:$0xff]
    %v1264 = vld [vmem:[%s1262 + $0x8] sm:$0xff]
    %v1265 = vld [vmem:[%s1262 + $0x10] sm:$0xff]
    %v1266 = vld [vmem:[%s1262 + $0x18] sm:$0xff]
    %v1268 = vlaneseq
    %v1269 = vshrl.u32 %v1268, 7
    %v1270 = vsub.s32 0, %v1269
    %v1271 = vrot.slane %v1261, %v1270
    %v1274 = vsel %vm99, %v1259, 0
    %v1277 = vsel %vm99, %v1263, 0
    %v1280 = vsel %vm99, %v1264, 0
    %v1283 = vsel %vm99, %v1265, 0
    %v1286 = vsel %vm99, %v1266, 0
    %1288 = vmatprep.subr.mxu0 0.0
    %1289 = vmatpush1.xpose.msra.mxu0 %v1277
    %1290 = vmatprep.subr.mxu0 0.0
    %1291 = vmatpush1.xpose.msra.mxu0 %v1280
    %1292 = vmatprep.subr.mxu0 0.0
    %1293 = vmatpush1.xpose.msra.mxu0 %v1283
    %1294 = vmatprep.subr.mxu0 0.0
    %1295 = vmatpush1.xpose.msra.mxu0 %v1286
    %1296 = vmatprep.subr.mxu0 0.0
    %1297 = vmatpush1.xpose.msra.mxu0 0.0
    %1298 = vmatprep.subr.mxu0 0.0
    %1299 = vmatpush1.xpose.msra.mxu0 0.0
    %1300 = vmatprep.subr.mxu0 0.0
    %1301 = vmatpush1.xpose.msra.mxu0 0.0
    %1302 = vmatprep.subr.mxu0 0.0
    %1303 = vmatpush1.xpose.msra.mxu0 0.0
    %1304 = vmatprep.subr.mxu0 0.0
    %1305 = vmatpush1.xpose.msra.mxu0 0.0
    %1306 = vmatprep.subr.mxu0 0.0
    %1307 = vmatpush1.xpose.msra.mxu0 0.0
    %1308 = vmatprep.subr.mxu0 0.0
    %1309 = vmatpush1.xpose.msra.mxu0 0.0
    %1310 = vmatprep.subr.mxu0 0.0
    %1311 = vmatpush1.xpose.msra.mxu0 0.0
    %1312 = vmatprep.subr.mxu0 0.0
    %1313 = vmatpush1.xpose.msra.mxu0 0.0
    %1314 = vmatprep.subr.mxu0 0.0
    %1315 = vmatpush1.xpose.msra.mxu0 0.0
    %1316 = vmatprep.subr.mxu0 0.0
    %1317 = vmatpush1.xpose.msra.mxu0 0.0
    %1318 = vmatprep.subr.mxu0 0.0
    %1319 = vmatpush1.xpose.msra.mxu0 0.0
    %1320 = vmatprep.subr.mxu0 0.0
    %1321 = vmatpush1.xpose.msra.mxu0 0.0
    %1322 = vmatprep.subr.mxu0 0.0
    %1323 = vmatpush1.xpose.msra.mxu0 0.0
    %1324 = vmatprep.subr.mxu0 0.0
    %1325 = vmatpush1.xpose.msra.mxu0 0.0
    %1326 = vmatprep.subr.mxu0 0.0
    %1327 = vmatpush1.xpose.msra.mxu0 0.0
    %1328 = vmatprep.subr.mxu0 0.0
    %1329 = vmatpush1.xpose.msra.mxu0 0.0
    %1330 = vmatprep.subr.mxu0 0.0
    %1331 = vmatpush1.xpose.msra.mxu0 0.0
    %1332 = vmatprep.subr.mxu0 0.0
    %1333 = vmatpush1.xpose.msra.mxu0 0.0
    %1334 = vmatprep.subr.mxu0 0.0
    %1335 = vmatpush1.xpose.msra.mxu0 0.0
    %1336 = vmatprep.subr.mxu0 0.0
    %1337 = vmatpush1.xpose.msra.mxu0 0.0
    %1338 = vmatprep.subr.mxu0 0.0
    %1339 = vmatpush1.xpose.msra.mxu0 0.0
    %1340 = vmatprep.subr.mxu0 0.0
    %1341 = vmatpush1.xpose.msra.mxu0 0.0
    %1342 = vmatprep.subr.mxu0 0.0
    %1343 = vmatpush1.xpose.msra.mxu0 0.0
    %1344 = vmatprep.subr.mxu0 0.0
    %1345 = vmatpush1.xpose.msra.mxu0 0.0
    %1346 = vmatprep.subr.mxu0 0.0
    %1347 = vmatpush1.xpose.msra.mxu0 0.0
    %1348 = vmatprep.subr.mxu0 0.0
    %1349 = vmatpush1.xpose.msra.mxu0 0.0
    %1350 = vmatprep.subr.mxu0 0.0
    %1351 = vmatpush1.xpose.msra.mxu0 0.0
    %1352 = vmatprep.mubr.f32.mxu0 0.0
    %1353 = vmatmul.mubr.f32.gmra.mrb[0].mxu0 %v1274
    %v1354 = vpop.f32.mrb[0].mxu0
    %v1355 = vadd.f32 %v1271, %v1354
    %v1356 = vpop.f32.mrb[0].mxu0
    %1357 = vdwg.mxu0
    %v1358 = vmul.f32 %v1355, 0.35355338
    %v1359 = vld [vmem:[%s1262 + $0x20] sm:$0xff]
    %v1360 = vld [vmem:[%s1262 + $0x28] sm:$0xff]
    %v1361 = vld [vmem:[%s1262 + $0x30] sm:$0xff]
    %v1362 = vld [vmem:[%s1262 + $0x38] sm:$0xff]
    %v1363 = vld [vmem:[%s1262 + $0x40] sm:$0xff]
    %v1364 = vld [vmem:[%s1262 + $0x48] sm:$0xff]
    %v1365 = vld [vmem:[%s1262 + $0x50] sm:$0xff]
    %v1366 = vld [vmem:[%s1262 + $0x58] sm:$0xff]
    %1367 = vrot.lane.b32.xlu0 %v1271, 96
    %v1368 = vpop.permute.xlu0 %1367
    %v1371 = vsel %vm99, %v86, 0
    %v1374 = vsel %vm99, %v1359, 0
    %v1377 = vsel %vm99, %v1360, 0
    %v1380 = vsel %vm99, %v1361, 0
    %v1383 = vsel %vm99, %v1362, 0
    %v1386 = vsel %vm99, %v1363, 0
    %v1389 = vsel %vm99, %v1364, 0
    %v1392 = vsel %vm99, %v1365, 0
    %v1395 = vsel %vm99, %v1366, 0
    %1397 = vmatprep.subr.mxu0 0.0
    %1398 = vmatpush1.xpose.msra.mxu0 %v1374
    %1399 = vmatprep.subr.mxu0 0.0
    %1400 = vmatpush1.xpose.msra.mxu0 %v1377
    %1401 = vmatprep.subr.mxu0 0.0
    %1402 = vmatpush1.xpose.msra.mxu0 %v1380
    %1403 = vmatprep.subr.mxu0 0.0
    %1404 = vmatpush1.xpose.msra.mxu0 %v1383
    %1405 = vmatprep.subr.mxu0 0.0
    %1406 = vmatpush1.xpose.msra.mxu0 %v1386
    %1407 = vmatprep.subr.mxu0 0.0
    %1408 = vmatpush1.xpose.msra.mxu0 %v1389
    %1409 = vmatprep.subr.mxu0 0.0
    %1410 = vmatpush1.xpose.msra.mxu0 %v1392
    %1411 = vmatprep.subr.mxu0 0.0
    %1412 = vmatpush1.xpose.msra.mxu0 %v1395
    %1413 = vmatprep.subr.mxu0 0.0
    %1414 = vmatpush1.xpose.msra.mxu0 0.0
    %1415 = vmatprep.subr.mxu0 0.0
    %1416 = vmatpush1.xpose.msra.mxu0 0.0
    %1417 = vmatprep.subr.mxu0 0.0
    %1418 = vmatpush1.xpose.msra.mxu0 0.0
    %1419 = vmatprep.subr.mxu0 0.0
    %1420 = vmatpush1.xpose.msra.mxu0 0.0
    %1421 = vmatprep.subr.mxu0 0.0
    %1422 = vmatpush1.xpose.msra.mxu0 0.0
    %1423 = vmatprep.subr.mxu0 0.0
    %1424 = vmatpush1.xpose.msra.mxu0 0.0
    %1425 = vmatprep.subr.mxu0 0.0
    %1426 = vmatpush1.xpose.msra.mxu0 0.0
    %1427 = vmatprep.subr.mxu0 0.0
    %1428 = vmatpush1.xpose.msra.mxu0 0.0
    %1429 = vmatprep.subr.mxu0 0.0
    %1430 = vmatpush1.xpose.msra.mxu0 0.0
    %1431 = vmatprep.subr.mxu0 0.0
    %1432 = vmatpush1.xpose.msra.mxu0 0.0
    %1433 = vmatprep.subr.mxu0 0.0
    %1434 = vmatpush1.xpose.msra.mxu0 0.0
    %1435 = vmatprep.subr.mxu0 0.0
    %1436 = vmatpush1.xpose.msra.mxu0 0.0
    %1437 = vmatprep.subr.mxu0 0.0
    %1438 = vmatpush1.xpose.msra.mxu0 0.0
    %1439 = vmatprep.subr.mxu0 0.0
    %1440 = vmatpush1.xpose.msra.mxu0 0.0
    %1441 = vmatprep.subr.mxu0 0.0
    %1442 = vmatpush1.xpose.msra.mxu0 0.0
    %1443 = vmatprep.subr.mxu0 0.0
    %1444 = vmatpush1.xpose.msra.mxu0 0.0
    %1445 = vmatprep.subr.mxu0 0.0
    %1446 = vmatpush1.xpose.msra.mxu0 0.0
    %1447 = vmatprep.subr.mxu0 0.0
    %1448 = vmatpush1.xpose.msra.mxu0 0.0
    %1449 = vmatprep.subr.mxu0 0.0
    %1450 = vmatpush1.xpose.msra.mxu0 0.0
    %1451 = vmatprep.subr.mxu0 0.0
    %1452 = vmatpush1.xpose.msra.mxu0 0.0
    %1453 = vmatprep.subr.mxu0 0.0
    %1454 = vmatpush1.xpose.msra.mxu0 0.0
    %1455 = vmatprep.subr.mxu0 0.0
    %1456 = vmatpush1.xpose.msra.mxu0 0.0
    %1457 = vmatprep.subr.mxu0 0.0
    %1458 = vmatpush1.xpose.msra.mxu0 0.0
    %1459 = vmatprep.subr.mxu0 0.0
    %1460 = vmatpush1.xpose.msra.mxu0 0.0
    %1461 = vmatprep.mubr.f32.mxu0 0.0
    %1462 = vmatmul.mubr.f32.gmra.mrb[0].mxu0 %v1371
    %v1463 = vpop.f32.mrb[0].mxu0
    %v1464 = vadd.f32 %v1368, %v1463
    %v1465 = vpop.f32.mrb[0].mxu0
    %1466 = vdwg.mxu0
    %s1467 = scalar_lea.vmem %s6, 32
    %v1468 = vld [vmem:[%s1467] sm:$0xff]
    %v1469 = vld [vmem:[%s1467 + $0x8] sm:$0xff]
    %v1470 = vld [vmem:[%s1467 + $0x10] sm:$0xff]
    %v1471 = vld [vmem:[%s1467 + $0x18] sm:$0xff]
    %s1472 = scalar_lea.vmem %s7, 1
    %v1473 = vld [vmem:[%s1472] sm:$0x1]
    %v1475 = vsel %vm266, %v1358, 0
    %v1478 = vsel %vm266, %v1464, 0
    %1480 = vmatprep.subr.mxu0 0.0
    %1481 = vmatpush1.xpose.msra.mxu0 %v1478
    %1482 = vmatprep.subr.mxu0 0.0
    %1483 = vmatpush1.xpose.msra.mxu0 0.0
    %1484 = vmatprep.subr.mxu0 0.0
    %1485 = vmatpush1.xpose.msra.mxu0 0.0
    %1486 = vmatprep.subr.mxu0 0.0
    %1487 = vmatpush1.xpose.msra.mxu0 0.0
    %1488 = vmatprep.subr.mxu0 0.0
    %1489 = vmatpush1.xpose.msra.mxu0 0.0
    %1490 = vmatprep.subr.mxu0 0.0
    %1491 = vmatpush1.xpose.msra.mxu0 0.0
    %1492 = vmatprep.subr.mxu0 0.0
    %1493 = vmatpush1.xpose.msra.mxu0 0.0
    %1494 = vmatprep.subr.mxu0 0.0
    %1495 = vmatpush1.xpose.msra.mxu0 0.0
    %1496 = vmatprep.subr.mxu0 0.0
    %1497 = vmatpush1.xpose.msra.mxu0 0.0
    %1498 = vmatprep.subr.mxu0 0.0
    %1499 = vmatpush1.xpose.msra.mxu0 0.0
    %1500 = vmatprep.subr.mxu0 0.0
    %1501 = vmatpush1.xpose.msra.mxu0 0.0
    %1502 = vmatprep.subr.mxu0 0.0
    %1503 = vmatpush1.xpose.msra.mxu0 0.0
    %1504 = vmatprep.subr.mxu0 0.0
    %1505 = vmatpush1.xpose.msra.mxu0 0.0
    %1506 = vmatprep.subr.mxu0 0.0
    %1507 = vmatpush1.xpose.msra.mxu0 0.0
    %1508 = vmatprep.subr.mxu0 0.0
    %1509 = vmatpush1.xpose.msra.mxu0 0.0
    %1510 = vmatprep.subr.mxu0 0.0
    %1511 = vmatpush1.xpose.msra.mxu0 0.0
    %1512 = vmatprep.subr.mxu0 0.0
    %1513 = vmatpush1.xpose.msra.mxu0 0.0
    %1514 = vmatprep.subr.mxu0 0.0
    %1515 = vmatpush1.xpose.msra.mxu0 0.0
    %1516 = vmatprep.subr.mxu0 0.0
    %1517 = vmatpush1.xpose.msra.mxu0 0.0
    %1518 = vmatprep.subr.mxu0 0.0
    %1519 = vmatpush1.xpose.msra.mxu0 0.0
    %1520 = vmatprep.subr.mxu0 0.0
    %1521 = vmatpush1.xpose.msra.mxu0 0.0
    %1522 = vmatprep.subr.mxu0 0.0
    %1523 = vmatpush1.xpose.msra.mxu0 0.0
    %1524 = vmatprep.subr.mxu0 0.0
    %1525 = vmatpush1.xpose.msra.mxu0 0.0
    %1526 = vmatprep.subr.mxu0 0.0
    %1527 = vmatpush1.xpose.msra.mxu0 0.0
    %1528 = vmatprep.subr.mxu0 0.0
    %1529 = vmatpush1.xpose.msra.mxu0 0.0
    %1530 = vmatprep.subr.mxu0 0.0
    %1531 = vmatpush1.xpose.msra.mxu0 0.0
    %1532 = vmatprep.subr.mxu0 0.0
    %1533 = vmatpush1.xpose.msra.mxu0 0.0
    %1534 = vmatprep.subr.mxu0 0.0
    %1535 = vmatpush1.xpose.msra.mxu0 0.0
    %1536 = vmatprep.subr.mxu0 0.0
    %1537 = vmatpush1.xpose.msra.mxu0 0.0
    %1538 = vmatprep.subr.mxu0 0.0
    %1539 = vmatpush1.xpose.msra.mxu0 0.0
    %1540 = vmatprep.subr.mxu0 0.0
    %1541 = vmatpush1.xpose.msra.mxu0 0.0
    %1542 = vmatprep.subr.mxu0 0.0
    %1543 = vmatpush1.xpose.msra.mxu0 0.0
    %1544 = vmatprep.mubr.f32.mxu0 0.0
    %1545 = vmatmul.mubr.f32.gmra.mrb[0].mxu0 %v1475
    %v1546 = vpop.f32.mrb[0].mxu0
    %v1547 = vadd.f32 %v95, %v1546
    %v1548 = vpop.f32.mrb[0].mxu0
    %1549 = vdwg.mxu0
    %v1550 = vsel %vm266, %v1547, -inf
    %1551 = vmax.xlane.f32.xlu0 %v1550
    %v1552 = vpop.xlane.xlu0 %1551
    %v1553 = vsub.f32 %v1547, %v1552
    %v1554 = vmul.f32 %v1553, 1.442695
    %v1555 = vpow.pop %v1554
    %v1556 = vsel %vm266, %v1555, 0.0
    %1557 = vadd.xlane.f32.xlu0 %v1556
    %v1558 = vpop.xlane.xlu0 %1557
    %v1559 = vrcp.pop %v1558
    %v1560 = vmul.f32 %v1555, %v1559
    %1561 = vrot.lane.b32.xlu0 %v69, 32
    %v1562 = vpop.permute.xlu0 %1561
    %v1564 = vmul.f32 %v1464, %v1562
    %1565 = vrot.lane.b32.xlu0 %v1358, 120
    %v1566 = vpop.permute.xlu0 %1565
    %1567 = vrot.lane.b32.xlu0 %v1464, 120
    %v1568 = vpop.permute.xlu0 %1567
    %v1569 = vsel %vm266, %v1566, 0
    %v1571 = vsel %vm266, %v1568, 0
    %1573 = vmatprep.subr.mxu0 0.0
    %1574 = vmatpush1.xpose.msra.mxu0 %v1571
    %1575 = vmatprep.subr.mxu0 0.0
    %1576 = vmatpush1.xpose.msra.mxu0 0.0
    %1577 = vmatprep.subr.mxu0 0.0
    %1578 = vmatpush1.xpose.msra.mxu0 0.0
    %1579 = vmatprep.subr.mxu0 0.0
    %1580 = vmatpush1.xpose.msra.mxu0 0.0
    %1581 = vmatprep.subr.mxu0 0.0
    %1582 = vmatpush1.xpose.msra.mxu0 0.0
    %1583 = vmatprep.subr.mxu0 0.0
    %1584 = vmatpush1.xpose.msra.mxu0 0.0
    %1585 = vmatprep.subr.mxu0 0.0
    %1586 = vmatpush1.xpose.msra.mxu0 0.0
    %1587 = vmatprep.subr.mxu0 0.0
    %1588 = vmatpush1.xpose.msra.mxu0 0.0
    %1589 = vmatprep.subr.mxu0 0.0
    %1590 = vmatpush1.xpose.msra.mxu0 0.0
    %1591 = vmatprep.subr.mxu0 0.0
    %1592 = vmatpush1.xpose.msra.mxu0 0.0
    %1593 = vmatprep.subr.mxu0 0.0
    %1594 = vmatpush1.xpose.msra.mxu0 0.0
    %1595 = vmatprep.subr.mxu0 0.0
    %1596 = vmatpush1.xpose.msra.mxu0 0.0
    %1597 = vmatprep.subr.mxu0 0.0
    %1598 = vmatpush1.xpose.msra.mxu0 0.0
    %1599 = vmatprep.subr.mxu0 0.0
    %1600 = vmatpush1.xpose.msra.mxu0 0.0
    %1601 = vmatprep.subr.mxu0 0.0
    %1602 = vmatpush1.xpose.msra.mxu0 0.0
    %1603 = vmatprep.subr.mxu0 0.0
    %1604 = vmatpush1.xpose.msra.mxu0 0.0
    %1605 = vmatprep.subr.mxu0 0.0
    %1606 = vmatpush1.xpose.msra.mxu0 0.0
    %1607 = vmatprep.subr.mxu0 0.0
    %1608 = vmatpush1.xpose.msra.mxu0 0.0
    %1609 = vmatprep.subr.mxu0 0.0
    %1610 = vmatpush1.xpose.msra.mxu0 0.0
    %1611 = vmatprep.subr.mxu0 0.0
    %1612 = vmatpush1.xpose.msra.mxu0 0.0
    %1613 = vmatprep.subr.mxu0 0.0
    %1614 = vmatpush1.xpose.msra.mxu0 0.0
    %1615 = vmatprep.subr.mxu0 0.0
    %1616 = vmatpush1.xpose.msra.mxu0 0.0
    %1617 = vmatprep.subr.mxu0 0.0
    %1618 = vmatpush1.xpose.msra.mxu0 0.0
    %1619 = vmatprep.subr.mxu0 0.0
    %1620 = vmatpush1.xpose.msra.mxu0 0.0
    %1621 = vmatprep.subr.mxu0 0.0
    %1622 = vmatpush1.xpose.msra.mxu0 0.0
    %1623 = vmatprep.subr.mxu0 0.0
    %1624 = vmatpush1.xpose.msra.mxu0 0.0
    %1625 = vmatprep.subr.mxu0 0.0
    %1626 = vmatpush1.xpose.msra.mxu0 0.0
    %1627 = vmatprep.subr.mxu0 0.0
    %1628 = vmatpush1.xpose.msra.mxu0 0.0
    %1629 = vmatprep.subr.mxu0 0.0
    %1630 = vmatpush1.xpose.msra.mxu0 0.0
    %1631 = vmatprep.subr.mxu0 0.0
    %1632 = vmatpush1.xpose.msra.mxu0 0.0
    %1633 = vmatprep.subr.mxu0 0.0
    %1634 = vmatpush1.xpose.msra.mxu0 0.0
    %1635 = vmatprep.subr.mxu0 0.0
    %1636 = vmatpush1.xpose.msra.mxu0 0.0
    %1637 = vmatprep.mubr.f32.mxu0 0.0
    %1638 = vmatmul.mubr.f32.gmra.mrb[0].mxu0 %v1569
    %v1639 = vpop.f32.mrb[0].mxu0
    %v1640 = vadd.f32 %v95, %v1639
    %v1641 = vpop.f32.mrb[0].mxu0
    %1642 = vdwg.mxu0
    %v1643 = vsel %vm266, %v1640, -inf
    %1644 = vmax.xlane.f32.xlu0 %v1643
    %v1645 = vpop.xlane.xlu0 %1644
    %v1646 = vsub.f32 %v1640, %v1645
    %v1647 = vmul.f32 %v1646, 1.442695
    %v1648 = vpow.pop %v1647
    %v1649 = vsel %vm266, %v1648, 0.0
    %1650 = vadd.xlane.f32.xlu0 %v1649
    %v1651 = vpop.xlane.xlu0 %1650
    %v1652 = vrcp.pop %v1651
    %v1653 = vmul.f32 %v1648, %v1652
    %1654 = vrot.lane.b32.xlu0 %v74, 32
    %v1655 = vpop.permute.xlu0 %1654
    %v1657 = vmul.f32 %v1464, %v1655
    %1659 = vrot.lane.b32.xlu0 %v1657, 96
    %v1660 = vpop.permute.xlu0 %1659
    %v1663 = vsel %vm266, %v1653, 0
    %1665 = vmatprep.subr.mxu0 0.0
    %1666 = vmatpush1.msra.mxu0 %v1660
    %1667 = vmatprep.subr.mxu0 0.0
    %1668 = vmatpush1.msra.mxu0 0.0
    %1669 = vmatprep.subr.mxu0 0.0
    %1670 = vmatpush1.msra.mxu0 0.0
    %1671 = vmatprep.subr.mxu0 0.0
    %1672 = vmatpush1.msra.mxu0 0.0
    %1673 = vmatprep.subr.mxu0 0.0
    %1674 = vmatpush1.msra.mxu0 0.0
    %1675 = vmatprep.subr.mxu0 0.0
    %1676 = vmatpush1.msra.mxu0 0.0
    %1677 = vmatprep.subr.mxu0 0.0
    %1678 = vmatpush1.msra.mxu0 0.0
    %1679 = vmatprep.subr.mxu0 0.0
    %1680 = vmatpush1.msra.mxu0 0.0
    %1681 = vmatprep.subr.mxu0 0.0
    %1682 = vmatpush1.msra.mxu0 0.0
    %1683 = vmatprep.subr.mxu0 0.0
    %1684 = vmatpush1.msra.mxu0 0.0
    %1685 = vmatprep.subr.mxu0 0.0
    %1686 = vmatpush1.msra.mxu0 0.0
    %1687 = vmatprep.subr.mxu0 0.0
    %1688 = vmatpush1.msra.mxu0 0.0
    %1689 = vmatprep.subr.mxu0 0.0
    %1690 = vmatpush1.msra.mxu0 0.0
    %1691 = vmatprep.subr.mxu0 0.0
    %1692 = vmatpush1.msra.mxu0 0.0
    %1693 = vmatprep.subr.mxu0 0.0
    %1694 = vmatpush1.msra.mxu0 0.0
    %1695 = vmatprep.subr.mxu0 0.0
    %1696 = vmatpush1.msra.mxu0 0.0
    %1697 = vmatprep.subr.mxu0 0.0
    %1698 = vmatpush1.msra.mxu0 0.0
    %1699 = vmatprep.subr.mxu0 0.0
    %1700 = vmatpush1.msra.mxu0 0.0
    %1701 = vmatprep.subr.mxu0 0.0
    %1702 = vmatpush1.msra.mxu0 0.0
    %1703 = vmatprep.subr.mxu0 0.0
    %1704 = vmatpush1.msra.mxu0 0.0
    %1705 = vmatprep.subr.mxu0 0.0
    %1706 = vmatpush1.msra.mxu0 0.0
    %1707 = vmatprep.subr.mxu0 0.0
    %1708 = vmatpush1.msra.mxu0 0.0
    %1709 = vmatprep.subr.mxu0 0.0
    %1710 = vmatpush1.msra.mxu0 0.0
    %1711 = vmatprep.subr.mxu0 0.0
    %1712 = vmatpush1.msra.mxu0 0.0
    %1713 = vmatprep.subr.mxu0 0.0
    %1714 = vmatpush1.msra.mxu0 0.0
    %1715 = vmatprep.subr.mxu0 0.0
    %1716 = vmatpush1.msra.mxu0 0.0
    %1717 = vmatprep.subr.mxu0 0.0
    %1718 = vmatpush1.msra.mxu0 0.0
    %1719 = vmatprep.subr.mxu0 0.0
    %1720 = vmatpush1.msra.mxu0 0.0
    %1721 = vmatprep.subr.mxu0 0.0
    %1722 = vmatpush1.msra.mxu0 0.0
    %1723 = vmatprep.subr.mxu0 0.0
    %1724 = vmatpush1.msra.mxu0 0.0
    %1725 = vmatprep.subr.mxu0 0.0
    %1726 = vmatpush1.msra.mxu0 0.0
    %1727 = vmatprep.subr.mxu0 0.0
    %1728 = vmatpush1.msra.mxu0 0.0
    %1729 = vmatprep.mubr.f32.mxu0 0.0
    %1730 = vmatmul.mubr.f32.gmra.mrb[0].mxu0 %v1663
    %v1731 = vpop.f32.mrb[0].mxu0
    %v1732 = vadd.f32 0.0, %v1731
    %v1733 = vpop.f32.mrb[0].mxu0
    %1734 = vdwg.mxu0
    %1736 = vrot.lane.b32.xlu0 %v1564, 96
    %v1737 = vpop.permute.xlu0 %1736
    %v1740 = vsel %vm266, %v1560, 0
    %1742 = vmatprep.subr.mxu0 0.0
    %1743 = vmatpush1.msra.mxu0 %v1737
    %1744 = vmatprep.subr.mxu0 0.0
    %1745 = vmatpush1.msra.mxu0 0.0
    %1746 = vmatprep.subr.mxu0 0.0
    %1747 = vmatpush1.msra.mxu0 0.0
    %1748 = vmatprep.subr.mxu0 0.0
    %1749 = vmatpush1.msra.mxu0 0.0
    %1750 = vmatprep.subr.mxu0 0.0
    %1751 = vmatpush1.msra.mxu0 0.0
    %1752 = vmatprep.subr.mxu0 0.0
    %1753 = vmatpush1.msra.mxu0 0.0
    %1754 = vmatprep.subr.mxu0 0.0
    %1755 = vmatpush1.msra.mxu0 0.0
    %1756 = vmatprep.subr.mxu0 0.0
    %1757 = vmatpush1.msra.mxu0 0.0
    %1758 = vmatprep.subr.mxu0 0.0
    %1759 = vmatpush1.msra.mxu0 0.0
    %1760 = vmatprep.subr.mxu0 0.0
    %1761 = vmatpush1.msra.mxu0 0.0
    %1762 = vmatprep.subr.mxu0 0.0
    %1763 = vmatpush1.msra.mxu0 0.0
    %1764 = vmatprep.subr.mxu0 0.0
    %1765 = vmatpush1.msra.mxu0 0.0
    %1766 = vmatprep.subr.mxu0 0.0
    %1767 = vmatpush1.msra.mxu0 0.0
    %1768 = vmatprep.subr.mxu0 0.0
    %1769 = vmatpush1.msra.mxu0 0.0
    %1770 = vmatprep.subr.mxu0 0.0
    %1771 = vmatpush1.msra.mxu0 0.0
    %1772 = vmatprep.subr.mxu0 0.0
    %1773 = vmatpush1.msra.mxu0 0.0
    %1774 = vmatprep.subr.mxu0 0.0
    %1775 = vmatpush1.msra.mxu0 0.0
    %1776 = vmatprep.subr.mxu0 0.0
    %1777 = vmatpush1.msra.mxu0 0.0
    %1778 = vmatprep.subr.mxu0 0.0
    %1779 = vmatpush1.msra.mxu0 0.0
    %1780 = vmatprep.subr.mxu0 0.0
    %1781 = vmatpush1.msra.mxu0 0.0
    %1782 = vmatprep.subr.mxu0 0.0
    %1783 = vmatpush1.msra.mxu0 0.0
    %1784 = vmatprep.subr.mxu0 0.0
    %1785 = vmatpush1.msra.mxu0 0.0
    %1786 = vmatprep.subr.mxu0 0.0
    %1787 = vmatpush1.msra.mxu0 0.0
    %1788 = vmatprep.subr.mxu0 0.0
    %1789 = vmatpush1.msra.mxu0 0.0
    %1790 = vmatprep.subr.mxu0 0.0
    %1791 = vmatpush1.msra.mxu0 0.0
    %1792 = vmatprep.subr.mxu0 0.0
    %1793 = vmatpush1.msra.mxu0 0.0
    %1794 = vmatprep.subr.mxu0 0.0
    %1795 = vmatpush1.msra.mxu0 0.0
    %1796 = vmatprep.subr.mxu0 0.0
    %1797 = vmatpush1.msra.mxu0 0.0
    %1798 = vmatprep.subr.mxu0 0.0
    %1799 = vmatpush1.msra.mxu0 0.0
    %1800 = vmatprep.subr.mxu0 0.0
    %1801 = vmatpush1.msra.mxu0 0.0
    %1802 = vmatprep.subr.mxu0 0.0
    %1803 = vmatpush1.msra.mxu0 0.0
    %1804 = vmatprep.subr.mxu0 0.0
    %1805 = vmatpush1.msra.mxu0 0.0
    %1806 = vmatprep.mubr.f32.mxu0 0.0
    %1807 = vmatmul.mubr.f32.gmra.mrb[0].mxu0 %v1740
    %v1808 = vpop.f32.mrb[0].mxu0
    %v1809 = vadd.f32 %v1732, %v1808
    %v1810 = vpop.f32.mrb[0].mxu0
    %1811 = vdwg.mxu0
    %1812 = vrot.lane.b32.xlu0 %v1358, 112
    %v1813 = vpop.permute.xlu0 %1812
    %1814 = vrot.lane.b32.xlu0 %v1464, 112
    %v1815 = vpop.permute.xlu0 %1814
    %v1816 = vsel %vm266, %v1813, 0
    %v1818 = vsel %vm266, %v1815, 0
    %1820 = vmatprep.subr.mxu0 0.0
    %1821 = vmatpush1.xpose.msra.mxu0 %v1818
    %1822 = vmatprep.subr.mxu0 0.0
    %1823 = vmatpush1.xpose.msra.mxu0 0.0
    %1824 = vmatprep.subr.mxu0 0.0
    %1825 = vmatpush1.xpose.msra.mxu0 0.0
    %1826 = vmatprep.subr.mxu0 0.0
    %1827 = vmatpush1.xpose.msra.mxu0 0.0
    %1828 = vmatprep.subr.mxu0 0.0
    %1829 = vmatpush1.xpose.msra.mxu0 0.0
    %1830 = vmatprep.subr.mxu0 0.0
    %1831 = vmatpush1.xpose.msra.mxu0 0.0
    %1832 = vmatprep.subr.mxu0 0.0
    %1833 = vmatpush1.xpose.msra.mxu0 0.0
    %1834 = vmatprep.subr.mxu0 0.0
    %1835 = vmatpush1.xpose.msra.mxu0 0.0
    %1836 = vmatprep.subr.mxu0 0.0
    %1837 = vmatpush1.xpose.msra.mxu0 0.0
    %1838 = vmatprep.subr.mxu0 0.0
    %1839 = vmatpush1.xpose.msra.mxu0 0.0
    %1840 = vmatprep.subr.mxu0 0.0
    %1841 = vmatpush1.xpose.msra.mxu0 0.0
    %1842 = vmatprep.subr.mxu0 0.0
    %1843 = vmatpush1.xpose.msra.mxu0 0.0
    %1844 = vmatprep.subr.mxu0 0.0
    %1845 = vmatpush1.xpose.msra.mxu0 0.0
    %1846 = vmatprep.subr.mxu0 0.0
    %1847 = vmatpush1.xpose.msra.mxu0 0.0
    %1848 = vmatprep.subr.mxu0 0.0
    %1849 = vmatpush1.xpose.msra.mxu0 0.0
    %1850 = vmatprep.subr.mxu0 0.0
    %1851 = vmatpush1.xpose.msra.mxu0 0.0
    %1852 = vmatprep.subr.mxu0 0.0
    %1853 = vmatpush1.xpose.msra.mxu0 0.0
    %1854 = vmatprep.subr.mxu0 0.0
    %1855 = vmatpush1.xpose.msra.mxu0 0.0
    %1856 = vmatprep.subr.mxu0 0.0
    %1857 = vmatpush1.xpose.msra.mxu0 0.0
    %1858 = vmatprep.subr.mxu0 0.0
    %1859 = vmatpush1.xpose.msra.mxu0 0.0
    %1860 = vmatprep.subr.mxu0 0.0
    %1861 = vmatpush1.xpose.msra.mxu0 0.0
    %1862 = vmatprep.subr.mxu0 0.0
    %1863 = vmatpush1.xpose.msra.mxu0 0.0
    %1864 = vmatprep.subr.mxu0 0.0
    %1865 = vmatpush1.xpose.msra.mxu0 0.0
    %1866 = vmatprep.subr.mxu0 0.0
    %1867 = vmatpush1.xpose.msra.mxu0 0.0
    %1868 = vmatprep.subr.mxu0 0.0
    %1869 = vmatpush1.xpose.msra.mxu0 0.0
    %1870 = vmatprep.subr.mxu0 0.0
    %1871 = vmatpush1.xpose.msra.mxu0 0.0
    %1872 = vmatprep.subr.mxu0 0.0
    %1873 = vmatpush1.xpose.msra.mxu0 0.0
    %1874 = vmatprep.subr.mxu0 0.0
    %1875 = vmatpush1.xpose.msra.mxu0 0.0
    %1876 = vmatprep.subr.mxu0 0.0
    %1877 = vmatpush1.xpose.msra.mxu0 0.0
    %1878 = vmatprep.subr.mxu0 0.0
    %1879 = vmatpush1.xpose.msra.mxu0 0.0
    %1880 = vmatprep.subr.mxu0 0.0
    %1881 = vmatpush1.xpose.msra.mxu0 0.0
    %1882 = vmatprep.subr.mxu0 0.0
    %1883 = vmatpush1.xpose.msra.mxu0 0.0
    %1884 = vmatprep.mubr.f32.mxu0 0.0
    %1885 = vmatmul.mubr.f32.gmra.mrb[0].mxu0 %v1816
    %v1886 = vpop.f32.mrb[0].mxu0
    %v1887 = vadd.f32 %v95, %v1886
    %v1888 = vpop.f32.mrb[0].mxu0
    %1889 = vdwg.mxu0
    %v1890 = vsel %vm266, %v1887, -inf
    %1891 = vmax.xlane.f32.xlu0 %v1890
    %v1892 = vpop.xlane.xlu0 %1891
    %v1893 = vsub.f32 %v1887, %v1892
    %v1894 = vmul.f32 %v1893, 1.442695
    %v1895 = vpow.pop %v1894
    %v1896 = vsel %vm266, %v1895, 0.0
    %1897 = vadd.xlane.f32.xlu0 %v1896
    %v1898 = vpop.xlane.xlu0 %1897
    %v1899 = vrcp.pop %v1898
    %v1900 = vmul.f32 %v1895, %v1899
    %1901 = vrot.lane.b32.xlu0 %v79, 32
    %v1902 = vpop.permute.xlu0 %1901
    %v1904 = vmul.f32 %v1464, %v1902
    %1906 = vrot.lane.b32.xlu0 %v1904, 96
    %v1907 = vpop.permute.xlu0 %1906
    %v1910 = vsel %vm266, %v1900, 0
    %1912 = vmatprep.subr.mxu0 0.0
    %1913 = vmatpush1.msra.mxu0 %v1907
    %1914 = vmatprep.subr.mxu0 0.0
    %1915 = vmatpush1.msra.mxu0 0.0
    %1916 = vmatprep.subr.mxu0 0.0
    %1917 = vmatpush1.msra.mxu0 0.0
    %1918 = vmatprep.subr.mxu0 0.0
    %1919 = vmatpush1.msra.mxu0 0.0
    %1920 = vmatprep.subr.mxu0 0.0
    %1921 = vmatpush1.msra.mxu0 0.0
    %1922 = vmatprep.subr.mxu0 0.0
    %1923 = vmatpush1.msra.mxu0 0.0
    %1924 = vmatprep.subr.mxu0 0.0
    %1925 = vmatpush1.msra.mxu0 0.0
    %1926 = vmatprep.subr.mxu0 0.0
    %1927 = vmatpush1.msra.mxu0 0.0
    %1928 = vmatprep.subr.mxu0 0.0
    %1929 = vmatpush1.msra.mxu0 0.0
    %1930 = vmatprep.subr.mxu0 0.0
    %1931 = vmatpush1.msra.mxu0 0.0
    %1932 = vmatprep.subr.mxu0 0.0
    %1933 = vmatpush1.msra.mxu0 0.0
    %1934 = vmatprep.subr.mxu0 0.0
    %1935 = vmatpush1.msra.mxu0 0.0
    %1936 = vmatprep.subr.mxu0 0.0
    %1937 = vmatpush1.msra.mxu0 0.0
    %1938 = vmatprep.subr.mxu0 0.0
    %1939 = vmatpush1.msra.mxu0 0.0
    %1940 = vmatprep.subr.mxu0 0.0
    %1941 = vmatpush1.msra.mxu0 0.0
    %1942 = vmatprep.subr.mxu0 0.0
    %1943 = vmatpush1.msra.mxu0 0.0
    %1944 = vmatprep.subr.mxu0 0.0
    %1945 = vmatpush1.msra.mxu0 0.0
    %1946 = vmatprep.subr.mxu0 0.0
    %1947 = vmatpush1.msra.mxu0 0.0
    %1948 = vmatprep.subr.mxu0 0.0
    %1949 = vmatpush1.msra.mxu0 0.0
    %1950 = vmatprep.subr.mxu0 0.0
    %1951 = vmatpush1.msra.mxu0 0.0
    %1952 = vmatprep.subr.mxu0 0.0
    %1953 = vmatpush1.msra.mxu0 0.0
    %1954 = vmatprep.subr.mxu0 0.0
    %1955 = vmatpush1.msra.mxu0 0.0
    %1956 = vmatprep.subr.mxu0 0.0
    %1957 = vmatpush1.msra.mxu0 0.0
    %1958 = vmatprep.subr.mxu0 0.0
    %1959 = vmatpush1.msra.mxu0 0.0
    %1960 = vmatprep.subr.mxu0 0.0
    %1961 = vmatpush1.msra.mxu0 0.0
    %1962 = vmatprep.subr.mxu0 0.0
    %1963 = vmatpush1.msra.mxu0 0.0
    %1964 = vmatprep.subr.mxu0 0.0
    %1965 = vmatpush1.msra.mxu0 0.0
    %1966 = vmatprep.subr.mxu0 0.0
    %1967 = vmatpush1.msra.mxu0 0.0
    %1968 = vmatprep.subr.mxu0 0.0
    %1969 = vmatpush1.msra.mxu0 0.0
    %1970 = vmatprep.subr.mxu0 0.0
    %1971 = vmatpush1.msra.mxu0 0.0
    %1972 = vmatprep.subr.mxu0 0.0
    %1973 = vmatpush1.msra.mxu0 0.0
    %1974 = vmatprep.subr.mxu0 0.0
    %1975 = vmatpush1.msra.mxu0 0.0
    %1976 = vmatprep.mubr.f32.mxu0 0.0
    %1977 = vmatmul.mubr.f32.gmra.mrb[0].mxu0 %v1910
    %v1978 = vpop.f32.mrb[0].mxu0
    %v1979 = vadd.f32 0.0, %v1978
    %v1980 = vpop.f32.mrb[0].mxu0
    %1981 = vdwg.mxu0
    %v1982 = vadd.f32 %v1809, %v1979
    %1983 = vrot.lane.b32.xlu0 %v1358, 104
    %v1984 = vpop.permute.xlu0 %1983
    %1985 = vrot.lane.b32.xlu0 %v1464, 104
    %v1986 = vpop.permute.xlu0 %1985
    %v1987 = vsel %vm266, %v1984, 0
    %v1989 = vsel %vm266, %v1986, 0
    %1991 = vmatprep.subr.mxu0 0.0
    %1992 = vmatpush1.xpose.msra.mxu0 %v1989
    %1993 = vmatprep.subr.mxu0 0.0
    %1994 = vmatpush1.xpose.msra.mxu0 0.0
    %1995 = vmatprep.subr.mxu0 0.0
    %1996 = vmatpush1.xpose.msra.mxu0 0.0
    %1997 = vmatprep.subr.mxu0 0.0
    %1998 = vmatpush1.xpose.msra.mxu0 0.0
    %1999 = vmatprep.subr.mxu0 0.0
    %2000 = vmatpush1.xpose.msra.mxu0 0.0
    %2001 = vmatprep.subr.mxu0 0.0
    %2002 = vmatpush1.xpose.msra.mxu0 0.0
    %2003 = vmatprep.subr.mxu0 0.0
    %2004 = vmatpush1.xpose.msra.mxu0 0.0
    %2005 = vmatprep.subr.mxu0 0.0
    %2006 = vmatpush1.xpose.msra.mxu0 0.0
    %2007 = vmatprep.subr.mxu0 0.0
    %2008 = vmatpush1.xpose.msra.mxu0 0.0
    %2009 = vmatprep.subr.mxu0 0.0
    %2010 = vmatpush1.xpose.msra.mxu0 0.0
    %2011 = vmatprep.subr.mxu0 0.0
    %2012 = vmatpush1.xpose.msra.mxu0 0.0
    %2013 = vmatprep.subr.mxu0 0.0
    %2014 = vmatpush1.xpose.msra.mxu0 0.0
    %2015 = vmatprep.subr.mxu0 0.0
    %2016 = vmatpush1.xpose.msra.mxu0 0.0
    %2017 = vmatprep.subr.mxu0 0.0
    %2018 = vmatpush1.xpose.msra.mxu0 0.0
    %2019 = vmatprep.subr.mxu0 0.0
    %2020 = vmatpush1.xpose.msra.mxu0 0.0
    %2021 = vmatprep.subr.mxu0 0.0
    %2022 = vmatpush1.xpose.msra.mxu0 0.0
    %2023 = vmatprep.subr.mxu0 0.0
    %2024 = vmatpush1.xpose.msra.mxu0 0.0
    %2025 = vmatprep.subr.mxu0 0.0
    %2026 = vmatpush1.xpose.msra.mxu0 0.0
    %2027 = vmatprep.subr.mxu0 0.0
    %2028 = vmatpush1.xpose.msra.mxu0 0.0
    %2029 = vmatprep.subr.mxu0 0.0
    %2030 = vmatpush1.xpose.msra.mxu0 0.0
    %2031 = vmatprep.subr.mxu0 0.0
    %2032 = vmatpush1.xpose.msra.mxu0 0.0
    %2033 = vmatprep.subr.mxu0 0.0
    %2034 = vmatpush1.xpose.msra.mxu0 0.0
    %2035 = vmatprep.subr.mxu0 0.0
    %2036 = vmatpush1.xpose.msra.mxu0 0.0
    %2037 = vmatprep.subr.mxu0 0.0
    %2038 = vmatpush1.xpose.msra.mxu0 0.0
    %2039 = vmatprep.subr.mxu0 0.0
    %2040 = vmatpush1.xpose.msra.mxu0 0.0
    %2041 = vmatprep.subr.mxu0 0.0
    %2042 = vmatpush1.xpose.msra.mxu0 0.0
    %2043 = vmatprep.subr.mxu0 0.0
    %2044 = vmatpush1.xpose.msra.mxu0 0.0
    %2045 = vmatprep.subr.mxu0 0.0
    %2046 = vmatpush1.xpose.msra.mxu0 0.0
    %2047 = vmatprep.subr.mxu0 0.0
    %2048 = vmatpush1.xpose.msra.mxu0 0.0
    %2049 = vmatprep.subr.mxu0 0.0
    %2050 = vmatpush1.xpose.msra.mxu0 0.0
    %2051 = vmatprep.subr.mxu0 0.0
    %2052 = vmatpush1.xpose.msra.mxu0 0.0
    %2053 = vmatprep.subr.mxu0 0.0
    %2054 = vmatpush1.xpose.msra.mxu0 0.0
    %2055 = vmatprep.mubr.f32.mxu0 0.0
    %2056 = vmatmul.mubr.f32.gmra.mrb[0].mxu0 %v1987
    %v2057 = vpop.f32.mrb[0].mxu0
    %v2058 = vadd.f32 %v95, %v2057
    %v2059 = vpop.f32.mrb[0].mxu0
    %2060 = vdwg.mxu0
    %v2061 = vsel %vm266, %v2058, -inf
    %2062 = vmax.xlane.f32.xlu0 %v2061
    %v2063 = vpop.xlane.xlu0 %2062
    %v2064 = vsub.f32 %v2058, %v2063
    %v2065 = vmul.f32 %v2064, 1.442695
    %v2066 = vpow.pop %v2065
    %v2067 = vsel %vm266, %v2066, 0.0
    %2068 = vadd.xlane.f32.xlu0 %v2067
    %v2069 = vpop.xlane.xlu0 %2068
    %v2070 = vrcp.pop %v2069
    %v2071 = vmul.f32 %v2066, %v2070
    %2072 = vrot.lane.b32.xlu0 %v84, 32
    %v2073 = vpop.permute.xlu0 %2072
    %v2075 = vmul.f32 %v1464, %v2073
    %2077 = vrot.lane.b32.xlu0 %v2075, 96
    %v2078 = vpop.permute.xlu0 %2077
    %v2081 = vsel %vm266, %v2071, 0
    %2083 = vmatprep.subr.mxu0 0.0
    %2084 = vmatpush1.msra.mxu0 %v2078
    %2085 = vmatprep.subr.mxu0 0.0
    %2086 = vmatpush1.msra.mxu0 0.0
    %2087 = vmatprep.subr.mxu0 0.0
    %2088 = vmatpush1.msra.mxu0 0.0
    %2089 = vmatprep.subr.mxu0 0.0
    %2090 = vmatpush1.msra.mxu0 0.0
    %2091 = vmatprep.subr.mxu0 0.0
    %2092 = vmatpush1.msra.mxu0 0.0
    %2093 = vmatprep.subr.mxu0 0.0
    %2094 = vmatpush1.msra.mxu0 0.0
    %2095 = vmatprep.subr.mxu0 0.0
    %2096 = vmatpush1.msra.mxu0 0.0
    %2097 = vmatprep.subr.mxu0 0.0
    %2098 = vmatpush1.msra.mxu0 0.0
    %2099 = vmatprep.subr.mxu0 0.0
    %2100 = vmatpush1.msra.mxu0 0.0
    %2101 = vmatprep.subr.mxu0 0.0
    %2102 = vmatpush1.msra.mxu0 0.0
    %2103 = vmatprep.subr.mxu0 0.0
    %2104 = vmatpush1.msra.mxu0 0.0
    %2105 = vmatprep.subr.mxu0 0.0
    %2106 = vmatpush1.msra.mxu0 0.0
    %2107 = vmatprep.subr.mxu0 0.0
    %2108 = vmatpush1.msra.mxu0 0.0
    %2109 = vmatprep.subr.mxu0 0.0
    %2110 = vmatpush1.msra.mxu0 0.0
    %2111 = vmatprep.subr.mxu0 0.0
    %2112 = vmatpush1.msra.mxu0 0.0
    %2113 = vmatprep.subr.mxu0 0.0
    %2114 = vmatpush1.msra.mxu0 0.0
    %2115 = vmatprep.subr.mxu0 0.0
    %2116 = vmatpush1.msra.mxu0 0.0
    %2117 = vmatprep.subr.mxu0 0.0
    %2118 = vmatpush1.msra.mxu0 0.0
    %2119 = vmatprep.subr.mxu0 0.0
    %2120 = vmatpush1.msra.mxu0 0.0
    %2121 = vmatprep.subr.mxu0 0.0
    %2122 = vmatpush1.msra.mxu0 0.0
    %2123 = vmatprep.subr.mxu0 0.0
    %2124 = vmatpush1.msra.mxu0 0.0
    %2125 = vmatprep.subr.mxu0 0.0
    %2126 = vmatpush1.msra.mxu0 0.0
    %2127 = vmatprep.subr.mxu0 0.0
    %2128 = vmatpush1.msra.mxu0 0.0
    %2129 = vmatprep.subr.mxu0 0.0
    %2130 = vmatpush1.msra.mxu0 0.0
    %2131 = vmatprep.subr.mxu0 0.0
    %2132 = vmatpush1.msra.mxu0 0.0
    %2133 = vmatprep.subr.mxu0 0.0
    %2134 = vmatpush1.msra.mxu0 0.0
    %2135 = vmatprep.subr.mxu0 0.0
    %2136 = vmatpush1.msra.mxu0 0.0
    %2137 = vmatprep.subr.mxu0 0.0
    %2138 = vmatpush1.msra.mxu0 0.0
    %2139 = vmatprep.subr.mxu0 0.0
    %2140 = vmatpush1.msra.mxu0 0.0
    %2141 = vmatprep.subr.mxu0 0.0
    %2142 = vmatpush1.msra.mxu0 0.0
    %2143 = vmatprep.subr.mxu0 0.0
    %2144 = vmatpush1.msra.mxu0 0.0
    %2145 = vmatprep.subr.mxu0 0.0
    %2146 = vmatpush1.msra.mxu0 0.0
    %2147 = vmatprep.mubr.f32.mxu0 0.0
    %2148 = vmatmul.mubr.f32.gmra.mrb[0].mxu0 %v2081
    %v2149 = vpop.f32.mrb[0].mxu0
    %v2150 = vadd.f32 0.0, %v2149
    %v2151 = vpop.f32.mrb[0].mxu0
    %2152 = vdwg.mxu0
    %v2153 = vadd.f32 %v1982, %v2150
    %v2155 = vlaneseq
    %v2156 = vshrl.u32 %v2155, 7
    %v2157 = vsub.s32 0, %v2156
    %v2158 = vrot.slane %v1473, %v2157
    %v2161 = vsel %vm99, %v2153, 0
    %v2164 = vsel %vm99, %v1468, 0
    %v2167 = vsel %vm99, %v1469, 0
    %v2170 = vsel %vm99, %v1470, 0
    %v2173 = vsel %vm99, %v1471, 0
    %2175 = vmatprep.subr.mxu0 0.0
    %2176 = vmatpush1.xpose.msra.mxu0 %v2164
    %2177 = vmatprep.subr.mxu0 0.0
    %2178 = vmatpush1.xpose.msra.mxu0 %v2167
    %2179 = vmatprep.subr.mxu0 0.0
    %2180 = vmatpush1.xpose.msra.mxu0 %v2170
    %2181 = vmatprep.subr.mxu0 0.0
    %2182 = vmatpush1.xpose.msra.mxu0 %v2173
    %2183 = vmatprep.subr.mxu0 0.0
    %2184 = vmatpush1.xpose.msra.mxu0 0.0
    %2185 = vmatprep.subr.mxu0 0.0
    %2186 = vmatpush1.xpose.msra.mxu0 0.0
    %2187 = vmatprep.subr.mxu0 0.0
    %2188 = vmatpush1.xpose.msra.mxu0 0.0
    %2189 = vmatprep.subr.mxu0 0.0
    %2190 = vmatpush1.xpose.msra.mxu0 0.0
    %2191 = vmatprep.subr.mxu0 0.0
    %2192 = vmatpush1.xpose.msra.mxu0 0.0
    %2193 = vmatprep.subr.mxu0 0.0
    %2194 = vmatpush1.xpose.msra.mxu0 0.0
    %2195 = vmatprep.subr.mxu0 0.0
    %2196 = vmatpush1.xpose.msra.mxu0 0.0
    %2197 = vmatprep.subr.mxu0 0.0
    %2198 = vmatpush1.xpose.msra.mxu0 0.0
    %2199 = vmatprep.subr.mxu0 0.0
    %2200 = vmatpush1.xpose.msra.mxu0 0.0
    %2201 = vmatprep.subr.mxu0 0.0
    %2202 = vmatpush1.xpose.msra.mxu0 0.0
    %2203 = vmatprep.subr.mxu0 0.0
    %2204 = vmatpush1.xpose.msra.mxu0 0.0
    %2205 = vmatprep.subr.mxu0 0.0
    %2206 = vmatpush1.xpose.msra.mxu0 0.0
    %2207 = vmatprep.subr.mxu0 0.0
    %2208 = vmatpush1.xpose.msra.mxu0 0.0
    %2209 = vmatprep.subr.mxu0 0.0
    %2210 = vmatpush1.xpose.msra.mxu0 0.0
    %2211 = vmatprep.subr.mxu0 0.0
    %2212 = vmatpush1.xpose.msra.mxu0 0.0
    %2213 = vmatprep.subr.mxu0 0.0
    %2214 = vmatpush1.xpose.msra.mxu0 0.0
    %2215 = vmatprep.subr.mxu0 0.0
    %2216 = vmatpush1.xpose.msra.mxu0 0.0
    %2217 = vmatprep.subr.mxu0 0.0
    %2218 = vmatpush1.xpose.msra.mxu0 0.0
    %2219 = vmatprep.subr.mxu0 0.0
    %2220 = vmatpush1.xpose.msra.mxu0 0.0
    %2221 = vmatprep.subr.mxu0 0.0
    %2222 = vmatpush1.xpose.msra.mxu0 0.0
    %2223 = vmatprep.subr.mxu0 0.0
    %2224 = vmatpush1.xpose.msra.mxu0 0.0
    %2225 = vmatprep.subr.mxu0 0.0
    %2226 = vmatpush1.xpose.msra.mxu0 0.0
    %2227 = vmatprep.subr.mxu0 0.0
    %2228 = vmatpush1.xpose.msra.mxu0 0.0
    %2229 = vmatprep.subr.mxu0 0.0
    %2230 = vmatpush1.xpose.msra.mxu0 0.0
    %2231 = vmatprep.subr.mxu0 0.0
    %2232 = vmatpush1.xpose.msra.mxu0 0.0
    %2233 = vmatprep.subr.mxu0 0.0
    %2234 = vmatpush1.xpose.msra.mxu0 0.0
    %2235 = vmatprep.subr.mxu0 0.0
    %2236 = vmatpush1.xpose.msra.mxu0 0.0
    %2237 = vmatprep.subr.mxu0 0.0
    %2238 = vmatpush1.xpose.msra.mxu0 0.0
    %2239 = vmatprep.mubr.f32.mxu0 0.0
    %2240 = vmatmul.mubr.f32.gmra.mrb[0].mxu0 %v2161
    %v2241 = vpop.f32.mrb[0].mxu0
    %v2242 = vadd.f32 %v2158, %v2241
    %v2243 = vpop.f32.mrb[0].mxu0
    %2244 = vdwg.mxu0
    %s2245 = scalar_lea.vmem %s14, 16
    %v2246 = vld [vmem:[%s2245] sm:$0xff]
    %v2247 = vld [vmem:[%s2245 + $0x8] sm:$0xff]
    %s2248 = scalar_lea.vmem %s15, 1
    %v2249 = vld [vmem:[%s2248] sm:$0x1]
    %s2250 = scalar_lea.vmem %s16, 32
    %v2251 = vld [vmem:[%s2250] sm:$0xff]
    %v2252 = vld [vmem:[%s2250 + $0x8] sm:$0xff]
    %v2253 = vld [vmem:[%s2250 + $0x10] sm:$0xff]
    %v2254 = vld [vmem:[%s2250 + $0x18] sm:$0xff]
    %s2255 = scalar_lea.vmem %s17, 1
    %v2256 = vld [vmem:[%s2255] sm:$0x1]
    %v2258 = vlaneseq
    %v2259 = vshrl.u32 %v2258, 7
    %v2260 = vsub.s32 0, %v2259
    %v2261 = vrot.slane %v2249, %v2260
    %v2264 = vsel %vm99, %v2242, 0
    %v2267 = vsel %vm99, %v2246, 0
    %v2270 = vsel %vm99, %v2247, 0
    %2272 = vmatprep.subr.mxu0 0.0
    %2273 = vmatpush1.xpose.msra.mxu0 %v2267
    %2274 = vmatprep.subr.mxu0 0.0
    %2275 = vmatpush1.xpose.msra.mxu0 %v2270
    %2276 = vmatprep.subr.mxu0 0.0
    %2277 = vmatpush1.xpose.msra.mxu0 0.0
    %2278 = vmatprep.subr.mxu0 0.0
    %2279 = vmatpush1.xpose.msra.mxu0 0.0
    %2280 = vmatprep.subr.mxu0 0.0
    %2281 = vmatpush1.xpose.msra.mxu0 0.0
    %2282 = vmatprep.subr.mxu0 0.0
    %2283 = vmatpush1.xpose.msra.mxu0 0.0
    %2284 = vmatprep.subr.mxu0 0.0
    %2285 = vmatpush1.xpose.msra.mxu0 0.0
    %2286 = vmatprep.subr.mxu0 0.0
    %2287 = vmatpush1.xpose.msra.mxu0 0.0
    %2288 = vmatprep.subr.mxu0 0.0
    %2289 = vmatpush1.xpose.msra.mxu0 0.0
    %2290 = vmatprep.subr.mxu0 0.0
    %2291 = vmatpush1.xpose.msra.mxu0 0.0
    %2292 = vmatprep.subr.mxu0 0.0
    %2293 = vmatpush1.xpose.msra.mxu0 0.0
    %2294 = vmatprep.subr.mxu0 0.0
    %2295 = vmatpush1.xpose.msra.mxu0 0.0
    %2296 = vmatprep.subr.mxu0 0.0
    %2297 = vmatpush1.xpose.msra.mxu0 0.0
    %2298 = vmatprep.subr.mxu0 0.0
    %2299 = vmatpush1.xpose.msra.mxu0 0.0
    %2300 = vmatprep.subr.mxu0 0.0
    %2301 = vmatpush1.xpose.msra.mxu0 0.0
    %2302 = vmatprep.subr.mxu0 0.0
    %2303 = vmatpush1.xpose.msra.mxu0 0.0
    %2304 = vmatprep.subr.mxu0 0.0
    %2305 = vmatpush1.xpose.msra.mxu0 0.0
    %2306 = vmatprep.subr.mxu0 0.0
    %2307 = vmatpush1.xpose.msra.mxu0 0.0
    %2308 = vmatprep.subr.mxu0 0.0
    %2309 = vmatpush1.xpose.msra.mxu0 0.0
    %2310 = vmatprep.subr.mxu0 0.0
    %2311 = vmatpush1.xpose.msra.mxu0 0.0
    %2312 = vmatprep.subr.mxu0 0.0
    %2313 = vmatpush1.xpose.msra.mxu0 0.0
    %2314 = vmatprep.subr.mxu0 0.0
    %2315 = vmatpush1.xpose.msra.mxu0 0.0
    %2316 = vmatprep.subr.mxu0 0.0
    %2317 = vmatpush1.xpose.msra.mxu0 0.0
    %2318 = vmatprep.subr.mxu0 0.0
    %2319 = vmatpush1.xpose.msra.mxu0 0.0
    %2320 = vmatprep.subr.mxu0 0.0
    %2321 = vmatpush1.xpose.msra.mxu0 0.0
    %2322 = vmatprep.subr.mxu0 0.0
    %2323 = vmatpush1.xpose.msra.mxu0 0.0
    %2324 = vmatprep.subr.mxu0 0.0
    %2325 = vmatpush1.xpose.msra.mxu0 0.0
    %2326 = vmatprep.subr.mxu0 0.0
    %2327 = vmatpush1.xpose.msra.mxu0 0.0
    %2328 = vmatprep.subr.mxu0 0.0
    %2329 = vmatpush1.xpose.msra.mxu0 0.0
    %2330 = vmatprep.subr.mxu0 0.0
    %2331 = vmatpush1.xpose.msra.mxu0 0.0
    %2332 = vmatprep.subr.mxu0 0.0
    %2333 = vmatpush1.xpose.msra.mxu0 0.0
    %2334 = vmatprep.subr.mxu0 0.0
    %2335 = vmatpush1.xpose.msra.mxu0 0.0
    %2336 = vmatprep.mubr.f32.mxu0 0.0
    %2337 = vmatmul.mubr.f32.gmra.mrb[0].mxu0 %v2264
    %v2338 = vpop.f32.mrb[0].mxu0
    %v2339 = vadd.f32 %v2261, %v2338
    %v2340 = vpop.f32.mrb[0].mxu0
    %2341 = vdwg.mxu0
    %v2342 = vmax.f32 %v2339, 0.0
    %v2344 = vlaneseq
    %v2345 = vshrl.u32 %v2344, 7
    %v2346 = vsub.s32 0, %v2345
    %v2347 = vrot.slane %v2256, %v2346
    %v2350 = vsel %vm1141, %v2342, 0
    %v2353 = vsel %vm1141, %v2251, 0
    %v2356 = vsel %vm1141, %v2252, 0
    %v2359 = vsel %vm1141, %v2253, 0
    %v2362 = vsel %vm1141, %v2254, 0
    %2364 = vmatprep.subr.mxu0 0.0
    %2365 = vmatpush1.xpose.msra.mxu0 %v2353
    %2366 = vmatprep.subr.mxu0 0.0
    %2367 = vmatpush1.xpose.msra.mxu0 %v2356
    %2368 = vmatprep.subr.mxu0 0.0
    %2369 = vmatpush1.xpose.msra.mxu0 %v2359
    %2370 = vmatprep.subr.mxu0 0.0
    %2371 = vmatpush1.xpose.msra.mxu0 %v2362
    %2372 = vmatprep.subr.mxu0 0.0
    %2373 = vmatpush1.xpose.msra.mxu0 0.0
    %2374 = vmatprep.subr.mxu0 0.0
    %2375 = vmatpush1.xpose.msra.mxu0 0.0
    %2376 = vmatprep.subr.mxu0 0.0
    %2377 = vmatpush1.xpose.msra.mxu0 0.0
    %2378 = vmatprep.subr.mxu0 0.0
    %2379 = vmatpush1.xpose.msra.mxu0 0.0
    %2380 = vmatprep.subr.mxu0 0.0
    %2381 = vmatpush1.xpose.msra.mxu0 0.0
    %2382 = vmatprep.subr.mxu0 0.0
    %2383 = vmatpush1.xpose.msra.mxu0 0.0
    %2384 = vmatprep.subr.mxu0 0.0
    %2385 = vmatpush1.xpose.msra.mxu0 0.0
    %2386 = vmatprep.subr.mxu0 0.0
    %2387 = vmatpush1.xpose.msra.mxu0 0.0
    %2388 = vmatprep.subr.mxu0 0.0
    %2389 = vmatpush1.xpose.msra.mxu0 0.0
    %2390 = vmatprep.subr.mxu0 0.0
    %2391 = vmatpush1.xpose.msra.mxu0 0.0
    %2392 = vmatprep.subr.mxu0 0.0
    %2393 = vmatpush1.xpose.msra.mxu0 0.0
    %2394 = vmatprep.subr.mxu0 0.0
    %2395 = vmatpush1.xpose.msra.mxu0 0.0
    %2396 = vmatprep.subr.mxu0 0.0
    %2397 = vmatpush1.xpose.msra.mxu0 0.0
    %2398 = vmatprep.subr.mxu0 0.0
    %2399 = vmatpush1.xpose.msra.mxu0 0.0
    %2400 = vmatprep.subr.mxu0 0.0
    %2401 = vmatpush1.xpose.msra.mxu0 0.0
    %2402 = vmatprep.subr.mxu0 0.0
    %2403 = vmatpush1.xpose.msra.mxu0 0.0
    %2404 = vmatprep.subr.mxu0 0.0
    %2405 = vmatpush1.xpose.msra.mxu0 0.0
    %2406 = vmatprep.subr.mxu0 0.0
    %2407 = vmatpush1.xpose.msra.mxu0 0.0
    %2408 = vmatprep.subr.mxu0 0.0
    %2409 = vmatpush1.xpose.msra.mxu0 0.0
    %2410 = vmatprep.subr.mxu0 0.0
    %2411 = vmatpush1.xpose.msra.mxu0 0.0
    %2412 = vmatprep.subr.mxu0 0.0
    %2413 = vmatpush1.xpose.msra.mxu0 0.0
    %2414 = vmatprep.subr.mxu0 0.0
    %2415 = vmatpush1.xpose.msra.mxu0 0.0
    %2416 = vmatprep.subr.mxu0 0.0
    %2417 = vmatpush1.xpose.msra.mxu0 0.0
    %2418 = vmatprep.subr.mxu0 0.0
    %2419 = vmatpush1.xpose.msra.mxu0 0.0
    %2420 = vmatprep.subr.mxu0 0.0
    %2421 = vmatpush1.xpose.msra.mxu0 0.0
    %2422 = vmatprep.subr.mxu0 0.0
    %2423 = vmatpush1.xpose.msra.mxu0 0.0
    %2424 = vmatprep.subr.mxu0 0.0
    %2425 = vmatpush1.xpose.msra.mxu0 0.0
    %2426 = vmatprep.subr.mxu0 0.0
    %2427 = vmatpush1.xpose.msra.mxu0 0.0
    %2428 = vmatprep.mubr.f32.mxu0 0.0
    %2429 = vmatmul.mubr.f32.gmra.mrb[0].mxu0 %v2350
    %v2430 = vpop.f32.mrb[0].mxu0
    %v2431 = vadd.f32 %v2347, %v2430
    %v2432 = vpop.f32.mrb[0].mxu0
    %2433 = vdwg.mxu0
    %v2434 = vadd.f32 %v2242, %v2431
    %v2435 = vadd.f32 %v2434, %v1228
    %s2436 = scalar_lea.vmem %s8, 2
    %v2437 = vld [vmem:[%s2436] sm:$0x1]
    %s2438 = scalar_lea.vmem %s9, 2
    %v2439 = vld [vmem:[%s2438] sm:$0x1]
    %v2440 = vsel %vm99, %v2435, 0.0
    %2441 = vadd.xlane.f32.xlu0 %v2440
    %v2442 = vpop.xlane.xlu0 %2441
    %v2443 = vmul.f32 %v2442, %v103
    %v2444 = vsub.f32 %v2435, %v2443
    %v2445 = vmul.f32 %v2444, %v2444
    %v2446 = vsel %vm99, %v2445, 0.0
    %2447 = vadd.xlane.f32.xlu0 %v2446
    %v2448 = vpop.xlane.xlu0 %2447
    %v2449 = vmul.f32 %v2448, %v103
    %v2450 = vadd.f32 %v2449, 1e-06
    %v2451 = vrsqrt.pop %v2450
    %v2452 = vmul.f32 %v2444, %v2451
    %v2454 = vlaneseq
    %v2455 = vshrl.u32 %v2454, 7
    %v2456 = vsub.s32 0, %v2455
    %v2457 = vrot.slane %v2437, %v2456
    %v2459 = vmul.f32 %v2452, %v2457
    %v2461 = vlaneseq
    %v2462 = vshrl.u32 %v2461, 7
    %v2463 = vsub.s32 0, %v2462
    %v2464 = vrot.slane %v2439, %v2463
    %v2466 = vadd.f32 %v2459, %v2464
    %v2467 = vld [vmem:[%s10] sm:$0xff]
    %v2468 = vld [vmem:[%s10 + $0x8] sm:$0xff]
    %v2469 = vld [vmem:[%s10 + $0x10] sm:$0xff]
    %v2470 = vld [vmem:[%s10 + $0x18] sm:$0xff]
    %v2471 = vld [vmem:[%s10 + $0x20] sm:$0xff]
    %v2472 = vld [vmem:[%s10 + $0x28] sm:$0xff]
    %v2473 = vld [vmem:[%s10 + $0x30] sm:$0xff]
    %v2474 = vld [vmem:[%s10 + $0x38] sm:$0xff]
    %v2475 = vld [vmem:[%s11] sm:$0x1]
    %v2477 = vlaneseq
    %v2478 = vshrl.u32 %v2477, 7
    %v2479 = vsub.s32 0, %v2478
    %v2480 = vrot.slane %v2475, %v2479
    %v2483 = vsel %vm99, %v2466, 0
    %v2486 = vsel %vm99, %v2467, 0
    %v2489 = vsel %vm99, %v2468, 0
    %v2492 = vsel %vm99, %v2469, 0
    %v2495 = vsel %vm99, %v2470, 0
    %v2498 = vsel %vm99, %v2471, 0
    %v2501 = vsel %vm99, %v2472, 0
    %v2504 = vsel %vm99, %v2473, 0
    %v2507 = vsel %vm99, %v2474, 0
    %2509 = vmatprep.subr.mxu0 0.0
    %2510 = vmatpush1.xpose.msra.mxu0 %v2486
    %2511 = vmatprep.subr.mxu0 0.0
    %2512 = vmatpush1.xpose.msra.mxu0 %v2489
    %2513 = vmatprep.subr.mxu0 0.0
    %2514 = vmatpush1.xpose.msra.mxu0 %v2492
    %2515 = vmatprep.subr.mxu0 0.0
    %2516 = vmatpush1.xpose.msra.mxu0 %v2495
    %2517 = vmatprep.subr.mxu0 0.0
    %2518 = vmatpush1.xpose.msra.mxu0 %v2498
    %2519 = vmatprep.subr.mxu0 0.0
    %2520 = vmatpush1.xpose.msra.mxu0 %v2501
    %2521 = vmatprep.subr.mxu0 0.0
    %2522 = vmatpush1.xpose.msra.mxu0 %v2504
    %2523 = vmatprep.subr.mxu0 0.0
    %2524 = vmatpush1.xpose.msra.mxu0 %v2507
    %2525 = vmatprep.subr.mxu0 0.0
    %2526 = vmatpush1.xpose.msra.mxu0 0.0
    %2527 = vmatprep.subr.mxu0 0.0
    %2528 = vmatpush1.xpose.msra.mxu0 0.0
    %2529 = vmatprep.subr.mxu0 0.0
    %2530 = vmatpush1.xpose.msra.mxu0 0.0
    %2531 = vmatprep.subr.mxu0 0.0
    %2532 = vmatpush1.xpose.msra.mxu0 0.0
    %2533 = vmatprep.subr.mxu0 0.0
    %2534 = vmatpush1.xpose.msra.mxu0 0.0
    %2535 = vmatprep.subr.mxu0 0.0
    %2536 = vmatpush1.xpose.msra.mxu0 0.0
    %2537 = vmatprep.subr.mxu0 0.0
    %2538 = vmatpush1.xpose.msra.mxu0 0.0
    %2539 = vmatprep.subr.mxu0 0.0
    %2540 = vmatpush1.xpose.msra.mxu0 0.0
    %2541 = vmatprep.subr.mxu0 0.0
    %2542 = vmatpush1.xpose.msra.mxu0 0.0
    %2543 = vmatprep.subr.mxu0 0.0
    %2544 = vmatpush1.xpose.msra.mxu0 0.0
    %2545 = vmatprep.subr.mxu0 0.0
    %2546 = vmatpush1.xpose.msra.mxu0 0.0
    %2547 = vmatprep.subr.mxu0 0.0
    %2548 = vmatpush1.xpose.msra.mxu0 0.0
    %2549 = vmatprep.subr.mxu0 0.0
    %2550 = vmatpush1.xpose.msra.mxu0 0.0
    %2551 = vmatprep.subr.mxu0 0.0
    %2552 = vmatpush1.xpose.msra.mxu0 0.0
    %2553 = vmatprep.subr.mxu0 0.0
    %2554 = vmatpush1.xpose.msra.mxu0 0.0
    %2555 = vmatprep.subr.mxu0 0.0
    %2556 = vmatpush1.xpose.msra.mxu0 0.0
    %2557 = vmatprep.subr.mxu0 0.0
    %2558 = vmatpush1.xpose.msra.mxu0 0.0
    %2559 = vmatprep.subr.mxu0 0.0
    %2560 = vmatpush1.xpose.msra.mxu0 0.0
    %2561 = vmatprep.subr.mxu0 0.0
    %2562 = vmatpush1.xpose.msra.mxu0 0.0
    %2563 = vmatprep.subr.mxu0 0.0
    %2564 = vmatpush1.xpose.msra.mxu0 0.0
    %2565 = vmatprep.subr.mxu0 0.0
    %2566 = vmatpush1.xpose.msra.mxu0 0.0
    %2567 = vmatprep.subr.mxu0 0.0
    %2568 = vmatpush1.xpose.msra.mxu0 0.0
    %2569 = vmatprep.subr.mxu0 0.0
    %2570 = vmatpush1.xpose.msra.mxu0 0.0
    %2571 = vmatprep.subr.mxu0 0.0
    %2572 = vmatpush1.xpose.msra.mxu0 0.0
    %2573 = vmatprep.mubr.f32.mxu0 0.0
    %2574 = vmatmul.mubr.f32.gmra.mrb[0].mxu0 %v2483
    %v2575 = vpop.f32.mrb[0].mxu0
    %v2576 = vadd.f32 %v2480, %v2575
    %v2577 = vpop.f32.mrb[0].mxu0
    %2578 = vdwg.mxu0
    %v2579 = vmul.f32 %v2576, %v2576
    %v2580 = vmul.f32 %v2576, %v2579
    %v2581 = vmul.f32 %v2580, 0.044715
    %v2582 = vadd.f32 %v2576, %v2581
    %v2583 = vmul.f32 %v2582, 0.7978846
    %v2584 = vtanh.pop %v2583
    %v2585 = vadd.f32 %v2584, 1.0
    %v2586 = vmul.f32 %v2585, 0.5
    %v2587 = vmul.f32 %v2576, %v2586
    %v2588 = vld [vmem:[%s12] sm:$0xff]
    %v2589 = vld [vmem:[%s12 + $0x8] sm:$0xff]
    %v2590 = vld [vmem:[%s12 + $0x10] sm:$0xff]
    %v2591 = vld [vmem:[%s12 + $0x18] sm:$0xff]
    %v2592 = vld [vmem:[%s13] sm:$0x1]
    %v2594 = vlaneseq
    %v2595 = vshrl.u32 %v2594, 7
    %v2596 = vsub.s32 0, %v2595
    %v2597 = vrot.slane %v2592, %v2596
    %vm2599 = vcmask 523264
    %v2601 = vsel %vm2599, %v2587, 0
    %v2604 = vsel %vm2599, %v2588, 0
    %v2607 = vsel %vm2599, %v2589, 0
    %v2610 = vsel %vm2599, %v2590, 0
    %v2613 = vsel %vm2599, %v2591, 0
    %2615 = vmatprep.subr.mxu0 0.0
    %2616 = vmatpush1.xpose.msra.mxu0 %v2604
    %2617 = vmatprep.subr.mxu0 0.0
    %2618 = vmatpush1.xpose.msra.mxu0 %v2607
    %2619 = vmatprep.subr.mxu0 0.0
    %2620 = vmatpush1.xpose.msra.mxu0 %v2610
    %2621 = vmatprep.subr.mxu0 0.0
    %2622 = vmatpush1.xpose.msra.mxu0 %v2613
    %2623 = vmatprep.subr.mxu0 0.0
    %2624 = vmatpush1.xpose.msra.mxu0 0.0
    %2625 = vmatprep.subr.mxu0 0.0
    %2626 = vmatpush1.xpose.msra.mxu0 0.0
    %2627 = vmatprep.subr.mxu0 0.0
    %2628 = vmatpush1.xpose.msra.mxu0 0.0
    %2629 = vmatprep.subr.mxu0 0.0
    %2630 = vmatpush1.xpose.msra.mxu0 0.0
    %2631 = vmatprep.subr.mxu0 0.0
    %2632 = vmatpush1.xpose.msra.mxu0 0.0
    %2633 = vmatprep.subr.mxu0 0.0
    %2634 = vmatpush1.xpose.msra.mxu0 0.0
    %2635 = vmatprep.subr.mxu0 0.0
    %2636 = vmatpush1.xpose.msra.mxu0 0.0
    %2637 = vmatprep.subr.mxu0 0.0
    %2638 = vmatpush1.xpose.msra.mxu0 0.0
    %2639 = vmatprep.subr.mxu0 0.0
    %2640 = vmatpush1.xpose.msra.mxu0 0.0
    %2641 = vmatprep.subr.mxu0 0.0
    %2642 = vmatpush1.xpose.msra.mxu0 0.0
    %2643 = vmatprep.subr.mxu0 0.0
    %2644 = vmatpush1.xpose.msra.mxu0 0.0
    %2645 = vmatprep.subr.mxu0 0.0
    %2646 = vmatpush1.xpose.msra.mxu0 0.0
    %2647 = vmatprep.subr.mxu0 0.0
    %2648 = vmatpush1.xpose.msra.mxu0 0.0
    %2649 = vmatprep.subr.mxu0 0.0
    %2650 = vmatpush1.xpose.msra.mxu0 0.0
    %2651 = vmatprep.subr.mxu0 0.0
    %2652 = vmatpush1.xpose.msra.mxu0 0.0
    %2653 = vmatprep.subr.mxu0 0.0
    %2654 = vmatpush1.xpose.msra.mxu0 0.0
    %2655 = vmatprep.subr.mxu0 0.0
    %2656 = vmatpush1.xpose.msra.mxu0 0.0
    %2657 = vmatprep.subr.mxu0 0.0
    %2658 = vmatpush1.xpose.msra.mxu0 0.0
    %2659 = vmatprep.subr.mxu0 0.0
    %2660 = vmatpush1.xpose.msra.mxu0 0.0
    %2661 = vmatprep.subr.mxu0 0.0
    %2662 = vmatpush1.xpose.msra.mxu0 0.0
    %2663 = vmatprep.subr.mxu0 0.0
    %2664 = vmatpush1.xpose.msra.mxu0 0.0
    %2665 = vmatprep.subr.mxu0 0.0
    %2666 = vmatpush1.xpose.msra.mxu0 0.0
    %2667 = vmatprep.subr.mxu0 0.0
    %2668 = vmatpush1.xpose.msra.mxu0 0.0
    %2669 = vmatprep.subr.mxu0 0.0
    %2670 = vmatpush1.xpose.msra.mxu0 0.0
    %2671 = vmatprep.subr.mxu0 0.0
    %2672 = vmatpush1.xpose.msra.mxu0 0.0
    %2673 = vmatprep.subr.mxu0 0.0
    %2674 = vmatpush1.xpose.msra.mxu0 0.0
    %2675 = vmatprep.subr.mxu0 0.0
    %2676 = vmatpush1.xpose.msra.mxu0 0.0
    %2677 = vmatprep.subr.mxu0 0.0
    %2678 = vmatpush1.xpose.msra.mxu0 0.0
    %2679 = vmatprep.mubr.f32.mxu0 0.0
    %2680 = vmatmul.mubr.f32.gmra.mrb[0].mxu0 %v2601
    %v2681 = vpop.f32.mrb[0].mxu0
    %v2682 = vadd.f32 %v2597, %v2681
    %v2683 = vpop.f32.mrb[0].mxu0
    %2684 = vdwg.mxu0
    %s2685 = scalar_lea.vmem %s14, 32
    %v2686 = vld [vmem:[%s2685] sm:$0xff]
    %v2687 = vld [vmem:[%s2685 + $0x8] sm:$0xff]
    %s2688 = scalar_lea.vmem %s15, 2
    %v2689 = vld [vmem:[%s2688] sm:$0x1]
    %s2690 = scalar_lea.vmem %s16, 64
    %v2691 = vld [vmem:[%s2690] sm:$0xff]
    %v2692 = vld [vmem:[%s2690 + $0x8] sm:$0xff]
    %v2693 = vld [vmem:[%s2690 + $0x10] sm:$0xff]
    %v2694 = vld [vmem:[%s2690 + $0x18] sm:$0xff]
    %s2695 = scalar_lea.vmem %s17, 2
    %v2696 = vld [vmem:[%s2695] sm:$0x1]
    %v2698 = vlaneseq
    %v2699 = vshrl.u32 %v2698, 7
    %v2700 = vsub.s32 0, %v2699
    %v2701 = vrot.slane %v2689, %v2700
    %v2704 = vsel %vm99, %v2682, 0
    %v2707 = vsel %vm99, %v2686, 0
    %v2710 = vsel %vm99, %v2687, 0
    %2712 = vmatprep.subr.mxu0 0.0
    %2713 = vmatpush1.xpose.msra.mxu0 %v2707
    %2714 = vmatprep.subr.mxu0 0.0
    %2715 = vmatpush1.xpose.msra.mxu0 %v2710
    %2716 = vmatprep.subr.mxu0 0.0
    %2717 = vmatpush1.xpose.msra.mxu0 0.0
    %2718 = vmatprep.subr.mxu0 0.0
    %2719 = vmatpush1.xpose.msra.mxu0 0.0
    %2720 = vmatprep.subr.mxu0 0.0
    %2721 = vmatpush1.xpose.msra.mxu0 0.0
    %2722 = vmatprep.subr.mxu0 0.0
    %2723 = vmatpush1.xpose.msra.mxu0 0.0
    %2724 = vmatprep.subr.mxu0 0.0
    %2725 = vmatpush1.xpose.msra.mxu0 0.0
    %2726 = vmatprep.subr.mxu0 0.0
    %2727 = vmatpush1.xpose.msra.mxu0 0.0
    %2728 = vmatprep.subr.mxu0 0.0
    %2729 = vmatpush1.xpose.msra.mxu0 0.0
    %2730 = vmatprep.subr.mxu0 0.0
    %2731 = vmatpush1.xpose.msra.mxu0 0.0
    %2732 = vmatprep.subr.mxu0 0.0
    %2733 = vmatpush1.xpose.msra.mxu0 0.0
    %2734 = vmatprep.subr.mxu0 0.0
    %2735 = vmatpush1.xpose.msra.mxu0 0.0
    %2736 = vmatprep.subr.mxu0 0.0
    %2737 = vmatpush1.xpose.msra.mxu0 0.0
    %2738 = vmatprep.subr.mxu0 0.0
    %2739 = vmatpush1.xpose.msra.mxu0 0.0
    %2740 = vmatprep.subr.mxu0 0.0
    %2741 = vmatpush1.xpose.msra.mxu0 0.0
    %2742 = vmatprep.subr.mxu0 0.0
    %2743 = vmatpush1.xpose.msra.mxu0 0.0
    %2744 = vmatprep.subr.mxu0 0.0
    %2745 = vmatpush1.xpose.msra.mxu0 0.0
    %2746 = vmatprep.subr.mxu0 0.0
    %2747 = vmatpush1.xpose.msra.mxu0 0.0
    %2748 = vmatprep.subr.mxu0 0.0
    %2749 = vmatpush1.xpose.msra.mxu0 0.0
    %2750 = vmatprep.subr.mxu0 0.0
    %2751 = vmatpush1.xpose.msra.mxu0 0.0
    %2752 = vmatprep.subr.mxu0 0.0
    %2753 = vmatpush1.xpose.msra.mxu0 0.0
    %2754 = vmatprep.subr.mxu0 0.0
    %2755 = vmatpush1.xpose.msra.mxu0 0.0
    %2756 = vmatprep.subr.mxu0 0.0
    %2757 = vmatpush1.xpose.msra.mxu0 0.0
    %2758 = vmatprep.subr.mxu0 0.0
    %2759 = vmatpush1.xpose.msra.mxu0 0.0
    %2760 = vmatprep.subr.mxu0 0.0
    %2761 = vmatpush1.xpose.msra.mxu0 0.0
    %2762 = vmatprep.subr.mxu0 0.0
    %2763 = vmatpush1.xpose.msra.mxu0 0.0
    %2764 = vmatprep.subr.mxu0 0.0
    %2765 = vmatpush1.xpose.msra.mxu0 0.0
    %2766 = vmatprep.subr.mxu0 0.0
    %2767 = vmatpush1.xpose.msra.mxu0 0.0
    %2768 = vmatprep.subr.mxu0 0.0
    %2769 = vmatpush1.xpose.msra.mxu0 0.0
    %2770 = vmatprep.subr.mxu0 0.0
    %2771 = vmatpush1.xpose.msra.mxu0 0.0
    %2772 = vmatprep.subr.mxu0 0.0
    %2773 = vmatpush1.xpose.msra.mxu0 0.0
    %2774 = vmatprep.subr.mxu0 0.0
    %2775 = vmatpush1.xpose.msra.mxu0 0.0
    %2776 = vmatprep.mubr.f32.mxu0 0.0
    %2777 = vmatmul.mubr.f32.gmra.mrb[0].mxu0 %v2704
    %v2778 = vpop.f32.mrb[0].mxu0
    %v2779 = vadd.f32 %v2701, %v2778
    %v2780 = vpop.f32.mrb[0].mxu0
    %2781 = vdwg.mxu0
    %v2782 = vmax.f32 %v2779, 0.0
    %v2784 = vlaneseq
    %v2785 = vshrl.u32 %v2784, 7
    %v2786 = vsub.s32 0, %v2785
    %v2787 = vrot.slane %v2696, %v2786
    %v2790 = vsel %vm1141, %v2782, 0
    %v2793 = vsel %vm1141, %v2691, 0
    %v2796 = vsel %vm1141, %v2692, 0
    %v2799 = vsel %vm1141, %v2693, 0
    %v2802 = vsel %vm1141, %v2694, 0
    %2804 = vmatprep.subr.mxu0 0.0
    %2805 = vmatpush1.xpose.msra.mxu0 %v2793
    %2806 = vmatprep.subr.mxu0 0.0
    %2807 = vmatpush1.xpose.msra.mxu0 %v2796
    %2808 = vmatprep.subr.mxu0 0.0
    %2809 = vmatpush1.xpose.msra.mxu0 %v2799
    %2810 = vmatprep.subr.mxu0 0.0
    %2811 = vmatpush1.xpose.msra.mxu0 %v2802
    %2812 = vmatprep.subr.mxu0 0.0
    %2813 = vmatpush1.xpose.msra.mxu0 0.0
    %2814 = vmatprep.subr.mxu0 0.0
    %2815 = vmatpush1.xpose.msra.mxu0 0.0
    %2816 = vmatprep.subr.mxu0 0.0
    %2817 = vmatpush1.xpose.msra.mxu0 0.0
    %2818 = vmatprep.subr.mxu0 0.0
    %2819 = vmatpush1.xpose.msra.mxu0 0.0
    %2820 = vmatprep.subr.mxu0 0.0
    %2821 = vmatpush1.xpose.msra.mxu0 0.0
    %2822 = vmatprep.subr.mxu0 0.0
    %2823 = vmatpush1.xpose.msra.mxu0 0.0
    %2824 = vmatprep.subr.mxu0 0.0
    %2825 = vmatpush1.xpose.msra.mxu0 0.0
    %2826 = vmatprep.subr.mxu0 0.0
    %2827 = vmatpush1.xpose.msra.mxu0 0.0
    %2828 = vmatprep.subr.mxu0 0.0
    %2829 = vmatpush1.xpose.msra.mxu0 0.0
    %2830 = vmatprep.subr.mxu0 0.0
    %2831 = vmatpush1.xpose.msra.mxu0 0.0
    %2832 = vmatprep.subr.mxu0 0.0
    %2833 = vmatpush1.xpose.msra.mxu0 0.0
    %2834 = vmatprep.subr.mxu0 0.0
    %2835 = vmatpush1.xpose.msra.mxu0 0.0
    %2836 = vmatprep.subr.mxu0 0.0
    %2837 = vmatpush1.xpose.msra.mxu0 0.0
    %2838 = vmatprep.subr.mxu0 0.0
    %2839 = vmatpush1.xpose.msra.mxu0 0.0
    %2840 = vmatprep.subr.mxu0 0.0
    %2841 = vmatpush1.xpose.msra.mxu0 0.0
    %2842 = vmatprep.subr.mxu0 0.0
    %2843 = vmatpush1.xpose.msra.mxu0 0.0
    %2844 = vmatprep.subr.mxu0 0.0
    %2845 = vmatpush1.xpose.msra.mxu0 0.0
    %2846 = vmatprep.subr.mxu0 0.0
    %2847 = vmatpush1.xpose.msra.mxu0 0.0
    %2848 = vmatprep.subr.mxu0 0.0
    %2849 = vmatpush1.xpose.msra.mxu0 0.0
    %2850 = vmatprep.subr.mxu0 0.0
    %2851 = vmatpush1.xpose.msra.mxu0 0.0
    %2852 = vmatprep.subr.mxu0 0.0
    %2853 = vmatpush1.xpose.msra.mxu0 0.0
    %2854 = vmatprep.subr.mxu0 0.0
    %2855 = vmatpush1.xpose.msra.mxu0 0.0
    %2856 = vmatprep.subr.mxu0 0.0
    %2857 = vmatpush1.xpose.msra.mxu0 0.0
    %2858 = vmatprep.subr.mxu0 0.0
    %2859 = vmatpush1.xpose.msra.mxu0 0.0
    %2860 = vmatprep.subr.mxu0 0.0
    %2861 = vmatpush1.xpose.msra.mxu0 0.0
    %2862 = vmatprep.subr.mxu0 0.0
    %2863 = vmatpush1.xpose.msra.mxu0 0.0
    %2864 = vmatprep.subr.mxu0 0.0
    %2865 = vmatpush1.xpose.msra.mxu0 0.0
    %2866 = vmatprep.subr.mxu0 0.0
    %2867 = vmatpush1.xpose.msra.mxu0 0.0
    %2868 = vmatprep.mubr.f32.mxu0 0.0
    %2869 = vmatmul.mubr.f32.gmra.mrb[0].mxu0 %v2790
    %v2870 = vpop.f32.mrb[0].mxu0
    %v2871 = vadd.f32 %v2787, %v2870
    %v2872 = vpop.f32.mrb[0].mxu0
    %2873 = vdwg.mxu0
    %v2874 = vadd.f32 %v2682, %v2871
    %v2875 = vadd.f32 %v2874, %v2435
    %2876 = vst.msk [vmem:[#allocation2] sm:$0xff] %vm99, %v2875
    %s2877 = scalar_lea.vmem %s0, 8
    %v2878 = vld [vmem:[%s2877] sm:$0xff]
    %s2879 = scalar_lea.vmem %s1, 8
    %v2880 = vld [vmem:[%s2879] sm:$0xff]
    %s2881 = scalar_lea.vmem %s2, 8
    %v2882 = vld [vmem:[%s2881] sm:$0xff]
    %v2883 = vmul.f32 %v2882, -1e+18
    %s2884 = scalar_lea.vmem %s3, 1
    %v2885 = vld [vmem:[%s2884] sm:$0x1]
    %v2886 = vmul.f32 %v2885, -1e+18
    %v2888 = vlaneseq
    %v2889 = vshrl.u32 %v2888, 7
    %v2890 = vsub.s32 0, %v2889
    %v2891 = vrot.slane %v2886, %v2890
    %v2893 = vld [vmem:[%s8] sm:$0x1]
    %v2894 = vld [vmem:[%s9] sm:$0x1]
    %v2895 = vsel %vm99, %v2878, 0.0
    %2896 = vadd.xlane.f32.xlu0 %v2895
    %v2897 = vpop.xlane.xlu0 %2896
    %v2898 = vmul.f32 %v2897, %v103
    %v2899 = vsub.f32 %v2878, %v2898
    %v2900 = vmul.f32 %v2899, %v2899
    %v2901 = vsel %vm99, %v2900, 0.0
    %2902 = vadd.xlane.f32.xlu0 %v2901
    %v2903 = vpop.xlane.xlu0 %2902
    %v2904 = vmul.f32 %v2903, %v103
    %v2905 = vadd.f32 %v2904, 1e-06
    %v2906 = vrsqrt.pop %v2905
    %v2907 = vmul.f32 %v2899, %v2906
    %v2909 = vlaneseq
    %v2910 = vshrl.u32 %v2909, 7
    %v2911 = vsub.s32 0, %v2910
    %v2912 = vrot.slane %v2893, %v2911
    %v2914 = vmul.f32 %v2907, %v2912
    %v2916 = vlaneseq
    %v2917 = vshrl.u32 %v2916, 7
    %v2918 = vsub.s32 0, %v2917
    %v2919 = vrot.slane %v2894, %v2918
    %v2921 = vadd.f32 %v2914, %v2919
    %s2922 = scalar_lea.vmem [#allocation4], 8
    %2923 = vst.msk [vmem:[%s2922] sm:$0xff] %vm99, %v2921
    %v2924 = vld [vmem:[%s4] sm:$0xff]
    %v2925 = vld [vmem:[%s4 + $0x8] sm:$0xff]
    %v2926 = vld [vmem:[%s4 + $0x10] sm:$0xff]
    %v2927 = vld [vmem:[%s4 + $0x18] sm:$0xff]
    %v2928 = vld [vmem:[%s4 + $0x20] sm:$0xff]
    %v2929 = vld [vmem:[%s4 + $0x28] sm:$0xff]
    %v2930 = vld [vmem:[%s4 + $0x30] sm:$0xff]
    %v2931 = vld [vmem:[%s4 + $0x38] sm:$0xff]
    %v2932 = vld [vmem:[%s4 + $0x40] sm:$0xff]
    %v2933 = vld [vmem:[%s4 + $0x48] sm:$0xff]
    %v2934 = vld [vmem:[%s4 + $0x50] sm:$0xff]
    %v2935 = vld [vmem:[%s4 + $0x58] sm:$0xff]
    %v2936 = vld [vmem:[%s5] sm:$0x1]
    %v2938 = vlaneseq
    %v2939 = vshrl.u32 %v2938, 7
    %v2940 = vsub.s32 0, %v2939
    %v2941 = vrot.slane %v2936, %v2940
    %v2944 = vsel %vm99, %v2921, 0
    %v2947 = vsel %vm99, %v2924, 0
    %v2950 = vsel %vm99, %v2925, 0
    %v2953 = vsel %vm99, %v2926, 0
    %v2956 = vsel %vm99, %v2927, 0
    %v2959 = vsel %vm99, %v2928, 0
    %v2962 = vsel %vm99, %v2929, 0
    %v2965 = vsel %vm99, %v2930, 0
    %v2968 = vsel %vm99, %v2931, 0
    %v2971 = vsel %vm99, %v2932, 0
    %v2974 = vsel %vm99, %v2933, 0
    %v2977 = vsel %vm99, %v2934, 0
    %v2980 = vsel %vm99, %v2935, 0
    %2982 = vmatprep.subr.mxu0 0.0
    %2983 = vmatpush1.xpose.msra.mxu0 %v2947
    %2984 = vmatprep.subr.mxu0 0.0
    %2985 = vmatpush1.xpose.msra.mxu0 %v2950
    %2986 = vmatprep.subr.mxu0 0.0
    %2987 = vmatpush1.xpose.msra.mxu0 %v2953
    %2988 = vmatprep.subr.mxu0 0.0
    %2989 = vmatpush1.xpose.msra.mxu0 %v2956
    %2990 = vmatprep.subr.mxu0 0.0
    %2991 = vmatpush1.xpose.msra.mxu0 %v2959
    %2992 = vmatprep.subr.mxu0 0.0
    %2993 = vmatpush1.xpose.msra.mxu0 %v2962
    %2994 = vmatprep.subr.mxu0 0.0
    %2995 = vmatpush1.xpose.msra.mxu0 %v2965
    %2996 = vmatprep.subr.mxu0 0.0
    %2997 = vmatpush1.xpose.msra.mxu0 %v2968
    %2998 = vmatprep.subr.mxu0 0.0
    %2999 = vmatpush1.xpose.msra.mxu0 %v2971
    %3000 = vmatprep.subr.mxu0 0.0
    %3001 = vmatpush1.xpose.msra.mxu0 %v2974
    %3002 = vmatprep.subr.mxu0 0.0
    %3003 = vmatpush1.xpose.msra.mxu0 %v2977
    %3004 = vmatprep.subr.mxu0 0.0
    %3005 = vmatpush1.xpose.msra.mxu0 %v2980
    %3006 = vmatprep.subr.mxu0 0.0
    %3007 = vmatpush1.xpose.msra.mxu0 0.0
    %3008 = vmatprep.subr.mxu0 0.0
    %3009 = vmatpush1.xpose.msra.mxu0 0.0
    %3010 = vmatprep.subr.mxu0 0.0
    %3011 = vmatpush1.xpose.msra.mxu0 0.0
    %3012 = vmatprep.subr.mxu0 0.0
    %3013 = vmatpush1.xpose.msra.mxu0 0.0
    %3014 = vmatprep.subr.mxu0 0.0
    %3015 = vmatpush1.xpose.msra.mxu0 0.0
    %3016 = vmatprep.subr.mxu0 0.0
    %3017 = vmatpush1.xpose.msra.mxu0 0.0
    %3018 = vmatprep.subr.mxu0 0.0
    %3019 = vmatpush1.xpose.msra.mxu0 0.0
    %3020 = vmatprep.subr.mxu0 0.0
    %3021 = vmatpush1.xpose.msra.mxu0 0.0
    %3022 = vmatprep.subr.mxu0 0.0
    %3023 = vmatpush1.xpose.msra.mxu0 0.0
    %3024 = vmatprep.subr.mxu0 0.0
    %3025 = vmatpush1.xpose.msra.mxu0 0.0
    %3026 = vmatprep.subr.mxu0 0.0
    %3027 = vmatpush1.xpose.msra.mxu0 0.0
    %3028 = vmatprep.subr.mxu0 0.0
    %3029 = vmatpush1.xpose.msra.mxu0 0.0
    %3030 = vmatprep.subr.mxu0 0.0
    %3031 = vmatpush1.xpose.msra.mxu0 0.0
    %3032 = vmatprep.subr.mxu0 0.0
    %3033 = vmatpush1.xpose.msra.mxu0 0.0
    %3034 = vmatprep.subr.mxu0 0.0
    %3035 = vmatpush1.xpose.msra.mxu0 0.0
    %3036 = vmatprep.subr.mxu0 0.0
    %3037 = vmatpush1.xpose.msra.mxu0 0.0
    %3038 = vmatprep.subr.mxu0 0.0
    %3039 = vmatpush1.xpose.msra.mxu0 0.0
    %3040 = vmatprep.subr.mxu0 0.0
    %3041 = vmatpush1.xpose.msra.mxu0 0.0
    %3042 = vmatprep.subr.mxu0 0.0
    %3043 = vmatpush1.xpose.msra.mxu0 0.0
    %3044 = vmatprep.subr.mxu0 0.0
    %3045 = vmatpush1.xpose.msra.mxu0 0.0
    %3046 = vmatprep.mubr.f32.mxu0 0.0
    %3047 = vmatmul.mubr.f32.gmra.mrb[0].mxu0 %v2944
    %v3048 = vpop.f32.mrb[0].mxu0
    %v3049 = vadd.f32 %v2941, %v3048
    %v3050 = vpop.f32.mrb[0].mxu0
    %3051 = vdwg.mxu0
    %v3052 = vmul.f32 %v3049, 0.35355338
    %v3053 = vld [vmem:[%s6] sm:$0xff]
    %v3054 = vld [vmem:[%s6 + $0x8] sm:$0xff]
    %v3055 = vld [vmem:[%s6 + $0x10] sm:$0xff]
    %v3056 = vld [vmem:[%s6 + $0x18] sm:$0xff]
    %v3057 = vld [vmem:[%s7] sm:$0x1]
    %3059 = vrot.lane.b32.xlu0 %v3049, 96
    %v3060 = vpop.permute.xlu0 %3059
    %v3062 = vsel %vm266, %v3052, 0
    %v3064 = vsel %vm266, %v3060, 0
    %3066 = vmatprep.subr.mxu0 0.0
    %3067 = vmatpush1.xpose.msra.mxu0 %v3064
    %3068 = vmatprep.subr.mxu0 0.0
    %3069 = vmatpush1.xpose.msra.mxu0 0.0
    %3070 = vmatprep.subr.mxu0 0.0
    %3071 = vmatpush1.xpose.msra.mxu0 0.0
    %3072 = vmatprep.subr.mxu0 0.0
    %3073 = vmatpush1.xpose.msra.mxu0 0.0
    %3074 = vmatprep.subr.mxu0 0.0
    %3075 = vmatpush1.xpose.msra.mxu0 0.0
    %3076 = vmatprep.subr.mxu0 0.0
    %3077 = vmatpush1.xpose.msra.mxu0 0.0
    %3078 = vmatprep.subr.mxu0 0.0
    %3079 = vmatpush1.xpose.msra.mxu0 0.0
    %3080 = vmatprep.subr.mxu0 0.0
    %3081 = vmatpush1.xpose.msra.mxu0 0.0
    %3082 = vmatprep.subr.mxu0 0.0
    %3083 = vmatpush1.xpose.msra.mxu0 0.0
    %3084 = vmatprep.subr.mxu0 0.0
    %3085 = vmatpush1.xpose.msra.mxu0 0.0
    %3086 = vmatprep.subr.mxu0 0.0
    %3087 = vmatpush1.xpose.msra.mxu0 0.0
    %3088 = vmatprep.subr.mxu0 0.0
    %3089 = vmatpush1.xpose.msra.mxu0 0.0
    %3090 = vmatprep.subr.mxu0 0.0
    %3091 = vmatpush1.xpose.msra.mxu0 0.0
    %3092 = vmatprep.subr.mxu0 0.0
    %3093 = vmatpush1.xpose.msra.mxu0 0.0
    %3094 = vmatprep.subr.mxu0 0.0
    %3095 = vmatpush1.xpose.msra.mxu0 0.0
    %3096 = vmatprep.subr.mxu0 0.0
    %3097 = vmatpush1.xpose.msra.mxu0 0.0
    %3098 = vmatprep.subr.mxu0 0.0
    %3099 = vmatpush1.xpose.msra.mxu0 0.0
    %3100 = vmatprep.subr.mxu0 0.0
    %3101 = vmatpush1.xpose.msra.mxu0 0.0
    %3102 = vmatprep.subr.mxu0 0.0
    %3103 = vmatpush1.xpose.msra.mxu0 0.0
    %3104 = vmatprep.subr.mxu0 0.0
    %3105 = vmatpush1.xpose.msra.mxu0 0.0
    %3106 = vmatprep.subr.mxu0 0.0
    %3107 = vmatpush1.xpose.msra.mxu0 0.0
    %3108 = vmatprep.subr.mxu0 0.0
    %3109 = vmatpush1.xpose.msra.mxu0 0.0
    %3110 = vmatprep.subr.mxu0 0.0
    %3111 = vmatpush1.xpose.msra.mxu0 0.0
    %3112 = vmatprep.subr.mxu0 0.0
    %3113 = vmatpush1.xpose.msra.mxu0 0.0
    %3114 = vmatprep.subr.mxu0 0.0
    %3115 = vmatpush1.xpose.msra.mxu0 0.0
    %3116 = vmatprep.subr.mxu0 0.0
    %3117 = vmatpush1.xpose.msra.mxu0 0.0
    %3118 = vmatprep.subr.mxu0 0.0
    %3119 = vmatpush1.xpose.msra.mxu0 0.0
    %3120 = vmatprep.subr.mxu0 0.0
    %3121 = vmatpush1.xpose.msra.mxu0 0.0
    %3122 = vmatprep.subr.mxu0 0.0
    %3123 = vmatpush1.xpose.msra.mxu0 0.0
    %3124 = vmatprep.subr.mxu0 0.0
    %3125 = vmatpush1.xpose.msra.mxu0 0.0
    %3126 = vmatprep.subr.mxu0 0.0
    %3127 = vmatpush1.xpose.msra.mxu0 0.0
    %3128 = vmatprep.subr.mxu0 0.0
    %3129 = vmatpush1.xpose.msra.mxu0 0.0
    %3130 = vmatprep.mubr.f32.mxu0 0.0
    %3131 = vmatmul.mubr.f32.gmra.mrb[0].mxu0 %v3062
    %v3132 = vpop.f32.mrb[0].mxu0
    %v3133 = vadd.f32 %v2883, %v3132
    %v3134 = vpop.f32.mrb[0].mxu0
    %3135 = vdwg.mxu0
    %v3136 = vsel %vm266, %v3133, -inf
    %3137 = vmax.xlane.f32.xlu0 %v3136
    %v3138 = vpop.xlane.xlu0 %3137
    %v3139 = vsub.f32 %v3133, %v3138
    %v3140 = vmul.f32 %v3139, 1.442695
    %v3141 = vpow.pop %v3140
    %v3142 = vsel %vm266, %v3141, 0.0
    %3143 = vadd.xlane.f32.xlu0 %v3142
    %v3144 = vpop.xlane.xlu0 %3143
    %v3145 = vrcp.pop %v3144
    %v3146 = vmul.f32 %v3141, %v3145
    %v3147 = vmul.f32 %v3049, %v355
    %3148 = vrot.lane.b32.xlu0 %v3052, 120
    %v3149 = vpop.permute.xlu0 %3148
    %3150 = vrot.lane.b32.xlu0 %v3049, 88
    %v3151 = vpop.permute.xlu0 %3150
    %v3152 = vsel %vm266, %v3149, 0
    %v3154 = vsel %vm266, %v3151, 0
    %3156 = vmatprep.subr.mxu0 0.0
    %3157 = vmatpush1.xpose.msra.mxu0 %v3154
    %3158 = vmatprep.subr.mxu0 0.0
    %3159 = vmatpush1.xpose.msra.mxu0 0.0
    %3160 = vmatprep.subr.mxu0 0.0
    %3161 = vmatpush1.xpose.msra.mxu0 0.0
    %3162 = vmatprep.subr.mxu0 0.0
    %3163 = vmatpush1.xpose.msra.mxu0 0.0
    %3164 = vmatprep.subr.mxu0 0.0
    %3165 = vmatpush1.xpose.msra.mxu0 0.0
    %3166 = vmatprep.subr.mxu0 0.0
    %3167 = vmatpush1.xpose.msra.mxu0 0.0
    %3168 = vmatprep.subr.mxu0 0.0
    %3169 = vmatpush1.xpose.msra.mxu0 0.0
    %3170 = vmatprep.subr.mxu0 0.0
    %3171 = vmatpush1.xpose.msra.mxu0 0.0
    %3172 = vmatprep.subr.mxu0 0.0
    %3173 = vmatpush1.xpose.msra.mxu0 0.0
    %3174 = vmatprep.subr.mxu0 0.0
    %3175 = vmatpush1.xpose.msra.mxu0 0.0
    %3176 = vmatprep.subr.mxu0 0.0
    %3177 = vmatpush1.xpose.msra.mxu0 0.0
    %3178 = vmatprep.subr.mxu0 0.0
    %3179 = vmatpush1.xpose.msra.mxu0 0.0
    %3180 = vmatprep.subr.mxu0 0.0
    %3181 = vmatpush1.xpose.msra.mxu0 0.0
    %3182 = vmatprep.subr.mxu0 0.0
    %3183 = vmatpush1.xpose.msra.mxu0 0.0
    %3184 = vmatprep.subr.mxu0 0.0
    %3185 = vmatpush1.xpose.msra.mxu0 0.0
    %3186 = vmatprep.subr.mxu0 0.0
    %3187 = vmatpush1.xpose.msra.mxu0 0.0
    %3188 = vmatprep.subr.mxu0 0.0
    %3189 = vmatpush1.xpose.msra.mxu0 0.0
    %3190 = vmatprep.subr.mxu0 0.0
    %3191 = vmatpush1.xpose.msra.mxu0 0.0
    %3192 = vmatprep.subr.mxu0 0.0
    %3193 = vmatpush1.xpose.msra.mxu0 0.0
    %3194 = vmatprep.subr.mxu0 0.0
    %3195 = vmatpush1.xpose.msra.mxu0 0.0
    %3196 = vmatprep.subr.mxu0 0.0
    %3197 = vmatpush1.xpose.msra.mxu0 0.0
    %3198 = vmatprep.subr.mxu0 0.0
    %3199 = vmatpush1.xpose.msra.mxu0 0.0
    %3200 = vmatprep.subr.mxu0 0.0
    %3201 = vmatpush1.xpose.msra.mxu0 0.0
    %3202 = vmatprep.subr.mxu0 0.0
    %3203 = vmatpush1.xpose.msra.mxu0 0.0
    %3204 = vmatprep.subr.mxu0 0.0
    %3205 = vmatpush1.xpose.msra.mxu0 0.0
    %3206 = vmatprep.subr.mxu0 0.0
    %3207 = vmatpush1.xpose.msra.mxu0 0.0
    %3208 = vmatprep.subr.mxu0 0.0
    %3209 = vmatpush1.xpose.msra.mxu0 0.0
    %3210 = vmatprep.subr.mxu0 0.0
    %3211 = vmatpush1.xpose.msra.mxu0 0.0
    %3212 = vmatprep.subr.mxu0 0.0
    %3213 = vmatpush1.xpose.msra.mxu0 0.0
    %3214 = vmatprep.subr.mxu0 0.0
    %3215 = vmatpush1.xpose.msra.mxu0 0.0
    %3216 = vmatprep.subr.mxu0 0.0
    %3217 = vmatpush1.xpose.msra.mxu0 0.0
    %3218 = vmatprep.subr.mxu0 0.0
    %3219 = vmatpush1.xpose.msra.mxu0 0.0
    %3220 = vmatprep.mubr.f32.mxu0 0.0
    %3221 = vmatmul.mubr.f32.gmra.mrb[0].mxu0 %v3152
    %v3222 = vpop.f32.mrb[0].mxu0
    %v3223 = vadd.f32 %v2883, %v3222
    %v3224 = vpop.f32.mrb[0].mxu0
    %3225 = vdwg.mxu0
    %v3226 = vsel %vm266, %v3223, -inf
    %3227 = vmax.xlane.f32.xlu0 %v3226
    %v3228 = vpop.xlane.xlu0 %3227
    %v3229 = vsub.f32 %v3223, %v3228
    %v3230 = vmul.f32 %v3229, 1.442695
    %v3231 = vpow.pop %v3230
    %v3232 = vsel %vm266, %v3231, 0.0
    %3233 = vadd.xlane.f32.xlu0 %v3232
    %v3234 = vpop.xlane.xlu0 %3233
    %v3235 = vrcp.pop %v3234
    %v3236 = vmul.f32 %v3231, %v3235
    %v3237 = vmul.f32 %v3049, %v449
    %3239 = vrot.lane.b32.xlu0 %v3237, 64
    %v3240 = vpop.permute.xlu0 %3239
    %v3243 = vsel %vm266, %v3236, 0
    %3245 = vmatprep.subr.mxu0 0.0
    %3246 = vmatpush1.msra.mxu0 %v3240
    %3247 = vmatprep.subr.mxu0 0.0
    %3248 = vmatpush1.msra.mxu0 0.0
    %3249 = vmatprep.subr.mxu0 0.0
    %3250 = vmatpush1.msra.mxu0 0.0
    %3251 = vmatprep.subr.mxu0 0.0
    %3252 = vmatpush1.msra.mxu0 0.0
    %3253 = vmatprep.subr.mxu0 0.0
    %3254 = vmatpush1.msra.mxu0 0.0
    %3255 = vmatprep.subr.mxu0 0.0
    %3256 = vmatpush1.msra.mxu0 0.0
    %3257 = vmatprep.subr.mxu0 0.0
    %3258 = vmatpush1.msra.mxu0 0.0
    %3259 = vmatprep.subr.mxu0 0.0
    %3260 = vmatpush1.msra.mxu0 0.0
    %3261 = vmatprep.subr.mxu0 0.0
    %3262 = vmatpush1.msra.mxu0 0.0
    %3263 = vmatprep.subr.mxu0 0.0
    %3264 = vmatpush1.msra.mxu0 0.0
    %3265 = vmatprep.subr.mxu0 0.0
    %3266 = vmatpush1.msra.mxu0 0.0
    %3267 = vmatprep.subr.mxu0 0.0
    %3268 = vmatpush1.msra.mxu0 0.0
    %3269 = vmatprep.subr.mxu0 0.0
    %3270 = vmatpush1.msra.mxu0 0.0
    %3271 = vmatprep.subr.mxu0 0.0
    %3272 = vmatpush1.msra.mxu0 0.0
    %3273 = vmatprep.subr.mxu0 0.0
    %3274 = vmatpush1.msra.mxu0 0.0
    %3275 = vmatprep.subr.mxu0 0.0
    %3276 = vmatpush1.msra.mxu0 0.0
    %3277 = vmatprep.subr.mxu0 0.0
    %3278 = vmatpush1.msra.mxu0 0.0
    %3279 = vmatprep.subr.mxu0 0.0
    %3280 = vmatpush1.msra.mxu0 0.0
    %3281 = vmatprep.subr.mxu0 0.0
    %3282 = vmatpush1.msra.mxu0 0.0
    %3283 = vmatprep.subr.mxu0 0.0
    %3284 = vmatpush1.msra.mxu0 0.0
    %3285 = vmatprep.subr.mxu0 0.0
    %3286 = vmatpush1.msra.mxu0 0.0
    %3287 = vmatprep.subr.mxu0 0.0
    %3288 = vmatpush1.msra.mxu0 0.0
    %3289 = vmatprep.subr.mxu0 0.0
    %3290 = vmatpush1.msra.mxu0 0.0
    %3291 = vmatprep.subr.mxu0 0.0
    %3292 = vmatpush1.msra.mxu0 0.0
    %3293 = vmatprep.subr.mxu0 0.0
    %3294 = vmatpush1.msra.mxu0 0.0
    %3295 = vmatprep.subr.mxu0 0.0
    %3296 = vmatpush1.msra.mxu0 0.0
    %3297 = vmatprep.subr.mxu0 0.0
    %3298 = vmatpush1.msra.mxu0 0.0
    %3299 = vmatprep.subr.mxu0 0.0
    %3300 = vmatpush1.msra.mxu0 0.0
    %3301 = vmatprep.subr.mxu0 0.0
    %3302 = vmatpush1.msra.mxu0 0.0
    %3303 = vmatprep.subr.mxu0 0.0
    %3304 = vmatpush1.msra.mxu0 0.0
    %3305 = vmatprep.subr.mxu0 0.0
    %3306 = vmatpush1.msra.mxu0 0.0
    %3307 = vmatprep.subr.mxu0 0.0
    %3308 = vmatpush1.msra.mxu0 0.0
    %3309 = vmatprep.mubr.f32.mxu0 0.0
    %3310 = vmatmul.mubr.f32.gmra.mrb[0].mxu0 %v3243
    %v3311 = vpop.f32.mrb[0].mxu0
    %v3312 = vadd.f32 0.0, %v3311
    %v3313 = vpop.f32.mrb[0].mxu0
    %3314 = vdwg.mxu0
    %3316 = vrot.lane.b32.xlu0 %v3147, 64
    %v3317 = vpop.permute.xlu0 %3316
    %v3320 = vsel %vm266, %v3146, 0
    %3322 = vmatprep.subr.mxu0 0.0
    %3323 = vmatpush1.msra.mxu0 %v3317
    %3324 = vmatprep.subr.mxu0 0.0
    %3325 = vmatpush1.msra.mxu0 0.0
    %3326 = vmatprep.subr.mxu0 0.0
    %3327 = vmatpush1.msra.mxu0 0.0
    %3328 = vmatprep.subr.mxu0 0.0
    %3329 = vmatpush1.msra.mxu0 0.0
    %3330 = vmatprep.subr.mxu0 0.0
    %3331 = vmatpush1.msra.mxu0 0.0
    %3332 = vmatprep.subr.mxu0 0.0
    %3333 = vmatpush1.msra.mxu0 0.0
    %3334 = vmatprep.subr.mxu0 0.0
    %3335 = vmatpush1.msra.mxu0 0.0
    %3336 = vmatprep.subr.mxu0 0.0
    %3337 = vmatpush1.msra.mxu0 0.0
    %3338 = vmatprep.subr.mxu0 0.0
    %3339 = vmatpush1.msra.mxu0 0.0
    %3340 = vmatprep.subr.mxu0 0.0
    %3341 = vmatpush1.msra.mxu0 0.0
    %3342 = vmatprep.subr.mxu0 0.0
    %3343 = vmatpush1.msra.mxu0 0.0
    %3344 = vmatprep.subr.mxu0 0.0
    %3345 = vmatpush1.msra.mxu0 0.0
    %3346 = vmatprep.subr.mxu0 0.0
    %3347 = vmatpush1.msra.mxu0 0.0
    %3348 = vmatprep.subr.mxu0 0.0
    %3349 = vmatpush1.msra.mxu0 0.0
    %3350 = vmatprep.subr.mxu0 0.0
    %3351 = vmatpush1.msra.mxu0 0.0
    %3352 = vmatprep.subr.mxu0 0.0
    %3353 = vmatpush1.msra.mxu0 0.0
    %3354 = vmatprep.subr.mxu0 0.0
    %3355 = vmatpush1.msra.mxu0 0.0
    %3356 = vmatprep.subr.mxu0 0.0
    %3357 = vmatpush1.msra.mxu0 0.0
    %3358 = vmatprep.subr.mxu0 0.0
    %3359 = vmatpush1.msra.mxu0 0.0
    %3360 = vmatprep.subr.mxu0 0.0
    %3361 = vmatpush1.msra.mxu0 0.0
    %3362 = vmatprep.subr.mxu0 0.0
    %3363 = vmatpush1.msra.mxu0 0.0
    %3364 = vmatprep.subr.mxu0 0.0
    %3365 = vmatpush1.msra.mxu0 0.0
    %3366 = vmatprep.subr.mxu0 0.0
    %3367 = vmatpush1.msra.mxu0 0.0
    %3368 = vmatprep.subr.mxu0 0.0
    %3369 = vmatpush1.msra.mxu0 0.0
    %3370 = vmatprep.subr.mxu0 0.0
    %3371 = vmatpush1.msra.mxu0 0.0
    %3372 = vmatprep.subr.mxu0 0.0
    %3373 = vmatpush1.msra.mxu0 0.0
    %3374 = vmatprep.subr.mxu0 0.0
    %3375 = vmatpush1.msra.mxu0 0.0
    %3376 = vmatprep.subr.mxu0 0.0
    %3377 = vmatpush1.msra.mxu0 0.0
    %3378 = vmatprep.subr.mxu0 0.0
    %3379 = vmatpush1.msra.mxu0 0.0
    %3380 = vmatprep.subr.mxu0 0.0
    %3381 = vmatpush1.msra.mxu0 0.0
    %3382 = vmatprep.subr.mxu0 0.0
    %3383 = vmatpush1.msra.mxu0 0.0
    %3384 = vmatprep.subr.mxu0 0.0
    %3385 = vmatpush1.msra.mxu0 0.0
    %3386 = vmatprep.mubr.f32.mxu0 0.0
    %3387 = vmatmul.mubr.f32.gmra.mrb[0].mxu0 %v3320
    %v3388 = vpop.f32.mrb[0].mxu0
    %v3389 = vadd.f32 %v3312, %v3388
    %v3390 = vpop.f32.mrb[0].mxu0
    %3391 = vdwg.mxu0
    %3392 = vrot.lane.b32.xlu0 %v3052, 112
    %v3393 = vpop.permute.xlu0 %3392
    %3394 = vrot.lane.b32.xlu0 %v3049, 80
    %v3395 = vpop.permute.xlu0 %3394
    %v3396 = vsel %vm266, %v3393, 0
    %v3398 = vsel %vm266, %v3395, 0
    %3400 = vmatprep.subr.mxu0 0.0
    %3401 = vmatpush1.xpose.msra.mxu0 %v3398
    %3402 = vmatprep.subr.mxu0 0.0
    %3403 = vmatpush1.xpose.msra.mxu0 0.0
    %3404 = vmatprep.subr.mxu0 0.0
    %3405 = vmatpush1.xpose.msra.mxu0 0.0
    %3406 = vmatprep.subr.mxu0 0.0
    %3407 = vmatpush1.xpose.msra.mxu0 0.0
    %3408 = vmatprep.subr.mxu0 0.0
    %3409 = vmatpush1.xpose.msra.mxu0 0.0
    %3410 = vmatprep.subr.mxu0 0.0
    %3411 = vmatpush1.xpose.msra.mxu0 0.0
    %3412 = vmatprep.subr.mxu0 0.0
    %3413 = vmatpush1.xpose.msra.mxu0 0.0
    %3414 = vmatprep.subr.mxu0 0.0
    %3415 = vmatpush1.xpose.msra.mxu0 0.0
    %3416 = vmatprep.subr.mxu0 0.0
    %3417 = vmatpush1.xpose.msra.mxu0 0.0
    %3418 = vmatprep.subr.mxu0 0.0
    %3419 = vmatpush1.xpose.msra.mxu0 0.0
    %3420 = vmatprep.subr.mxu0 0.0
    %3421 = vmatpush1.xpose.msra.mxu0 0.0
    %3422 = vmatprep.subr.mxu0 0.0
    %3423 = vmatpush1.xpose.msra.mxu0 0.0
    %3424 = vmatprep.subr.mxu0 0.0
    %3425 = vmatpush1.xpose.msra.mxu0 0.0
    %3426 = vmatprep.subr.mxu0 0.0
    %3427 = vmatpush1.xpose.msra.mxu0 0.0
    %3428 = vmatprep.subr.mxu0 0.0
    %3429 = vmatpush1.xpose.msra.mxu0 0.0
    %3430 = vmatprep.subr.mxu0 0.0
    %3431 = vmatpush1.xpose.msra.mxu0 0.0
    %3432 = vmatprep.subr.mxu0 0.0
    %3433 = vmatpush1.xpose.msra.mxu0 0.0
    %3434 = vmatprep.subr.mxu0 0.0
    %3435 = vmatpush1.xpose.msra.mxu0 0.0
    %3436 = vmatprep.subr.mxu0 0.0
    %3437 = vmatpush1.xpose.msra.mxu0 0.0
    %3438 = vmatprep.subr.mxu0 0.0
    %3439 = vmatpush1.xpose.msra.mxu0 0.0
    %3440 = vmatprep.subr.mxu0 0.0
    %3441 = vmatpush1.xpose.msra.mxu0 0.0
    %3442 = vmatprep.subr.mxu0 0.0
    %3443 = vmatpush1.xpose.msra.mxu0 0.0
    %3444 = vmatprep.subr.mxu0 0.0
    %3445 = vmatpush1.xpose.msra.mxu0 0.0
    %3446 = vmatprep.subr.mxu0 0.0
    %3447 = vmatpush1.xpose.msra.mxu0 0.0
    %3448 = vmatprep.subr.mxu0 0.0
    %3449 = vmatpush1.xpose.msra.mxu0 0.0
    %3450 = vmatprep.subr.mxu0 0.0
    %3451 = vmatpush1.xpose.msra.mxu0 0.0
    %3452 = vmatprep.subr.mxu0 0.0
    %3453 = vmatpush1.xpose.msra.mxu0 0.0
    %3454 = vmatprep.subr.mxu0 0.0
    %3455 = vmatpush1.xpose.msra.mxu0 0.0
    %3456 = vmatprep.subr.mxu0 0.0
    %3457 = vmatpush1.xpose.msra.mxu0 0.0
    %3458 = vmatprep.subr.mxu0 0.0
    %3459 = vmatpush1.xpose.msra.mxu0 0.0
    %3460 = vmatprep.subr.mxu0 0.0
    %3461 = vmatpush1.xpose.msra.mxu0 0.0
    %3462 = vmatprep.subr.mxu0 0.0
    %3463 = vmatpush1.xpose.msra.mxu0 0.0
    %3464 = vmatprep.mubr.f32.mxu0 0.0
    %3465 = vmatmul.mubr.f32.gmra.mrb[0].mxu0 %v3396
    %v3466 = vpop.f32.mrb[0].mxu0
    %v3467 = vadd.f32 %v2883, %v3466
    %v3468 = vpop.f32.mrb[0].mxu0
    %3469 = vdwg.mxu0
    %v3470 = vsel %vm266, %v3467, -inf
    %3471 = vmax.xlane.f32.xlu0 %v3470
    %v3472 = vpop.xlane.xlu0 %3471
    %v3473 = vsub.f32 %v3467, %v3472
    %v3474 = vmul.f32 %v3473, 1.442695
    %v3475 = vpow.pop %v3474
    %v3476 = vsel %vm266, %v3475, 0.0
    %3477 = vadd.xlane.f32.xlu0 %v3476
    %v3478 = vpop.xlane.xlu0 %3477
    %v3479 = vrcp.pop %v3478
    %v3480 = vmul.f32 %v3475, %v3479
    %v3481 = vmul.f32 %v3049, %v697
    %3483 = vrot.lane.b32.xlu0 %v3481, 64
    %v3484 = vpop.permute.xlu0 %3483
    %v3487 = vsel %vm266, %v3480, 0
    %3489 = vmatprep.subr.mxu0 0.0
    %3490 = vmatpush1.msra.mxu0 %v3484
    %3491 = vmatprep.subr.mxu0 0.0
    %3492 = vmatpush1.msra.mxu0 0.0
    %3493 = vmatprep.subr.mxu0 0.0
    %3494 = vmatpush1.msra.mxu0 0.0
    %3495 = vmatprep.subr.mxu0 0.0
    %3496 = vmatpush1.msra.mxu0 0.0
    %3497 = vmatprep.subr.mxu0 0.0
    %3498 = vmatpush1.msra.mxu0 0.0
    %3499 = vmatprep.subr.mxu0 0.0
    %3500 = vmatpush1.msra.mxu0 0.0
    %3501 = vmatprep.subr.mxu0 0.0
    %3502 = vmatpush1.msra.mxu0 0.0
    %3503 = vmatprep.subr.mxu0 0.0
    %3504 = vmatpush1.msra.mxu0 0.0
    %3505 = vmatprep.subr.mxu0 0.0
    %3506 = vmatpush1.msra.mxu0 0.0
    %3507 = vmatprep.subr.mxu0 0.0
    %3508 = vmatpush1.msra.mxu0 0.0
    %3509 = vmatprep.subr.mxu0 0.0
    %3510 = vmatpush1.msra.mxu0 0.0
    %3511 = vmatprep.subr.mxu0 0.0
    %3512 = vmatpush1.msra.mxu0 0.0
    %3513 = vmatprep.subr.mxu0 0.0
    %3514 = vmatpush1.msra.mxu0 0.0
    %3515 = vmatprep.subr.mxu0 0.0
    %3516 = vmatpush1.msra.mxu0 0.0
    %3517 = vmatprep.subr.mxu0 0.0
    %3518 = vmatpush1.msra.mxu0 0.0
    %3519 = vmatprep.subr.mxu0 0.0
    %3520 = vmatpush1.msra.mxu0 0.0
    %3521 = vmatprep.subr.mxu0 0.0
    %3522 = vmatpush1.msra.mxu0 0.0
    %3523 = vmatprep.subr.mxu0 0.0
    %3524 = vmatpush1.msra.mxu0 0.0
    %3525 = vmatprep.subr.mxu0 0.0
    %3526 = vmatpush1.msra.mxu0 0.0
    %3527 = vmatprep.subr.mxu0 0.0
    %3528 = vmatpush1.msra.mxu0 0.0
    %3529 = vmatprep.subr.mxu0 0.0
    %3530 = vmatpush1.msra.mxu0 0.0
    %3531 = vmatprep.subr.mxu0 0.0
    %3532 = vmatpush1.msra.mxu0 0.0
    %3533 = vmatprep.subr.mxu0 0.0
    %3534 = vmatpush1.msra.mxu0 0.0
    %3535 = vmatprep.subr.mxu0 0.0
    %3536 = vmatpush1.msra.mxu0 0.0
    %3537 = vmatprep.subr.mxu0 0.0
    %3538 = vmatpush1.msra.mxu0 0.0
    %3539 = vmatprep.subr.mxu0 0.0
    %3540 = vmatpush1.msra.mxu0 0.0
    %3541 = vmatprep.subr.mxu0 0.0
    %3542 = vmatpush1.msra.mxu0 0.0
    %3543 = vmatprep.subr.mxu0 0.0
    %3544 = vmatpush1.msra.mxu0 0.0
    %3545 = vmatprep.subr.mxu0 0.0
    %3546 = vmatpush1.msra.mxu0 0.0
    %3547 = vmatprep.subr.mxu0 0.0
    %3548 = vmatpush1.msra.mxu0 0.0
    %3549 = vmatprep.subr.mxu0 0.0
    %3550 = vmatpush1.msra.mxu0 0.0
    %3551 = vmatprep.subr.mxu0 0.0
    %3552 = vmatpush1.msra.mxu0 0.0
    %3553 = vmatprep.mubr.f32.mxu0 0.0
    %3554 = vmatmul.mubr.f32.gmra.mrb[0].mxu0 %v3487
    %v3555 = vpop.f32.mrb[0].mxu0
    %v3556 = vadd.f32 0.0, %v3555
    %v3557 = vpop.f32.mrb[0].mxu0
    %3558 = vdwg.mxu0
    %v3559 = vadd.f32 %v3389, %v3556
    %3560 = vrot.lane.b32.xlu0 %v3052, 104
    %v3561 = vpop.permute.xlu0 %3560
    %3562 = vrot.lane.b32.xlu0 %v3049, 72
    %v3563 = vpop.permute.xlu0 %3562
    %v3564 = vsel %vm266, %v3561, 0
    %v3566 = vsel %vm266, %v3563, 0
    %3568 = vmatprep.subr.mxu0 0.0
    %3569 = vmatpush1.xpose.msra.mxu0 %v3566
    %3570 = vmatprep.subr.mxu0 0.0
    %3571 = vmatpush1.xpose.msra.mxu0 0.0
    %3572 = vmatprep.subr.mxu0 0.0
    %3573 = vmatpush1.xpose.msra.mxu0 0.0
    %3574 = vmatprep.subr.mxu0 0.0
    %3575 = vmatpush1.xpose.msra.mxu0 0.0
    %3576 = vmatprep.subr.mxu0 0.0
    %3577 = vmatpush1.xpose.msra.mxu0 0.0
    %3578 = vmatprep.subr.mxu0 0.0
    %3579 = vmatpush1.xpose.msra.mxu0 0.0
    %3580 = vmatprep.subr.mxu0 0.0
    %3581 = vmatpush1.xpose.msra.mxu0 0.0
    %3582 = vmatprep.subr.mxu0 0.0
    %3583 = vmatpush1.xpose.msra.mxu0 0.0
    %3584 = vmatprep.subr.mxu0 0.0
    %3585 = vmatpush1.xpose.msra.mxu0 0.0
    %3586 = vmatprep.subr.mxu0 0.0
    %3587 = vmatpush1.xpose.msra.mxu0 0.0
    %3588 = vmatprep.subr.mxu0 0.0
    %3589 = vmatpush1.xpose.msra.mxu0 0.0
    %3590 = vmatprep.subr.mxu0 0.0
    %3591 = vmatpush1.xpose.msra.mxu0 0.0
    %3592 = vmatprep.subr.mxu0 0.0
    %3593 = vmatpush1.xpose.msra.mxu0 0.0
    %3594 = vmatprep.subr.mxu0 0.0
    %3595 = vmatpush1.xpose.msra.mxu0 0.0
    %3596 = vmatprep.subr.mxu0 0.0
    %3597 = vmatpush1.xpose.msra.mxu0 0.0
    %3598 = vmatprep.subr.mxu0 0.0
    %3599 = vmatpush1.xpose.msra.mxu0 0.0
    %3600 = vmatprep.subr.mxu0 0.0
    %3601 = vmatpush1.xpose.msra.mxu0 0.0
    %3602 = vmatprep.subr.mxu0 0.0
    %3603 = vmatpush1.xpose.msra.mxu0 0.0
    %3604 = vmatprep.subr.mxu0 0.0
    %3605 = vmatpush1.xpose.msra.mxu0 0.0
    %3606 = vmatprep.subr.mxu0 0.0
    %3607 = vmatpush1.xpose.msra.mxu0 0.0
    %3608 = vmatprep.subr.mxu0 0.0
    %3609 = vmatpush1.xpose.msra.mxu0 0.0
    %3610 = vmatprep.subr.mxu0 0.0
    %3611 = vmatpush1.xpose.msra.mxu0 0.0
    %3612 = vmatprep.subr.mxu0 0.0
    %3613 = vmatpush1.xpose.msra.mxu0 0.0
    %3614 = vmatprep.subr.mxu0 0.0
    %3615 = vmatpush1.xpose.msra.mxu0 0.0
    %3616 = vmatprep.subr.mxu0 0.0
    %3617 = vmatpush1.xpose.msra.mxu0 0.0
    %3618 = vmatprep.subr.mxu0 0.0
    %3619 = vmatpush1.xpose.msra.mxu0 0.0
    %3620 = vmatprep.subr.mxu0 0.0
    %3621 = vmatpush1.xpose.msra.mxu0 0.0
    %3622 = vmatprep.subr.mxu0 0.0
    %3623 = vmatpush1.xpose.msra.mxu0 0.0
    %3624 = vmatprep.subr.mxu0 0.0
    %3625 = vmatpush1.xpose.msra.mxu0 0.0
    %3626 = vmatprep.subr.mxu0 0.0
    %3627 = vmatpush1.xpose.msra.mxu0 0.0
    %3628 = vmatprep.subr.mxu0 0.0
    %3629 = vmatpush1.xpose.msra.mxu0 0.0
    %3630 = vmatprep.subr.mxu0 0.0
    %3631 = vmatpush1.xpose.msra.mxu0 0.0
    %3632 = vmatprep.mubr.f32.mxu0 0.0
    %3633 = vmatmul.mubr.f32.gmra.mrb[0].mxu0 %v3564
    %v3634 = vpop.f32.mrb[0].mxu0
    %v3635 = vadd.f32 %v2883, %v3634
    %v3636 = vpop.f32.mrb[0].mxu0
    %3637 = vdwg.mxu0
    %v3638 = vsel %vm266, %v3635, -inf
    %3639 = vmax.xlane.f32.xlu0 %v3638
    %v3640 = vpop.xlane.xlu0 %3639
    %v3641 = vsub.f32 %v3635, %v3640
    %v3642 = vmul.f32 %v3641, 1.442695
    %v3643 = vpow.pop %v3642
    %v3644 = vsel %vm266, %v3643, 0.0
    %3645 = vadd.xlane.f32.xlu0 %v3644
    %v3646 = vpop.xlane.xlu0 %3645
    %v3647 = vrcp.pop %v3646
    %v3648 = vmul.f32 %v3643, %v3647
    %v3649 = vmul.f32 %v3049, %v869
    %3651 = vrot.lane.b32.xlu0 %v3649, 64
    %v3652 = vpop.permute.xlu0 %3651
    %v3655 = vsel %vm266, %v3648, 0
    %3657 = vmatprep.subr.mxu0 0.0
    %3658 = vmatpush1.msra.mxu0 %v3652
    %3659 = vmatprep.subr.mxu0 0.0
    %3660 = vmatpush1.msra.mxu0 0.0
    %3661 = vmatprep.subr.mxu0 0.0
    %3662 = vmatpush1.msra.mxu0 0.0
    %3663 = vmatprep.subr.mxu0 0.0
    %3664 = vmatpush1.msra.mxu0 0.0
    %3665 = vmatprep.subr.mxu0 0.0
    %3666 = vmatpush1.msra.mxu0 0.0
    %3667 = vmatprep.subr.mxu0 0.0
    %3668 = vmatpush1.msra.mxu0 0.0
    %3669 = vmatprep.subr.mxu0 0.0
    %3670 = vmatpush1.msra.mxu0 0.0
    %3671 = vmatprep.subr.mxu0 0.0
    %3672 = vmatpush1.msra.mxu0 0.0
    %3673 = vmatprep.subr.mxu0 0.0
    %3674 = vmatpush1.msra.mxu0 0.0
    %3675 = vmatprep.subr.mxu0 0.0
    %3676 = vmatpush1.msra.mxu0 0.0
    %3677 = vmatprep.subr.mxu0 0.0
    %3678 = vmatpush1.msra.mxu0 0.0
    %3679 = vmatprep.subr.mxu0 0.0
    %3680 = vmatpush1.msra.mxu0 0.0
    %3681 = vmatprep.subr.mxu0 0.0
    %3682 = vmatpush1.msra.mxu0 0.0
    %3683 = vmatprep.subr.mxu0 0.0
    %3684 = vmatpush1.msra.mxu0 0.0
    %3685 = vmatprep.subr.mxu0 0.0
    %3686 = vmatpush1.msra.mxu0 0.0
    %3687 = vmatprep.subr.mxu0 0.0
    %3688 = vmatpush1.msra.mxu0 0.0
    %3689 = vmatprep.subr.mxu0 0.0
    %3690 = vmatpush1.msra.mxu0 0.0
    %3691 = vmatprep.subr.mxu0 0.0
    %3692 = vmatpush1.msra.mxu0 0.0
    %3693 = vmatprep.subr.mxu0 0.0
    %3694 = vmatpush1.msra.mxu0 0.0
    %3695 = vmatprep.subr.mxu0 0.0
    %3696 = vmatpush1.msra.mxu0 0.0
    %3697 = vmatprep.subr.mxu0 0.0
    %3698 = vmatpush1.msra.mxu0 0.0
    %3699 = vmatprep.subr.mxu0 0.0
    %3700 = vmatpush1.msra.mxu0 0.0
    %3701 = vmatprep.subr.mxu0 0.0
    %3702 = vmatpush1.msra.mxu0 0.0
    %3703 = vmatprep.subr.mxu0 0.0
    %3704 = vmatpush1.msra.mxu0 0.0
    %3705 = vmatprep.subr.mxu0 0.0
    %3706 = vmatpush1.msra.mxu0 0.0
    %3707 = vmatprep.subr.mxu0 0.0
    %3708 = vmatpush1.msra.mxu0 0.0
    %3709 = vmatprep.subr.mxu0 0.0
    %3710 = vmatpush1.msra.mxu0 0.0
    %3711 = vmatprep.subr.mxu0 0.0
    %3712 = vmatpush1.msra.mxu0 0.0
    %3713 = vmatprep.subr.mxu0 0.0
    %3714 = vmatpush1.msra.mxu0 0.0
    %3715 = vmatprep.subr.mxu0 0.0
    %3716 = vmatpush1.msra.mxu0 0.0
    %3717 = vmatprep.subr.mxu0 0.0
    %3718 = vmatpush1.msra.mxu0 0.0
    %3719 = vmatprep.subr.mxu0 0.0
    %3720 = vmatpush1.msra.mxu0 0.0
    %3721 = vmatprep.mubr.f32.mxu0 0.0
    %3722 = vmatmul.mubr.f32.gmra.mrb[0].mxu0 %v3655
    %v3723 = vpop.f32.mrb[0].mxu0
    %v3724 = vadd.f32 0.0, %v3723
    %v3725 = vpop.f32.mrb[0].mxu0
    %3726 = vdwg.mxu0
    %v3727 = vadd.f32 %v3559, %v3724
    %v3729 = vlaneseq
    %v3730 = vshrl.u32 %v3729, 7
    %v3731 = vsub.s32 0, %v3730
    %v3732 = vrot.slane %v3057, %v3731
    %v3735 = vsel %vm99, %v3727, 0
    %v3738 = vsel %vm99, %v3053, 0
    %v3741 = vsel %vm99, %v3054, 0
    %v3744 = vsel %vm99, %v3055, 0
    %v3747 = vsel %vm99, %v3056, 0
    %3749 = vmatprep.subr.mxu0 0.0
    %3750 = vmatpush1.xpose.msra.mxu0 %v3738
    %3751 = vmatprep.subr.mxu0 0.0
    %3752 = vmatpush1.xpose.msra.mxu0 %v3741
    %3753 = vmatprep.subr.mxu0 0.0
    %3754 = vmatpush1.xpose.msra.mxu0 %v3744
    %3755 = vmatprep.subr.mxu0 0.0
    %3756 = vmatpush1.xpose.msra.mxu0 %v3747
    %3757 = vmatprep.subr.mxu0 0.0
    %3758 = vmatpush1.xpose.msra.mxu0 0.0
    %3759 = vmatprep.subr.mxu0 0.0
    %3760 = vmatpush1.xpose.msra.mxu0 0.0
    %3761 = vmatprep.subr.mxu0 0.0
    %3762 = vmatpush1.xpose.msra.mxu0 0.0
    %3763 = vmatprep.subr.mxu0 0.0
    %3764 = vmatpush1.xpose.msra.mxu0 0.0
    %3765 = vmatprep.subr.mxu0 0.0
    %3766 = vmatpush1.xpose.msra.mxu0 0.0
    %3767 = vmatprep.subr.mxu0 0.0
    %3768 = vmatpush1.xpose.msra.mxu0 0.0
    %3769 = vmatprep.subr.mxu0 0.0
    %3770 = vmatpush1.xpose.msra.mxu0 0.0
    %3771 = vmatprep.subr.mxu0 0.0
    %3772 = vmatpush1.xpose.msra.mxu0 0.0
    %3773 = vmatprep.subr.mxu0 0.0
    %3774 = vmatpush1.xpose.msra.mxu0 0.0
    %3775 = vmatprep.subr.mxu0 0.0
    %3776 = vmatpush1.xpose.msra.mxu0 0.0
    %3777 = vmatprep.subr.mxu0 0.0
    %3778 = vmatpush1.xpose.msra.mxu0 0.0
    %3779 = vmatprep.subr.mxu0 0.0
    %3780 = vmatpush1.xpose.msra.mxu0 0.0
    %3781 = vmatprep.subr.mxu0 0.0
    %3782 = vmatpush1.xpose.msra.mxu0 0.0
    %3783 = vmatprep.subr.mxu0 0.0
    %3784 = vmatpush1.xpose.msra.mxu0 0.0
    %3785 = vmatprep.subr.mxu0 0.0
    %3786 = vmatpush1.xpose.msra.mxu0 0.0
    %3787 = vmatprep.subr.mxu0 0.0
    %3788 = vmatpush1.xpose.msra.mxu0 0.0
    %3789 = vmatprep.subr.mxu0 0.0
    %3790 = vmatpush1.xpose.msra.mxu0 0.0
    %3791 = vmatprep.subr.mxu0 0.0
    %3792 = vmatpush1.xpose.msra.mxu0 0.0
    %3793 = vmatprep.subr.mxu0 0.0
    %3794 = vmatpush1.xpose.msra.mxu0 0.0
    %3795 = vmatprep.subr.mxu0 0.0
    %3796 = vmatpush1.xpose.msra.mxu0 0.0
    %3797 = vmatprep.subr.mxu0 0.0
    %3798 = vmatpush1.xpose.msra.mxu0 0.0
    %3799 = vmatprep.subr.mxu0 0.0
    %3800 = vmatpush1.xpose.msra.mxu0 0.0
    %3801 = vmatprep.subr.mxu0 0.0
    %3802 = vmatpush1.xpose.msra.mxu0 0.0
    %3803 = vmatprep.subr.mxu0 0.0
    %3804 = vmatpush1.xpose.msra.mxu0 0.0
    %3805 = vmatprep.subr.mxu0 0.0
    %3806 = vmatpush1.xpose.msra.mxu0 0.0
    %3807 = vmatprep.subr.mxu0 0.0
    %3808 = vmatpush1.xpose.msra.mxu0 0.0
    %3809 = vmatprep.subr.mxu0 0.0
    %3810 = vmatpush1.xpose.msra.mxu0 0.0
    %3811 = vmatprep.subr.mxu0 0.0
    %3812 = vmatpush1.xpose.msra.mxu0 0.0
    %3813 = vmatprep.mubr.f32.mxu0 0.0
    %3814 = vmatmul.mubr.f32.gmra.mrb[0].mxu0 %v3735
    %v3815 = vpop.f32.mrb[0].mxu0
    %v3816 = vadd.f32 %v3732, %v3815
    %v3817 = vpop.f32.mrb[0].mxu0
    %3818 = vdwg.mxu0
    %v3819 = vld [vmem:[%s14] sm:$0xff]
    %v3820 = vld [vmem:[%s14 + $0x8] sm:$0xff]
    %v3821 = vld [vmem:[%s15] sm:$0x1]
    %v3822 = vld [vmem:[%s16] sm:$0xff]
    %v3823 = vld [vmem:[%s16 + $0x8] sm:$0xff]
    %v3824 = vld [vmem:[%s16 + $0x10] sm:$0xff]
    %v3825 = vld [vmem:[%s16 + $0x18] sm:$0xff]
    %v3826 = vld [vmem:[%s17] sm:$0x1]
    %v3828 = vlaneseq
    %v3829 = vshrl.u32 %v3828, 7
    %v3830 = vsub.s32 0, %v3829
    %v3831 = vrot.slane %v3821, %v3830
    %v3834 = vsel %vm99, %v3816, 0
    %v3837 = vsel %vm99, %v3819, 0
    %v3840 = vsel %vm99, %v3820, 0
    %3842 = vmatprep.subr.mxu0 0.0
    %3843 = vmatpush1.xpose.msra.mxu0 %v3837
    %3844 = vmatprep.subr.mxu0 0.0
    %3845 = vmatpush1.xpose.msra.mxu0 %v3840
    %3846 = vmatprep.subr.mxu0 0.0
    %3847 = vmatpush1.xpose.msra.mxu0 0.0
    %3848 = vmatprep.subr.mxu0 0.0
    %3849 = vmatpush1.xpose.msra.mxu0 0.0
    %3850 = vmatprep.subr.mxu0 0.0
    %3851 = vmatpush1.xpose.msra.mxu0 0.0
    %3852 = vmatprep.subr.mxu0 0.0
    %3853 = vmatpush1.xpose.msra.mxu0 0.0
    %3854 = vmatprep.subr.mxu0 0.0
    %3855 = vmatpush1.xpose.msra.mxu0 0.0
    %3856 = vmatprep.subr.mxu0 0.0
    %3857 = vmatpush1.xpose.msra.mxu0 0.0
    %3858 = vmatprep.subr.mxu0 0.0
    %3859 = vmatpush1.xpose.msra.mxu0 0.0
    %3860 = vmatprep.subr.mxu0 0.0
    %3861 = vmatpush1.xpose.msra.mxu0 0.0
    %3862 = vmatprep.subr.mxu0 0.0
    %3863 = vmatpush1.xpose.msra.mxu0 0.0
    %3864 = vmatprep.subr.mxu0 0.0
    %3865 = vmatpush1.xpose.msra.mxu0 0.0
    %3866 = vmatprep.subr.mxu0 0.0
    %3867 = vmatpush1.xpose.msra.mxu0 0.0
    %3868 = vmatprep.subr.mxu0 0.0
    %3869 = vmatpush1.xpose.msra.mxu0 0.0
    %3870 = vmatprep.subr.mxu0 0.0
    %3871 = vmatpush1.xpose.msra.mxu0 0.0
    %3872 = vmatprep.subr.mxu0 0.0
    %3873 = vmatpush1.xpose.msra.mxu0 0.0
    %3874 = vmatprep.subr.mxu0 0.0
    %3875 = vmatpush1.xpose.msra.mxu0 0.0
    %3876 = vmatprep.subr.mxu0 0.0
    %3877 = vmatpush1.xpose.msra.mxu0 0.0
    %3878 = vmatprep.subr.mxu0 0.0
    %3879 = vmatpush1.xpose.msra.mxu0 0.0
    %3880 = vmatprep.subr.mxu0 0.0
    %3881 = vmatpush1.xpose.msra.mxu0 0.0
    %3882 = vmatprep.subr.mxu0 0.0
    %3883 = vmatpush1.xpose.msra.mxu0 0.0
    %3884 = vmatprep.subr.mxu0 0.0
    %3885 = vmatpush1.xpose.msra.mxu0 0.0
    %3886 = vmatprep.subr.mxu0 0.0
    %3887 = vmatpush1.xpose.msra.mxu0 0.0
    %3888 = vmatprep.subr.mxu0 0.0
    %3889 = vmatpush1.xpose.msra.mxu0 0.0
    %3890 = vmatprep.subr.mxu0 0.0
    %3891 = vmatpush1.xpose.msra.mxu0 0.0
    %3892 = vmatprep.subr.mxu0 0.0
    %3893 = vmatpush1.xpose.msra.mxu0 0.0
    %3894 = vmatprep.subr.mxu0 0.0
    %3895 = vmatpush1.xpose.msra.mxu0 0.0
    %3896 = vmatprep.subr.mxu0 0.0
    %3897 = vmatpush1.xpose.msra.mxu0 0.0
    %3898 = vmatprep.subr.mxu0 0.0
    %3899 = vmatpush1.xpose.msra.mxu0 0.0
    %3900 = vmatprep.subr.mxu0 0.0
    %3901 = vmatpush1.xpose.msra.mxu0 0.0
    %3902 = vmatprep.subr.mxu0 0.0
    %3903 = vmatpush1.xpose.msra.mxu0 0.0
    %3904 = vmatprep.subr.mxu0 0.0
    %3905 = vmatpush1.xpose.msra.mxu0 0.0
    %3906 = vmatprep.mubr.f32.mxu0 0.0
    %3907 = vmatmul.mubr.f32.gmra.mrb[0].mxu0 %v3834
    %v3908 = vpop.f32.mrb[0].mxu0
    %v3909 = vadd.f32 %v3831, %v3908
    %v3910 = vpop.f32.mrb[0].mxu0
    %3911 = vdwg.mxu0
    %v3912 = vmax.f32 %v3909, 0.0
    %v3914 = vlaneseq
    %v3915 = vshrl.u32 %v3914, 7
    %v3916 = vsub.s32 0, %v3915
    %v3917 = vrot.slane %v3826, %v3916
    %v3920 = vsel %vm1141, %v3912, 0
    %v3923 = vsel %vm1141, %v3822, 0
    %v3926 = vsel %vm1141, %v3823, 0
    %v3929 = vsel %vm1141, %v3824, 0
    %v3932 = vsel %vm1141, %v3825, 0
    %3934 = vmatprep.subr.mxu0 0.0
    %3935 = vmatpush1.xpose.msra.mxu0 %v3923
    %3936 = vmatprep.subr.mxu0 0.0
    %3937 = vmatpush1.xpose.msra.mxu0 %v3926
    %3938 = vmatprep.subr.mxu0 0.0
    %3939 = vmatpush1.xpose.msra.mxu0 %v3929
    %3940 = vmatprep.subr.mxu0 0.0
    %3941 = vmatpush1.xpose.msra.mxu0 %v3932
    %3942 = vmatprep.subr.mxu0 0.0
    %3943 = vmatpush1.xpose.msra.mxu0 0.0
    %3944 = vmatprep.subr.mxu0 0.0
    %3945 = vmatpush1.xpose.msra.mxu0 0.0
    %3946 = vmatprep.subr.mxu0 0.0
    %3947 = vmatpush1.xpose.msra.mxu0 0.0
    %3948 = vmatprep.subr.mxu0 0.0
    %3949 = vmatpush1.xpose.msra.mxu0 0.0
    %3950 = vmatprep.subr.mxu0 0.0
    %3951 = vmatpush1.xpose.msra.mxu0 0.0
    %3952 = vmatprep.subr.mxu0 0.0
    %3953 = vmatpush1.xpose.msra.mxu0 0.0
    %3954 = vmatprep.subr.mxu0 0.0
    %3955 = vmatpush1.xpose.msra.mxu0 0.0
    %3956 = vmatprep.subr.mxu0 0.0
    %3957 = vmatpush1.xpose.msra.mxu0 0.0
    %3958 = vmatprep.subr.mxu0 0.0
    %3959 = vmatpush1.xpose.msra.mxu0 0.0
    %3960 = vmatprep.subr.mxu0 0.0
    %3961 = vmatpush1.xpose.msra.mxu0 0.0
    %3962 = vmatprep.subr.mxu0 0.0
    %3963 = vmatpush1.xpose.msra.mxu0 0.0
    %3964 = vmatprep.subr.mxu0 0.0
    %3965 = vmatpush1.xpose.msra.mxu0 0.0
    %3966 = vmatprep.subr.mxu0 0.0
    %3967 = vmatpush1.xpose.msra.mxu0 0.0
    %3968 = vmatprep.subr.mxu0 0.0
    %3969 = vmatpush1.xpose.msra.mxu0 0.0
    %3970 = vmatprep.subr.mxu0 0.0
    %3971 = vmatpush1.xpose.msra.mxu0 0.0
    %3972 = vmatprep.subr.mxu0 0.0
    %3973 = vmatpush1.xpose.msra.mxu0 0.0
    %3974 = vmatprep.subr.mxu0 0.0
    %3975 = vmatpush1.xpose.msra.mxu0 0.0
    %3976 = vmatprep.subr.mxu0 0.0
    %3977 = vmatpush1.xpose.msra.mxu0 0.0
    %3978 = vmatprep.subr.mxu0 0.0
    %3979 = vmatpush1.xpose.msra.mxu0 0.0
    %3980 = vmatprep.subr.mxu0 0.0
    %3981 = vmatpush1.xpose.msra.mxu0 0.0
    %3982 = vmatprep.subr.mxu0 0.0
    %3983 = vmatpush1.xpose.msra.mxu0 0.0
    %3984 = vmatprep.subr.mxu0 0.0
    %3985 = vmatpush1.xpose.msra.mxu0 0.0
    %3986 = vmatprep.subr.mxu0 0.0
    %3987 = vmatpush1.xpose.msra.mxu0 0.0
    %3988 = vmatprep.subr.mxu0 0.0
    %3989 = vmatpush1.xpose.msra.mxu0 0.0
    %3990 = vmatprep.subr.mxu0 0.0
    %3991 = vmatpush1.xpose.msra.mxu0 0.0
    %3992 = vmatprep.subr.mxu0 0.0
    %3993 = vmatpush1.xpose.msra.mxu0 0.0
    %3994 = vmatprep.subr.mxu0 0.0
    %3995 = vmatpush1.xpose.msra.mxu0 0.0
    %3996 = vmatprep.subr.mxu0 0.0
    %3997 = vmatpush1.xpose.msra.mxu0 0.0
    %3998 = vmatprep.mubr.f32.mxu0 0.0
    %3999 = vmatmul.mubr.f32.gmra.mrb[0].mxu0 %v3920
    %v4000 = vpop.f32.mrb[0].mxu0
    %v4001 = vadd.f32 %v3917, %v4000
    %v4002 = vpop.f32.mrb[0].mxu0
    %4003 = vdwg.mxu0
    %v4004 = vadd.f32 %v3816, %v4001
    %v4005 = vadd.f32 %v4004, %v2878
    %v4006 = vld [vmem:[%s1229] sm:$0x1]
    %v4007 = vld [vmem:[%s1231] sm:$0x1]
    %v4008 = vsel %vm99, %v4005, 0.0
    %4009 = vadd.xlane.f32.xlu0 %v4008
    %v4010 = vpop.xlane.xlu0 %4009
    %v4011 = vmul.f32 %v4010, %v103
    %v4012 = vsub.f32 %v4005, %v4011
    %v4013 = vmul.f32 %v4012, %v4012
    %v4014 = vsel %vm99, %v4013, 0.0
    %4015 = vadd.xlane.f32.xlu0 %v4014
    %v4016 = vpop.xlane.xlu0 %4015
    %v4017 = vmul.f32 %v4016, %v103
    %v4018 = vadd.f32 %v4017, 1e-06
    %v4019 = vrsqrt.pop %v4018
    %v4020 = vmul.f32 %v4012, %v4019
    %v4022 = vlaneseq
    %v4023 = vshrl.u32 %v4022, 7
    %v4024 = vsub.s32 0, %v4023
    %v4025 = vrot.slane %v4006, %v4024
    %v4027 = vmul.f32 %v4020, %v4025
    %v4029 = vlaneseq
    %v4030 = vshrl.u32 %v4029, 7
    %v4031 = vsub.s32 0, %v4030
    %v4032 = vrot.slane %v4007, %v4031
    %v4034 = vadd.f32 %v4027, %v4032
    %v4035 = vld [vmem:[%s1260] sm:$0x1]
    %v4036 = vld [vmem:[%s1262] sm:$0xff]
    %v4037 = vld [vmem:[%s1262 + $0x8] sm:$0xff]
    %v4038 = vld [vmem:[%s1262 + $0x10] sm:$0xff]
    %v4039 = vld [vmem:[%s1262 + $0x18] sm:$0xff]
    %v4041 = vlaneseq
    %v4042 = vshrl.u32 %v4041, 7
    %v4043 = vsub.s32 0, %v4042
    %v4044 = vrot.slane %v4035, %v4043
    %v4047 = vsel %vm99, %v4034, 0
    %v4050 = vsel %vm99, %v4036, 0
    %v4053 = vsel %vm99, %v4037, 0
    %v4056 = vsel %vm99, %v4038, 0
    %v4059 = vsel %vm99, %v4039, 0
    %4061 = vmatprep.subr.mxu0 0.0
    %4062 = vmatpush1.xpose.msra.mxu0 %v4050
    %4063 = vmatprep.subr.mxu0 0.0
    %4064 = vmatpush1.xpose.msra.mxu0 %v4053
    %4065 = vmatprep.subr.mxu0 0.0
    %4066 = vmatpush1.xpose.msra.mxu0 %v4056
    %4067 = vmatprep.subr.mxu0 0.0
    %4068 = vmatpush1.xpose.msra.mxu0 %v4059
    %4069 = vmatprep.subr.mxu0 0.0
    %4070 = vmatpush1.xpose.msra.mxu0 0.0
    %4071 = vmatprep.subr.mxu0 0.0
    %4072 = vmatpush1.xpose.msra.mxu0 0.0
    %4073 = vmatprep.subr.mxu0 0.0
    %4074 = vmatpush1.xpose.msra.mxu0 0.0
    %4075 = vmatprep.subr.mxu0 0.0
    %4076 = vmatpush1.xpose.msra.mxu0 0.0
    %4077 = vmatprep.subr.mxu0 0.0
    %4078 = vmatpush1.xpose.msra.mxu0 0.0
    %4079 = vmatprep.subr.mxu0 0.0
    %4080 = vmatpush1.xpose.msra.mxu0 0.0
    %4081 = vmatprep.subr.mxu0 0.0
    %4082 = vmatpush1.xpose.msra.mxu0 0.0
    %4083 = vmatprep.subr.mxu0 0.0
    %4084 = vmatpush1.xpose.msra.mxu0 0.0
    %4085 = vmatprep.subr.mxu0 0.0
    %4086 = vmatpush1.xpose.msra.mxu0 0.0
    %4087 = vmatprep.subr.mxu0 0.0
    %4088 = vmatpush1.xpose.msra.mxu0 0.0
    %4089 = vmatprep.subr.mxu0 0.0
    %4090 = vmatpush1.xpose.msra.mxu0 0.0
    %4091 = vmatprep.subr.mxu0 0.0
    %4092 = vmatpush1.xpose.msra.mxu0 0.0
    %4093 = vmatprep.subr.mxu0 0.0
    %4094 = vmatpush1.xpose.msra.mxu0 0.0
    %4095 = vmatprep.subr.mxu0 0.0
    %4096 = vmatpush1.xpose.msra.mxu0 0.0
    %4097 = vmatprep.subr.mxu0 0.0
    %4098 = vmatpush1.xpose.msra.mxu0 0.0
    %4099 = vmatprep.subr.mxu0 0.0
    %4100 = vmatpush1.xpose.msra.mxu0 0.0
    %4101 = vmatprep.subr.mxu0 0.0
    %4102 = vmatpush1.xpose.msra.mxu0 0.0
    %4103 = vmatprep.subr.mxu0 0.0
    %4104 = vmatpush1.xpose.msra.mxu0 0.0
    %4105 = vmatprep.subr.mxu0 0.0
    %4106 = vmatpush1.xpose.msra.mxu0 0.0
    %4107 = vmatprep.subr.mxu0 0.0
    %4108 = vmatpush1.xpose.msra.mxu0 0.0
    %4109 = vmatprep.subr.mxu0 0.0
    %4110 = vmatpush1.xpose.msra.mxu0 0.0
    %4111 = vmatprep.subr.mxu0 0.0
    %4112 = vmatpush1.xpose.msra.mxu0 0.0
    %4113 = vmatprep.subr.mxu0 0.0
    %4114 = vmatpush1.xpose.msra.mxu0 0.0
    %4115 = vmatprep.subr.mxu0 0.0
    %4116 = vmatpush1.xpose.msra.mxu0 0.0
    %4117 = vmatprep.subr.mxu0 0.0
    %4118 = vmatpush1.xpose.msra.mxu0 0.0
    %4119 = vmatprep.subr.mxu0 0.0
    %4120 = vmatpush1.xpose.msra.mxu0 0.0
    %4121 = vmatprep.subr.mxu0 0.0
    %4122 = vmatpush1.xpose.msra.mxu0 0.0
    %4123 = vmatprep.subr.mxu0 0.0
    %4124 = vmatpush1.xpose.msra.mxu0 0.0
    %4125 = vmatprep.mubr.f32.mxu0 0.0
    %4126 = vmatmul.mubr.f32.gmra.mrb[0].mxu0 %v4047
    %v4127 = vpop.f32.mrb[0].mxu0
    %v4128 = vadd.f32 %v4044, %v4127
    %v4129 = vpop.f32.mrb[0].mxu0
    %4130 = vdwg.mxu0
    %v4131 = vmul.f32 %v4128, 0.35355338
    %v4132 = vld [vmem:[%s1262 + $0x20] sm:$0xff]
    %v4133 = vld [vmem:[%s1262 + $0x28] sm:$0xff]
    %v4134 = vld [vmem:[%s1262 + $0x30] sm:$0xff]
    %v4135 = vld [vmem:[%s1262 + $0x38] sm:$0xff]
    %v4136 = vld [vmem:[%s1262 + $0x40] sm:$0xff]
    %v4137 = vld [vmem:[%s1262 + $0x48] sm:$0xff]
    %v4138 = vld [vmem:[%s1262 + $0x50] sm:$0xff]
    %v4139 = vld [vmem:[%s1262 + $0x58] sm:$0xff]
    %4140 = vrot.lane.b32.xlu0 %v4044, 96
    %v4141 = vpop.permute.xlu0 %4140
    %v4144 = vsel %vm99, %v2880, 0
    %v4147 = vsel %vm99, %v4132, 0
    %v4150 = vsel %vm99, %v4133, 0
    %v4153 = vsel %vm99, %v4134, 0
    %v4156 = vsel %vm99, %v4135, 0
    %v4159 = vsel %vm99, %v4136, 0
    %v4162 = vsel %vm99, %v4137, 0
    %v4165 = vsel %vm99, %v4138, 0
    %v4168 = vsel %vm99, %v4139, 0
    %4170 = vmatprep.subr.mxu0 0.0
    %4171 = vmatpush1.xpose.msra.mxu0 %v4147
    %4172 = vmatprep.subr.mxu0 0.0
    %4173 = vmatpush1.xpose.msra.mxu0 %v4150
    %4174 = vmatprep.subr.mxu0 0.0
    %4175 = vmatpush1.xpose.msra.mxu0 %v4153
    %4176 = vmatprep.subr.mxu0 0.0
    %4177 = vmatpush1.xpose.msra.mxu0 %v4156
    %4178 = vmatprep.subr.mxu0 0.0
    %4179 = vmatpush1.xpose.msra.mxu0 %v4159
    %4180 = vmatprep.subr.mxu0 0.0
    %4181 = vmatpush1.xpose.msra.mxu0 %v4162
    %4182 = vmatprep.subr.mxu0 0.0
    %4183 = vmatpush1.xpose.msra.mxu0 %v4165
    %4184 = vmatprep.subr.mxu0 0.0
    %4185 = vmatpush1.xpose.msra.mxu0 %v4168
    %4186 = vmatprep.subr.mxu0 0.0
    %4187 = vmatpush1.xpose.msra.mxu0 0.0
    %4188 = vmatprep.subr.mxu0 0.0
    %4189 = vmatpush1.xpose.msra.mxu0 0.0
    %4190 = vmatprep.subr.mxu0 0.0
    %4191 = vmatpush1.xpose.msra.mxu0 0.0
    %4192 = vmatprep.subr.mxu0 0.0
    %4193 = vmatpush1.xpose.msra.mxu0 0.0
    %4194 = vmatprep.subr.mxu0 0.0
    %4195 = vmatpush1.xpose.msra.mxu0 0.0
    %4196 = vmatprep.subr.mxu0 0.0
    %4197 = vmatpush1.xpose.msra.mxu0 0.0
    %4198 = vmatprep.subr.mxu0 0.0
    %4199 = vmatpush1.xpose.msra.mxu0 0.0
    %4200 = vmatprep.subr.mxu0 0.0
    %4201 = vmatpush1.xpose.msra.mxu0 0.0
    %4202 = vmatprep.subr.mxu0 0.0
    %4203 = vmatpush1.xpose.msra.mxu0 0.0
    %4204 = vmatprep.subr.mxu0 0.0
    %4205 = vmatpush1.xpose.msra.mxu0 0.0
    %4206 = vmatprep.subr.mxu0 0.0
    %4207 = vmatpush1.xpose.msra.mxu0 0.0
    %4208 = vmatprep.subr.mxu0 0.0
    %4209 = vmatpush1.xpose.msra.mxu0 0.0
    %4210 = vmatprep.subr.mxu0 0.0
    %4211 = vmatpush1.xpose.msra.mxu0 0.0
    %4212 = vmatprep.subr.mxu0 0.0
    %4213 = vmatpush1.xpose.msra.mxu0 0.0
    %4214 = vmatprep.subr.mxu0 0.0
    %4215 = vmatpush1.xpose.msra.mxu0 0.0
    %4216 = vmatprep.subr.mxu0 0.0
    %4217 = vmatpush1.xpose.msra.mxu0 0.0
    %4218 = vmatprep.subr.mxu0 0.0
    %4219 = vmatpush1.xpose.msra.mxu0 0.0
    %4220 = vmatprep.subr.mxu0 0.0
    %4221 = vmatpush1.xpose.msra.mxu0 0.0
    %4222 = vmatprep.subr.mxu0 0.0
    %4223 = vmatpush1.xpose.msra.mxu0 0.0
    %4224 = vmatprep.subr.mxu0 0.0
    %4225 = vmatpush1.xpose.msra.mxu0 0.0
    %4226 = vmatprep.subr.mxu0 0.0
    %4227 = vmatpush1.xpose.msra.mxu0 0.0
    %4228 = vmatprep.subr.mxu0 0.0
    %4229 = vmatpush1.xpose.msra.mxu0 0.0
    %4230 = vmatprep.subr.mxu0 0.0
    %4231 = vmatpush1.xpose.msra.mxu0 0.0
    %4232 = vmatprep.subr.mxu0 0.0
    %4233 = vmatpush1.xpose.msra.mxu0 0.0
    %4234 = vmatprep.mubr.f32.mxu0 0.0
    %4235 = vmatmul.mubr.f32.gmra.mrb[0].mxu0 %v4144
    %v4236 = vpop.f32.mrb[0].mxu0
    %v4237 = vadd.f32 %v4141, %v4236
    %v4238 = vpop.f32.mrb[0].mxu0
    %4239 = vdwg.mxu0
    %v4240 = vld [vmem:[%s1467] sm:$0xff]
    %v4241 = vld [vmem:[%s1467 + $0x8] sm:$0xff]
    %v4242 = vld [vmem:[%s1467 + $0x10] sm:$0xff]
    %v4243 = vld [vmem:[%s1467 + $0x18] sm:$0xff]
    %v4244 = vld [vmem:[%s1472] sm:$0x1]
    %v4246 = vsel %vm266, %v4131, 0
    %v4249 = vsel %vm266, %v4237, 0
    %4251 = vmatprep.subr.mxu0 0.0
    %4252 = vmatpush1.xpose.msra.mxu0 %v4249
    %4253 = vmatprep.subr.mxu0 0.0
    %4254 = vmatpush1.xpose.msra.mxu0 0.0
    %4255 = vmatprep.subr.mxu0 0.0
    %4256 = vmatpush1.xpose.msra.mxu0 0.0
    %4257 = vmatprep.subr.mxu0 0.0
    %4258 = vmatpush1.xpose.msra.mxu0 0.0
    %4259 = vmatprep.subr.mxu0 0.0
    %4260 = vmatpush1.xpose.msra.mxu0 0.0
    %4261 = vmatprep.subr.mxu0 0.0
    %4262 = vmatpush1.xpose.msra.mxu0 0.0
    %4263 = vmatprep.subr.mxu0 0.0
    %4264 = vmatpush1.xpose.msra.mxu0 0.0
    %4265 = vmatprep.subr.mxu0 0.0
    %4266 = vmatpush1.xpose.msra.mxu0 0.0
    %4267 = vmatprep.subr.mxu0 0.0
    %4268 = vmatpush1.xpose.msra.mxu0 0.0
    %4269 = vmatprep.subr.mxu0 0.0
    %4270 = vmatpush1.xpose.msra.mxu0 0.0
    %4271 = vmatprep.subr.mxu0 0.0
    %4272 = vmatpush1.xpose.msra.mxu0 0.0
    %4273 = vmatprep.subr.mxu0 0.0
    %4274 = vmatpush1.xpose.msra.mxu0 0.0
    %4275 = vmatprep.subr.mxu0 0.0
    %4276 = vmatpush1.xpose.msra.mxu0 0.0
    %4277 = vmatprep.subr.mxu0 0.0
    %4278 = vmatpush1.xpose.msra.mxu0 0.0
    %4279 = vmatprep.subr.mxu0 0.0
    %4280 = vmatpush1.xpose.msra.mxu0 0.0
    %4281 = vmatprep.subr.mxu0 0.0
    %4282 = vmatpush1.xpose.msra.mxu0 0.0
    %4283 = vmatprep.subr.mxu0 0.0
    %4284 = vmatpush1.xpose.msra.mxu0 0.0
    %4285 = vmatprep.subr.mxu0 0.0
    %4286 = vmatpush1.xpose.msra.mxu0 0.0
    %4287 = vmatprep.subr.mxu0 0.0
    %4288 = vmatpush1.xpose.msra.mxu0 0.0
    %4289 = vmatprep.subr.mxu0 0.0
    %4290 = vmatpush1.xpose.msra.mxu0 0.0
    %4291 = vmatprep.subr.mxu0 0.0
    %4292 = vmatpush1.xpose.msra.mxu0 0.0
    %4293 = vmatprep.subr.mxu0 0.0
    %4294 = vmatpush1.xpose.msra.mxu0 0.0
    %4295 = vmatprep.subr.mxu0 0.0
    %4296 = vmatpush1.xpose.msra.mxu0 0.0
    %4297 = vmatprep.subr.mxu0 0.0
    %4298 = vmatpush1.xpose.msra.mxu0 0.0
    %4299 = vmatprep.subr.mxu0 0.0
    %4300 = vmatpush1.xpose.msra.mxu0 0.0
    %4301 = vmatprep.subr.mxu0 0.0
    %4302 = vmatpush1.xpose.msra.mxu0 0.0
    %4303 = vmatprep.subr.mxu0 0.0
    %4304 = vmatpush1.xpose.msra.mxu0 0.0
    %4305 = vmatprep.subr.mxu0 0.0
    %4306 = vmatpush1.xpose.msra.mxu0 0.0
    %4307 = vmatprep.subr.mxu0 0.0
    %4308 = vmatpush1.xpose.msra.mxu0 0.0
    %4309 = vmatprep.subr.mxu0 0.0
    %4310 = vmatpush1.xpose.msra.mxu0 0.0
    %4311 = vmatprep.subr.mxu0 0.0
    %4312 = vmatpush1.xpose.msra.mxu0 0.0
    %4313 = vmatprep.subr.mxu0 0.0
    %4314 = vmatpush1.xpose.msra.mxu0 0.0
    %4315 = vmatprep.mubr.f32.mxu0 0.0
    %4316 = vmatmul.mubr.f32.gmra.mrb[0].mxu0 %v4246
    %v4317 = vpop.f32.mrb[0].mxu0
    %v4318 = vadd.f32 %v2891, %v4317
    %v4319 = vpop.f32.mrb[0].mxu0
    %4320 = vdwg.mxu0
    %v4321 = vsel %vm266, %v4318, -inf
    %4322 = vmax.xlane.f32.xlu0 %v4321
    %v4323 = vpop.xlane.xlu0 %4322
    %v4324 = vsub.f32 %v4318, %v4323
    %v4325 = vmul.f32 %v4324, 1.442695
    %v4326 = vpow.pop %v4325
    %v4327 = vsel %vm266, %v4326, 0.0
    %4328 = vadd.xlane.f32.xlu0 %v4327
    %v4329 = vpop.xlane.xlu0 %4328
    %v4330 = vrcp.pop %v4329
    %v4331 = vmul.f32 %v4326, %v4330
    %v4332 = vmul.f32 %v4237, %v1562
    %4333 = vrot.lane.b32.xlu0 %v4131, 120
    %v4334 = vpop.permute.xlu0 %4333
    %4335 = vrot.lane.b32.xlu0 %v4237, 120
    %v4336 = vpop.permute.xlu0 %4335
    %v4337 = vsel %vm266, %v4334, 0
    %v4339 = vsel %vm266, %v4336, 0
    %4341 = vmatprep.subr.mxu0 0.0
    %4342 = vmatpush1.xpose.msra.mxu0 %v4339
    %4343 = vmatprep.subr.mxu0 0.0
    %4344 = vmatpush1.xpose.msra.mxu0 0.0
    %4345 = vmatprep.subr.mxu0 0.0
    %4346 = vmatpush1.xpose.msra.mxu0 0.0
    %4347 = vmatprep.subr.mxu0 0.0
    %4348 = vmatpush1.xpose.msra.mxu0 0.0
    %4349 = vmatprep.subr.mxu0 0.0
    %4350 = vmatpush1.xpose.msra.mxu0 0.0
    %4351 = vmatprep.subr.mxu0 0.0
    %4352 = vmatpush1.xpose.msra.mxu0 0.0
    %4353 = vmatprep.subr.mxu0 0.0
    %4354 = vmatpush1.xpose.msra.mxu0 0.0
    %4355 = vmatprep.subr.mxu0 0.0
    %4356 = vmatpush1.xpose.msra.mxu0 0.0
    %4357 = vmatprep.subr.mxu0 0.0
    %4358 = vmatpush1.xpose.msra.mxu0 0.0
    %4359 = vmatprep.subr.mxu0 0.0
    %4360 = vmatpush1.xpose.msra.mxu0 0.0
    %4361 = vmatprep.subr.mxu0 0.0
    %4362 = vmatpush1.xpose.msra.mxu0 0.0
    %4363 = vmatprep.subr.mxu0 0.0
    %4364 = vmatpush1.xpose.msra.mxu0 0.0
    %4365 = vmatprep.subr.mxu0 0.0
    %4366 = vmatpush1.xpose.msra.mxu0 0.0
    %4367 = vmatprep.subr.mxu0 0.0
    %4368 = vmatpush1.xpose.msra.mxu0 0.0
    %4369 = vmatprep.subr.mxu0 0.0
    %4370 = vmatpush1.xpose.msra.mxu0 0.0
    %4371 = vmatprep.subr.mxu0 0.0
    %4372 = vmatpush1.xpose.msra.mxu0 0.0
    %4373 = vmatprep.subr.mxu0 0.0
    %4374 = vmatpush1.xpose.msra.mxu0 0.0
    %4375 = vmatprep.subr.mxu0 0.0
    %4376 = vmatpush1.xpose.msra.mxu0 0.0
    %4377 = vmatprep.subr.mxu0 0.0
    %4378 = vmatpush1.xpose.msra.mxu0 0.0
    %4379 = vmatprep.subr.mxu0 0.0
    %4380 = vmatpush1.xpose.msra.mxu0 0.0
    %4381 = vmatprep.subr.mxu0 0.0
    %4382 = vmatpush1.xpose.msra.mxu0 0.0
    %4383 = vmatprep.subr.mxu0 0.0
    %4384 = vmatpush1.xpose.msra.mxu0 0.0
    %4385 = vmatprep.subr.mxu0 0.0
    %4386 = vmatpush1.xpose.msra.mxu0 0.0
    %4387 = vmatprep.subr.mxu0 0.0
    %4388 = vmatpush1.xpose.msra.mxu0 0.0
    %4389 = vmatprep.subr.mxu0 0.0
    %4390 = vmatpush1.xpose.msra.mxu0 0.0
    %4391 = vmatprep.subr.mxu0 0.0
    %4392 = vmatpush1.xpose.msra.mxu0 0.0
    %4393 = vmatprep.subr.mxu0 0.0
    %4394 = vmatpush1.xpose.msra.mxu0 0.0
    %4395 = vmatprep.subr.mxu0 0.0
    %4396 = vmatpush1.xpose.msra.mxu0 0.0
    %4397 = vmatprep.subr.mxu0 0.0
    %4398 = vmatpush1.xpose.msra.mxu0 0.0
    %4399 = vmatprep.subr.mxu0 0.0
    %4400 = vmatpush1.xpose.msra.mxu0 0.0
    %4401 = vmatprep.subr.mxu0 0.0
    %4402 = vmatpush1.xpose.msra.mxu0 0.0
    %4403 = vmatprep.subr.mxu0 0.0
    %4404 = vmatpush1.xpose.msra.mxu0 0.0
    %4405 = vmatprep.mubr.f32.mxu0 0.0
    %4406 = vmatmul.mubr.f32.gmra.mrb[0].mxu0 %v4337
    %v4407 = vpop.f32.mrb[0].mxu0
    %v4408 = vadd.f32 %v2891, %v4407
    %v4409 = vpop.f32.mrb[0].mxu0
    %4410 = vdwg.mxu0
    %v4411 = vsel %vm266, %v4408, -inf
    %4412 = vmax.xlane.f32.xlu0 %v4411
    %v4413 = vpop.xlane.xlu0 %4412
    %v4414 = vsub.f32 %v4408, %v4413
    %v4415 = vmul.f32 %v4414, 1.442695
    %v4416 = vpow.pop %v4415
    %v4417 = vsel %vm266, %v4416, 0.0
    %4418 = vadd.xlane.f32.xlu0 %v4417
    %v4419 = vpop.xlane.xlu0 %4418
    %v4420 = vrcp.pop %v4419
    %v4421 = vmul.f32 %v4416, %v4420
    %v4422 = vmul.f32 %v4237, %v1655
    %4424 = vrot.lane.b32.xlu0 %v4422, 96
    %v4425 = vpop.permute.xlu0 %4424
    %v4428 = vsel %vm266, %v4421, 0
    %4430 = vmatprep.subr.mxu0 0.0
    %4431 = vmatpush1.msra.mxu0 %v4425
    %4432 = vmatprep.subr.mxu0 0.0
    %4433 = vmatpush1.msra.mxu0 0.0
    %4434 = vmatprep.subr.mxu0 0.0
    %4435 = vmatpush1.msra.mxu0 0.0
    %4436 = vmatprep.subr.mxu0 0.0
    %4437 = vmatpush1.msra.mxu0 0.0
    %4438 = vmatprep.subr.mxu0 0.0
    %4439 = vmatpush1.msra.mxu0 0.0
    %4440 = vmatprep.subr.mxu0 0.0
    %4441 = vmatpush1.msra.mxu0 0.0
    %4442 = vmatprep.subr.mxu0 0.0
    %4443 = vmatpush1.msra.mxu0 0.0
    %4444 = vmatprep.subr.mxu0 0.0
    %4445 = vmatpush1.msra.mxu0 0.0
    %4446 = vmatprep.subr.mxu0 0.0
    %4447 = vmatpush1.msra.mxu0 0.0
    %4448 = vmatprep.subr.mxu0 0.0
    %4449 = vmatpush1.msra.mxu0 0.0
    %4450 = vmatprep.subr.mxu0 0.0
    %4451 = vmatpush1.msra.mxu0 0.0
    %4452 = vmatprep.subr.mxu0 0.0
    %4453 = vmatpush1.msra.mxu0 0.0
    %4454 = vmatprep.subr.mxu0 0.0
    %4455 = vmatpush1.msra.mxu0 0.0
    %4456 = vmatprep.subr.mxu0 0.0
    %4457 = vmatpush1.msra.mxu0 0.0
    %4458 = vmatprep.subr.mxu0 0.0
    %4459 = vmatpush1.msra.mxu0 0.0
    %4460 = vmatprep.subr.mxu0 0.0
    %4461 = vmatpush1.msra.mxu0 0.0
    %4462 = vmatprep.subr.mxu0 0.0
    %4463 = vmatpush1.msra.mxu0 0.0
    %4464 = vmatprep.subr.mxu0 0.0
    %4465 = vmatpush1.msra.mxu0 0.0
    %4466 = vmatprep.subr.mxu0 0.0
    %4467 = vmatpush1.msra.mxu0 0.0
    %4468 = vmatprep.subr.mxu0 0.0
    %4469 = vmatpush1.msra.mxu0 0.0
    %4470 = vmatprep.subr.mxu0 0.0
    %4471 = vmatpush1.msra.mxu0 0.0
    %4472 = vmatprep.subr.mxu0 0.0
    %4473 = vmatpush1.msra.mxu0 0.0
    %4474 = vmatprep.subr.mxu0 0.0
    %4475 = vmatpush1.msra.mxu0 0.0
    %4476 = vmatprep.subr.mxu0 0.0
    %4477 = vmatpush1.msra.mxu0 0.0
    %4478 = vmatprep.subr.mxu0 0.0
    %4479 = vmatpush1.msra.mxu0 0.0
    %4480 = vmatprep.subr.mxu0 0.0
    %4481 = vmatpush1.msra.mxu0 0.0
    %4482 = vmatprep.subr.mxu0 0.0
    %4483 = vmatpush1.msra.mxu0 0.0
    %4484 = vmatprep.subr.mxu0 0.0
    %4485 = vmatpush1.msra.mxu0 0.0
    %4486 = vmatprep.subr.mxu0 0.0
    %4487 = vmatpush1.msra.mxu0 0.0
    %4488 = vmatprep.subr.mxu0 0.0
    %4489 = vmatpush1.msra.mxu0 0.0
    %4490 = vmatprep.subr.mxu0 0.0
    %4491 = vmatpush1.msra.mxu0 0.0
    %4492 = vmatprep.subr.mxu0 0.0
    %4493 = vmatpush1.msra.mxu0 0.0
    %4494 = vmatprep.mubr.f32.mxu0 0.0
    %4495 = vmatmul.mubr.f32.gmra.mrb[0].mxu0 %v4428
    %v4496 = vpop.f32.mrb[0].mxu0
    %v4497 = vadd.f32 0.0, %v4496
    %v4498 = vpop.f32.mrb[0].mxu0
    %4499 = vdwg.mxu0
    %4501 = vrot.lane.b32.xlu0 %v4332, 96
    %v4502 = vpop.permute.xlu0 %4501
    %v4505 = vsel %vm266, %v4331, 0
    %4507 = vmatprep.subr.mxu0 0.0
    %4508 = vmatpush1.msra.mxu0 %v4502
    %4509 = vmatprep.subr.mxu0 0.0
    %4510 = vmatpush1.msra.mxu0 0.0
    %4511 = vmatprep.subr.mxu0 0.0
    %4512 = vmatpush1.msra.mxu0 0.0
    %4513 = vmatprep.subr.mxu0 0.0
    %4514 = vmatpush1.msra.mxu0 0.0
    %4515 = vmatprep.subr.mxu0 0.0
    %4516 = vmatpush1.msra.mxu0 0.0
    %4517 = vmatprep.subr.mxu0 0.0
    %4518 = vmatpush1.msra.mxu0 0.0
    %4519 = vmatprep.subr.mxu0 0.0
    %4520 = vmatpush1.msra.mxu0 0.0
    %4521 = vmatprep.subr.mxu0 0.0
    %4522 = vmatpush1.msra.mxu0 0.0
    %4523 = vmatprep.subr.mxu0 0.0
    %4524 = vmatpush1.msra.mxu0 0.0
    %4525 = vmatprep.subr.mxu0 0.0
    %4526 = vmatpush1.msra.mxu0 0.0
    %4527 = vmatprep.subr.mxu0 0.0
    %4528 = vmatpush1.msra.mxu0 0.0
    %4529 = vmatprep.subr.mxu0 0.0
    %4530 = vmatpush1.msra.mxu0 0.0
    %4531 = vmatprep.subr.mxu0 0.0
    %4532 = vmatpush1.msra.mxu0 0.0
    %4533 = vmatprep.subr.mxu0 0.0
    %4534 = vmatpush1.msra.mxu0 0.0
    %4535 = vmatprep.subr.mxu0 0.0
    %4536 = vmatpush1.msra.mxu0 0.0
    %4537 = vmatprep.subr.mxu0 0.0
    %4538 = vmatpush1.msra.mxu0 0.0
    %4539 = vmatprep.subr.mxu0 0.0
    %4540 = vmatpush1.msra.mxu0 0.0
    %4541 = vmatprep.subr.mxu0 0.0
    %4542 = vmatpush1.msra.mxu0 0.0
    %4543 = vmatprep.subr.mxu0 0.0
    %4544 = vmatpush1.msra.mxu0 0.0
    %4545 = vmatprep.subr.mxu0 0.0
    %4546 = vmatpush1.msra.mxu0 0.0
    %4547 = vmatprep.subr.mxu0 0.0
    %4548 = vmatpush1.msra.mxu0 0.0
    %4549 = vmatprep.subr.mxu0 0.0
    %4550 = vmatpush1.msra.mxu0 0.0
    %4551 = vmatprep.subr.mxu0 0.0
    %4552 = vmatpush1.msra.mxu0 0.0
    %4553 = vmatprep.subr.mxu0 0.0
    %4554 = vmatpush1.msra.mxu0 0.0
    %4555 = vmatprep.subr.mxu0 0.0
    %4556 = vmatpush1.msra.mxu0 0.0
    %4557 = vmatprep.subr.mxu0 0.0
    %4558 = vmatpush1.msra.mxu0 0.0
    %4559 = vmatprep.subr.mxu0 0.0
    %4560 = vmatpush1.msra.mxu0 0.0
    %4561 = vmatprep.subr.mxu0 0.0
    %4562 = vmatpush1.msra.mxu0 0.0
    %4563 = vmatprep.subr.mxu0 0.0
    %4564 = vmatpush1.msra.mxu0 0.0
    %4565 = vmatprep.subr.mxu0 0.0
    %4566 = vmatpush1.msra.mxu0 0.0
    %4567 = vmatprep.subr.mxu0 0.0
    %4568 = vmatpush1.msra.mxu0 0.0
    %4569 = vmatprep.subr.mxu0 0.0
    %4570 = vmatpush1.msra.mxu0 0.0
    %4571 = vmatprep.mubr.f32.mxu0 0.0
    %4572 = vmatmul.mubr.f32.gmra.mrb[0].mxu0 %v4505
    %v4573 = vpop.f32.mrb[0].mxu0
    %v4574 = vadd.f32 %v4497, %v4573
    %v4575 = vpop.f32.mrb[0].mxu0
    %4576 = vdwg.mxu0
    %4577 = vrot.lane.b32.xlu0 %v4131, 112
    %v4578 = vpop.permute.xlu0 %4577
    %4579 = vrot.lane.b32.xlu0 %v4237, 112
    %v4580 = vpop.permute.xlu0 %4579
    %v4581 = vsel %vm266, %v4578, 0
    %v4583 = vsel %vm266, %v4580, 0
    %4585 = vmatprep.subr.mxu0 0.0
    %4586 = vmatpush1.xpose.msra.mxu0 %v4583
    %4587 = vmatprep.subr.mxu0 0.0
    %4588 = vmatpush1.xpose.msra.mxu0 0.0
    %4589 = vmatprep.subr.mxu0 0.0
    %4590 = vmatpush1.xpose.msra.mxu0 0.0
    %4591 = vmatprep.subr.mxu0 0.0
    %4592 = vmatpush1.xpose.msra.mxu0 0.0
    %4593 = vmatprep.subr.mxu0 0.0
    %4594 = vmatpush1.xpose.msra.mxu0 0.0
    %4595 = vmatprep.subr.mxu0 0.0
    %4596 = vmatpush1.xpose.msra.mxu0 0.0
    %4597 = vmatprep.subr.mxu0 0.0
    %4598 = vmatpush1.xpose.msra.mxu0 0.0
    %4599 = vmatprep.subr.mxu0 0.0
    %4600 = vmatpush1.xpose.msra.mxu0 0.0
    %4601 = vmatprep.subr.mxu0 0.0
    %4602 = vmatpush1.xpose.msra.mxu0 0.0
    %4603 = vmatprep.subr.mxu0 0.0
    %4604 = vmatpush1.xpose.msra.mxu0 0.0
    %4605 = vmatprep.subr.mxu0 0.0
    %4606 = vmatpush1.xpose.msra.mxu0 0.0
    %4607 = vmatprep.subr.mxu0 0.0
    %4608 = vmatpush1.xpose.msra.mxu0 0.0
    %4609 = vmatprep.subr.mxu0 0.0
    %4610 = vmatpush1.xpose.msra.mxu0 0.0
    %4611 = vmatprep.subr.mxu0 0.0
    %4612 = vmatpush1.xpose.msra.mxu0 0.0
    %4613 = vmatprep.subr.mxu0 0.0
    %4614 = vmatpush1.xpose.msra.mxu0 0.0
    %4615 = vmatprep.subr.mxu0 0.0
    %4616 = vmatpush1.xpose.msra.mxu0 0.0
    %4617 = vmatprep.subr.mxu0 0.0
    %4618 = vmatpush1.xpose.msra.mxu0 0.0
    %4619 = vmatprep.subr.mxu0 0.0
    %4620 = vmatpush1.xpose.msra.mxu0 0.0
    %4621 = vmatprep.subr.mxu0 0.0
    %4622 = vmatpush1.xpose.msra.mxu0 0.0
    %4623 = vmatprep.subr.mxu0 0.0
    %4624 = vmatpush1.xpose.msra.mxu0 0.0
    %4625 = vmatprep.subr.mxu0 0.0
    %4626 = vmatpush1.xpose.msra.mxu0 0.0
    %4627 = vmatprep.subr.mxu0 0.0
    %4628 = vmatpush1.xpose.msra.mxu0 0.0
    %4629 = vmatprep.subr.mxu0 0.0
    %4630 = vmatpush1.xpose.msra.mxu0 0.0
    %4631 = vmatprep.subr.mxu0 0.0
    %4632 = vmatpush1.xpose.msra.mxu0 0.0
    %4633 = vmatprep.subr.mxu0 0.0
    %4634 = vmatpush1.xpose.msra.mxu0 0.0
    %4635 = vmatprep.subr.mxu0 0.0
    %4636 = vmatpush1.xpose.msra.mxu0 0.0
    %4637 = vmatprep.subr.mxu0 0.0
    %4638 = vmatpush1.xpose.msra.mxu0 0.0
    %4639 = vmatprep.subr.mxu0 0.0
    %4640 = vmatpush1.xpose.msra.mxu0 0.0
    %4641 = vmatprep.subr.mxu0 0.0
    %4642 = vmatpush1.xpose.msra.mxu0 0.0
    %4643 = vmatprep.subr.mxu0 0.0
    %4644 = vmatpush1.xpose.msra.mxu0 0.0
    %4645 = vmatprep.subr.mxu0 0.0
    %4646 = vmatpush1.xpose.msra.mxu0 0.0
    %4647 = vmatprep.subr.mxu0 0.0
    %4648 = vmatpush1.xpose.msra.mxu0 0.0
    %4649 = vmatprep.mubr.f32.mxu0 0.0
    %4650 = vmatmul.mubr.f32.gmra.mrb[0].mxu0 %v4581
    %v4651 = vpop.f32.mrb[0].mxu0
    %v4652 = vadd.f32 %v2891, %v4651
    %v4653 = vpop.f32.mrb[0].mxu0
    %4654 = vdwg.mxu0
    %v4655 = vsel %vm266, %v4652, -inf
    %4656 = vmax.xlane.f32.xlu0 %v4655
    %v4657 = vpop.xlane.xlu0 %4656
    %v4658 = vsub.f32 %v4652, %v4657
    %v4659 = vmul.f32 %v4658, 1.442695
    %v4660 = vpow.pop %v4659
    %v4661 = vsel %vm266, %v4660, 0.0
    %4662 = vadd.xlane.f32.xlu0 %v4661
    %v4663 = vpop.xlane.xlu0 %4662
    %v4664 = vrcp.pop %v4663
    %v4665 = vmul.f32 %v4660, %v4664
    %v4666 = vmul.f32 %v4237, %v1902
    %4668 = vrot.lane.b32.xlu0 %v4666, 96
    %v4669 = vpop.permute.xlu0 %4668
    %v4672 = vsel %vm266, %v4665, 0
    %4674 = vmatprep.subr.mxu0 0.0
    %4675 = vmatpush1.msra.mxu0 %v4669
    %4676 = vmatprep.subr.mxu0 0.0
    %4677 = vmatpush1.msra.mxu0 0.0
    %4678 = vmatprep.subr.mxu0 0.0
    %4679 = vmatpush1.msra.mxu0 0.0
    %4680 = vmatprep.subr.mxu0 0.0
    %4681 = vmatpush1.msra.mxu0 0.0
    %4682 = vmatprep.subr.mxu0 0.0
    %4683 = vmatpush1.msra.mxu0 0.0
    %4684 = vmatprep.subr.mxu0 0.0
    %4685 = vmatpush1.msra.mxu0 0.0
    %4686 = vmatprep.subr.mxu0 0.0
    %4687 = vmatpush1.msra.mxu0 0.0
    %4688 = vmatprep.subr.mxu0 0.0
    %4689 = vmatpush1.msra.mxu0 0.0
    %4690 = vmatprep.subr.mxu0 0.0
    %4691 = vmatpush1.msra.mxu0 0.0
    %4692 = vmatprep.subr.mxu0 0.0
    %4693 = vmatpush1.msra.mxu0 0.0
    %4694 = vmatprep.subr.mxu0 0.0
    %4695 = vmatpush1.msra.mxu0 0.0
    %4696 = vmatprep.subr.mxu0 0.0
    %4697 = vmatpush1.msra.mxu0 0.0
    %4698 = vmatprep.subr.mxu0 0.0
    %4699 = vmatpush1.msra.mxu0 0.0
    %4700 = vmatprep.subr.mxu0 0.0
    %4701 = vmatpush1.msra.mxu0 0.0
    %4702 = vmatprep.subr.mxu0 0.0
    %4703 = vmatpush1.msra.mxu0 0.0
    %4704 = vmatprep.subr.mxu0 0.0
    %4705 = vmatpush1.msra.mxu0 0.0
    %4706 = vmatprep.subr.mxu0 0.0
    %4707 = vmatpush1.msra.mxu0 0.0
    %4708 = vmatprep.subr.mxu0 0.0
    %4709 = vmatpush1.msra.mxu0 0.0
    %4710 = vmatprep.subr.mxu0 0.0
    %4711 = vmatpush1.msra.mxu0 0.0
    %4712 = vmatprep.subr.mxu0 0.0
    %4713 = vmatpush1.msra.mxu0 0.0
    %4714 = vmatprep.subr.mxu0 0.0
    %4715 = vmatpush1.msra.mxu0 0.0
    %4716 = vmatprep.subr.mxu0 0.0
    %4717 = vmatpush1.msra.mxu0 0.0
    %4718 = vmatprep.subr.mxu0 0.0
    %4719 = vmatpush1.msra.mxu0 0.0
    %4720 = vmatprep.subr.mxu0 0.0
    %4721 = vmatpush1.msra.mxu0 0.0
    %4722 = vmatprep.subr.mxu0 0.0
    %4723 = vmatpush1.msra.mxu0 0.0
    %4724 = vmatprep.subr.mxu0 0.0
    %4725 = vmatpush1.msra.mxu0 0.0
    %4726 = vmatprep.subr.mxu0 0.0
    %4727 = vmatpush1.msra.mxu0 0.0
    %4728 = vmatprep.subr.mxu0 0.0
    %4729 = vmatpush1.msra.mxu0 0.0
    %4730 = vmatprep.subr.mxu0 0.0
    %4731 = vmatpush1.msra.mxu0 0.0
    %4732 = vmatprep.subr.mxu0 0.0
    %4733 = vmatpush1.msra.mxu0 0.0
    %4734 = vmatprep.subr.mxu0 0.0
    %4735 = vmatpush1.msra.mxu0 0.0
    %4736 = vmatprep.subr.mxu0 0.0
    %4737 = vmatpush1.msra.mxu0 0.0
    %4738 = vmatprep.mubr.f32.mxu0 0.0
    %4739 = vmatmul.mubr.f32.gmra.mrb[0].mxu0 %v4672
    %v4740 = vpop.f32.mrb[0].mxu0
    %v4741 = vadd.f32 0.0, %v4740
    %v4742 = vpop.f32.mrb[0].mxu0
    %4743 = vdwg.mxu0
    %v4744 = vadd.f32 %v4574, %v4741
    %4745 = vrot.lane.b32.xlu0 %v4131, 104
    %v4746 = vpop.permute.xlu0 %4745
    %4747 = vrot.lane.b32.xlu0 %v4237, 104
    %v4748 = vpop.permute.xlu0 %4747
    %v4749 = vsel %vm266, %v4746, 0
    %v4751 = vsel %vm266, %v4748, 0
    %4753 = vmatprep.subr.mxu0 0.0
    %4754 = vmatpush1.xpose.msra.mxu0 %v4751
    %4755 = vmatprep.subr.mxu0 0.0
    %4756 = vmatpush1.xpose.msra.mxu0 0.0
    %4757 = vmatprep.subr.mxu0 0.0
    %4758 = vmatpush1.xpose.msra.mxu0 0.0
    %4759 = vmatprep.subr.mxu0 0.0
    %4760 = vmatpush1.xpose.msra.mxu0 0.0
    %4761 = vmatprep.subr.mxu0 0.0
    %4762 = vmatpush1.xpose.msra.mxu0 0.0
    %4763 = vmatprep.subr.mxu0 0.0
    %4764 = vmatpush1.xpose.msra.mxu0 0.0
    %4765 = vmatprep.subr.mxu0 0.0
    %4766 = vmatpush1.xpose.msra.mxu0 0.0
    %4767 = vmatprep.subr.mxu0 0.0
    %4768 = vmatpush1.xpose.msra.mxu0 0.0
    %4769 = vmatprep.subr.mxu0 0.0
    %4770 = vmatpush1.xpose.msra.mxu0 0.0
    %4771 = vmatprep.subr.mxu0 0.0
    %4772 = vmatpush1.xpose.msra.mxu0 0.0
    %4773 = vmatprep.subr.mxu0 0.0
    %4774 = vmatpush1.xpose.msra.mxu0 0.0
    %4775 = vmatprep.subr.mxu0 0.0
    %4776 = vmatpush1.xpose.msra.mxu0 0.0
    %4777 = vmatprep.subr.mxu0 0.0
    %4778 = vmatpush1.xpose.msra.mxu0 0.0
    %4779 = vmatprep.subr.mxu0 0.0
    %4780 = vmatpush1.xpose.msra.mxu0 0.0
    %4781 = vmatprep.subr.mxu0 0.0
    %4782 = vmatpush1.xpose.msra.mxu0 0.0
    %4783 = vmatprep.subr.mxu0 0.0
    %4784 = vmatpush1.xpose.msra.mxu0 0.0
    %4785 = vmatprep.subr.mxu0 0.0
    %4786 = vmatpush1.xpose.msra.mxu0 0.0
    %4787 = vmatprep.subr.mxu0 0.0
    %4788 = vmatpush1.xpose.msra.mxu0 0.0
    %4789 = vmatprep.subr.mxu0 0.0
    %4790 = vmatpush1.xpose.msra.mxu0 0.0
    %4791 = vmatprep.subr.mxu0 0.0
    %4792 = vmatpush1.xpose.msra.mxu0 0.0
    %4793 = vmatprep.subr.mxu0 0.0
    %4794 = vmatpush1.xpose.msra.mxu0 0.0
    %4795 = vmatprep.subr.mxu0 0.0
    %4796 = vmatpush1.xpose.msra.mxu0 0.0
    %4797 = vmatprep.subr.mxu0 0.0
    %4798 = vmatpush1.xpose.msra.mxu0 0.0
    %4799 = vmatprep.subr.mxu0 0.0
    %4800 = vmatpush1.xpose.msra.mxu0 0.0
    %4801 = vmatprep.subr.mxu0 0.0
    %4802 = vmatpush1.xpose.msra.mxu0 0.0
    %4803 = vmatprep.subr.mxu0 0.0
    %4804 = vmatpush1.xpose.msra.mxu0 0.0
    %4805 = vmatprep.subr.mxu0 0.0
    %4806 = vmatpush1.xpose.msra.mxu0 0.0
    %4807 = vmatprep.subr.mxu0 0.0
    %4808 = vmatpush1.xpose.msra.mxu0 0.0
    %4809 = vmatprep.subr.mxu0 0.0
    %4810 = vmatpush1.xpose.msra.mxu0 0.0
    %4811 = vmatprep.subr.mxu0 0.0
    %4812 = vmatpush1.xpose.msra.mxu0 0.0
    %4813 = vmatprep.subr.mxu0 0.0
    %4814 = vmatpush1.xpose.msra.mxu0 0.0
    %4815 = vmatprep.subr.mxu0 0.0
    %4816 = vmatpush1.xpose.msra.mxu0 0.0
    %4817 = vmatprep.mubr.f32.mxu0 0.0
    %4818 = vmatmul.mubr.f32.gmra.mrb[0].mxu0 %v4749
    %v4819 = vpop.f32.mrb[0].mxu0
    %v4820 = vadd.f32 %v2891, %v4819
    %v4821 = vpop.f32.mrb[0].mxu0
    %4822 = vdwg.mxu0
    %v4823 = vsel %vm266, %v4820, -inf
    %4824 = vmax.xlane.f32.xlu0 %v4823
    %v4825 = vpop.xlane.xlu0 %4824
    %v4826 = vsub.f32 %v4820, %v4825
    %v4827 = vmul.f32 %v4826, 1.442695
    %v4828 = vpow.pop %v4827
    %v4829 = vsel %vm266, %v4828, 0.0
    %4830 = vadd.xlane.f32.xlu0 %v4829
    %v4831 = vpop.xlane.xlu0 %4830
    %v4832 = vrcp.pop %v4831
    %v4833 = vmul.f32 %v4828, %v4832
    %v4834 = vmul.f32 %v4237, %v2073
    %4836 = vrot.lane.b32.xlu0 %v4834, 96
    %v4837 = vpop.permute.xlu0 %4836
    %v4840 = vsel %vm266, %v4833, 0
    %4842 = vmatprep.subr.mxu0 0.0
    %4843 = vmatpush1.msra.mxu0 %v4837
    %4844 = vmatprep.subr.mxu0 0.0
    %4845 = vmatpush1.msra.mxu0 0.0
    %4846 = vmatprep.subr.mxu0 0.0
    %4847 = vmatpush1.msra.mxu0 0.0
    %4848 = vmatprep.subr.mxu0 0.0
    %4849 = vmatpush1.msra.mxu0 0.0
    %4850 = vmatprep.subr.mxu0 0.0
    %4851 = vmatpush1.msra.mxu0 0.0
    %4852 = vmatprep.subr.mxu0 0.0
    %4853 = vmatpush1.msra.mxu0 0.0
    %4854 = vmatprep.subr.mxu0 0.0
    %4855 = vmatpush1.msra.mxu0 0.0
    %4856 = vmatprep.subr.mxu0 0.0
    %4857 = vmatpush1.msra.mxu0 0.0
    %4858 = vmatprep.subr.mxu0 0.0
    %4859 = vmatpush1.msra.mxu0 0.0
    %4860 = vmatprep.subr.mxu0 0.0
    %4861 = vmatpush1.msra.mxu0 0.0
    %4862 = vmatprep.subr.mxu0 0.0
    %4863 = vmatpush1.msra.mxu0 0.0
    %4864 = vmatprep.subr.mxu0 0.0
    %4865 = vmatpush1.msra.mxu0 0.0
    %4866 = vmatprep.subr.mxu0 0.0
    %4867 = vmatpush1.msra.mxu0 0.0
    %4868 = vmatprep.subr.mxu0 0.0
    %4869 = vmatpush1.msra.mxu0 0.0
    %4870 = vmatprep.subr.mxu0 0.0
    %4871 = vmatpush1.msra.mxu0 0.0
    %4872 = vmatprep.subr.mxu0 0.0
    %4873 = vmatpush1.msra.mxu0 0.0
    %4874 = vmatprep.subr.mxu0 0.0
    %4875 = vmatpush1.msra.mxu0 0.0
    %4876 = vmatprep.subr.mxu0 0.0
    %4877 = vmatpush1.msra.mxu0 0.0
    %4878 = vmatprep.subr.mxu0 0.0
    %4879 = vmatpush1.msra.mxu0 0.0
    %4880 = vmatprep.subr.mxu0 0.0
    %4881 = vmatpush1.msra.mxu0 0.0
    %4882 = vmatprep.subr.mxu0 0.0
    %4883 = vmatpush1.msra.mxu0 0.0
    %4884 = vmatprep.subr.mxu0 0.0
    %4885 = vmatpush1.msra.mxu0 0.0
    %4886 = vmatprep.subr.mxu0 0.0
    %4887 = vmatpush1.msra.mxu0 0.0
    %4888 = vmatprep.subr.mxu0 0.0
    %4889 = vmatpush1.msra.mxu0 0.0
    %4890 = vmatprep.subr.mxu0 0.0
    %4891 = vmatpush1.msra.mxu0 0.0
    %4892 = vmatprep.subr.mxu0 0.0
    %4893 = vmatpush1.msra.mxu0 0.0
    %4894 = vmatprep.subr.mxu0 0.0
    %4895 = vmatpush1.msra.mxu0 0.0
    %4896 = vmatprep.subr.mxu0 0.0
    %4897 = vmatpush1.msra.mxu0 0.0
    %4898 = vmatprep.subr.mxu0 0.0
    %4899 = vmatpush1.msra.mxu0 0.0
    %4900 = vmatprep.subr.mxu0 0.0
    %4901 = vmatpush1.msra.mxu0 0.0
    %4902 = vmatprep.subr.mxu0 0.0
    %4903 = vmatpush1.msra.mxu0 0.0
    %4904 = vmatprep.subr.mxu0 0.0
    %4905 = vmatpush1.msra.mxu0 0.0
    %4906 = vmatprep.mubr.f32.mxu0 0.0
    %4907 = vmatmul.mubr.f32.gmra.mrb[0].mxu0 %v4840
    %v4908 = vpop.f32.mrb[0].mxu0
    %v4909 = vadd.f32 0.0, %v4908
    %v4910 = vpop.f32.mrb[0].mxu0
    %4911 = vdwg.mxu0
    %v4912 = vadd.f32 %v4744, %v4909
    %v4914 = vlaneseq
    %v4915 = vshrl.u32 %v4914, 7
    %v4916 = vsub.s32 0, %v4915
    %v4917 = vrot.slane %v4244, %v4916
    %v4920 = vsel %vm99, %v4912, 0
    %v4923 = vsel %vm99, %v4240, 0
    %v4926 = vsel %vm99, %v4241, 0
    %v4929 = vsel %vm99, %v4242, 0
    %v4932 = vsel %vm99, %v4243, 0
    %4934 = vmatprep.subr.mxu0 0.0
    %4935 = vmatpush1.xpose.msra.mxu0 %v4923
    %4936 = vmatprep.subr.mxu0 0.0
    %4937 = vmatpush1.xpose.msra.mxu0 %v4926
    %4938 = vmatprep.subr.mxu0 0.0
    %4939 = vmatpush1.xpose.msra.mxu0 %v4929
    %4940 = vmatprep.subr.mxu0 0.0
    %4941 = vmatpush1.xpose.msra.mxu0 %v4932
    %4942 = vmatprep.subr.mxu0 0.0
    %4943 = vmatpush1.xpose.msra.mxu0 0.0
    %4944 = vmatprep.subr.mxu0 0.0
    %4945 = vmatpush1.xpose.msra.mxu0 0.0
    %4946 = vmatprep.subr.mxu0 0.0
    %4947 = vmatpush1.xpose.msra.mxu0 0.0
    %4948 = vmatprep.subr.mxu0 0.0
    %4949 = vmatpush1.xpose.msra.mxu0 0.0
    %4950 = vmatprep.subr.mxu0 0.0
    %4951 = vmatpush1.xpose.msra.mxu0 0.0
    %4952 = vmatprep.subr.mxu0 0.0
    %4953 = vmatpush1.xpose.msra.mxu0 0.0
    %4954 = vmatprep.subr.mxu0 0.0
    %4955 = vmatpush1.xpose.msra.mxu0 0.0
    %4956 = vmatprep.subr.mxu0 0.0
    %4957 = vmatpush1.xpose.msra.mxu0 0.0
    %4958 = vmatprep.subr.mxu0 0.0
    %4959 = vmatpush1.xpose.msra.mxu0 0.0
    %4960 = vmatprep.subr.mxu0 0.0
    %4961 = vmatpush1.xpose.msra.mxu0 0.0
    %4962 = vmatprep.subr.mxu0 0.0
    %4963 = vmatpush1.xpose.msra.mxu0 0.0
    %4964 = vmatprep.subr.mxu0 0.0
    %4965 = vmatpush1.xpose.msra.mxu0 0.0
    %4966 = vmatprep.subr.mxu0 0.0
    %4967 = vmatpush1.xpose.msra.mxu0 0.0
    %4968 = vmatprep.subr.mxu0 0.0
    %4969 = vmatpush1.xpose.msra.mxu0 0.0
    %4970 = vmatprep.subr.mxu0 0.0
    %4971 = vmatpush1.xpose.msra.mxu0 0.0
    %4972 = vmatprep.subr.mxu0 0.0
    %4973 = vmatpush1.xpose.msra.mxu0 0.0
    %4974 = vmatprep.subr.mxu0 0.0
    %4975 = vmatpush1.xpose.msra.mxu0 0.0
    %4976 = vmatprep.subr.mxu0 0.0
    %4977 = vmatpush1.xpose.msra.mxu0 0.0
    %4978 = vmatprep.subr.mxu0 0.0
    %4979 = vmatpush1.xpose.msra.mxu0 0.0
    %4980 = vmatprep.subr.mxu0 0.0
    %4981 = vmatpush1.xpose.msra.mxu0 0.0
    %4982 = vmatprep.subr.mxu0 0.0
    %4983 = vmatpush1.xpose.msra.mxu0 0.0
    %4984 = vmatprep.subr.mxu0 0.0
    %4985 = vmatpush1.xpose.msra.mxu0 0.0
    %4986 = vmatprep.subr.mxu0 0.0
    %4987 = vmatpush1.xpose.msra.mxu0 0.0
    %4988 = vmatprep.subr.mxu0 0.0
    %4989 = vmatpush1.xpose.msra.mxu0 0.0
    %4990 = vmatprep.subr.mxu0 0.0
    %4991 = vmatpush1.xpose.msra.mxu0 0.0
    %4992 = vmatprep.subr.mxu0 0.0
    %4993 = vmatpush1.xpose.msra.mxu0 0.0
    %4994 = vmatprep.subr.mxu0 0.0
    %4995 = vmatpush1.xpose.msra.mxu0 0.0
    %4996 = vmatprep.subr.mxu0 0.0
    %4997 = vmatpush1.xpose.msra.mxu0 0.0
    %4998 = vmatprep.mubr.f32.mxu0 0.0
    %4999 = vmatmul.mubr.f32.gmra.mrb[0].mxu0 %v4920
    %v5000 = vpop.f32.mrb[0].mxu0
    %v5001 = vadd.f32 %v4917, %v5000
    %v5002 = vpop.f32.mrb[0].mxu0
    %5003 = vdwg.mxu0
    %v5004 = vld [vmem:[%s2245] sm:$0xff]
    %v5005 = vld [vmem:[%s2245 + $0x8] sm:$0xff]
    %v5006 = vld [vmem:[%s2248] sm:$0x1]
    %v5007 = vld [vmem:[%s2250] sm:$0xff]
    %v5008 = vld [vmem:[%s2250 + $0x8] sm:$0xff]
    %v5009 = vld [vmem:[%s2250 + $0x10] sm:$0xff]
    %v5010 = vld [vmem:[%s2250 + $0x18] sm:$0xff]
    %v5011 = vld [vmem:[%s2255] sm:$0x1]
    %v5013 = vlaneseq
    %v5014 = vshrl.u32 %v5013, 7
    %v5015 = vsub.s32 0, %v5014
    %v5016 = vrot.slane %v5006, %v5015
    %v5019 = vsel %vm99, %v5001, 0
    %v5022 = vsel %vm99, %v5004, 0
    %v5025 = vsel %vm99, %v5005, 0
    %5027 = vmatprep.subr.mxu0 0.0
    %5028 = vmatpush1.xpose.msra.mxu0 %v5022
    %5029 = vmatprep.subr.mxu0 0.0
    %5030 = vmatpush1.xpose.msra.mxu0 %v5025
    %5031 = vmatprep.subr.mxu0 0.0
    %5032 = vmatpush1.xpose.msra.mxu0 0.0
    %5033 = vmatprep.subr.mxu0 0.0
    %5034 = vmatpush1.xpose.msra.mxu0 0.0
    %5035 = vmatprep.subr.mxu0 0.0
    %5036 = vmatpush1.xpose.msra.mxu0 0.0
    %5037 = vmatprep.subr.mxu0 0.0
    %5038 = vmatpush1.xpose.msra.mxu0 0.0
    %5039 = vmatprep.subr.mxu0 0.0
    %5040 = vmatpush1.xpose.msra.mxu0 0.0
    %5041 = vmatprep.subr.mxu0 0.0
    %5042 = vmatpush1.xpose.msra.mxu0 0.0
    %5043 = vmatprep.subr.mxu0 0.0
    %5044 = vmatpush1.xpose.msra.mxu0 0.0
    %5045 = vmatprep.subr.mxu0 0.0
    %5046 = vmatpush1.xpose.msra.mxu0 0.0
    %5047 = vmatprep.subr.mxu0 0.0
    %5048 = vmatpush1.xpose.msra.mxu0 0.0
    %5049 = vmatprep.subr.mxu0 0.0
    %5050 = vmatpush1.xpose.msra.mxu0 0.0
    %5051 = vmatprep.subr.mxu0 0.0
    %5052 = vmatpush1.xpose.msra.mxu0 0.0
    %5053 = vmatprep.subr.mxu0 0.0
    %5054 = vmatpush1.xpose.msra.mxu0 0.0
    %5055 = vmatprep.subr.mxu0 0.0
    %5056 = vmatpush1.xpose.msra.mxu0 0.0
    %5057 = vmatprep.subr.mxu0 0.0
    %5058 = vmatpush1.xpose.msra.mxu0 0.0
    %5059 = vmatprep.subr.mxu0 0.0
    %5060 = vmatpush1.xpose.msra.mxu0 0.0
    %5061 = vmatprep.subr.mxu0 0.0
    %5062 = vmatpush1.xpose.msra.mxu0 0.0
    %5063 = vmatprep.subr.mxu0 0.0
    %5064 = vmatpush1.xpose.msra.mxu0 0.0
    %5065 = vmatprep.subr.mxu0 0.0
    %5066 = vmatpush1.xpose.msra.mxu0 0.0
    %5067 = vmatprep.subr.mxu0 0.0
    %5068 = vmatpush1.xpose.msra.mxu0 0.0
    %5069 = vmatprep.subr.mxu0 0.0
    %5070 = vmatpush1.xpose.msra.mxu0 0.0
    %5071 = vmatprep.subr.mxu0 0.0
    %5072 = vmatpush1.xpose.msra.mxu0 0.0
    %5073 = vmatprep.subr.mxu0 0.0
    %5074 = vmatpush1.xpose.msra.mxu0 0.0
    %5075 = vmatprep.subr.mxu0 0.0
    %5076 = vmatpush1.xpose.msra.mxu0 0.0
    %5077 = vmatprep.subr.mxu0 0.0
    %5078 = vmatpush1.xpose.msra.mxu0 0.0
    %5079 = vmatprep.subr.mxu0 0.0
    %5080 = vmatpush1.xpose.msra.mxu0 0.0
    %5081 = vmatprep.subr.mxu0 0.0
    %5082 = vmatpush1.xpose.msra.mxu0 0.0
    %5083 = vmatprep.subr.mxu0 0.0
    %5084 = vmatpush1.xpose.msra.mxu0 0.0
    %5085 = vmatprep.subr.mxu0 0.0
    %5086 = vmatpush1.xpose.msra.mxu0 0.0
    %5087 = vmatprep.subr.mxu0 0.0
    %5088 = vmatpush1.xpose.msra.mxu0 0.0
    %5089 = vmatprep.subr.mxu0 0.0
    %5090 = vmatpush1.xpose.msra.mxu0 0.0
    %5091 = vmatprep.mubr.f32.mxu0 0.0
    %5092 = vmatmul.mubr.f32.gmra.mrb[0].mxu0 %v5019
    %v5093 = vpop.f32.mrb[0].mxu0
    %v5094 = vadd.f32 %v5016, %v5093
    %v5095 = vpop.f32.mrb[0].mxu0
    %5096 = vdwg.mxu0
    %v5097 = vmax.f32 %v5094, 0.0
    %v5099 = vlaneseq
    %v5100 = vshrl.u32 %v5099, 7
    %v5101 = vsub.s32 0, %v5100
    %v5102 = vrot.slane %v5011, %v5101
    %v5105 = vsel %vm1141, %v5097, 0
    %v5108 = vsel %vm1141, %v5007, 0
    %v5111 = vsel %vm1141, %v5008, 0
    %v5114 = vsel %vm1141, %v5009, 0
    %v5117 = vsel %vm1141, %v5010, 0
    %5119 = vmatprep.subr.mxu0 0.0
    %5120 = vmatpush1.xpose.msra.mxu0 %v5108
    %5121 = vmatprep.subr.mxu0 0.0
    %5122 = vmatpush1.xpose.msra.mxu0 %v5111
    %5123 = vmatprep.subr.mxu0 0.0
    %5124 = vmatpush1.xpose.msra.mxu0 %v5114
    %5125 = vmatprep.subr.mxu0 0.0
    %5126 = vmatpush1.xpose.msra.mxu0 %v5117
    %5127 = vmatprep.subr.mxu0 0.0
    %5128 = vmatpush1.xpose.msra.mxu0 0.0
    %5129 = vmatprep.subr.mxu0 0.0
    %5130 = vmatpush1.xpose.msra.mxu0 0.0
    %5131 = vmatprep.subr.mxu0 0.0
    %5132 = vmatpush1.xpose.msra.mxu0 0.0
    %5133 = vmatprep.subr.mxu0 0.0
    %5134 = vmatpush1.xpose.msra.mxu0 0.0
    %5135 = vmatprep.subr.mxu0 0.0
    %5136 = vmatpush1.xpose.msra.mxu0 0.0
    %5137 = vmatprep.subr.mxu0 0.0
    %5138 = vmatpush1.xpose.msra.mxu0 0.0
    %5139 = vmatprep.subr.mxu0 0.0
    %5140 = vmatpush1.xpose.msra.mxu0 0.0
    %5141 = vmatprep.subr.mxu0 0.0
    %5142 = vmatpush1.xpose.msra.mxu0 0.0
    %5143 = vmatprep.subr.mxu0 0.0
    %5144 = vmatpush1.xpose.msra.mxu0 0.0
    %5145 = vmatprep.subr.mxu0 0.0
    %5146 = vmatpush1.xpose.msra.mxu0 0.0
    %5147 = vmatprep.subr.mxu0 0.0
    %5148 = vmatpush1.xpose.msra.mxu0 0.0
    %5149 = vmatprep.subr.mxu0 0.0
    %5150 = vmatpush1.xpose.msra.mxu0 0.0
    %5151 = vmatprep.subr.mxu0 0.0
    %5152 = vmatpush1.xpose.msra.mxu0 0.0
    %5153 = vmatprep.subr.mxu0 0.0
    %5154 = vmatpush1.xpose.msra.mxu0 0.0
    %5155 = vmatprep.subr.mxu0 0.0
    %5156 = vmatpush1.xpose.msra.mxu0 0.0
    %5157 = vmatprep.subr.mxu0 0.0
    %5158 = vmatpush1.xpose.msra.mxu0 0.0
    %5159 = vmatprep.subr.mxu0 0.0
    %5160 = vmatpush1.xpose.msra.mxu0 0.0
    %5161 = vmatprep.subr.mxu0 0.0
    %5162 = vmatpush1.xpose.msra.mxu0 0.0
    %5163 = vmatprep.subr.mxu0 0.0
    %5164 = vmatpush1.xpose.msra.mxu0 0.0
    %5165 = vmatprep.subr.mxu0 0.0
    %5166 = vmatpush1.xpose.msra.mxu0 0.0
    %5167 = vmatprep.subr.mxu0 0.0
    %5168 = vmatpush1.xpose.msra.mxu0 0.0
    %5169 = vmatprep.subr.mxu0 0.0
    %5170 = vmatpush1.xpose.msra.mxu0 0.0
    %5171 = vmatprep.subr.mxu0 0.0
    %5172 = vmatpush1.xpose.msra.mxu0 0.0
    %5173 = vmatprep.subr.mxu0 0.0
    %5174 = vmatpush1.xpose.msra.mxu0 0.0
    %5175 = vmatprep.subr.mxu0 0.0
    %5176 = vmatpush1.xpose.msra.mxu0 0.0
    %5177 = vmatprep.subr.mxu0 0.0
    %5178 = vmatpush1.xpose.msra.mxu0 0.0
    %5179 = vmatprep.subr.mxu0 0.0
    %5180 = vmatpush1.xpose.msra.mxu0 0.0
    %5181 = vmatprep.subr.mxu0 0.0
    %5182 = vmatpush1.xpose.msra.mxu0 0.0
    %5183 = vmatprep.mubr.f32.mxu0 0.0
    %5184 = vmatmul.mubr.f32.gmra.mrb[0].mxu0 %v5105
    %v5185 = vpop.f32.mrb[0].mxu0
    %v5186 = vadd.f32 %v5102, %v5185
    %v5187 = vpop.f32.mrb[0].mxu0
    %5188 = vdwg.mxu0
    %v5189 = vadd.f32 %v5001, %v5186
    %v5190 = vadd.f32 %v5189, %v4005
    %v5191 = vld [vmem:[%s2436] sm:$0x1]
    %v5192 = vld [vmem:[%s2438] sm:$0x1]
    %v5193 = vsel %vm99, %v5190, 0.0
    %5194 = vadd.xlane.f32.xlu0 %v5193
    %v5195 = vpop.xlane.xlu0 %5194
    %v5196 = vmul.f32 %v5195, %v103
    %v5197 = vsub.f32 %v5190, %v5196
    %v5198 = vmul.f32 %v5197, %v5197
    %v5199 = vsel %vm99, %v5198, 0.0
    %5200 = vadd.xlane.f32.xlu0 %v5199
    %v5201 = vpop.xlane.xlu0 %5200
    %v5202 = vmul.f32 %v5201, %v103
    %v5203 = vadd.f32 %v5202, 1e-06
    %v5204 = vrsqrt.pop %v5203
    %v5205 = vmul.f32 %v5197, %v5204
    %v5207 = vlaneseq
    %v5208 = vshrl.u32 %v5207, 7
    %v5209 = vsub.s32 0, %v5208
    %v5210 = vrot.slane %v5191, %v5209
    %v5212 = vmul.f32 %v5205, %v5210
    %v5214 = vlaneseq
    %v5215 = vshrl.u32 %v5214, 7
    %v5216 = vsub.s32 0, %v5215
    %v5217 = vrot.slane %v5192, %v5216
    %v5219 = vadd.f32 %v5212, %v5217
    %v5220 = vld [vmem:[%s10] sm:$0xff]
    %v5221 = vld [vmem:[%s10 + $0x8] sm:$0xff]
    %v5222 = vld [vmem:[%s10 + $0x10] sm:$0xff]
    %v5223 = vld [vmem:[%s10 + $0x18] sm:$0xff]
    %v5224 = vld [vmem:[%s10 + $0x20] sm:$0xff]
    %v5225 = vld [vmem:[%s10 + $0x28] sm:$0xff]
    %v5226 = vld [vmem:[%s10 + $0x30] sm:$0xff]
    %v5227 = vld [vmem:[%s10 + $0x38] sm:$0xff]
    %v5228 = vld [vmem:[%s11] sm:$0x1]
    %v5230 = vlaneseq
    %v5231 = vshrl.u32 %v5230, 7
    %v5232 = vsub.s32 0, %v5231
    %v5233 = vrot.slane %v5228, %v5232
    %v5236 = vsel %vm99, %v5219, 0
    %v5239 = vsel %vm99, %v5220, 0
    %v5242 = vsel %vm99, %v5221, 0
    %v5245 = vsel %vm99, %v5222, 0
    %v5248 = vsel %vm99, %v5223, 0
    %v5251 = vsel %vm99, %v5224, 0
    %v5254 = vsel %vm99, %v5225, 0
    %v5257 = vsel %vm99, %v5226, 0
    %v5260 = vsel %vm99, %v5227, 0
    %5262 = vmatprep.subr.mxu0 0.0
    %5263 = vmatpush1.xpose.msra.mxu0 %v5239
    %5264 = vmatprep.subr.mxu0 0.0
    %5265 = vmatpush1.xpose.msra.mxu0 %v5242
    %5266 = vmatprep.subr.mxu0 0.0
    %5267 = vmatpush1.xpose.msra.mxu0 %v5245
    %5268 = vmatprep.subr.mxu0 0.0
    %5269 = vmatpush1.xpose.msra.mxu0 %v5248
    %5270 = vmatprep.subr.mxu0 0.0
    %5271 = vmatpush1.xpose.msra.mxu0 %v5251
    %5272 = vmatprep.subr.mxu0 0.0
    %5273 = vmatpush1.xpose.msra.mxu0 %v5254
    %5274 = vmatprep.subr.mxu0 0.0
    %5275 = vmatpush1.xpose.msra.mxu0 %v5257
    %5276 = vmatprep.subr.mxu0 0.0
    %5277 = vmatpush1.xpose.msra.mxu0 %v5260
    %5278 = vmatprep.subr.mxu0 0.0
    %5279 = vmatpush1.xpose.msra.mxu0 0.0
    %5280 = vmatprep.subr.mxu0 0.0
    %5281 = vmatpush1.xpose.msra.mxu0 0.0
    %5282 = vmatprep.subr.mxu0 0.0
    %5283 = vmatpush1.xpose.msra.mxu0 0.0
    %5284 = vmatprep.subr.mxu0 0.0
    %5285 = vmatpush1.xpose.msra.mxu0 0.0
    %5286 = vmatprep.subr.mxu0 0.0
    %5287 = vmatpush1.xpose.msra.mxu0 0.0
    %5288 = vmatprep.subr.mxu0 0.0
    %5289 = vmatpush1.xpose.msra.mxu0 0.0
    %5290 = vmatprep.subr.mxu0 0.0
    %5291 = vmatpush1.xpose.msra.mxu0 0.0
    %5292 = vmatprep.subr.mxu0 0.0
    %5293 = vmatpush1.xpose.msra.mxu0 0.0
    %5294 = vmatprep.subr.mxu0 0.0
    %5295 = vmatpush1.xpose.msra.mxu0 0.0
    %5296 = vmatprep.subr.mxu0 0.0
    %5297 = vmatpush1.xpose.msra.mxu0 0.0
    %5298 = vmatprep.subr.mxu0 0.0
    %5299 = vmatpush1.xpose.msra.mxu0 0.0
    %5300 = vmatprep.subr.mxu0 0.0
    %5301 = vmatpush1.xpose.msra.mxu0 0.0
    %5302 = vmatprep.subr.mxu0 0.0
    %5303 = vmatpush1.xpose.msra.mxu0 0.0
    %5304 = vmatprep.subr.mxu0 0.0
    %5305 = vmatpush1.xpose.msra.mxu0 0.0
    %5306 = vmatprep.subr.mxu0 0.0
    %5307 = vmatpush1.xpose.msra.mxu0 0.0
    %5308 = vmatprep.subr.mxu0 0.0
    %5309 = vmatpush1.xpose.msra.mxu0 0.0
    %5310 = vmatprep.subr.mxu0 0.0
    %5311 = vmatpush1.xpose.msra.mxu0 0.0
    %5312 = vmatprep.subr.mxu0 0.0
    %5313 = vmatpush1.xpose.msra.mxu0 0.0
    %5314 = vmatprep.subr.mxu0 0.0
    %5315 = vmatpush1.xpose.msra.mxu0 0.0
    %5316 = vmatprep.subr.mxu0 0.0
    %5317 = vmatpush1.xpose.msra.mxu0 0.0
    %5318 = vmatprep.subr.mxu0 0.0
    %5319 = vmatpush1.xpose.msra.mxu0 0.0
    %5320 = vmatprep.subr.mxu0 0.0
    %5321 = vmatpush1.xpose.msra.mxu0 0.0
    %5322 = vmatprep.subr.mxu0 0.0
    %5323 = vmatpush1.xpose.msra.mxu0 0.0
    %5324 = vmatprep.subr.mxu0 0.0
    %5325 = vmatpush1.xpose.msra.mxu0 0.0
    %5326 = vmatprep.mubr.f32.mxu0 0.0
    %5327 = vmatmul.mubr.f32.gmra.mrb[0].mxu0 %v5236
    %v5328 = vpop.f32.mrb[0].mxu0
    %v5329 = vadd.f32 %v5233, %v5328
    %v5330 = vpop.f32.mrb[0].mxu0
    %5331 = vdwg.mxu0
    %v5332 = vmul.f32 %v5329, %v5329
    %v5333 = vmul.f32 %v5329, %v5332
    %v5334 = vmul.f32 %v5333, 0.044715
    %v5335 = vadd.f32 %v5329, %v5334
    %v5336 = vmul.f32 %v5335, 0.7978846
    %v5337 = vtanh.pop %v5336
    %v5338 = vadd.f32 %v5337, 1.0
    %v5339 = vmul.f32 %v5338, 0.5
    %v5340 = vmul.f32 %v5329, %v5339
    %v5341 = vld [vmem:[%s12] sm:$0xff]
    %v5342 = vld [vmem:[%s12 + $0x8] sm:$0xff]
    %v5343 = vld [vmem:[%s12 + $0x10] sm:$0xff]
    %v5344 = vld [vmem:[%s12 + $0x18] sm:$0xff]
    %v5345 = vld [vmem:[%s13] sm:$0x1]
    %v5347 = vlaneseq
    %v5348 = vshrl.u32 %v5347, 7
    %v5349 = vsub.s32 0, %v5348
    %v5350 = vrot.slane %v5345, %v5349
    %v5353 = vsel %vm2599, %v5340, 0
    %v5356 = vsel %vm2599, %v5341, 0
    %v5359 = vsel %vm2599, %v5342, 0
    %v5362 = vsel %vm2599, %v5343, 0
    %v5365 = vsel %vm2599, %v5344, 0
    %5367 = vmatprep.subr.mxu0 0.0
    %5368 = vmatpush1.xpose.msra.mxu0 %v5356
    %5369 = vmatprep.subr.mxu0 0.0
    %5370 = vmatpush1.xpose.msra.mxu0 %v5359
    %5371 = vmatprep.subr.mxu0 0.0
    %5372 = vmatpush1.xpose.msra.mxu0 %v5362
    %5373 = vmatprep.subr.mxu0 0.0
    %5374 = vmatpush1.xpose.msra.mxu0 %v5365
    %5375 = vmatprep.subr.mxu0 0.0
    %5376 = vmatpush1.xpose.msra.mxu0 0.0
    %5377 = vmatprep.subr.mxu0 0.0
    %5378 = vmatpush1.xpose.msra.mxu0 0.0
    %5379 = vmatprep.subr.mxu0 0.0
    %5380 = vmatpush1.xpose.msra.mxu0 0.0
    %5381 = vmatprep.subr.mxu0 0.0
    %5382 = vmatpush1.xpose.msra.mxu0 0.0
    %5383 = vmatprep.subr.mxu0 0.0
    %5384 = vmatpush1.xpose.msra.mxu0 0.0
    %5385 = vmatprep.subr.mxu0 0.0
    %5386 = vmatpush1.xpose.msra.mxu0 0.0
    %5387 = vmatprep.subr.mxu0 0.0
    %5388 = vmatpush1.xpose.msra.mxu0 0.0
    %5389 = vmatprep.subr.mxu0 0.0
    %5390 = vmatpush1.xpose.msra.mxu0 0.0
    %5391 = vmatprep.subr.mxu0 0.0
    %5392 = vmatpush1.xpose.msra.mxu0 0.0
    %5393 = vmatprep.subr.mxu0 0.0
    %5394 = vmatpush1.xpose.msra.mxu0 0.0
    %5395 = vmatprep.subr.mxu0 0.0
    %5396 = vmatpush1.xpose.msra.mxu0 0.0
    %5397 = vmatprep.subr.mxu0 0.0
    %5398 = vmatpush1.xpose.msra.mxu0 0.0
    %5399 = vmatprep.subr.mxu0 0.0
    %5400 = vmatpush1.xpose.msra.mxu0 0.0
    %5401 = vmatprep.subr.mxu0 0.0
    %5402 = vmatpush1.xpose.msra.mxu0 0.0
    %5403 = vmatprep.subr.mxu0 0.0
    %5404 = vmatpush1.xpose.msra.mxu0 0.0
    %5405 = vmatprep.subr.mxu0 0.0
    %5406 = vmatpush1.xpose.msra.mxu0 0.0
    %5407 = vmatprep.subr.mxu0 0.0
    %5408 = vmatpush1.xpose.msra.mxu0 0.0
    %5409 = vmatprep.subr.mxu0 0.0
    %5410 = vmatpush1.xpose.msra.mxu0 0.0
    %5411 = vmatprep.subr.mxu0 0.0
    %5412 = vmatpush1.xpose.msra.mxu0 0.0
    %5413 = vmatprep.subr.mxu0 0.0
    %5414 = vmatpush1.xpose.msra.mxu0 0.0
    %5415 = vmatprep.subr.mxu0 0.0
    %5416 = vmatpush1.xpose.msra.mxu0 0.0
    %5417 = vmatprep.subr.mxu0 0.0
    %5418 = vmatpush1.xpose.msra.mxu0 0.0
    %5419 = vmatprep.subr.mxu0 0.0
    %5420 = vmatpush1.xpose.msra.mxu0 0.0
    %5421 = vmatprep.subr.mxu0 0.0
    %5422 = vmatpush1.xpose.msra.mxu0 0.0
    %5423 = vmatprep.subr.mxu0 0.0
    %5424 = vmatpush1.xpose.msra.mxu0 0.0
    %5425 = vmatprep.subr.mxu0 0.0
    %5426 = vmatpush1.xpose.msra.mxu0 0.0
    %5427 = vmatprep.subr.mxu0 0.0
    %5428 = vmatpush1.xpose.msra.mxu0 0.0
    %5429 = vmatprep.subr.mxu0 0.0
    %5430 = vmatpush1.xpose.msra.mxu0 0.0
    %5431 = vmatprep.mubr.f32.mxu0 0.0
    %5432 = vmatmul.mubr.f32.gmra.mrb[0].mxu0 %v5353
    %v5433 = vpop.f32.mrb[0].mxu0
    %v5434 = vadd.f32 %v5350, %v5433
    %v5435 = vpop.f32.mrb[0].mxu0
    %5436 = vdwg.mxu0
    %v5437 = vld [vmem:[%s2685] sm:$0xff]
    %v5438 = vld [vmem:[%s2685 + $0x8] sm:$0xff]
    %v5439 = vld [vmem:[%s2688] sm:$0x1]
    %v5440 = vld [vmem:[%s2690] sm:$0xff]
    %v5441 = vld [vmem:[%s2690 + $0x8] sm:$0xff]
    %v5442 = vld [vmem:[%s2690 + $0x10] sm:$0xff]
    %v5443 = vld [vmem:[%s2690 + $0x18] sm:$0xff]
    %v5444 = vld [vmem:[%s2695] sm:$0x1]
    %v5446 = vlaneseq
    %v5447 = vshrl.u32 %v5446, 7
    %v5448 = vsub.s32 0, %v5447
    %v5449 = vrot.slane %v5439, %v5448
    %v5452 = vsel %vm99, %v5434, 0
    %v5455 = vsel %vm99, %v5437, 0
    %v5458 = vsel %vm99, %v5438, 0
    %5460 = vmatprep.subr.mxu0 0.0
    %5461 = vmatpush1.xpose.msra.mxu0 %v5455
    %5462 = vmatprep.subr.mxu0 0.0
    %5463 = vmatpush1.xpose.msra.mxu0 %v5458
    %5464 = vmatprep.subr.mxu0 0.0
    %5465 = vmatpush1.xpose.msra.mxu0 0.0
    %5466 = vmatprep.subr.mxu0 0.0
    %5467 = vmatpush1.xpose.msra.mxu0 0.0
    %5468 = vmatprep.subr.mxu0 0.0
    %5469 = vmatpush1.xpose.msra.mxu0 0.0
    %5470 = vmatprep.subr.mxu0 0.0
    %5471 = vmatpush1.xpose.msra.mxu0 0.0
    %5472 = vmatprep.subr.mxu0 0.0
    %5473 = vmatpush1.xpose.msra.mxu0 0.0
    %5474 = vmatprep.subr.mxu0 0.0
    %5475 = vmatpush1.xpose.msra.mxu0 0.0
    %5476 = vmatprep.subr.mxu0 0.0
    %5477 = vmatpush1.xpose.msra.mxu0 0.0
    %5478 = vmatprep.subr.mxu0 0.0
    %5479 = vmatpush1.xpose.msra.mxu0 0.0
    %5480 = vmatprep.subr.mxu0 0.0
    %5481 = vmatpush1.xpose.msra.mxu0 0.0
    %5482 = vmatprep.subr.mxu0 0.0
    %5483 = vmatpush1.xpose.msra.mxu0 0.0
    %5484 = vmatprep.subr.mxu0 0.0
    %5485 = vmatpush1.xpose.msra.mxu0 0.0
    %5486 = vmatprep.subr.mxu0 0.0
    %5487 = vmatpush1.xpose.msra.mxu0 0.0
    %5488 = vmatprep.subr.mxu0 0.0
    %5489 = vmatpush1.xpose.msra.mxu0 0.0
    %5490 = vmatprep.subr.mxu0 0.0
    %5491 = vmatpush1.xpose.msra.mxu0 0.0
    %5492 = vmatprep.subr.mxu0 0.0
    %5493 = vmatpush1.xpose.msra.mxu0 0.0
    %5494 = vmatprep.subr.mxu0 0.0
    %5495 = vmatpush1.xpose.msra.mxu0 0.0
    %5496 = vmatprep.subr.mxu0 0.0
    %5497 = vmatpush1.xpose.msra.mxu0 0.0
    %5498 = vmatprep.subr.mxu0 0.0
    %5499 = vmatpush1.xpose.msra.mxu0 0.0
    %5500 = vmatprep.subr.mxu0 0.0
    %5501 = vmatpush1.xpose.msra.mxu0 0.0
    %5502 = vmatprep.subr.mxu0 0.0
    %5503 = vmatpush1.xpose.msra.mxu0 0.0
    %5504 = vmatprep.subr.mxu0 0.0
    %5505 = vmatpush1.xpose.msra.mxu0 0.0
    %5506 = vmatprep.subr.mxu0 0.0
    %5507 = vmatpush1.xpose.msra.mxu0 0.0
    %5508 = vmatprep.subr.mxu0 0.0
    %5509 = vmatpush1.xpose.msra.mxu0 0.0
    %5510 = vmatprep.subr.mxu0 0.0
    %5511 = vmatpush1.xpose.msra.mxu0 0.0
    %5512 = vmatprep.subr.mxu0 0.0
    %5513 = vmatpush1.xpose.msra.mxu0 0.0
    %5514 = vmatprep.subr.mxu0 0.0
    %5515 = vmatpush1.xpose.msra.mxu0 0.0
    %5516 = vmatprep.subr.mxu0 0.0
    %5517 = vmatpush1.xpose.msra.mxu0 0.0
    %5518 = vmatprep.subr.mxu0 0.0
    %5519 = vmatpush1.xpose.msra.mxu0 0.0
    %5520 = vmatprep.subr.mxu0 0.0
    %5521 = vmatpush1.xpose.msra.mxu0 0.0
    %5522 = vmatprep.subr.mxu0 0.0
    %5523 = vmatpush1.xpose.msra.mxu0 0.0
    %5524 = vmatprep.mubr.f32.mxu0 0.0
    %5525 = vmatmul.mubr.f32.gmra.mrb[0].mxu0 %v5452
    %v5526 = vpop.f32.mrb[0].mxu0
    %v5527 = vadd.f32 %v5449, %v5526
    %v5528 = vpop.f32.mrb[0].mxu0
    %5529 = vdwg.mxu0
    %v5530 = vmax.f32 %v5527, 0.0
    %v5532 = vlaneseq
    %v5533 = vshrl.u32 %v5532, 7
    %v5534 = vsub.s32 0, %v5533
    %v5535 = vrot.slane %v5444, %v5534
    %v5538 = vsel %vm1141, %v5530, 0
    %v5541 = vsel %vm1141, %v5440, 0
    %v5544 = vsel %vm1141, %v5441, 0
    %v5547 = vsel %vm1141, %v5442, 0
    %v5550 = vsel %vm1141, %v5443, 0
    %5552 = vmatprep.subr.mxu0 0.0
    %5553 = vmatpush1.xpose.msra.mxu0 %v5541
    %5554 = vmatprep.subr.mxu0 0.0
    %5555 = vmatpush1.xpose.msra.mxu0 %v5544
    %5556 = vmatprep.subr.mxu0 0.0
    %5557 = vmatpush1.xpose.msra.mxu0 %v5547
    %5558 = vmatprep.subr.mxu0 0.0
    %5559 = vmatpush1.xpose.msra.mxu0 %v5550
    %5560 = vmatprep.subr.mxu0 0.0
    %5561 = vmatpush1.xpose.msra.mxu0 0.0
    %5562 = vmatprep.subr.mxu0 0.0
    %5563 = vmatpush1.xpose.msra.mxu0 0.0
    %5564 = vmatprep.subr.mxu0 0.0
    %5565 = vmatpush1.xpose.msra.mxu0 0.0
    %5566 = vmatprep.subr.mxu0 0.0
    %5567 = vmatpush1.xpose.msra.mxu0 0.0
    %5568 = vmatprep.subr.mxu0 0.0
    %5569 = vmatpush1.xpose.msra.mxu0 0.0
    %5570 = vmatprep.subr.mxu0 0.0
    %5571 = vmatpush1.xpose.msra.mxu0 0.0
    %5572 = vmatprep.subr.mxu0 0.0
    %5573 = vmatpush1.xpose.msra.mxu0 0.0
    %5574 = vmatprep.subr.mxu0 0.0
    %5575 = vmatpush1.xpose.msra.mxu0 0.0
    %5576 = vmatprep.subr.mxu0 0.0
    %5577 = vmatpush1.xpose.msra.mxu0 0.0
    %5578 = vmatprep.subr.mxu0 0.0
    %5579 = vmatpush1.xpose.msra.mxu0 0.0
    %5580 = vmatprep.subr.mxu0 0.0
    %5581 = vmatpush1.xpose.msra.mxu0 0.0
    %5582 = vmatprep.subr.mxu0 0.0
    %5583 = vmatpush1.xpose.msra.mxu0 0.0
    %5584 = vmatprep.subr.mxu0 0.0
    %5585 = vmatpush1.xpose.msra.mxu0 0.0
    %5586 = vmatprep.subr.mxu0 0.0
    %5587 = vmatpush1.xpose.msra.mxu0 0.0
    %5588 = vmatprep.subr.mxu0 0.0
    %5589 = vmatpush1.xpose.msra.mxu0 0.0
    %5590 = vmatprep.subr.mxu0 0.0
    %5591 = vmatpush1.xpose.msra.mxu0 0.0
    %5592 = vmatprep.subr.mxu0 0.0
    %5593 = vmatpush1.xpose.msra.mxu0 0.0
    %5594 = vmatprep.subr.mxu0 0.0
    %5595 = vmatpush1.xpose.msra.mxu0 0.0
    %5596 = vmatprep.subr.mxu0 0.0
    %5597 = vmatpush1.xpose.msra.mxu0 0.0
    %5598 = vmatprep.subr.mxu0 0.0
    %5599 = vmatpush1.xpose.msra.mxu0 0.0
    %5600 = vmatprep.subr.mxu0 0.0
    %5601 = vmatpush1.xpose.msra.mxu0 0.0
    %5602 = vmatprep.subr.mxu0 0.0
    %5603 = vmatpush1.xpose.msra.mxu0 0.0
    %5604 = vmatprep.subr.mxu0 0.0
    %5605 = vmatpush1.xpose.msra.mxu0 0.0
    %5606 = vmatprep.subr.mxu0 0.0
    %5607 = vmatpush1.xpose.msra.mxu0 0.0
    %5608 = vmatprep.subr.mxu0 0.0
    %5609 = vmatpush1.xpose.msra.mxu0 0.0
    %5610 = vmatprep.subr.mxu0 0.0
    %5611 = vmatpush1.xpose.msra.mxu0 0.0
    %5612 = vmatprep.subr.mxu0 0.0
    %5613 = vmatpush1.xpose.msra.mxu0 0.0
    %5614 = vmatprep.subr.mxu0 0.0
    %5615 = vmatpush1.xpose.msra.mxu0 0.0
    %5616 = vmatprep.mubr.f32.mxu0 0.0
    %5617 = vmatmul.mubr.f32.gmra.mrb[0].mxu0 %v5538
    %v5618 = vpop.f32.mrb[0].mxu0
    %v5619 = vadd.f32 %v5535, %v5618
    %v5620 = vpop.f32.mrb[0].mxu0
    %5621 = vdwg.mxu0
    %v5622 = vadd.f32 %v5434, %v5619
    %v5623 = vadd.f32 %v5622, %v5190
    %s5624 = scalar_lea.vmem [#allocation2], 8
    %5625 = vst.msk [vmem:[%s5624] sm:$0xff] %vm99, %v5623
    // Predicated region
    $region74: #{tpu_custom_call.1} parent=1 // pred_check
      _
    $region75: #{tpu_custom_call.1} parent=1 // pred_check_branch
      %5627 = sbr.rel (0) target = $region77
    $region76: #{tpu_custom_call.1} parent=1 // pred_region
      %s5629 = ssub.s32 256, 256
      %5630 = vsyncadd [#allocation3], %s5629
      %s5631 = sshll.u32 [#allocation2], 4
      %s5632 = int_to_ptr.vmem [resolvable:$true] %s5631
      %5637 = dma.vmem_to_hbm [thread:$0]  %s5632, 256, %s18, [#allocation3], 128, 128, 8
    $region77: #{tpu_custom_call.1} parent=1 // pred_fallthru
      _
    // Predicated region
    $region78: #{tpu_custom_call.1} parent=1 // pred_check
      _
    $region79: #{tpu_custom_call.1} parent=1 // pred_check_branch
      %5639 = sbr.rel (0) target = $region81
    $region80: #{tpu_custom_call.1} parent=1 // pred_region
      %s5641 = ssub.s32 256, 256
      %5642 = vsyncadd [#allocation5], %s5641
      %s5643 = sshll.u32 [#allocation4], 4
      %s5644 = int_to_ptr.vmem [resolvable:$true] %s5643
      %5649 = dma.vmem_to_hbm [thread:$0]  %s5644, 256, %s19, [#allocation5], 128, 128, 8
    $region81: #{tpu_custom_call.1} parent=1 // pred_fallthru
      _
    // Predicated region
    $region82: #{tpu_custom_call.1} parent=1 // pred_check
      _
    $region83: #{tpu_custom_call.1} parent=1 // pred_check_branch
      %5651 = sbr.rel (0) target = $region85
    $region84: #{tpu_custom_call.1} parent=1 // pred_region
      %5652 = dma.done [#allocation3], 256
    $region85: #{tpu_custom_call.1} parent=1 // pred_fallthru
      _
    // Predicated region
    $region86: #{tpu_custom_call.1} parent=1 // pred_check
      _
    $region87: #{tpu_custom_call.1} parent=1 // pred_check_branch
      %5654 = sbr.rel (0) target = $region89
    $region88: #{tpu_custom_call.1} parent=1 // pred_region
      %5655 = dma.done [#allocation5], 256
    $region89: #{tpu_custom_call.1} parent=1 // pred_fallthru
      _
    %5656 = vsyncpa [#allocation3], 1
    %5657 = vsyncpa [#allocation5], 1

</llo_original>
